<compile_context>
chip_gen: v7x
topology: tpu7x:2x2x1
jax: 0.10.0
libtpu: 0.0.40
codegen_flags: <defaults>
</compile_context>

<pallas_src>
import math

import numpy as np
import jax
import jax.numpy as jnp
from jax.experimental import pallas as pl
from jax.experimental.pallas import tpu as pltpu

# ---------------- configuration (small synthetic model) ----------------
NUM_BLOCK = [1, 1, 1, 1, 1]
NUM_CLASSES = 16
ARC_S = 30.0
ARC_M = 0.5
BN_EPS = 1e-5
LEAKY_SLOPE = 0.1          # nn.LeakyReLU(0.1) in conv_batch
STAGE_COUT = [16, 32, 64, 128, 256]


def _leaky(y):
    return jnp.where(y >= 0, y, LEAKY_SLOPE * y)


def _fs(shape):
    """Full-array BlockSpec for a grid=(1,) call (no divisibility constraints)."""
    zeros = (0,) * len(shape)
    return pl.BlockSpec(shape, lambda i, _z=zeros: _z)


# --------------------------- fused kernel body ---------------------------
def _make_fused_kernel(num_block, n_inputs, *, s, cos_m, sin_m, th, mm):
    def _conv3x3(xb, sel_ref, wc_ref, b_ref):
        # sum over the three vertical taps: RowSel[dh] @ X @ ColW[dh]
        acc = None
        for d in range(3):
            t = jnp.dot(sel_ref[d], xb, preferred_element_type=jnp.float32)
            t = jnp.dot(t.astype(jnp.bfloat16), wc_ref[d],
                        preferred_element_type=jnp.float32)
            acc = t if acc is None else acc + t
        return _leaky(acc + b_ref[...])

    def kernel(*refs):
        in_refs = refs[:n_inputs]
        feat_ref, logit_ref = refs[n_inputs:]
        it = iter(in_refs)
        x_ref = next(it)
        label_ref = next(it)

        # conv1: 3x3 / stride 1 / 1 -> 8
        x = _conv3x3(x_ref[...].astype(jnp.bfloat16),
                     next(it), next(it), next(it))

        # five stages: stride-2 conv_batch + ResidualBlock(s), all in VMEM
        for nb in num_block:
            x = _conv3x3(x.astype(jnp.bfloat16), next(it), next(it), next(it))
            for _ in range(nb):
                w1_ref = next(it)
                b1_ref = next(it)
                sh_ref = next(it)
                w2c_ref = next(it)
                b2_ref = next(it)
                residual = x
                # layer1: 1x1 conv (block-diag matmul) + BN + LeakyReLU
                mid = _leaky(
                    jnp.dot(x.astype(jnp.bfloat16), w1_ref[...],
                            preferred_element_type=jnp.float32) + b1_ref[...])
                # layer2: 3x3 conv + BN + LeakyReLU, residual add AFTER act
                x = _conv3x3(mid.astype(jnp.bfloat16),
                             sh_ref, w2c_ref, b2_ref) + residual

        # ------------- AdaptiveAvgPool2d(1) + ArcMarginProduct -------------
        prow_ref = next(it)
        pcol_ref = next(it)
        arc_ref = next(it)

        pooled = jnp.dot(prow_ref[...], x, preferred_element_type=jnp.float32)
        feat = jnp.dot(pooled, pcol_ref[...], preferred_element_type=jnp.float32)
        feat_ref[...] = feat

        w = arc_ref[...]                                    # (D, N) pre-transposed
        # F.normalize (p=2, eps=1e-12)
        xn = feat * jax.lax.rsqrt(
            jnp.maximum(jnp.sum(feat * feat, axis=1, keepdims=True), 1e-24))
        wn = w * jax.lax.rsqrt(
            jnp.maximum(jnp.sum(w * w, axis=0, keepdims=True), 1e-24))
        cosine = jnp.clip(jnp.dot(xn, wn, preferred_element_type=jnp.float32),
                          -1.0, 1.0)
        sine = jnp.sqrt(jnp.maximum(1.0 - cosine * cosine, 0.0))
        phi = cosine * cos_m - sine * sin_m
        phi = jnp.where(cosine > th, phi, cosine - mm)       # easy_margin=False
        col = jax.lax.broadcasted_iota(jnp.int32, cosine.shape, 1)
        one_hot = (col == label_ref[...]).astype(jnp.float32)  # ls_eps = 0
        logit_ref[...] = (one_hot * phi + (1.0 - one_hot) * cosine) * s

    return kernel


# ----------------------- weight relayout (done at init) ------------------
def _bn_fold(w, b):
    # eval-mode BatchNorm (gamma=1, beta=0, mean=0, var=1) folded into conv.
    scale = 1.0 / np.sqrt(1.0 + BN_EPS)
    return w * scale, b * scale


def _row_select(Bn, Hin, Hout, stride):
    m = np.zeros((3, Bn * Hout, Bn * Hin), np.float32)
    for d, dh in enumerate((-1, 0, 1)):
        for b in range(Bn):
            for ho in range(Hout):
                hi = stride * ho + dh
                if 0 <= hi < Hin:
                    m[d, b * Hout + ho, b * Hin + hi] = 1.0
    return m


def _col_weight(w, Win, Wout, stride):
    cin, cout = w.shape[2], w.shape[3]
    m = np.zeros((3, Win * cin, Wout * cout), np.float32)
    for d in range(3):
        for wo in range(Wout):
            for dwi, dw in enumerate((-1, 0, 1)):
                wi = stride * wo + dw
                if 0 <= wi < Win:
                    m[d, wi * cin:(wi + 1) * cin,
                      wo * cout:(wo + 1) * cout] = w[d, dwi]
    return m


def _block_diag(w1, Wo):
    cin, cout = w1.shape
    m = np.zeros((Wo * cin, Wo * cout), np.float32)
    for wo in range(Wo):
        m[wo * cin:(wo + 1) * cin, wo * cout:(wo + 1) * cout] = w1
    return m


def _conv_arrays(key, Bn, Hin, Win, cin, cout, stride):
    """3x3 / pad 1 conv_batch -> (RowSel stack, ColW stack, bias row)."""
    wkey, bkey = jax.random.split(key)
    w = np.asarray(jax.random.normal(wkey, (3, 3, cin, cout), jnp.float32))
    w = w / math.sqrt(9 * cin)
    b = np.asarray(jax.random.normal(bkey, (cout,), jnp.float32)) * 0.01
    w, b = _bn_fold(w, b)
    Hout, Wout = Hin // stride, Win // stride
    sel = _row_select(Bn, Hin, Hout, stride)
    wc = _col_weight(w, Win, Wout, stride)
    brow = np.tile(b, Wout)[None, :]
    arrs = (jnp.asarray(sel, jnp.bfloat16), jnp.asarray(wc, jnp.bfloat16),
            jnp.asarray(brow, jnp.float32))
    return arrs, (Hout, Wout, cout)


def _conv1x1_arrays(key, Wo, cin, cout):
    wkey, bkey = jax.random.split(key)
    w = np.asarray(jax.random.normal(wkey, (cin, cout), jnp.float32))
    w = w / math.sqrt(cin)
    b = np.asarray(jax.random.normal(bkey, (cout,), jnp.float32)) * 0.01
    w, b = _bn_fold(w, b)
    return (jnp.asarray(_block_diag(w, Wo), jnp.bfloat16),
            jnp.asarray(np.tile(b, Wo)[None, :], jnp.float32))


def init_params(key, B, H, W):
    keys = iter(jax.random.split(key, 64))
    # conv1: 1 -> 8, stride 1
    (sel, wc, br), (h, wsp, c) = _conv_arrays(next(keys), B, H, W, 1, 8, 1)
    weights = [sel, wc, br]
    for cout, nb in zip(STAGE_COUT, NUM_BLOCK):
        (sel, wc, br), (h, wsp, c) = _conv_arrays(next(keys), B, h, wsp, c,
                                                  cout, 2)
        weights += [sel, wc, br]
        cmid = cout // 2
        for _ in range(nb):
            w1, b1 = _conv1x1_arrays(next(keys), wsp, c, cmid)
            (sh, w2c, b2), _ = _conv_arrays(next(keys), B, h, wsp, cmid, c, 1)
            weights += [w1, b1, sh, w2c, b2]
    # AdaptiveAvgPool2d(1) as two averaging matmuls (identity when 1x1)
    prow = np.zeros((B, B * h), np.float32)
    for b in range(B):
        prow[b, b * h:(b + 1) * h] = 1.0 / h
    pcol = np.tile(np.eye(c, dtype=np.float32) / wsp, (wsp, 1))
    weights += [jnp.asarray(prow), jnp.asarray(pcol)]
    # ArcMarginProduct weight: xavier_uniform, pre-transposed to (D, N)
    limit = math.sqrt(6.0 / (c + NUM_CLASSES))
    arc_w = jax.random.uniform(next(keys), (NUM_CLASSES, c), jnp.float32,
                               -limit, limit)
    weights.append(jnp.asarray(arc_w.T))
    # NOTE: self.fc / self.bn of the PyTorch module are unused in forward().
    return weights, c


# ------------------------------ forward ---------------------------------
def build_forward(B, H, W, n_weights, feat_dim):
    n_inputs = 2 + n_weights
    kernel = _make_fused_kernel(
        NUM_BLOCK, n_inputs,
        s=ARC_S, cos_m=math.cos(ARC_M), sin_m=math.sin(ARC_M),
        th=math.cos(math.pi - ARC_M), mm=math.sin(math.pi - ARC_M) * ARC_M)

    def forward(weights, x_nchw, label):
        x2 = x_nchw.reshape(B * H, W)                # NCHW with C=1 -> (B*H, W)
        lab = label.astype(jnp.int32).reshape(B, 1)
        inputs = [x2, lab] + list(weights)
        in_specs = [_fs(a.shape) for a in inputs]
        feat, logits = pl.pallas_call(
            kernel,
            out_shape=(jax.ShapeDtypeStruct((B, feat_dim), jnp.float32),
                       jax.ShapeDtypeStruct((B, NUM_CLASSES), jnp.float32)),
            grid=(1,),
            in_specs=in_specs,
            out_specs=[_fs((B, feat_dim)), _fs((B, NUM_CLASSES))],
            compiler_params=pltpu.CompilerParams(
                dimension_semantics=("arbitrary",),
                vmem_limit_bytes=32 * 1024 * 1024),
        )(*inputs)
        return feat, logits

    return forward


if __name__ == "__main__":
    key = jax.random.PRNGKey(0)
    pkey, xkey, lkey = jax.random.split(key, 3)

    B, H, W = 2, 32, 32
    weights, feat_dim = init_params(pkey, B, H, W)
    forward = build_forward(B, H, W, len(weights), feat_dim)
    fwd = jax.jit(forward)

    x = jax.random.normal(xkey, (B, 1, H, W), jnp.float32)   # NCHW like torch
    label = jax.random.randint(lkey, (B,), 0, NUM_CLASSES, dtype=jnp.int32)

    feat, logits = fwd(weights, x, label)
    jax.block_until_ready((feat, logits))

    assert feat.shape == (B, 256), feat.shape
    assert logits.shape == (B, NUM_CLASSES), logits.shape
    assert bool(jnp.all(jnp.isfinite(feat))) and bool(jnp.all(jnp.isfinite(logits)))
    print("KERNEL_OK")
</pallas_src>

<mosaic_0001>
module attributes {stable_mosaic.version = 11 : i64} {
  func.func @kernel(%arg0: i32, %arg1: memref<64x32xf32, #tpu.memory_space<vmem>>, %arg2: memref<2x1xi32, #tpu.memory_space<vmem>>, %arg3: memref<3x64x64xbf16, #tpu.memory_space<vmem>>, %arg4: memref<3x32x256xbf16, #tpu.memory_space<vmem>>, %arg5: memref<1x256xf32, #tpu.memory_space<vmem>>, %arg6: memref<3x32x64xbf16, #tpu.memory_space<vmem>>, %arg7: memref<3x256x256xbf16, #tpu.memory_space<vmem>>, %arg8: memref<1x256xf32, #tpu.memory_space<vmem>>, %arg9: memref<256x128xbf16, #tpu.memory_space<vmem>>, %arg10: memref<1x128xf32, #tpu.memory_space<vmem>>, %arg11: memref<3x32x32xbf16, #tpu.memory_space<vmem>>, %arg12: memref<3x128x256xbf16, #tpu.memory_space<vmem>>, %arg13: memref<1x256xf32, #tpu.memory_space<vmem>>, %arg14: memref<3x16x32xbf16, #tpu.memory_space<vmem>>, %arg15: memref<3x256x256xbf16, #tpu.memory_space<vmem>>, %arg16: memref<1x256xf32, #tpu.memory_space<vmem>>, %arg17: memref<256x128xbf16, #tpu.memory_space<vmem>>, %arg18: memref<1x128xf32, #tpu.memory_space<vmem>>, %arg19: memref<3x16x16xbf16, #tpu.memory_space<vmem>>, %arg20: memref<3x128x256xbf16, #tpu.memory_space<vmem>>, %arg21: memref<1x256xf32, #tpu.memory_space<vmem>>, %arg22: memref<3x8x16xbf16, #tpu.memory_space<vmem>>, %arg23: memref<3x256x256xbf16, #tpu.memory_space<vmem>>, %arg24: memref<1x256xf32, #tpu.memory_space<vmem>>, %arg25: memref<256x128xbf16, #tpu.memory_space<vmem>>, %arg26: memref<1x128xf32, #tpu.memory_space<vmem>>, %arg27: memref<3x8x8xbf16, #tpu.memory_space<vmem>>, %arg28: memref<3x128x256xbf16, #tpu.memory_space<vmem>>, %arg29: memref<1x256xf32, #tpu.memory_space<vmem>>, %arg30: memref<3x4x8xbf16, #tpu.memory_space<vmem>>, %arg31: memref<3x256x256xbf16, #tpu.memory_space<vmem>>, %arg32: memref<1x256xf32, #tpu.memory_space<vmem>>, %arg33: memref<256x128xbf16, #tpu.memory_space<vmem>>, %arg34: memref<1x128xf32, #tpu.memory_space<vmem>>, %arg35: memref<3x4x4xbf16, #tpu.memory_space<vmem>>, %arg36: memref<3x128x256xbf16, #tpu.memory_space<vmem>>, %arg37: memref<1x256xf32, #tpu.memory_space<vmem>>, %arg38: memref<3x2x4xbf16, #tpu.memory_space<vmem>>, %arg39: memref<3x256x256xbf16, #tpu.memory_space<vmem>>, %arg40: memref<1x256xf32, #tpu.memory_space<vmem>>, %arg41: memref<256x128xbf16, #tpu.memory_space<vmem>>, %arg42: memref<1x128xf32, #tpu.memory_space<vmem>>, %arg43: memref<3x2x2xbf16, #tpu.memory_space<vmem>>, %arg44: memref<3x128x256xbf16, #tpu.memory_space<vmem>>, %arg45: memref<1x256xf32, #tpu.memory_space<vmem>>, %arg46: memref<2x2xf32, #tpu.memory_space<vmem>>, %arg47: memref<256x256xf32, #tpu.memory_space<vmem>>, %arg48: memref<256x16xf32, #tpu.memory_space<vmem>>, %arg49: memref<2x256xf32, #tpu.memory_space<vmem>>, %arg50: memref<2x16xf32, #tpu.memory_space<vmem>>) attributes {dimension_semantics = [#tpu.dimension_semantics<arbitrary>], iteration_bounds = array<i64: 1>, scalar_prefetch = 0 : i64, scratch_operands = 0 : i64, tpu.core_type = #tpu.core_type<tc>, window_params = [{pipeline_mode = #tpu.pipeline_mode<synchronous>, transform_indices = @transform_0, window_bounds = array<i64: 64, 32>}, {pipeline_mode = #tpu.pipeline_mode<synchronous>, transform_indices = @transform_1, window_bounds = array<i64: 2, 1>}, {pipeline_mode = #tpu.pipeline_mode<synchronous>, transform_indices = @transform_2, window_bounds = array<i64: 3, 64, 64>}, {pipeline_mode = #tpu.pipeline_mode<synchronous>, transform_indices = @transform_3, window_bounds = array<i64: 3, 32, 256>}, {pipeline_mode = #tpu.pipeline_mode<synchronous>, transform_indices = @transform_4, window_bounds = array<i64: 1, 256>}, {pipeline_mode = #tpu.pipeline_mode<synchronous>, transform_indices = @transform_5, window_bounds = array<i64: 3, 32, 64>}, {pipeline_mode = #tpu.pipeline_mode<synchronous>, transform_indices = @transform_6, window_bounds = array<i64: 3, 256, 256>}, {pipeline_mode = #tpu.pipeline_mode<synchronous>, transform_indices = @transform_7, window_bounds = array<i64: 1, 256>}, {pipeline_mode = #tpu.pipeline_mode<synchronous>, transform_indices = @transform_8, window_bounds = array<i64: 256, 128>}, {pipeline_mode = #tpu.pipeline_mode<synchronous>, transform_indices = @transform_9, window_bounds = array<i64: 1, 128>}, {pipeline_mode = #tpu.pipeline_mode<synchronous>, transform_indices = @transform_10, window_bounds = array<i64: 3, 32, 32>}, {pipeline_mode = #tpu.pipeline_mode<synchronous>, transform_indices = @transform_11, window_bounds = array<i64: 3, 128, 256>}, {pipeline_mode = #tpu.pipeline_mode<synchronous>, transform_indices = @transform_12, window_bounds = array<i64: 1, 256>}, {pipeline_mode = #tpu.pipeline_mode<synchronous>, transform_indices = @transform_13, window_bounds = array<i64: 3, 16, 32>}, {pipeline_mode = #tpu.pipeline_mode<synchronous>, transform_indices = @transform_14, window_bounds = array<i64: 3, 256, 256>}, {pipeline_mode = #tpu.pipeline_mode<synchronous>, transform_indices = @transform_15, window_bounds = array<i64: 1, 256>}, {pipeline_mode = #tpu.pipeline_mode<synchronous>, transform_indices = @transform_16, window_bounds = array<i64: 256, 128>}, {pipeline_mode = #tpu.pipeline_mode<synchronous>, transform_indices = @transform_17, window_bounds = array<i64: 1, 128>}, {pipeline_mode = #tpu.pipeline_mode<synchronous>, transform_indices = @transform_18, window_bounds = array<i64: 3, 16, 16>}, {pipeline_mode = #tpu.pipeline_mode<synchronous>, transform_indices = @transform_19, window_bounds = array<i64: 3, 128, 256>}, {pipeline_mode = #tpu.pipeline_mode<synchronous>, transform_indices = @transform_20, window_bounds = array<i64: 1, 256>}, {pipeline_mode = #tpu.pipeline_mode<synchronous>, transform_indices = @transform_21, window_bounds = array<i64: 3, 8, 16>}, {pipeline_mode = #tpu.pipeline_mode<synchronous>, transform_indices = @transform_22, window_bounds = array<i64: 3, 256, 256>}, {pipeline_mode = #tpu.pipeline_mode<synchronous>, transform_indices = @transform_23, window_bounds = array<i64: 1, 256>}, {pipeline_mode = #tpu.pipeline_mode<synchronous>, transform_indices = @transform_24, window_bounds = array<i64: 256, 128>}, {pipeline_mode = #tpu.pipeline_mode<synchronous>, transform_indices = @transform_25, window_bounds = array<i64: 1, 128>}, {pipeline_mode = #tpu.pipeline_mode<synchronous>, transform_indices = @transform_26, window_bounds = array<i64: 3, 8, 8>}, {pipeline_mode = #tpu.pipeline_mode<synchronous>, transform_indices = @transform_27, window_bounds = array<i64: 3, 128, 256>}, {pipeline_mode = #tpu.pipeline_mode<synchronous>, transform_indices = @transform_28, window_bounds = array<i64: 1, 256>}, {pipeline_mode = #tpu.pipeline_mode<synchronous>, transform_indices = @transform_29, window_bounds = array<i64: 3, 4, 8>}, {pipeline_mode = #tpu.pipeline_mode<synchronous>, transform_indices = @transform_30, window_bounds = array<i64: 3, 256, 256>}, {pipeline_mode = #tpu.pipeline_mode<synchronous>, transform_indices = @transform_31, window_bounds = array<i64: 1, 256>}, {pipeline_mode = #tpu.pipeline_mode<synchronous>, transform_indices = @transform_32, window_bounds = array<i64: 256, 128>}, {pipeline_mode = #tpu.pipeline_mode<synchronous>, transform_indices = @transform_33, window_bounds = array<i64: 1, 128>}, {pipeline_mode = #tpu.pipeline_mode<synchronous>, transform_indices = @transform_34, window_bounds = array<i64: 3, 4, 4>}, {pipeline_mode = #tpu.pipeline_mode<synchronous>, transform_indices = @transform_35, window_bounds = array<i64: 3, 128, 256>}, {pipeline_mode = #tpu.pipeline_mode<synchronous>, transform_indices = @transform_36, window_bounds = array<i64: 1, 256>}, {pipeline_mode = #tpu.pipeline_mode<synchronous>, transform_indices = @transform_37, window_bounds = array<i64: 3, 2, 4>}, {pipeline_mode = #tpu.pipeline_mode<synchronous>, transform_indices = @transform_38, window_bounds = array<i64: 3, 256, 256>}, {pipeline_mode = #tpu.pipeline_mode<synchronous>, transform_indices = @transform_39, window_bounds = array<i64: 1, 256>}, {pipeline_mode = #tpu.pipeline_mode<synchronous>, transform_indices = @transform_40, window_bounds = array<i64: 256, 128>}, {pipeline_mode = #tpu.pipeline_mode<synchronous>, transform_indices = @transform_41, window_bounds = array<i64: 1, 128>}, {pipeline_mode = #tpu.pipeline_mode<synchronous>, transform_indices = @transform_42, window_bounds = array<i64: 3, 2, 2>}, {pipeline_mode = #tpu.pipeline_mode<synchronous>, transform_indices = @transform_43, window_bounds = array<i64: 3, 128, 256>}, {pipeline_mode = #tpu.pipeline_mode<synchronous>, transform_indices = @transform_44, window_bounds = array<i64: 1, 256>}, {pipeline_mode = #tpu.pipeline_mode<synchronous>, transform_indices = @transform_45, window_bounds = array<i64: 2, 2>}, {pipeline_mode = #tpu.pipeline_mode<synchronous>, transform_indices = @transform_46, window_bounds = array<i64: 256, 256>}, {pipeline_mode = #tpu.pipeline_mode<synchronous>, transform_indices = @transform_47, window_bounds = array<i64: 256, 16>}, {pipeline_mode = #tpu.pipeline_mode<synchronous>, transform_indices = @transform_48, window_bounds = array<i64: 2, 256>}, {pipeline_mode = #tpu.pipeline_mode<synchronous>, transform_indices = @transform_49, window_bounds = array<i64: 2, 16>}]} {
    %c0 = arith.constant 0 : index
    %c0_0 = arith.constant 0 : index
    %0 = vector.load %arg1[%c0, %c0_0] : memref<64x32xf32, #tpu.memory_space<vmem>>, vector<64x32xf32>
    %1 = arith.truncf %0 : vector<64x32xf32> to vector<64x32xbf16>
    %c0_1 = arith.constant 0 : index
    %c0_2 = arith.constant 0 : index
    %c0_3 = arith.constant 0 : index
    %2 = vector.load %arg3[%c0_1, %c0_2, %c0_3] : memref<3x64x64xbf16, #tpu.memory_space<vmem>>, vector<1x64x64xbf16>
    %3 = vector.shape_cast %2 : vector<1x64x64xbf16> to vector<64x64xbf16>
    %cst = arith.constant dense<0.000000e+00> : vector<64x32xf32>
    %4 = tpu.matmul %3, %1, %cst {dimension_numbers = #tpu.dot_dimension_numbers<[1], [0], [0], [1], [0, 0, 1, 1], [], []>} : vector<64x64xbf16>, vector<64x32xbf16>, vector<64x32xf32> -> vector<64x32xf32>
    %5 = arith.truncf %4 : vector<64x32xf32> to vector<64x32xbf16>
    %c0_4 = arith.constant 0 : index
    %c0_5 = arith.constant 0 : index
    %c0_6 = arith.constant 0 : index
    %6 = vector.load %arg4[%c0_4, %c0_5, %c0_6] : memref<3x32x256xbf16, #tpu.memory_space<vmem>>, vector<1x32x256xbf16>
    %7 = vector.shape_cast %6 : vector<1x32x256xbf16> to vector<32x256xbf16>
    %cst_7 = arith.constant dense<0.000000e+00> : vector<64x256xf32>
    %8 = tpu.matmul %5, %7, %cst_7 {dimension_numbers = #tpu.dot_dimension_numbers<[1], [0], [0], [1], [0, 0, 1, 1], [], []>} : vector<64x32xbf16>, vector<32x256xbf16>, vector<64x256xf32> -> vector<64x256xf32>
    %c1 = arith.constant 1 : index
    %c0_8 = arith.constant 0 : index
    %c0_9 = arith.constant 0 : index
    %9 = vector.load %arg3[%c1, %c0_8, %c0_9] : memref<3x64x64xbf16, #tpu.memory_space<vmem>>, vector<1x64x64xbf16>
    %10 = vector.shape_cast %9 : vector<1x64x64xbf16> to vector<64x64xbf16>
    %cst_10 = arith.constant dense<0.000000e+00> : vector<64x32xf32>
    %11 = tpu.matmul %10, %1, %cst_10 {dimension_numbers = #tpu.dot_dimension_numbers<[1], [0], [0], [1], [0, 0, 1, 1], [], []>} : vector<64x64xbf16>, vector<64x32xbf16>, vector<64x32xf32> -> vector<64x32xf32>
    %12 = arith.truncf %11 : vector<64x32xf32> to vector<64x32xbf16>
    %c1_11 = arith.constant 1 : index
    %c0_12 = arith.constant 0 : index
    %c0_13 = arith.constant 0 : index
    %13 = vector.load %arg4[%c1_11, %c0_12, %c0_13] : memref<3x32x256xbf16, #tpu.memory_space<vmem>>, vector<1x32x256xbf16>
    %14 = vector.shape_cast %13 : vector<1x32x256xbf16> to vector<32x256xbf16>
    %cst_14 = arith.constant dense<0.000000e+00> : vector<64x256xf32>
    %15 = tpu.matmul %12, %14, %cst_14 {dimension_numbers = #tpu.dot_dimension_numbers<[1], [0], [0], [1], [0, 0, 1, 1], [], []>} : vector<64x32xbf16>, vector<32x256xbf16>, vector<64x256xf32> -> vector<64x256xf32>
    %16 = arith.addf %8, %15 : vector<64x256xf32>
    %c2 = arith.constant 2 : index
    %c0_15 = arith.constant 0 : index
    %c0_16 = arith.constant 0 : index
    %17 = vector.load %arg3[%c2, %c0_15, %c0_16] : memref<3x64x64xbf16, #tpu.memory_space<vmem>>, vector<1x64x64xbf16>
    %18 = vector.shape_cast %17 : vector<1x64x64xbf16> to vector<64x64xbf16>
    %cst_17 = arith.constant dense<0.000000e+00> : vector<64x32xf32>
    %19 = tpu.matmul %18, %1, %cst_17 {dimension_numbers = #tpu.dot_dimension_numbers<[1], [0], [0], [1], [0, 0, 1, 1], [], []>} : vector<64x64xbf16>, vector<64x32xbf16>, vector<64x32xf32> -> vector<64x32xf32>
    %20 = arith.truncf %19 : vector<64x32xf32> to vector<64x32xbf16>
    %c2_18 = arith.constant 2 : index
    %c0_19 = arith.constant 0 : index
    %c0_20 = arith.constant 0 : index
    %21 = vector.load %arg4[%c2_18, %c0_19, %c0_20] : memref<3x32x256xbf16, #tpu.memory_space<vmem>>, vector<1x32x256xbf16>
    %22 = vector.shape_cast %21 : vector<1x32x256xbf16> to vector<32x256xbf16>
    %cst_21 = arith.constant dense<0.000000e+00> : vector<64x256xf32>
    %23 = tpu.matmul %20, %22, %cst_21 {dimension_numbers = #tpu.dot_dimension_numbers<[1], [0], [0], [1], [0, 0, 1, 1], [], []>} : vector<64x32xbf16>, vector<32x256xbf16>, vector<64x256xf32> -> vector<64x256xf32>
    %24 = arith.addf %16, %23 : vector<64x256xf32>
    %c0_22 = arith.constant 0 : index
    %c0_23 = arith.constant 0 : index
    %25 = vector.load %arg5[%c0_22, %c0_23] : memref<1x256xf32, #tpu.memory_space<vmem>>, vector<1x256xf32>
    %26 = vector.broadcast %25 : vector<1x256xf32> to vector<64x256xf32>
    %27 = arith.addf %24, %26 : vector<64x256xf32>
    %cst_24 = arith.constant 0.000000e+00 : f32
    %28 = vector.broadcast %cst_24 : f32 to vector<64x256xf32>
    %29 = arith.cmpf oge, %27, %28 : vector<64x256xf32>
    %cst_25 = arith.constant 1.000000e-01 : f32
    %30 = vector.broadcast %cst_25 : f32 to vector<64x256xf32>
    %31 = arith.mulf %30, %27 : vector<64x256xf32>
    %32 = arith.select %29, %27, %31 : vector<64x256xi1>, vector<64x256xf32>
    %33 = arith.truncf %32 : vector<64x256xf32> to vector<64x256xbf16>
    %c0_26 = arith.constant 0 : index
    %c0_27 = arith.constant 0 : index
    %c0_28 = arith.constant 0 : index
    %34 = vector.load %arg6[%c0_26, %c0_27, %c0_28] : memref<3x32x64xbf16, #tpu.memory_space<vmem>>, vector<1x32x64xbf16>
    %35 = vector.shape_cast %34 : vector<1x32x64xbf16> to vector<32x64xbf16>
    %cst_29 = arith.constant dense<0.000000e+00> : vector<32x256xf32>
    %36 = tpu.matmul %35, %33, %cst_29 {dimension_numbers = #tpu.dot_dimension_numbers<[1], [0], [0], [1], [0, 0, 1, 1], [], []>} : vector<32x64xbf16>, vector<64x256xbf16>, vector<32x256xf32> -> vector<32x256xf32>
    %37 = arith.truncf %36 : vector<32x256xf32> to vector<32x256xbf16>
    %c0_30 = arith.constant 0 : index
    %c0_31 = arith.constant 0 : index
    %c0_32 = arith.constant 0 : index
    %38 = vector.load %arg7[%c0_30, %c0_31, %c0_32] : memref<3x256x256xbf16, #tpu.memory_space<vmem>>, vector<1x256x256xbf16>
    %39 = vector.shape_cast %38 : vector<1x256x256xbf16> to vector<256x256xbf16>
    %cst_33 = arith.constant dense<0.000000e+00> : vector<32x256xf32>
    %40 = tpu.matmul %37, %39, %cst_33 {dimension_numbers = #tpu.dot_dimension_numbers<[1], [0], [0], [1], [0, 0, 1, 1], [], []>} : vector<32x256xbf16>, vector<256x256xbf16>, vector<32x256xf32> -> vector<32x256xf32>
    %c1_34 = arith.constant 1 : index
    %c0_35 = arith.constant 0 : index
    %c0_36 = arith.constant 0 : index
    %41 = vector.load %arg6[%c1_34, %c0_35, %c0_36] : memref<3x32x64xbf16, #tpu.memory_space<vmem>>, vector<1x32x64xbf16>
    %42 = vector.shape_cast %41 : vector<1x32x64xbf16> to vector<32x64xbf16>
    %cst_37 = arith.constant dense<0.000000e+00> : vector<32x256xf32>
    %43 = tpu.matmul %42, %33, %cst_37 {dimension_numbers = #tpu.dot_dimension_numbers<[1], [0], [0], [1], [0, 0, 1, 1], [], []>} : vector<32x64xbf16>, vector<64x256xbf16>, vector<32x256xf32> -> vector<32x256xf32>
    %44 = arith.truncf %43 : vector<32x256xf32> to vector<32x256xbf16>
    %c1_38 = arith.constant 1 : index
    %c0_39 = arith.constant 0 : index
    %c0_40 = arith.constant 0 : index
    %45 = vector.load %arg7[%c1_38, %c0_39, %c0_40] : memref<3x256x256xbf16, #tpu.memory_space<vmem>>, vector<1x256x256xbf16>
    %46 = vector.shape_cast %45 : vector<1x256x256xbf16> to vector<256x256xbf16>
    %cst_41 = arith.constant dense<0.000000e+00> : vector<32x256xf32>
    %47 = tpu.matmul %44, %46, %cst_41 {dimension_numbers = #tpu.dot_dimension_numbers<[1], [0], [0], [1], [0, 0, 1, 1], [], []>} : vector<32x256xbf16>, vector<256x256xbf16>, vector<32x256xf32> -> vector<32x256xf32>
    %48 = arith.addf %40, %47 : vector<32x256xf32>
    %c2_42 = arith.constant 2 : index
    %c0_43 = arith.constant 0 : index
    %c0_44 = arith.constant 0 : index
    %49 = vector.load %arg6[%c2_42, %c0_43, %c0_44] : memref<3x32x64xbf16, #tpu.memory_space<vmem>>, vector<1x32x64xbf16>
    %50 = vector.shape_cast %49 : vector<1x32x64xbf16> to vector<32x64xbf16>
    %cst_45 = arith.constant dense<0.000000e+00> : vector<32x256xf32>
    %51 = tpu.matmul %50, %33, %cst_45 {dimension_numbers = #tpu.dot_dimension_numbers<[1], [0], [0], [1], [0, 0, 1, 1], [], []>} : vector<32x64xbf16>, vector<64x256xbf16>, vector<32x256xf32> -> vector<32x256xf32>
    %52 = arith.truncf %51 : vector<32x256xf32> to vector<32x256xbf16>
    %c2_46 = arith.constant 2 : index
    %c0_47 = arith.constant 0 : index
    %c0_48 = arith.constant 0 : index
    %53 = vector.load %arg7[%c2_46, %c0_47, %c0_48] : memref<3x256x256xbf16, #tpu.memory_space<vmem>>, vector<1x256x256xbf16>
    %54 = vector.shape_cast %53 : vector<1x256x256xbf16> to vector<256x256xbf16>
    %cst_49 = arith.constant dense<0.000000e+00> : vector<32x256xf32>
    %55 = tpu.matmul %52, %54, %cst_49 {dimension_numbers = #tpu.dot_dimension_numbers<[1], [0], [0], [1], [0, 0, 1, 1], [], []>} : vector<32x256xbf16>, vector<256x256xbf16>, vector<32x256xf32> -> vector<32x256xf32>
    %56 = arith.addf %48, %55 : vector<32x256xf32>
    %c0_50 = arith.constant 0 : index
    %c0_51 = arith.constant 0 : index
    %57 = vector.load %arg8[%c0_50, %c0_51] : memref<1x256xf32, #tpu.memory_space<vmem>>, vector<1x256xf32>
    %58 = vector.broadcast %57 : vector<1x256xf32> to vector<32x256xf32>
    %59 = arith.addf %56, %58 : vector<32x256xf32>
    %cst_52 = arith.constant 0.000000e+00 : f32
    %60 = vector.broadcast %cst_52 : f32 to vector<32x256xf32>
    %61 = arith.cmpf oge, %59, %60 : vector<32x256xf32>
    %cst_53 = arith.constant 1.000000e-01 : f32
    %62 = vector.broadcast %cst_53 : f32 to vector<32x256xf32>
    %63 = arith.mulf %62, %59 : vector<32x256xf32>
    %64 = arith.select %61, %59, %63 : vector<32x256xi1>, vector<32x256xf32>
    %65 = arith.truncf %64 : vector<32x256xf32> to vector<32x256xbf16>
    %c0_54 = arith.constant 0 : index
    %c0_55 = arith.constant 0 : index
    %66 = vector.load %arg9[%c0_54, %c0_55] : memref<256x128xbf16, #tpu.memory_space<vmem>>, vector<256x128xbf16>
    %cst_56 = arith.constant dense<0.000000e+00> : vector<32x128xf32>
    %67 = tpu.matmul %65, %66, %cst_56 {dimension_numbers = #tpu.dot_dimension_numbers<[1], [0], [0], [1], [0, 0, 1, 1], [], []>} : vector<32x256xbf16>, vector<256x128xbf16>, vector<32x128xf32> -> vector<32x128xf32>
    %c0_57 = arith.constant 0 : index
    %c0_58 = arith.constant 0 : index
    %68 = vector.load %arg10[%c0_57, %c0_58] : memref<1x128xf32, #tpu.memory_space<vmem>>, vector<1x128xf32>
    %69 = vector.broadcast %68 : vector<1x128xf32> to vector<32x128xf32>
    %70 = arith.addf %67, %69 : vector<32x128xf32>
    %cst_59 = arith.constant 0.000000e+00 : f32
    %71 = vector.broadcast %cst_59 : f32 to vector<32x128xf32>
    %72 = arith.cmpf oge, %70, %71 : vector<32x128xf32>
    %cst_60 = arith.constant 1.000000e-01 : f32
    %73 = vector.broadcast %cst_60 : f32 to vector<32x128xf32>
    %74 = arith.mulf %73, %70 : vector<32x128xf32>
    %75 = arith.select %72, %70, %74 : vector<32x128xi1>, vector<32x128xf32>
    %76 = arith.truncf %75 : vector<32x128xf32> to vector<32x128xbf16>
    %c0_61 = arith.constant 0 : index
    %c0_62 = arith.constant 0 : index
    %c0_63 = arith.constant 0 : index
    %77 = vector.load %arg11[%c0_61, %c0_62, %c0_63] : memref<3x32x32xbf16, #tpu.memory_space<vmem>>, vector<1x32x32xbf16>
    %78 = vector.shape_cast %77 : vector<1x32x32xbf16> to vector<32x32xbf16>
    %cst_64 = arith.constant dense<0.000000e+00> : vector<32x128xf32>
    %79 = tpu.matmul %78, %76, %cst_64 {dimension_numbers = #tpu.dot_dimension_numbers<[1], [0], [0], [1], [0, 0, 1, 1], [], []>} : vector<32x32xbf16>, vector<32x128xbf16>, vector<32x128xf32> -> vector<32x128xf32>
    %80 = arith.truncf %79 : vector<32x128xf32> to vector<32x128xbf16>
    %c0_65 = arith.constant 0 : index
    %c0_66 = arith.constant 0 : index
    %c0_67 = arith.constant 0 : index
    %81 = vector.load %arg12[%c0_65, %c0_66, %c0_67] : memref<3x128x256xbf16, #tpu.memory_space<vmem>>, vector<1x128x256xbf16>
    %82 = vector.shape_cast %81 : vector<1x128x256xbf16> to vector<128x256xbf16>
    %cst_68 = arith.constant dense<0.000000e+00> : vector<32x256xf32>
    %83 = tpu.matmul %80, %82, %cst_68 {dimension_numbers = #tpu.dot_dimension_numbers<[1], [0], [0], [1], [0, 0, 1, 1], [], []>} : vector<32x128xbf16>, vector<128x256xbf16>, vector<32x256xf32> -> vector<32x256xf32>
    %c1_69 = arith.constant 1 : index
    %c0_70 = arith.constant 0 : index
    %c0_71 = arith.constant 0 : index
    %84 = vector.load %arg11[%c1_69, %c0_70, %c0_71] : memref<3x32x32xbf16, #tpu.memory_space<vmem>>, vector<1x32x32xbf16>
    %85 = vector.shape_cast %84 : vector<1x32x32xbf16> to vector<32x32xbf16>
    %cst_72 = arith.constant dense<0.000000e+00> : vector<32x128xf32>
    %86 = tpu.matmul %85, %76, %cst_72 {dimension_numbers = #tpu.dot_dimension_numbers<[1], [0], [0], [1], [0, 0, 1, 1], [], []>} : vector<32x32xbf16>, vector<32x128xbf16>, vector<32x128xf32> -> vector<32x128xf32>
    %87 = arith.truncf %86 : vector<32x128xf32> to vector<32x128xbf16>
    %c1_73 = arith.constant 1 : index
    %c0_74 = arith.constant 0 : index
    %c0_75 = arith.constant 0 : index
    %88 = vector.load %arg12[%c1_73, %c0_74, %c0_75] : memref<3x128x256xbf16, #tpu.memory_space<vmem>>, vector<1x128x256xbf16>
    %89 = vector.shape_cast %88 : vector<1x128x256xbf16> to vector<128x256xbf16>
    %cst_76 = arith.constant dense<0.000000e+00> : vector<32x256xf32>
    %90 = tpu.matmul %87, %89, %cst_76 {dimension_numbers = #tpu.dot_dimension_numbers<[1], [0], [0], [1], [0, 0, 1, 1], [], []>} : vector<32x128xbf16>, vector<128x256xbf16>, vector<32x256xf32> -> vector<32x256xf32>
    %91 = arith.addf %83, %90 : vector<32x256xf32>
    %c2_77 = arith.constant 2 : index
    %c0_78 = arith.constant 0 : index
    %c0_79 = arith.constant 0 : index
    %92 = vector.load %arg11[%c2_77, %c0_78, %c0_79] : memref<3x32x32xbf16, #tpu.memory_space<vmem>>, vector<1x32x32xbf16>
    %93 = vector.shape_cast %92 : vector<1x32x32xbf16> to vector<32x32xbf16>
    %cst_80 = arith.constant dense<0.000000e+00> : vector<32x128xf32>
    %94 = tpu.matmul %93, %76, %cst_80 {dimension_numbers = #tpu.dot_dimension_numbers<[1], [0], [0], [1], [0, 0, 1, 1], [], []>} : vector<32x32xbf16>, vector<32x128xbf16>, vector<32x128xf32> -> vector<32x128xf32>
    %95 = arith.truncf %94 : vector<32x128xf32> to vector<32x128xbf16>
    %c2_81 = arith.constant 2 : index
    %c0_82 = arith.constant 0 : index
    %c0_83 = arith.constant 0 : index
    %96 = vector.load %arg12[%c2_81, %c0_82, %c0_83] : memref<3x128x256xbf16, #tpu.memory_space<vmem>>, vector<1x128x256xbf16>
    %97 = vector.shape_cast %96 : vector<1x128x256xbf16> to vector<128x256xbf16>
    %cst_84 = arith.constant dense<0.000000e+00> : vector<32x256xf32>
    %98 = tpu.matmul %95, %97, %cst_84 {dimension_numbers = #tpu.dot_dimension_numbers<[1], [0], [0], [1], [0, 0, 1, 1], [], []>} : vector<32x128xbf16>, vector<128x256xbf16>, vector<32x256xf32> -> vector<32x256xf32>
    %99 = arith.addf %91, %98 : vector<32x256xf32>
    %c0_85 = arith.constant 0 : index
    %c0_86 = arith.constant 0 : index
    %100 = vector.load %arg13[%c0_85, %c0_86] : memref<1x256xf32, #tpu.memory_space<vmem>>, vector<1x256xf32>
    %101 = vector.broadcast %100 : vector<1x256xf32> to vector<32x256xf32>
    %102 = arith.addf %99, %101 : vector<32x256xf32>
    %cst_87 = arith.constant 0.000000e+00 : f32
    %103 = vector.broadcast %cst_87 : f32 to vector<32x256xf32>
    %104 = arith.cmpf oge, %102, %103 : vector<32x256xf32>
    %cst_88 = arith.constant 1.000000e-01 : f32
    %105 = vector.broadcast %cst_88 : f32 to vector<32x256xf32>
    %106 = arith.mulf %105, %102 : vector<32x256xf32>
    %107 = arith.select %104, %102, %106 : vector<32x256xi1>, vector<32x256xf32>
    %108 = arith.addf %107, %64 : vector<32x256xf32>
    %109 = arith.truncf %108 : vector<32x256xf32> to vector<32x256xbf16>
    %c0_89 = arith.constant 0 : index
    %c0_90 = arith.constant 0 : index
    %c0_91 = arith.constant 0 : index
    %110 = vector.load %arg14[%c0_89, %c0_90, %c0_91] : memref<3x16x32xbf16, #tpu.memory_space<vmem>>, vector<1x16x32xbf16>
    %111 = vector.shape_cast %110 : vector<1x16x32xbf16> to vector<16x32xbf16>
    %cst_92 = arith.constant dense<0.000000e+00> : vector<16x256xf32>
    %112 = tpu.matmul %111, %109, %cst_92 {dimension_numbers = #tpu.dot_dimension_numbers<[1], [0], [0], [1], [0, 0, 1, 1], [], []>} : vector<16x32xbf16>, vector<32x256xbf16>, vector<16x256xf32> -> vector<16x256xf32>
    %113 = arith.truncf %112 : vector<16x256xf32> to vector<16x256xbf16>
    %c0_93 = arith.constant 0 : index
    %c0_94 = arith.constant 0 : index
    %c0_95 = arith.constant 0 : index
    %114 = vector.load %arg15[%c0_93, %c0_94, %c0_95] : memref<3x256x256xbf16, #tpu.memory_space<vmem>>, vector<1x256x256xbf16>
    %115 = vector.shape_cast %114 : vector<1x256x256xbf16> to vector<256x256xbf16>
    %cst_96 = arith.constant dense<0.000000e+00> : vector<16x256xf32>
    %116 = tpu.matmul %113, %115, %cst_96 {dimension_numbers = #tpu.dot_dimension_numbers<[1], [0], [0], [1], [0, 0, 1, 1], [], []>} : vector<16x256xbf16>, vector<256x256xbf16>, vector<16x256xf32> -> vector<16x256xf32>
    %c1_97 = arith.constant 1 : index
    %c0_98 = arith.constant 0 : index
    %c0_99 = arith.constant 0 : index
    %117 = vector.load %arg14[%c1_97, %c0_98, %c0_99] : memref<3x16x32xbf16, #tpu.memory_space<vmem>>, vector<1x16x32xbf16>
    %118 = vector.shape_cast %117 : vector<1x16x32xbf16> to vector<16x32xbf16>
    %cst_100 = arith.constant dense<0.000000e+00> : vector<16x256xf32>
    %119 = tpu.matmul %118, %109, %cst_100 {dimension_numbers = #tpu.dot_dimension_numbers<[1], [0], [0], [1], [0, 0, 1, 1], [], []>} : vector<16x32xbf16>, vector<32x256xbf16>, vector<16x256xf32> -> vector<16x256xf32>
    %120 = arith.truncf %119 : vector<16x256xf32> to vector<16x256xbf16>
    %c1_101 = arith.constant 1 : index
    %c0_102 = arith.constant 0 : index
    %c0_103 = arith.constant 0 : index
    %121 = vector.load %arg15[%c1_101, %c0_102, %c0_103] : memref<3x256x256xbf16, #tpu.memory_space<vmem>>, vector<1x256x256xbf16>
    %122 = vector.shape_cast %121 : vector<1x256x256xbf16> to vector<256x256xbf16>
    %cst_104 = arith.constant dense<0.000000e+00> : vector<16x256xf32>
    %123 = tpu.matmul %120, %122, %cst_104 {dimension_numbers = #tpu.dot_dimension_numbers<[1], [0], [0], [1], [0, 0, 1, 1], [], []>} : vector<16x256xbf16>, vector<256x256xbf16>, vector<16x256xf32> -> vector<16x256xf32>
    %124 = arith.addf %116, %123 : vector<16x256xf32>
    %c2_105 = arith.constant 2 : index
    %c0_106 = arith.constant 0 : index
    %c0_107 = arith.constant 0 : index
    %125 = vector.load %arg14[%c2_105, %c0_106, %c0_107] : memref<3x16x32xbf16, #tpu.memory_space<vmem>>, vector<1x16x32xbf16>
    %126 = vector.shape_cast %125 : vector<1x16x32xbf16> to vector<16x32xbf16>
    %cst_108 = arith.constant dense<0.000000e+00> : vector<16x256xf32>
    %127 = tpu.matmul %126, %109, %cst_108 {dimension_numbers = #tpu.dot_dimension_numbers<[1], [0], [0], [1], [0, 0, 1, 1], [], []>} : vector<16x32xbf16>, vector<32x256xbf16>, vector<16x256xf32> -> vector<16x256xf32>
    %128 = arith.truncf %127 : vector<16x256xf32> to vector<16x256xbf16>
    %c2_109 = arith.constant 2 : index
    %c0_110 = arith.constant 0 : index
    %c0_111 = arith.constant 0 : index
    %129 = vector.load %arg15[%c2_109, %c0_110, %c0_111] : memref<3x256x256xbf16, #tpu.memory_space<vmem>>, vector<1x256x256xbf16>
    %130 = vector.shape_cast %129 : vector<1x256x256xbf16> to vector<256x256xbf16>
    %cst_112 = arith.constant dense<0.000000e+00> : vector<16x256xf32>
    %131 = tpu.matmul %128, %130, %cst_112 {dimension_numbers = #tpu.dot_dimension_numbers<[1], [0], [0], [1], [0, 0, 1, 1], [], []>} : vector<16x256xbf16>, vector<256x256xbf16>, vector<16x256xf32> -> vector<16x256xf32>
    %132 = arith.addf %124, %131 : vector<16x256xf32>
    %c0_113 = arith.constant 0 : index
    %c0_114 = arith.constant 0 : index
    %133 = vector.load %arg16[%c0_113, %c0_114] : memref<1x256xf32, #tpu.memory_space<vmem>>, vector<1x256xf32>
    %134 = vector.broadcast %133 : vector<1x256xf32> to vector<16x256xf32>
    %135 = arith.addf %132, %134 : vector<16x256xf32>
    %cst_115 = arith.constant 0.000000e+00 : f32
    %136 = vector.broadcast %cst_115 : f32 to vector<16x256xf32>
    %137 = arith.cmpf oge, %135, %136 : vector<16x256xf32>
    %cst_116 = arith.constant 1.000000e-01 : f32
    %138 = vector.broadcast %cst_116 : f32 to vector<16x256xf32>
    %139 = arith.mulf %138, %135 : vector<16x256xf32>
    %140 = arith.select %137, %135, %139 : vector<16x256xi1>, vector<16x256xf32>
    %141 = arith.truncf %140 : vector<16x256xf32> to vector<16x256xbf16>
    %c0_117 = arith.constant 0 : index
    %c0_118 = arith.constant 0 : index
    %142 = vector.load %arg17[%c0_117, %c0_118] : memref<256x128xbf16, #tpu.memory_space<vmem>>, vector<256x128xbf16>
    %cst_119 = arith.constant dense<0.000000e+00> : vector<16x128xf32>
    %143 = tpu.matmul %141, %142, %cst_119 {dimension_numbers = #tpu.dot_dimension_numbers<[1], [0], [0], [1], [0, 0, 1, 1], [], []>} : vector<16x256xbf16>, vector<256x128xbf16>, vector<16x128xf32> -> vector<16x128xf32>
    %c0_120 = arith.constant 0 : index
    %c0_121 = arith.constant 0 : index
    %144 = vector.load %arg18[%c0_120, %c0_121] : memref<1x128xf32, #tpu.memory_space<vmem>>, vector<1x128xf32>
    %145 = vector.broadcast %144 : vector<1x128xf32> to vector<16x128xf32>
    %146 = arith.addf %143, %145 : vector<16x128xf32>
    %cst_122 = arith.constant 0.000000e+00 : f32
    %147 = vector.broadcast %cst_122 : f32 to vector<16x128xf32>
    %148 = arith.cmpf oge, %146, %147 : vector<16x128xf32>
    %cst_123 = arith.constant 1.000000e-01 : f32
    %149 = vector.broadcast %cst_123 : f32 to vector<16x128xf32>
    %150 = arith.mulf %149, %146 : vector<16x128xf32>
    %151 = arith.select %148, %146, %150 : vector<16x128xi1>, vector<16x128xf32>
    %152 = arith.truncf %151 : vector<16x128xf32> to vector<16x128xbf16>
    %c0_124 = arith.constant 0 : index
    %c0_125 = arith.constant 0 : index
    %c0_126 = arith.constant 0 : index
    %153 = vector.load %arg19[%c0_124, %c0_125, %c0_126] : memref<3x16x16xbf16, #tpu.memory_space<vmem>>, vector<1x16x16xbf16>
    %154 = vector.shape_cast %153 : vector<1x16x16xbf16> to vector<16x16xbf16>
    %cst_127 = arith.constant dense<0.000000e+00> : vector<16x128xf32>
    %155 = tpu.matmul %154, %152, %cst_127 {dimension_numbers = #tpu.dot_dimension_numbers<[1], [0], [0], [1], [0, 0, 1, 1], [], []>} : vector<16x16xbf16>, vector<16x128xbf16>, vector<16x128xf32> -> vector<16x128xf32>
    %156 = arith.truncf %155 : vector<16x128xf32> to vector<16x128xbf16>
    %c0_128 = arith.constant 0 : index
    %c0_129 = arith.constant 0 : index
    %c0_130 = arith.constant 0 : index
    %157 = vector.load %arg20[%c0_128, %c0_129, %c0_130] : memref<3x128x256xbf16, #tpu.memory_space<vmem>>, vector<1x128x256xbf16>
    %158 = vector.shape_cast %157 : vector<1x128x256xbf16> to vector<128x256xbf16>
    %cst_131 = arith.constant dense<0.000000e+00> : vector<16x256xf32>
    %159 = tpu.matmul %156, %158, %cst_131 {dimension_numbers = #tpu.dot_dimension_numbers<[1], [0], [0], [1], [0, 0, 1, 1], [], []>} : vector<16x128xbf16>, vector<128x256xbf16>, vector<16x256xf32> -> vector<16x256xf32>
    %c1_132 = arith.constant 1 : index
    %c0_133 = arith.constant 0 : index
    %c0_134 = arith.constant 0 : index
    %160 = vector.load %arg19[%c1_132, %c0_133, %c0_134] : memref<3x16x16xbf16, #tpu.memory_space<vmem>>, vector<1x16x16xbf16>
    %161 = vector.shape_cast %160 : vector<1x16x16xbf16> to vector<16x16xbf16>
    %cst_135 = arith.constant dense<0.000000e+00> : vector<16x128xf32>
    %162 = tpu.matmul %161, %152, %cst_135 {dimension_numbers = #tpu.dot_dimension_numbers<[1], [0], [0], [1], [0, 0, 1, 1], [], []>} : vector<16x16xbf16>, vector<16x128xbf16>, vector<16x128xf32> -> vector<16x128xf32>
    %163 = arith.truncf %162 : vector<16x128xf32> to vector<16x128xbf16>
    %c1_136 = arith.constant 1 : index
    %c0_137 = arith.constant 0 : index
    %c0_138 = arith.constant 0 : index
    %164 = vector.load %arg20[%c1_136, %c0_137, %c0_138] : memref<3x128x256xbf16, #tpu.memory_space<vmem>>, vector<1x128x256xbf16>
    %165 = vector.shape_cast %164 : vector<1x128x256xbf16> to vector<128x256xbf16>
    %cst_139 = arith.constant dense<0.000000e+00> : vector<16x256xf32>
    %166 = tpu.matmul %163, %165, %cst_139 {dimension_numbers = #tpu.dot_dimension_numbers<[1], [0], [0], [1], [0, 0, 1, 1], [], []>} : vector<16x128xbf16>, vector<128x256xbf16>, vector<16x256xf32> -> vector<16x256xf32>
    %167 = arith.addf %159, %166 : vector<16x256xf32>
    %c2_140 = arith.constant 2 : index
    %c0_141 = arith.constant 0 : index
    %c0_142 = arith.constant 0 : index
    %168 = vector.load %arg19[%c2_140, %c0_141, %c0_142] : memref<3x16x16xbf16, #tpu.memory_space<vmem>>, vector<1x16x16xbf16>
    %169 = vector.shape_cast %168 : vector<1x16x16xbf16> to vector<16x16xbf16>
    %cst_143 = arith.constant dense<0.000000e+00> : vector<16x128xf32>
    %170 = tpu.matmul %169, %152, %cst_143 {dimension_numbers = #tpu.dot_dimension_numbers<[1], [0], [0], [1], [0, 0, 1, 1], [], []>} : vector<16x16xbf16>, vector<16x128xbf16>, vector<16x128xf32> -> vector<16x128xf32>
    %171 = arith.truncf %170 : vector<16x128xf32> to vector<16x128xbf16>
    %c2_144 = arith.constant 2 : index
    %c0_145 = arith.constant 0 : index
    %c0_146 = arith.constant 0 : index
    %172 = vector.load %arg20[%c2_144, %c0_145, %c0_146] : memref<3x128x256xbf16, #tpu.memory_space<vmem>>, vector<1x128x256xbf16>
    %173 = vector.shape_cast %172 : vector<1x128x256xbf16> to vector<128x256xbf16>
    %cst_147 = arith.constant dense<0.000000e+00> : vector<16x256xf32>
    %174 = tpu.matmul %171, %173, %cst_147 {dimension_numbers = #tpu.dot_dimension_numbers<[1], [0], [0], [1], [0, 0, 1, 1], [], []>} : vector<16x128xbf16>, vector<128x256xbf16>, vector<16x256xf32> -> vector<16x256xf32>
    %175 = arith.addf %167, %174 : vector<16x256xf32>
    %c0_148 = arith.constant 0 : index
    %c0_149 = arith.constant 0 : index
    %176 = vector.load %arg21[%c0_148, %c0_149] : memref<1x256xf32, #tpu.memory_space<vmem>>, vector<1x256xf32>
    %177 = vector.broadcast %176 : vector<1x256xf32> to vector<16x256xf32>
    %178 = arith.addf %175, %177 : vector<16x256xf32>
    %cst_150 = arith.constant 0.000000e+00 : f32
    %179 = vector.broadcast %cst_150 : f32 to vector<16x256xf32>
    %180 = arith.cmpf oge, %178, %179 : vector<16x256xf32>
    %cst_151 = arith.constant 1.000000e-01 : f32
    %181 = vector.broadcast %cst_151 : f32 to vector<16x256xf32>
    %182 = arith.mulf %181, %178 : vector<16x256xf32>
    %183 = arith.select %180, %178, %182 : vector<16x256xi1>, vector<16x256xf32>
    %184 = arith.addf %183, %140 : vector<16x256xf32>
    %185 = arith.truncf %184 : vector<16x256xf32> to vector<16x256xbf16>
    %c0_152 = arith.constant 0 : index
    %c0_153 = arith.constant 0 : index
    %c0_154 = arith.constant 0 : index
    %186 = vector.load %arg22[%c0_152, %c0_153, %c0_154] : memref<3x8x16xbf16, #tpu.memory_space<vmem>>, vector<1x8x16xbf16>
    %187 = vector.shape_cast %186 : vector<1x8x16xbf16> to vector<8x16xbf16>
    %cst_155 = arith.constant dense<0.000000e+00> : vector<8x256xf32>
    %188 = tpu.matmul %187, %185, %cst_155 {dimension_numbers = #tpu.dot_dimension_numbers<[1], [0], [0], [1], [0, 0, 1, 1], [], []>} : vector<8x16xbf16>, vector<16x256xbf16>, vector<8x256xf32> -> vector<8x256xf32>
    %189 = arith.truncf %188 : vector<8x256xf32> to vector<8x256xbf16>
    %c0_156 = arith.constant 0 : index
    %c0_157 = arith.constant 0 : index
    %c0_158 = arith.constant 0 : index
    %190 = vector.load %arg23[%c0_156, %c0_157, %c0_158] : memref<3x256x256xbf16, #tpu.memory_space<vmem>>, vector<1x256x256xbf16>
    %191 = vector.shape_cast %190 : vector<1x256x256xbf16> to vector<256x256xbf16>
    %cst_159 = arith.constant dense<0.000000e+00> : vector<8x256xf32>
    %192 = tpu.matmul %189, %191, %cst_159 {dimension_numbers = #tpu.dot_dimension_numbers<[1], [0], [0], [1], [0, 0, 1, 1], [], []>} : vector<8x256xbf16>, vector<256x256xbf16>, vector<8x256xf32> -> vector<8x256xf32>
    %c1_160 = arith.constant 1 : index
    %c0_161 = arith.constant 0 : index
    %c0_162 = arith.constant 0 : index
    %193 = vector.load %arg22[%c1_160, %c0_161, %c0_162] : memref<3x8x16xbf16, #tpu.memory_space<vmem>>, vector<1x8x16xbf16>
    %194 = vector.shape_cast %193 : vector<1x8x16xbf16> to vector<8x16xbf16>
    %cst_163 = arith.constant dense<0.000000e+00> : vector<8x256xf32>
    %195 = tpu.matmul %194, %185, %cst_163 {dimension_numbers = #tpu.dot_dimension_numbers<[1], [0], [0], [1], [0, 0, 1, 1], [], []>} : vector<8x16xbf16>, vector<16x256xbf16>, vector<8x256xf32> -> vector<8x256xf32>
    %196 = arith.truncf %195 : vector<8x256xf32> to vector<8x256xbf16>
    %c1_164 = arith.constant 1 : index
    %c0_165 = arith.constant 0 : index
    %c0_166 = arith.constant 0 : index
    %197 = vector.load %arg23[%c1_164, %c0_165, %c0_166] : memref<3x256x256xbf16, #tpu.memory_space<vmem>>, vector<1x256x256xbf16>
    %198 = vector.shape_cast %197 : vector<1x256x256xbf16> to vector<256x256xbf16>
    %cst_167 = arith.constant dense<0.000000e+00> : vector<8x256xf32>
    %199 = tpu.matmul %196, %198, %cst_167 {dimension_numbers = #tpu.dot_dimension_numbers<[1], [0], [0], [1], [0, 0, 1, 1], [], []>} : vector<8x256xbf16>, vector<256x256xbf16>, vector<8x256xf32> -> vector<8x256xf32>
    %200 = arith.addf %192, %199 : vector<8x256xf32>
    %c2_168 = arith.constant 2 : index
    %c0_169 = arith.constant 0 : index
    %c0_170 = arith.constant 0 : index
    %201 = vector.load %arg22[%c2_168, %c0_169, %c0_170] : memref<3x8x16xbf16, #tpu.memory_space<vmem>>, vector<1x8x16xbf16>
    %202 = vector.shape_cast %201 : vector<1x8x16xbf16> to vector<8x16xbf16>
    %cst_171 = arith.constant dense<0.000000e+00> : vector<8x256xf32>
    %203 = tpu.matmul %202, %185, %cst_171 {dimension_numbers = #tpu.dot_dimension_numbers<[1], [0], [0], [1], [0, 0, 1, 1], [], []>} : vector<8x16xbf16>, vector<16x256xbf16>, vector<8x256xf32> -> vector<8x256xf32>
    %204 = arith.truncf %203 : vector<8x256xf32> to vector<8x256xbf16>
    %c2_172 = arith.constant 2 : index
    %c0_173 = arith.constant 0 : index
    %c0_174 = arith.constant 0 : index
    %205 = vector.load %arg23[%c2_172, %c0_173, %c0_174] : memref<3x256x256xbf16, #tpu.memory_space<vmem>>, vector<1x256x256xbf16>
    %206 = vector.shape_cast %205 : vector<1x256x256xbf16> to vector<256x256xbf16>
    %cst_175 = arith.constant dense<0.000000e+00> : vector<8x256xf32>
    %207 = tpu.matmul %204, %206, %cst_175 {dimension_numbers = #tpu.dot_dimension_numbers<[1], [0], [0], [1], [0, 0, 1, 1], [], []>} : vector<8x256xbf16>, vector<256x256xbf16>, vector<8x256xf32> -> vector<8x256xf32>
    %208 = arith.addf %200, %207 : vector<8x256xf32>
    %c0_176 = arith.constant 0 : index
    %c0_177 = arith.constant 0 : index
    %209 = vector.load %arg24[%c0_176, %c0_177] : memref<1x256xf32, #tpu.memory_space<vmem>>, vector<1x256xf32>
    %210 = vector.broadcast %209 : vector<1x256xf32> to vector<8x256xf32>
    %211 = arith.addf %208, %210 : vector<8x256xf32>
    %cst_178 = arith.constant 0.000000e+00 : f32
    %212 = vector.broadcast %cst_178 : f32 to vector<8x256xf32>
    %213 = arith.cmpf oge, %211, %212 : vector<8x256xf32>
    %cst_179 = arith.constant 1.000000e-01 : f32
    %214 = vector.broadcast %cst_179 : f32 to vector<8x256xf32>
    %215 = arith.mulf %214, %211 : vector<8x256xf32>
    %216 = arith.select %213, %211, %215 : vector<8x256xi1>, vector<8x256xf32>
    %217 = arith.truncf %216 : vector<8x256xf32> to vector<8x256xbf16>
    %c0_180 = arith.constant 0 : index
    %c0_181 = arith.constant 0 : index
    %218 = vector.load %arg25[%c0_180, %c0_181] : memref<256x128xbf16, #tpu.memory_space<vmem>>, vector<256x128xbf16>
    %cst_182 = arith.constant dense<0.000000e+00> : vector<8x128xf32>
    %219 = tpu.matmul %217, %218, %cst_182 {dimension_numbers = #tpu.dot_dimension_numbers<[1], [0], [0], [1], [0, 0, 1, 1], [], []>} : vector<8x256xbf16>, vector<256x128xbf16>, vector<8x128xf32> -> vector<8x128xf32>
    %c0_183 = arith.constant 0 : index
    %c0_184 = arith.constant 0 : index
    %220 = vector.load %arg26[%c0_183, %c0_184] : memref<1x128xf32, #tpu.memory_space<vmem>>, vector<1x128xf32>
    %221 = vector.broadcast %220 : vector<1x128xf32> to vector<8x128xf32>
    %222 = arith.addf %219, %221 : vector<8x128xf32>
    %cst_185 = arith.constant 0.000000e+00 : f32
    %223 = vector.broadcast %cst_185 : f32 to vector<8x128xf32>
    %224 = arith.cmpf oge, %222, %223 : vector<8x128xf32>
    %cst_186 = arith.constant 1.000000e-01 : f32
    %225 = vector.broadcast %cst_186 : f32 to vector<8x128xf32>
    %226 = arith.mulf %225, %222 : vector<8x128xf32>
    %227 = arith.select %224, %222, %226 : vector<8x128xi1>, vector<8x128xf32>
    %228 = arith.truncf %227 : vector<8x128xf32> to vector<8x128xbf16>
    %c0_187 = arith.constant 0 : index
    %c0_188 = arith.constant 0 : index
    %c0_189 = arith.constant 0 : index
    %229 = vector.load %arg27[%c0_187, %c0_188, %c0_189] : memref<3x8x8xbf16, #tpu.memory_space<vmem>>, vector<1x8x8xbf16>
    %230 = vector.shape_cast %229 : vector<1x8x8xbf16> to vector<8x8xbf16>
    %cst_190 = arith.constant dense<0.000000e+00> : vector<8x128xf32>
    %231 = tpu.matmul %230, %228, %cst_190 {dimension_numbers = #tpu.dot_dimension_numbers<[1], [0], [0], [1], [0, 0, 1, 1], [], []>} : vector<8x8xbf16>, vector<8x128xbf16>, vector<8x128xf32> -> vector<8x128xf32>
    %232 = arith.truncf %231 : vector<8x128xf32> to vector<8x128xbf16>
    %c0_191 = arith.constant 0 : index
    %c0_192 = arith.constant 0 : index
    %c0_193 = arith.constant 0 : index
    %233 = vector.load %arg28[%c0_191, %c0_192, %c0_193] : memref<3x128x256xbf16, #tpu.memory_space<vmem>>, vector<1x128x256xbf16>
    %234 = vector.shape_cast %233 : vector<1x128x256xbf16> to vector<128x256xbf16>
    %cst_194 = arith.constant dense<0.000000e+00> : vector<8x256xf32>
    %235 = tpu.matmul %232, %234, %cst_194 {dimension_numbers = #tpu.dot_dimension_numbers<[1], [0], [0], [1], [0, 0, 1, 1], [], []>} : vector<8x128xbf16>, vector<128x256xbf16>, vector<8x256xf32> -> vector<8x256xf32>
    %c1_195 = arith.constant 1 : index
    %c0_196 = arith.constant 0 : index
    %c0_197 = arith.constant 0 : index
    %236 = vector.load %arg27[%c1_195, %c0_196, %c0_197] : memref<3x8x8xbf16, #tpu.memory_space<vmem>>, vector<1x8x8xbf16>
    %237 = vector.shape_cast %236 : vector<1x8x8xbf16> to vector<8x8xbf16>
    %cst_198 = arith.constant dense<0.000000e+00> : vector<8x128xf32>
    %238 = tpu.matmul %237, %228, %cst_198 {dimension_numbers = #tpu.dot_dimension_numbers<[1], [0], [0], [1], [0, 0, 1, 1], [], []>} : vector<8x8xbf16>, vector<8x128xbf16>, vector<8x128xf32> -> vector<8x128xf32>
    %239 = arith.truncf %238 : vector<8x128xf32> to vector<8x128xbf16>
    %c1_199 = arith.constant 1 : index
    %c0_200 = arith.constant 0 : index
    %c0_201 = arith.constant 0 : index
    %240 = vector.load %arg28[%c1_199, %c0_200, %c0_201] : memref<3x128x256xbf16, #tpu.memory_space<vmem>>, vector<1x128x256xbf16>
    %241 = vector.shape_cast %240 : vector<1x128x256xbf16> to vector<128x256xbf16>
    %cst_202 = arith.constant dense<0.000000e+00> : vector<8x256xf32>
    %242 = tpu.matmul %239, %241, %cst_202 {dimension_numbers = #tpu.dot_dimension_numbers<[1], [0], [0], [1], [0, 0, 1, 1], [], []>} : vector<8x128xbf16>, vector<128x256xbf16>, vector<8x256xf32> -> vector<8x256xf32>
    %243 = arith.addf %235, %242 : vector<8x256xf32>
    %c2_203 = arith.constant 2 : index
    %c0_204 = arith.constant 0 : index
    %c0_205 = arith.constant 0 : index
    %244 = vector.load %arg27[%c2_203, %c0_204, %c0_205] : memref<3x8x8xbf16, #tpu.memory_space<vmem>>, vector<1x8x8xbf16>
    %245 = vector.shape_cast %244 : vector<1x8x8xbf16> to vector<8x8xbf16>
    %cst_206 = arith.constant dense<0.000000e+00> : vector<8x128xf32>
    %246 = tpu.matmul %245, %228, %cst_206 {dimension_numbers = #tpu.dot_dimension_numbers<[1], [0], [0], [1], [0, 0, 1, 1], [], []>} : vector<8x8xbf16>, vector<8x128xbf16>, vector<8x128xf32> -> vector<8x128xf32>
    %247 = arith.truncf %246 : vector<8x128xf32> to vector<8x128xbf16>
    %c2_207 = arith.constant 2 : index
    %c0_208 = arith.constant 0 : index
    %c0_209 = arith.constant 0 : index
    %248 = vector.load %arg28[%c2_207, %c0_208, %c0_209] : memref<3x128x256xbf16, #tpu.memory_space<vmem>>, vector<1x128x256xbf16>
    %249 = vector.shape_cast %248 : vector<1x128x256xbf16> to vector<128x256xbf16>
    %cst_210 = arith.constant dense<0.000000e+00> : vector<8x256xf32>
    %250 = tpu.matmul %247, %249, %cst_210 {dimension_numbers = #tpu.dot_dimension_numbers<[1], [0], [0], [1], [0, 0, 1, 1], [], []>} : vector<8x128xbf16>, vector<128x256xbf16>, vector<8x256xf32> -> vector<8x256xf32>
    %251 = arith.addf %243, %250 : vector<8x256xf32>
    %c0_211 = arith.constant 0 : index
    %c0_212 = arith.constant 0 : index
    %252 = vector.load %arg29[%c0_211, %c0_212] : memref<1x256xf32, #tpu.memory_space<vmem>>, vector<1x256xf32>
    %253 = vector.broadcast %252 : vector<1x256xf32> to vector<8x256xf32>
    %254 = arith.addf %251, %253 : vector<8x256xf32>
    %cst_213 = arith.constant 0.000000e+00 : f32
    %255 = vector.broadcast %cst_213 : f32 to vector<8x256xf32>
    %256 = arith.cmpf oge, %254, %255 : vector<8x256xf32>
    %cst_214 = arith.constant 1.000000e-01 : f32
    %257 = vector.broadcast %cst_214 : f32 to vector<8x256xf32>
    %258 = arith.mulf %257, %254 : vector<8x256xf32>
    %259 = arith.select %256, %254, %258 : vector<8x256xi1>, vector<8x256xf32>
    %260 = arith.addf %259, %216 : vector<8x256xf32>
    %261 = arith.truncf %260 : vector<8x256xf32> to vector<8x256xbf16>
    %c0_215 = arith.constant 0 : index
    %c0_216 = arith.constant 0 : index
    %c0_217 = arith.constant 0 : index
    %262 = vector.load %arg30[%c0_215, %c0_216, %c0_217] : memref<3x4x8xbf16, #tpu.memory_space<vmem>>, vector<1x4x8xbf16>
    %263 = vector.shape_cast %262 : vector<1x4x8xbf16> to vector<4x8xbf16>
    %cst_218 = arith.constant dense<0.000000e+00> : vector<4x256xf32>
    %264 = tpu.matmul %263, %261, %cst_218 {dimension_numbers = #tpu.dot_dimension_numbers<[1], [0], [0], [1], [0, 0, 1, 1], [], []>} : vector<4x8xbf16>, vector<8x256xbf16>, vector<4x256xf32> -> vector<4x256xf32>
    %265 = arith.truncf %264 : vector<4x256xf32> to vector<4x256xbf16>
    %c0_219 = arith.constant 0 : index
    %c0_220 = arith.constant 0 : index
    %c0_221 = arith.constant 0 : index
    %266 = vector.load %arg31[%c0_219, %c0_220, %c0_221] : memref<3x256x256xbf16, #tpu.memory_space<vmem>>, vector<1x256x256xbf16>
    %267 = vector.shape_cast %266 : vector<1x256x256xbf16> to vector<256x256xbf16>
    %cst_222 = arith.constant dense<0.000000e+00> : vector<4x256xf32>
    %268 = tpu.matmul %265, %267, %cst_222 {dimension_numbers = #tpu.dot_dimension_numbers<[1], [0], [0], [1], [0, 0, 1, 1], [], []>} : vector<4x256xbf16>, vector<256x256xbf16>, vector<4x256xf32> -> vector<4x256xf32>
    %c1_223 = arith.constant 1 : index
    %c0_224 = arith.constant 0 : index
    %c0_225 = arith.constant 0 : index
    %269 = vector.load %arg30[%c1_223, %c0_224, %c0_225] : memref<3x4x8xbf16, #tpu.memory_space<vmem>>, vector<1x4x8xbf16>
    %270 = vector.shape_cast %269 : vector<1x4x8xbf16> to vector<4x8xbf16>
    %cst_226 = arith.constant dense<0.000000e+00> : vector<4x256xf32>
    %271 = tpu.matmul %270, %261, %cst_226 {dimension_numbers = #tpu.dot_dimension_numbers<[1], [0], [0], [1], [0, 0, 1, 1], [], []>} : vector<4x8xbf16>, vector<8x256xbf16>, vector<4x256xf32> -> vector<4x256xf32>
    %272 = arith.truncf %271 : vector<4x256xf32> to vector<4x256xbf16>
    %c1_227 = arith.constant 1 : index
    %c0_228 = arith.constant 0 : index
    %c0_229 = arith.constant 0 : index
    %273 = vector.load %arg31[%c1_227, %c0_228, %c0_229] : memref<3x256x256xbf16, #tpu.memory_space<vmem>>, vector<1x256x256xbf16>
    %274 = vector.shape_cast %273 : vector<1x256x256xbf16> to vector<256x256xbf16>
    %cst_230 = arith.constant dense<0.000000e+00> : vector<4x256xf32>
    %275 = tpu.matmul %272, %274, %cst_230 {dimension_numbers = #tpu.dot_dimension_numbers<[1], [0], [0], [1], [0, 0, 1, 1], [], []>} : vector<4x256xbf16>, vector<256x256xbf16>, vector<4x256xf32> -> vector<4x256xf32>
    %276 = arith.addf %268, %275 : vector<4x256xf32>
    %c2_231 = arith.constant 2 : index
    %c0_232 = arith.constant 0 : index
    %c0_233 = arith.constant 0 : index
    %277 = vector.load %arg30[%c2_231, %c0_232, %c0_233] : memref<3x4x8xbf16, #tpu.memory_space<vmem>>, vector<1x4x8xbf16>
    %278 = vector.shape_cast %277 : vector<1x4x8xbf16> to vector<4x8xbf16>
    %cst_234 = arith.constant dense<0.000000e+00> : vector<4x256xf32>
    %279 = tpu.matmul %278, %261, %cst_234 {dimension_numbers = #tpu.dot_dimension_numbers<[1], [0], [0], [1], [0, 0, 1, 1], [], []>} : vector<4x8xbf16>, vector<8x256xbf16>, vector<4x256xf32> -> vector<4x256xf32>
    %280 = arith.truncf %279 : vector<4x256xf32> to vector<4x256xbf16>
    %c2_235 = arith.constant 2 : index
    %c0_236 = arith.constant 0 : index
    %c0_237 = arith.constant 0 : index
    %281 = vector.load %arg31[%c2_235, %c0_236, %c0_237] : memref<3x256x256xbf16, #tpu.memory_space<vmem>>, vector<1x256x256xbf16>
    %282 = vector.shape_cast %281 : vector<1x256x256xbf16> to vector<256x256xbf16>
    %cst_238 = arith.constant dense<0.000000e+00> : vector<4x256xf32>
    %283 = tpu.matmul %280, %282, %cst_238 {dimension_numbers = #tpu.dot_dimension_numbers<[1], [0], [0], [1], [0, 0, 1, 1], [], []>} : vector<4x256xbf16>, vector<256x256xbf16>, vector<4x256xf32> -> vector<4x256xf32>
    %284 = arith.addf %276, %283 : vector<4x256xf32>
    %c0_239 = arith.constant 0 : index
    %c0_240 = arith.constant 0 : index
    %285 = vector.load %arg32[%c0_239, %c0_240] : memref<1x256xf32, #tpu.memory_space<vmem>>, vector<1x256xf32>
    %286 = vector.broadcast %285 : vector<1x256xf32> to vector<4x256xf32>
    %287 = arith.addf %284, %286 : vector<4x256xf32>
    %cst_241 = arith.constant 0.000000e+00 : f32
    %288 = vector.broadcast %cst_241 : f32 to vector<4x256xf32>
    %289 = arith.cmpf oge, %287, %288 : vector<4x256xf32>
    %cst_242 = arith.constant 1.000000e-01 : f32
    %290 = vector.broadcast %cst_242 : f32 to vector<4x256xf32>
    %291 = arith.mulf %290, %287 : vector<4x256xf32>
    %292 = arith.select %289, %287, %291 : vector<4x256xi1>, vector<4x256xf32>
    %293 = arith.truncf %292 : vector<4x256xf32> to vector<4x256xbf16>
    %c0_243 = arith.constant 0 : index
    %c0_244 = arith.constant 0 : index
    %294 = vector.load %arg33[%c0_243, %c0_244] : memref<256x128xbf16, #tpu.memory_space<vmem>>, vector<256x128xbf16>
    %cst_245 = arith.constant dense<0.000000e+00> : vector<4x128xf32>
    %295 = tpu.matmul %293, %294, %cst_245 {dimension_numbers = #tpu.dot_dimension_numbers<[1], [0], [0], [1], [0, 0, 1, 1], [], []>} : vector<4x256xbf16>, vector<256x128xbf16>, vector<4x128xf32> -> vector<4x128xf32>
    %c0_246 = arith.constant 0 : index
    %c0_247 = arith.constant 0 : index
    %296 = vector.load %arg34[%c0_246, %c0_247] : memref<1x128xf32, #tpu.memory_space<vmem>>, vector<1x128xf32>
    %297 = vector.broadcast %296 : vector<1x128xf32> to vector<4x128xf32>
    %298 = arith.addf %295, %297 : vector<4x128xf32>
    %cst_248 = arith.constant 0.000000e+00 : f32
    %299 = vector.broadcast %cst_248 : f32 to vector<4x128xf32>
    %300 = arith.cmpf oge, %298, %299 : vector<4x128xf32>
    %cst_249 = arith.constant 1.000000e-01 : f32
    %301 = vector.broadcast %cst_249 : f32 to vector<4x128xf32>
    %302 = arith.mulf %301, %298 : vector<4x128xf32>
    %303 = arith.select %300, %298, %302 : vector<4x128xi1>, vector<4x128xf32>
    %304 = arith.truncf %303 : vector<4x128xf32> to vector<4x128xbf16>
    %c0_250 = arith.constant 0 : index
    %c0_251 = arith.constant 0 : index
    %c0_252 = arith.constant 0 : index
    %305 = vector.load %arg35[%c0_250, %c0_251, %c0_252] : memref<3x4x4xbf16, #tpu.memory_space<vmem>>, vector<1x4x4xbf16>
    %306 = vector.shape_cast %305 : vector<1x4x4xbf16> to vector<4x4xbf16>
    %cst_253 = arith.constant dense<0.000000e+00> : vector<4x128xf32>
    %307 = tpu.matmul %306, %304, %cst_253 {dimension_numbers = #tpu.dot_dimension_numbers<[1], [0], [0], [1], [0, 0, 1, 1], [], []>} : vector<4x4xbf16>, vector<4x128xbf16>, vector<4x128xf32> -> vector<4x128xf32>
    %308 = arith.truncf %307 : vector<4x128xf32> to vector<4x128xbf16>
    %c0_254 = arith.constant 0 : index
    %c0_255 = arith.constant 0 : index
    %c0_256 = arith.constant 0 : index
    %309 = vector.load %arg36[%c0_254, %c0_255, %c0_256] : memref<3x128x256xbf16, #tpu.memory_space<vmem>>, vector<1x128x256xbf16>
    %310 = vector.shape_cast %309 : vector<1x128x256xbf16> to vector<128x256xbf16>
    %cst_257 = arith.constant dense<0.000000e+00> : vector<4x256xf32>
    %311 = tpu.matmul %308, %310, %cst_257 {dimension_numbers = #tpu.dot_dimension_numbers<[1], [0], [0], [1], [0, 0, 1, 1], [], []>} : vector<4x128xbf16>, vector<128x256xbf16>, vector<4x256xf32> -> vector<4x256xf32>
    %c1_258 = arith.constant 1 : index
    %c0_259 = arith.constant 0 : index
    %c0_260 = arith.constant 0 : index
    %312 = vector.load %arg35[%c1_258, %c0_259, %c0_260] : memref<3x4x4xbf16, #tpu.memory_space<vmem>>, vector<1x4x4xbf16>
    %313 = vector.shape_cast %312 : vector<1x4x4xbf16> to vector<4x4xbf16>
    %cst_261 = arith.constant dense<0.000000e+00> : vector<4x128xf32>
    %314 = tpu.matmul %313, %304, %cst_261 {dimension_numbers = #tpu.dot_dimension_numbers<[1], [0], [0], [1], [0, 0, 1, 1], [], []>} : vector<4x4xbf16>, vector<4x128xbf16>, vector<4x128xf32> -> vector<4x128xf32>
    %315 = arith.truncf %314 : vector<4x128xf32> to vector<4x128xbf16>
    %c1_262 = arith.constant 1 : index
    %c0_263 = arith.constant 0 : index
    %c0_264 = arith.constant 0 : index
    %316 = vector.load %arg36[%c1_262, %c0_263, %c0_264] : memref<3x128x256xbf16, #tpu.memory_space<vmem>>, vector<1x128x256xbf16>
    %317 = vector.shape_cast %316 : vector<1x128x256xbf16> to vector<128x256xbf16>
    %cst_265 = arith.constant dense<0.000000e+00> : vector<4x256xf32>
    %318 = tpu.matmul %315, %317, %cst_265 {dimension_numbers = #tpu.dot_dimension_numbers<[1], [0], [0], [1], [0, 0, 1, 1], [], []>} : vector<4x128xbf16>, vector<128x256xbf16>, vector<4x256xf32> -> vector<4x256xf32>
    %319 = arith.addf %311, %318 : vector<4x256xf32>
    %c2_266 = arith.constant 2 : index
    %c0_267 = arith.constant 0 : index
    %c0_268 = arith.constant 0 : index
    %320 = vector.load %arg35[%c2_266, %c0_267, %c0_268] : memref<3x4x4xbf16, #tpu.memory_space<vmem>>, vector<1x4x4xbf16>
    %321 = vector.shape_cast %320 : vector<1x4x4xbf16> to vector<4x4xbf16>
    %cst_269 = arith.constant dense<0.000000e+00> : vector<4x128xf32>
    %322 = tpu.matmul %321, %304, %cst_269 {dimension_numbers = #tpu.dot_dimension_numbers<[1], [0], [0], [1], [0, 0, 1, 1], [], []>} : vector<4x4xbf16>, vector<4x128xbf16>, vector<4x128xf32> -> vector<4x128xf32>
    %323 = arith.truncf %322 : vector<4x128xf32> to vector<4x128xbf16>
    %c2_270 = arith.constant 2 : index
    %c0_271 = arith.constant 0 : index
    %c0_272 = arith.constant 0 : index
    %324 = vector.load %arg36[%c2_270, %c0_271, %c0_272] : memref<3x128x256xbf16, #tpu.memory_space<vmem>>, vector<1x128x256xbf16>
    %325 = vector.shape_cast %324 : vector<1x128x256xbf16> to vector<128x256xbf16>
    %cst_273 = arith.constant dense<0.000000e+00> : vector<4x256xf32>
    %326 = tpu.matmul %323, %325, %cst_273 {dimension_numbers = #tpu.dot_dimension_numbers<[1], [0], [0], [1], [0, 0, 1, 1], [], []>} : vector<4x128xbf16>, vector<128x256xbf16>, vector<4x256xf32> -> vector<4x256xf32>
    %327 = arith.addf %319, %326 : vector<4x256xf32>
    %c0_274 = arith.constant 0 : index
    %c0_275 = arith.constant 0 : index
    %328 = vector.load %arg37[%c0_274, %c0_275] : memref<1x256xf32, #tpu.memory_space<vmem>>, vector<1x256xf32>
    %329 = vector.broadcast %328 : vector<1x256xf32> to vector<4x256xf32>
    %330 = arith.addf %327, %329 : vector<4x256xf32>
    %cst_276 = arith.constant 0.000000e+00 : f32
    %331 = vector.broadcast %cst_276 : f32 to vector<4x256xf32>
    %332 = arith.cmpf oge, %330, %331 : vector<4x256xf32>
    %cst_277 = arith.constant 1.000000e-01 : f32
    %333 = vector.broadcast %cst_277 : f32 to vector<4x256xf32>
    %334 = arith.mulf %333, %330 : vector<4x256xf32>
    %335 = arith.select %332, %330, %334 : vector<4x256xi1>, vector<4x256xf32>
    %336 = arith.addf %335, %292 : vector<4x256xf32>
    %337 = arith.truncf %336 : vector<4x256xf32> to vector<4x256xbf16>
    %c0_278 = arith.constant 0 : index
    %c0_279 = arith.constant 0 : index
    %c0_280 = arith.constant 0 : index
    %338 = vector.load %arg38[%c0_278, %c0_279, %c0_280] : memref<3x2x4xbf16, #tpu.memory_space<vmem>>, vector<1x2x4xbf16>
    %339 = vector.shape_cast %338 : vector<1x2x4xbf16> to vector<2x4xbf16>
    %cst_281 = arith.constant dense<0.000000e+00> : vector<2x256xf32>
    %340 = tpu.matmul %339, %337, %cst_281 {dimension_numbers = #tpu.dot_dimension_numbers<[1], [0], [0], [1], [0, 0, 1, 1], [], []>} : vector<2x4xbf16>, vector<4x256xbf16>, vector<2x256xf32> -> vector<2x256xf32>
    %341 = arith.truncf %340 : vector<2x256xf32> to vector<2x256xbf16>
    %c0_282 = arith.constant 0 : index
    %c0_283 = arith.constant 0 : index
    %c0_284 = arith.constant 0 : index
    %342 = vector.load %arg39[%c0_282, %c0_283, %c0_284] : memref<3x256x256xbf16, #tpu.memory_space<vmem>>, vector<1x256x256xbf16>
    %343 = vector.shape_cast %342 : vector<1x256x256xbf16> to vector<256x256xbf16>
    %cst_285 = arith.constant dense<0.000000e+00> : vector<2x256xf32>
    %344 = tpu.matmul %341, %343, %cst_285 {dimension_numbers = #tpu.dot_dimension_numbers<[1], [0], [0], [1], [0, 0, 1, 1], [], []>} : vector<2x256xbf16>, vector<256x256xbf16>, vector<2x256xf32> -> vector<2x256xf32>
    %c1_286 = arith.constant 1 : index
    %c0_287 = arith.constant 0 : index
    %c0_288 = arith.constant 0 : index
    %345 = vector.load %arg38[%c1_286, %c0_287, %c0_288] : memref<3x2x4xbf16, #tpu.memory_space<vmem>>, vector<1x2x4xbf16>
    %346 = vector.shape_cast %345 : vector<1x2x4xbf16> to vector<2x4xbf16>
    %cst_289 = arith.constant dense<0.000000e+00> : vector<2x256xf32>
    %347 = tpu.matmul %346, %337, %cst_289 {dimension_numbers = #tpu.dot_dimension_numbers<[1], [0], [0], [1], [0, 0, 1, 1], [], []>} : vector<2x4xbf16>, vector<4x256xbf16>, vector<2x256xf32> -> vector<2x256xf32>
    %348 = arith.truncf %347 : vector<2x256xf32> to vector<2x256xbf16>
    %c1_290 = arith.constant 1 : index
    %c0_291 = arith.constant 0 : index
    %c0_292 = arith.constant 0 : index
    %349 = vector.load %arg39[%c1_290, %c0_291, %c0_292] : memref<3x256x256xbf16, #tpu.memory_space<vmem>>, vector<1x256x256xbf16>
    %350 = vector.shape_cast %349 : vector<1x256x256xbf16> to vector<256x256xbf16>
    %cst_293 = arith.constant dense<0.000000e+00> : vector<2x256xf32>
    %351 = tpu.matmul %348, %350, %cst_293 {dimension_numbers = #tpu.dot_dimension_numbers<[1], [0], [0], [1], [0, 0, 1, 1], [], []>} : vector<2x256xbf16>, vector<256x256xbf16>, vector<2x256xf32> -> vector<2x256xf32>
    %352 = arith.addf %344, %351 : vector<2x256xf32>
    %c2_294 = arith.constant 2 : index
    %c0_295 = arith.constant 0 : index
    %c0_296 = arith.constant 0 : index
    %353 = vector.load %arg38[%c2_294, %c0_295, %c0_296] : memref<3x2x4xbf16, #tpu.memory_space<vmem>>, vector<1x2x4xbf16>
    %354 = vector.shape_cast %353 : vector<1x2x4xbf16> to vector<2x4xbf16>
    %cst_297 = arith.constant dense<0.000000e+00> : vector<2x256xf32>
    %355 = tpu.matmul %354, %337, %cst_297 {dimension_numbers = #tpu.dot_dimension_numbers<[1], [0], [0], [1], [0, 0, 1, 1], [], []>} : vector<2x4xbf16>, vector<4x256xbf16>, vector<2x256xf32> -> vector<2x256xf32>
    %356 = arith.truncf %355 : vector<2x256xf32> to vector<2x256xbf16>
    %c2_298 = arith.constant 2 : index
    %c0_299 = arith.constant 0 : index
    %c0_300 = arith.constant 0 : index
    %357 = vector.load %arg39[%c2_298, %c0_299, %c0_300] : memref<3x256x256xbf16, #tpu.memory_space<vmem>>, vector<1x256x256xbf16>
    %358 = vector.shape_cast %357 : vector<1x256x256xbf16> to vector<256x256xbf16>
    %cst_301 = arith.constant dense<0.000000e+00> : vector<2x256xf32>
    %359 = tpu.matmul %356, %358, %cst_301 {dimension_numbers = #tpu.dot_dimension_numbers<[1], [0], [0], [1], [0, 0, 1, 1], [], []>} : vector<2x256xbf16>, vector<256x256xbf16>, vector<2x256xf32> -> vector<2x256xf32>
    %360 = arith.addf %352, %359 : vector<2x256xf32>
    %c0_302 = arith.constant 0 : index
    %c0_303 = arith.constant 0 : index
    %361 = vector.load %arg40[%c0_302, %c0_303] : memref<1x256xf32, #tpu.memory_space<vmem>>, vector<1x256xf32>
    %362 = vector.broadcast %361 : vector<1x256xf32> to vector<2x256xf32>
    %363 = arith.addf %360, %362 : vector<2x256xf32>
    %cst_304 = arith.constant 0.000000e+00 : f32
    %364 = vector.broadcast %cst_304 : f32 to vector<2x256xf32>
    %365 = arith.cmpf oge, %363, %364 : vector<2x256xf32>
    %cst_305 = arith.constant 1.000000e-01 : f32
    %366 = vector.broadcast %cst_305 : f32 to vector<2x256xf32>
    %367 = arith.mulf %366, %363 : vector<2x256xf32>
    %368 = arith.select %365, %363, %367 : vector<2x256xi1>, vector<2x256xf32>
    %369 = arith.truncf %368 : vector<2x256xf32> to vector<2x256xbf16>
    %c0_306 = arith.constant 0 : index
    %c0_307 = arith.constant 0 : index
    %370 = vector.load %arg41[%c0_306, %c0_307] : memref<256x128xbf16, #tpu.memory_space<vmem>>, vector<256x128xbf16>
    %cst_308 = arith.constant dense<0.000000e+00> : vector<2x128xf32>
    %371 = tpu.matmul %369, %370, %cst_308 {dimension_numbers = #tpu.dot_dimension_numbers<[1], [0], [0], [1], [0, 0, 1, 1], [], []>} : vector<2x256xbf16>, vector<256x128xbf16>, vector<2x128xf32> -> vector<2x128xf32>
    %c0_309 = arith.constant 0 : index
    %c0_310 = arith.constant 0 : index
    %372 = vector.load %arg42[%c0_309, %c0_310] : memref<1x128xf32, #tpu.memory_space<vmem>>, vector<1x128xf32>
    %373 = vector.broadcast %372 : vector<1x128xf32> to vector<2x128xf32>
    %374 = arith.addf %371, %373 : vector<2x128xf32>
    %cst_311 = arith.constant 0.000000e+00 : f32
    %375 = vector.broadcast %cst_311 : f32 to vector<2x128xf32>
    %376 = arith.cmpf oge, %374, %375 : vector<2x128xf32>
    %cst_312 = arith.constant 1.000000e-01 : f32
    %377 = vector.broadcast %cst_312 : f32 to vector<2x128xf32>
    %378 = arith.mulf %377, %374 : vector<2x128xf32>
    %379 = arith.select %376, %374, %378 : vector<2x128xi1>, vector<2x128xf32>
    %380 = arith.truncf %379 : vector<2x128xf32> to vector<2x128xbf16>
    %c0_313 = arith.constant 0 : index
    %c0_314 = arith.constant 0 : index
    %c0_315 = arith.constant 0 : index
    %381 = vector.load %arg43[%c0_313, %c0_314, %c0_315] : memref<3x2x2xbf16, #tpu.memory_space<vmem>>, vector<1x2x2xbf16>
    %382 = vector.shape_cast %381 : vector<1x2x2xbf16> to vector<2x2xbf16>
    %cst_316 = arith.constant dense<0.000000e+00> : vector<2x128xf32>
    %383 = tpu.matmul %382, %380, %cst_316 {dimension_numbers = #tpu.dot_dimension_numbers<[1], [0], [0], [1], [0, 0, 1, 1], [], []>} : vector<2x2xbf16>, vector<2x128xbf16>, vector<2x128xf32> -> vector<2x128xf32>
    %384 = arith.truncf %383 : vector<2x128xf32> to vector<2x128xbf16>
    %c0_317 = arith.constant 0 : index
    %c0_318 = arith.constant 0 : index
    %c0_319 = arith.constant 0 : index
    %385 = vector.load %arg44[%c0_317, %c0_318, %c0_319] : memref<3x128x256xbf16, #tpu.memory_space<vmem>>, vector<1x128x256xbf16>
    %386 = vector.shape_cast %385 : vector<1x128x256xbf16> to vector<128x256xbf16>
    %cst_320 = arith.constant dense<0.000000e+00> : vector<2x256xf32>
    %387 = tpu.matmul %384, %386, %cst_320 {dimension_numbers = #tpu.dot_dimension_numbers<[1], [0], [0], [1], [0, 0, 1, 1], [], []>} : vector<2x128xbf16>, vector<128x256xbf16>, vector<2x256xf32> -> vector<2x256xf32>
    %c1_321 = arith.constant 1 : index
    %c0_322 = arith.constant 0 : index
    %c0_323 = arith.constant 0 : index
    %388 = vector.load %arg43[%c1_321, %c0_322, %c0_323] : memref<3x2x2xbf16, #tpu.memory_space<vmem>>, vector<1x2x2xbf16>
    %389 = vector.shape_cast %388 : vector<1x2x2xbf16> to vector<2x2xbf16>
    %cst_324 = arith.constant dense<0.000000e+00> : vector<2x128xf32>
    %390 = tpu.matmul %389, %380, %cst_324 {dimension_numbers = #tpu.dot_dimension_numbers<[1], [0], [0], [1], [0, 0, 1, 1], [], []>} : vector<2x2xbf16>, vector<2x128xbf16>, vector<2x128xf32> -> vector<2x128xf32>
    %391 = arith.truncf %390 : vector<2x128xf32> to vector<2x128xbf16>
    %c1_325 = arith.constant 1 : index
    %c0_326 = arith.constant 0 : index
    %c0_327 = arith.constant 0 : index
    %392 = vector.load %arg44[%c1_325, %c0_326, %c0_327] : memref<3x128x256xbf16, #tpu.memory_space<vmem>>, vector<1x128x256xbf16>
    %393 = vector.shape_cast %392 : vector<1x128x256xbf16> to vector<128x256xbf16>
    %cst_328 = arith.constant dense<0.000000e+00> : vector<2x256xf32>
    %394 = tpu.matmul %391, %393, %cst_328 {dimension_numbers = #tpu.dot_dimension_numbers<[1], [0], [0], [1], [0, 0, 1, 1], [], []>} : vector<2x128xbf16>, vector<128x256xbf16>, vector<2x256xf32> -> vector<2x256xf32>
    %395 = arith.addf %387, %394 : vector<2x256xf32>
    %c2_329 = arith.constant 2 : index
    %c0_330 = arith.constant 0 : index
    %c0_331 = arith.constant 0 : index
    %396 = vector.load %arg43[%c2_329, %c0_330, %c0_331] : memref<3x2x2xbf16, #tpu.memory_space<vmem>>, vector<1x2x2xbf16>
    %397 = vector.shape_cast %396 : vector<1x2x2xbf16> to vector<2x2xbf16>
    %cst_332 = arith.constant dense<0.000000e+00> : vector<2x128xf32>
    %398 = tpu.matmul %397, %380, %cst_332 {dimension_numbers = #tpu.dot_dimension_numbers<[1], [0], [0], [1], [0, 0, 1, 1], [], []>} : vector<2x2xbf16>, vector<2x128xbf16>, vector<2x128xf32> -> vector<2x128xf32>
    %399 = arith.truncf %398 : vector<2x128xf32> to vector<2x128xbf16>
    %c2_333 = arith.constant 2 : index
    %c0_334 = arith.constant 0 : index
    %c0_335 = arith.constant 0 : index
    %400 = vector.load %arg44[%c2_333, %c0_334, %c0_335] : memref<3x128x256xbf16, #tpu.memory_space<vmem>>, vector<1x128x256xbf16>
    %401 = vector.shape_cast %400 : vector<1x128x256xbf16> to vector<128x256xbf16>
    %cst_336 = arith.constant dense<0.000000e+00> : vector<2x256xf32>
    %402 = tpu.matmul %399, %401, %cst_336 {dimension_numbers = #tpu.dot_dimension_numbers<[1], [0], [0], [1], [0, 0, 1, 1], [], []>} : vector<2x128xbf16>, vector<128x256xbf16>, vector<2x256xf32> -> vector<2x256xf32>
    %403 = arith.addf %395, %402 : vector<2x256xf32>
    %c0_337 = arith.constant 0 : index
    %c0_338 = arith.constant 0 : index
    %404 = vector.load %arg45[%c0_337, %c0_338] : memref<1x256xf32, #tpu.memory_space<vmem>>, vector<1x256xf32>
    %405 = vector.broadcast %404 : vector<1x256xf32> to vector<2x256xf32>
    %406 = arith.addf %403, %405 : vector<2x256xf32>
    %cst_339 = arith.constant 0.000000e+00 : f32
    %407 = vector.broadcast %cst_339 : f32 to vector<2x256xf32>
    %408 = arith.cmpf oge, %406, %407 : vector<2x256xf32>
    %cst_340 = arith.constant 1.000000e-01 : f32
    %409 = vector.broadcast %cst_340 : f32 to vector<2x256xf32>
    %410 = arith.mulf %409, %406 : vector<2x256xf32>
    %411 = arith.select %408, %406, %410 : vector<2x256xi1>, vector<2x256xf32>
    %412 = arith.addf %411, %368 : vector<2x256xf32>
    %c0_341 = arith.constant 0 : index
    %c0_342 = arith.constant 0 : index
    %413 = vector.load %arg46[%c0_341, %c0_342] : memref<2x2xf32, #tpu.memory_space<vmem>>, vector<2x2xf32>
    %cst_343 = arith.constant dense<0.000000e+00> : vector<2x256xf32>
    %414 = tpu.matmul %413, %412, %cst_343 {dimension_numbers = #tpu.dot_dimension_numbers<[1], [0], [0], [1], [0, 0, 1, 1], [], []>} : vector<2x2xf32>, vector<2x256xf32>, vector<2x256xf32> -> vector<2x256xf32>
    %c0_344 = arith.constant 0 : index
    %c0_345 = arith.constant 0 : index
    %415 = vector.load %arg47[%c0_344, %c0_345] : memref<256x256xf32, #tpu.memory_space<vmem>>, vector<256x256xf32>
    %cst_346 = arith.constant dense<0.000000e+00> : vector<2x256xf32>
    %416 = tpu.matmul %414, %415, %cst_346 {dimension_numbers = #tpu.dot_dimension_numbers<[1], [0], [0], [1], [0, 0, 1, 1], [], []>} : vector<2x256xf32>, vector<256x256xf32>, vector<2x256xf32> -> vector<2x256xf32>
    %c0_347 = arith.constant 0 : index
    %c0_348 = arith.constant 0 : index
    %417 = vector.load %arg49[%c0_347, %c0_348] : memref<2x256xf32, #tpu.memory_space<vmem>>, vector<2x256xf32>
    tpu.vector_store %arg49[%c0_347, %c0_348], %416 {strides = array<i32>} : memref<2x256xf32, #tpu.memory_space<vmem>>, vector<2x256xf32>,
    %c0_349 = arith.constant 0 : index
    %c0_350 = arith.constant 0 : index
    %418 = vector.load %arg48[%c0_349, %c0_350] : memref<256x16xf32, #tpu.memory_space<vmem>>, vector<256x16xf32>
    %419 = arith.mulf %416, %416 : vector<2x256xf32>
    %cst_351 = arith.constant dense<0.000000e+00> : vector<2xf32>
    %420 = vector.multi_reduction <add>, %419, %cst_351 [1] : vector<2x256xf32> to vector<2xf32>
    %421 = vector.shape_cast %420 : vector<2xf32> to vector<2x1xf32>
    %cst_352 = arith.constant 1.000000e-24 : f32
    %422 = vector.broadcast %cst_352 : f32 to vector<2x1xf32>
    %423 = arith.maximumf %421, %422 : vector<2x1xf32>
    %424 = math.rsqrt %423 : vector<2x1xf32>
    %425 = vector.broadcast %424 : vector<2x1xf32> to vector<2x256xf32>
    %426 = arith.mulf %416, %425 : vector<2x256xf32>
    %427 = arith.mulf %418, %418 : vector<256x16xf32>
    %cst_353 = arith.constant dense<0.000000e+00> : vector<16xf32>
    %428 = vector.multi_reduction <add>, %427, %cst_353 [0] : vector<256x16xf32> to vector<16xf32>
    %429 = vector.shape_cast %428 : vector<16xf32> to vector<1x16xf32>
    %cst_354 = arith.constant 1.000000e-24 : f32
    %430 = vector.broadcast %cst_354 : f32 to vector<1x16xf32>
    %431 = arith.maximumf %429, %430 : vector<1x16xf32>
    %432 = math.rsqrt %431 : vector<1x16xf32>
    %433 = vector.broadcast %432 : vector<1x16xf32> to vector<256x16xf32>
    %434 = arith.mulf %418, %433 : vector<256x16xf32>
    %cst_355 = arith.constant dense<0.000000e+00> : vector<2x16xf32>
    %435 = tpu.matmul %426, %434, %cst_355 {dimension_numbers = #tpu.dot_dimension_numbers<[1], [0], [0], [1], [0, 0, 1, 1], [], []>} : vector<2x256xf32>, vector<256x16xf32>, vector<2x16xf32> -> vector<2x16xf32>
    %cst_356 = arith.constant -1.000000e+00 : f32
    %cst_357 = arith.constant 1.000000e+00 : f32
    %436 = vector.broadcast %cst_356 : f32 to vector<2x16xf32>
    %437 = arith.maximumf %436, %435 : vector<2x16xf32>
    %438 = vector.broadcast %cst_357 : f32 to vector<2x16xf32>
    %439 = arith.minimumf %438, %437 : vector<2x16xf32>
    %440 = arith.mulf %439, %439 : vector<2x16xf32>
    %cst_358 = arith.constant 1.000000e+00 : f32
    %441 = vector.broadcast %cst_358 : f32 to vector<2x16xf32>
    %442 = arith.subf %441, %440 : vector<2x16xf32>
    %cst_359 = arith.constant 0.000000e+00 : f32
    %443 = vector.broadcast %cst_359 : f32 to vector<2x16xf32>
    %444 = arith.maximumf %442, %443 : vector<2x16xf32>
    %445 = math.sqrt %444 : vector<2x16xf32>
    %cst_360 = arith.constant 0.87758255 : f32
    %446 = vector.broadcast %cst_360 : f32 to vector<2x16xf32>
    %447 = arith.mulf %439, %446 : vector<2x16xf32>
    %cst_361 = arith.constant 0.47942555 : f32
    %448 = vector.broadcast %cst_361 : f32 to vector<2x16xf32>
    %449 = arith.mulf %445, %448 : vector<2x16xf32>
    %450 = arith.subf %447, %449 : vector<2x16xf32>
    %cst_362 = arith.constant -0.87758255 : f32
    %451 = vector.broadcast %cst_362 : f32 to vector<2x16xf32>
    %452 = arith.cmpf ogt, %439, %451 : vector<2x16xf32>
    %cst_363 = arith.constant 0.239712775 : f32
    %453 = vector.broadcast %cst_363 : f32 to vector<2x16xf32>
    %454 = arith.subf %439, %453 : vector<2x16xf32>
    %455 = arith.select %452, %450, %454 : vector<2x16xi1>, vector<2x16xf32>
    %456 = tpu.iota {dimensions = array<i32: 1>} : vector<2x16xi32>
    %c0_364 = arith.constant 0 : index
    %c0_365 = arith.constant 0 : index
    %457 = vector.load %arg2[%c0_364, %c0_365] : memref<2x1xi32, #tpu.memory_space<vmem>>, vector<2x1xi32>
    %458 = vector.broadcast %457 : vector<2x1xi32> to vector<2x16xi32>
    %459 = arith.cmpi eq, %456, %458 : vector<2x16xi32>
    %460 = arith.extui %459 : vector<2x16xi1> to vector<2x16xi32>
    %461 = arith.sitofp %460 : vector<2x16xi32> to vector<2x16xf32>
    %462 = arith.mulf %461, %455 : vector<2x16xf32>
    %cst_366 = arith.constant 1.000000e+00 : f32
    %463 = vector.broadcast %cst_366 : f32 to vector<2x16xf32>
    %464 = arith.subf %463, %461 : vector<2x16xf32>
    %465 = arith.mulf %464, %439 : vector<2x16xf32>
    %466 = arith.addf %462, %465 : vector<2x16xf32>
    %cst_367 = arith.constant 3.000000e+01 : f32
    %467 = vector.broadcast %cst_367 : f32 to vector<2x16xf32>
    %468 = arith.mulf %466, %467 : vector<2x16xf32>
    %c0_368 = arith.constant 0 : index
    %c0_369 = arith.constant 0 : index
    %469 = vector.load %arg50[%c0_368, %c0_369] : memref<2x16xf32, #tpu.memory_space<vmem>>, vector<2x16xf32>
    tpu.vector_store %arg50[%c0_368, %c0_369], %468 {strides = array<i32>} : memref<2x16xf32, #tpu.memory_space<vmem>>, vector<2x16xf32>,
    return
  }
  func.func @transform_0(%arg0: i32) -> (i32, i32) {
    %c0_i32 = arith.constant 0 : i32
    %c0_i32_0 = arith.constant 0 : i32
    %c0_i32_1 = arith.constant 0 : i32
    return %c0_i32, %c0_i32_0 : i32, i32
  }
  func.func @transform_1(%arg0: i32) -> (i32, i32) {
    %c0_i32 = arith.constant 0 : i32
    %c0_i32_0 = arith.constant 0 : i32
    %c0_i32_1 = arith.constant 0 : i32
    return %c0_i32, %c0_i32_0 : i32, i32
  }
  func.func @transform_2(%arg0: i32) -> (i32, i32, i32) {
    %c0_i32 = arith.constant 0 : i32
    %c0_i32_0 = arith.constant 0 : i32
    %c0_i32_1 = arith.constant 0 : i32
    %c0_i32_2 = arith.constant 0 : i32
    return %c0_i32, %c0_i32_0, %c0_i32_1 : i32, i32, i32
  }
  func.func @transform_3(%arg0: i32) -> (i32, i32, i32) {
    %c0_i32 = arith.constant 0 : i32
    %c0_i32_0 = arith.constant 0 : i32
    %c0_i32_1 = arith.constant 0 : i32
    %c0_i32_2 = arith.constant 0 : i32
    return %c0_i32, %c0_i32_0, %c0_i32_1 : i32, i32, i32
  }
  func.func @transform_4(%arg0: i32) -> (i32, i32) {
    %c0_i32 = arith.constant 0 : i32
    %c0_i32_0 = arith.constant 0 : i32
    %c0_i32_1 = arith.constant 0 : i32
    return %c0_i32, %c0_i32_0 : i32, i32
  }
  func.func @transform_5(%arg0: i32) -> (i32, i32, i32) {
    %c0_i32 = arith.constant 0 : i32
    %c0_i32_0 = arith.constant 0 : i32
    %c0_i32_1 = arith.constant 0 : i32
    %c0_i32_2 = arith.constant 0 : i32
    return %c0_i32, %c0_i32_0, %c0_i32_1 : i32, i32, i32
  }
  func.func @transform_6(%arg0: i32) -> (i32, i32, i32) {
    %c0_i32 = arith.constant 0 : i32
    %c0_i32_0 = arith.constant 0 : i32
    %c0_i32_1 = arith.constant 0 : i32
    %c0_i32_2 = arith.constant 0 : i32
    return %c0_i32, %c0_i32_0, %c0_i32_1 : i32, i32, i32
  }
  func.func @transform_7(%arg0: i32) -> (i32, i32) {
    %c0_i32 = arith.constant 0 : i32
    %c0_i32_0 = arith.constant 0 : i32
    %c0_i32_1 = arith.constant 0 : i32
    return %c0_i32, %c0_i32_0 : i32, i32
  }
  func.func @transform_8(%arg0: i32) -> (i32, i32) {
    %c0_i32 = arith.constant 0 : i32
    %c0_i32_0 = arith.constant 0 : i32
    %c0_i32_1 = arith.constant 0 : i32
    return %c0_i32, %c0_i32_0 : i32, i32
  }
  func.func @transform_9(%arg0: i32) -> (i32, i32) {
    %c0_i32 = arith.constant 0 : i32
    %c0_i32_0 = arith.constant 0 : i32
    %c0_i32_1 = arith.constant 0 : i32
    return %c0_i32, %c0_i32_0 : i32, i32
  }
  func.func @transform_10(%arg0: i32) -> (i32, i32, i32) {
    %c0_i32 = arith.constant 0 : i32
    %c0_i32_0 = arith.constant 0 : i32
    %c0_i32_1 = arith.constant 0 : i32
    %c0_i32_2 = arith.constant 0 : i32
    return %c0_i32, %c0_i32_0, %c0_i32_1 : i32, i32, i32
  }
  func.func @transform_11(%arg0: i32) -> (i32, i32, i32) {
    %c0_i32 = arith.constant 0 : i32
    %c0_i32_0 = arith.constant 0 : i32
    %c0_i32_1 = arith.constant 0 : i32
    %c0_i32_2 = arith.constant 0 : i32
    return %c0_i32, %c0_i32_0, %c0_i32_1 : i32, i32, i32
  }
  func.func @transform_12(%arg0: i32) -> (i32, i32) {
    %c0_i32 = arith.constant 0 : i32
    %c0_i32_0 = arith.constant 0 : i32
    %c0_i32_1 = arith.constant 0 : i32
    return %c0_i32, %c0_i32_0 : i32, i32
  }
  func.func @transform_13(%arg0: i32) -> (i32, i32, i32) {
    %c0_i32 = arith.constant 0 : i32
    %c0_i32_0 = arith.constant 0 : i32
    %c0_i32_1 = arith.constant 0 : i32
    %c0_i32_2 = arith.constant 0 : i32
    return %c0_i32, %c0_i32_0, %c0_i32_1 : i32, i32, i32
  }
  func.func @transform_14(%arg0: i32) -> (i32, i32, i32) {
    %c0_i32 = arith.constant 0 : i32
    %c0_i32_0 = arith.constant 0 : i32
    %c0_i32_1 = arith.constant 0 : i32
    %c0_i32_2 = arith.constant 0 : i32
    return %c0_i32, %c0_i32_0, %c0_i32_1 : i32, i32, i32
  }
  func.func @transform_15(%arg0: i32) -> (i32, i32) {
    %c0_i32 = arith.constant 0 : i32
    %c0_i32_0 = arith.constant 0 : i32
    %c0_i32_1 = arith.constant 0 : i32
    return %c0_i32, %c0_i32_0 : i32, i32
  }
  func.func @transform_16(%arg0: i32) -> (i32, i32) {
    %c0_i32 = arith.constant 0 : i32
    %c0_i32_0 = arith.constant 0 : i32
    %c0_i32_1 = arith.constant 0 : i32
    return %c0_i32, %c0_i32_0 : i32, i32
  }
  func.func @transform_17(%arg0: i32) -> (i32, i32) {
    %c0_i32 = arith.constant 0 : i32
    %c0_i32_0 = arith.constant 0 : i32
    %c0_i32_1 = arith.constant 0 : i32
    return %c0_i32, %c0_i32_0 : i32, i32
  }
  func.func @transform_18(%arg0: i32) -> (i32, i32, i32) {
    %c0_i32 = arith.constant 0 : i32
    %c0_i32_0 = arith.constant 0 : i32
    %c0_i32_1 = arith.constant 0 : i32
    %c0_i32_2 = arith.constant 0 : i32
    return %c0_i32, %c0_i32_0, %c0_i32_1 : i32, i32, i32
  }
  func.func @transform_19(%arg0: i32) -> (i32, i32, i32) {
    %c0_i32 = arith.constant 0 : i32
    %c0_i32_0 = arith.constant 0 : i32
    %c0_i32_1 = arith.constant 0 : i32
    %c0_i32_2 = arith.constant 0 : i32
    return %c0_i32, %c0_i32_0, %c0_i32_1 : i32, i32, i32
  }
  func.func @transform_20(%arg0: i32) -> (i32, i32) {
    %c0_i32 = arith.constant 0 : i32
    %c0_i32_0 = arith.constant 0 : i32
    %c0_i32_1 = arith.constant 0 : i32
    return %c0_i32, %c0_i32_0 : i32, i32
  }
  func.func @transform_21(%arg0: i32) -> (i32, i32, i32) {
    %c0_i32 = arith.constant 0 : i32
    %c0_i32_0 = arith.constant 0 : i32
    %c0_i32_1 = arith.constant 0 : i32
    %c0_i32_2 = arith.constant 0 : i32
    return %c0_i32, %c0_i32_0, %c0_i32_1 : i32, i32, i32
  }
  func.func @transform_22(%arg0: i32) -> (i32, i32, i32) {
    %c0_i32 = arith.constant 0 : i32
    %c0_i32_0 = arith.constant 0 : i32
    %c0_i32_1 = arith.constant 0 : i32
    %c0_i32_2 = arith.constant 0 : i32
    return %c0_i32, %c0_i32_0, %c0_i32_1 : i32, i32, i32
  }
  func.func @transform_23(%arg0: i32) -> (i32, i32) {
    %c0_i32 = arith.constant 0 : i32
    %c0_i32_0 = arith.constant 0 : i32
    %c0_i32_1 = arith.constant 0 : i32
    return %c0_i32, %c0_i32_0 : i32, i32
  }
  func.func @transform_24(%arg0: i32) -> (i32, i32) {
    %c0_i32 = arith.constant 0 : i32
    %c0_i32_0 = arith.constant 0 : i32
    %c0_i32_1 = arith.constant 0 : i32
    return %c0_i32, %c0_i32_0 : i32, i32
  }
  func.func @transform_25(%arg0: i32) -> (i32, i32) {
    %c0_i32 = arith.constant 0 : i32
    %c0_i32_0 = arith.constant 0 : i32
    %c0_i32_1 = arith.constant 0 : i32
    return %c0_i32, %c0_i32_0 : i32, i32
  }
  func.func @transform_26(%arg0: i32) -> (i32, i32, i32) {
    %c0_i32 = arith.constant 0 : i32
    %c0_i32_0 = arith.constant 0 : i32
    %c0_i32_1 = arith.constant 0 : i32
    %c0_i32_2 = arith.constant 0 : i32
    return %c0_i32, %c0_i32_0, %c0_i32_1 : i32, i32, i32
  }
  func.func @transform_27(%arg0: i32) -> (i32, i32, i32) {
    %c0_i32 = arith.constant 0 : i32
    %c0_i32_0 = arith.constant 0 : i32
    %c0_i32_1 = arith.constant 0 : i32
    %c0_i32_2 = arith.constant 0 : i32
    return %c0_i32, %c0_i32_0, %c0_i32_1 : i32, i32, i32
  }
  func.func @transform_28(%arg0: i32) -> (i32, i32) {
    %c0_i32 = arith.constant 0 : i32
    %c0_i32_0 = arith.constant 0 : i32
    %c0_i32_1 = arith.constant 0 : i32
    return %c0_i32, %c0_i32_0 : i32, i32
  }
  func.func @transform_29(%arg0: i32) -> (i32, i32, i32) {
    %c0_i32 = arith.constant 0 : i32
    %c0_i32_0 = arith.constant 0 : i32
    %c0_i32_1 = arith.constant 0 : i32
    %c0_i32_2 = arith.constant 0 : i32
    return %c0_i32, %c0_i32_0, %c0_i32_1 : i32, i32, i32
  }
  func.func @transform_30(%arg0: i32) -> (i32, i32, i32) {
    %c0_i32 = arith.constant 0 : i32
    %c0_i32_0 = arith.constant 0 : i32
    %c0_i32_1 = arith.constant 0 : i32
    %c0_i32_2 = arith.constant 0 : i32
    return %c0_i32, %c0_i32_0, %c0_i32_1 : i32, i32, i32
  }
  func.func @transform_31(%arg0: i32) -> (i32, i32) {
    %c0_i32 = arith.constant 0 : i32
    %c0_i32_0 = arith.constant 0 : i32
    %c0_i32_1 = arith.constant 0 : i32
    return %c0_i32, %c0_i32_0 : i32, i32
  }
  func.func @transform_32(%arg0: i32) -> (i32, i32) {
    %c0_i32 = arith.constant 0 : i32
    %c0_i32_0 = arith.constant 0 : i32
    %c0_i32_1 = arith.constant 0 : i32
    return %c0_i32, %c0_i32_0 : i32, i32
  }
  func.func @transform_33(%arg0: i32) -> (i32, i32) {
    %c0_i32 = arith.constant 0 : i32
    %c0_i32_0 = arith.constant 0 : i32
    %c0_i32_1 = arith.constant 0 : i32
    return %c0_i32, %c0_i32_0 : i32, i32
  }
  func.func @transform_34(%arg0: i32) -> (i32, i32, i32) {
    %c0_i32 = arith.constant 0 : i32
    %c0_i32_0 = arith.constant 0 : i32
    %c0_i32_1 = arith.constant 0 : i32
    %c0_i32_2 = arith.constant 0 : i32
    return %c0_i32, %c0_i32_0, %c0_i32_1 : i32, i32, i32
  }
  func.func @transform_35(%arg0: i32) -> (i32, i32, i32) {
    %c0_i32 = arith.constant 0 : i32
    %c0_i32_0 = arith.constant 0 : i32
    %c0_i32_1 = arith.constant 0 : i32
    %c0_i32_2 = arith.constant 0 : i32
    return %c0_i32, %c0_i32_0, %c0_i32_1 : i32, i32, i32
  }
  func.func @transform_36(%arg0: i32) -> (i32, i32) {
    %c0_i32 = arith.constant 0 : i32
    %c0_i32_0 = arith.constant 0 : i32
    %c0_i32_1 = arith.constant 0 : i32
    return %c0_i32, %c0_i32_0 : i32, i32
  }
  func.func @transform_37(%arg0: i32) -> (i32, i32, i32) {
    %c0_i32 = arith.constant 0 : i32
    %c0_i32_0 = arith.constant 0 : i32
    %c0_i32_1 = arith.constant 0 : i32
    %c0_i32_2 = arith.constant 0 : i32
    return %c0_i32, %c0_i32_0, %c0_i32_1 : i32, i32, i32
  }
  func.func @transform_38(%arg0: i32) -> (i32, i32, i32) {
    %c0_i32 = arith.constant 0 : i32
    %c0_i32_0 = arith.constant 0 : i32
    %c0_i32_1 = arith.constant 0 : i32
    %c0_i32_2 = arith.constant 0 : i32
    return %c0_i32, %c0_i32_0, %c0_i32_1 : i32, i32, i32
  }
  func.func @transform_39(%arg0: i32) -> (i32, i32) {
    %c0_i32 = arith.constant 0 : i32
    %c0_i32_0 = arith.constant 0 : i32
    %c0_i32_1 = arith.constant 0 : i32
    return %c0_i32, %c0_i32_0 : i32, i32
  }
  func.func @transform_40(%arg0: i32) -> (i32, i32) {
    %c0_i32 = arith.constant 0 : i32
    %c0_i32_0 = arith.constant 0 : i32
    %c0_i32_1 = arith.constant 0 : i32
    return %c0_i32, %c0_i32_0 : i32, i32
  }
  func.func @transform_41(%arg0: i32) -> (i32, i32) {
    %c0_i32 = arith.constant 0 : i32
    %c0_i32_0 = arith.constant 0 : i32
    %c0_i32_1 = arith.constant 0 : i32
    return %c0_i32, %c0_i32_0 : i32, i32
  }
  func.func @transform_42(%arg0: i32) -> (i32, i32, i32) {
    %c0_i32 = arith.constant 0 : i32
    %c0_i32_0 = arith.constant 0 : i32
    %c0_i32_1 = arith.constant 0 : i32
    %c0_i32_2 = arith.constant 0 : i32
    return %c0_i32, %c0_i32_0, %c0_i32_1 : i32, i32, i32
  }
  func.func @transform_43(%arg0: i32) -> (i32, i32, i32) {
    %c0_i32 = arith.constant 0 : i32
    %c0_i32_0 = arith.constant 0 : i32
    %c0_i32_1 = arith.constant 0 : i32
    %c0_i32_2 = arith.constant 0 : i32
    return %c0_i32, %c0_i32_0, %c0_i32_1 : i32, i32, i32
  }
  func.func @transform_44(%arg0: i32) -> (i32, i32) {
    %c0_i32 = arith.constant 0 : i32
    %c0_i32_0 = arith.constant 0 : i32
    %c0_i32_1 = arith.constant 0 : i32
    return %c0_i32, %c0_i32_0 : i32, i32
  }
  func.func @transform_45(%arg0: i32) -> (i32, i32) {
    %c0_i32 = arith.constant 0 : i32
    %c0_i32_0 = arith.constant 0 : i32
    %c0_i32_1 = arith.constant 0 : i32
    return %c0_i32, %c0_i32_0 : i32, i32
  }
  func.func @transform_46(%arg0: i32) -> (i32, i32) {
    %c0_i32 = arith.constant 0 : i32
    %c0_i32_0 = arith.constant 0 : i32
    %c0_i32_1 = arith.constant 0 : i32
    return %c0_i32, %c0_i32_0 : i32, i32
  }
  func.func @transform_47(%arg0: i32) -> (i32, i32) {
    %c0_i32 = arith.constant 0 : i32
    %c0_i32_0 = arith.constant 0 : i32
    %c0_i32_1 = arith.constant 0 : i32
    return %c0_i32, %c0_i32_0 : i32, i32
  }
  func.func @transform_48(%arg0: i32) -> (i32, i32) {
    %c0_i32 = arith.constant 0 : i32
    %c0_i32_0 = arith.constant 0 : i32
    %c0_i32_1 = arith.constant 0 : i32
    return %c0_i32, %c0_i32_0 : i32, i32
  }
  func.func @transform_49(%arg0: i32) -> (i32, i32) {
    %c0_i32 = arith.constant 0 : i32
    %c0_i32_0 = arith.constant 0 : i32
    %c0_i32_1 = arith.constant 0 : i32
    return %c0_i32, %c0_i32_0 : i32, i32
  }
}

</mosaic_0001>

<llo_original>
// kernel: forward.1
$region0: #{forward.1}
  #allocation0 [shape = 'u32[]', space=smem, size = 0x4, offset = 0x4, fixed_abs, tag = 'smem constant byte address 0x4 - core index']
  #allocation1 [shape = 'u32[144,128]{1,0:T(1,128)}', space=vmem, size = 0x12000, scoped, tag = 'internal scratch']
  %s0 = inlined_call_operand.smem [shape: u32[50], index: -1, kind: input, shape index: {}]
  %s1 = sld [smem:[%s0]]
  %s2 = scalar_lea.smem %s0, 1
  %s3 = sld [smem:[%s2]]
  %s4 = scalar_lea.smem %s0, 2
  %s5 = sld [smem:[%s4]]
  %s6 = scalar_lea.smem %s0, 3
  %s7 = sld [smem:[%s6]]
  %s8 = scalar_lea.smem %s0, 4
  %s9 = sld [smem:[%s8]]
  %s10 = scalar_lea.smem %s0, 5
  %s11 = sld [smem:[%s10]]
  %s12 = scalar_lea.smem %s0, 6
  %s13 = sld [smem:[%s12]]
  %s14 = scalar_lea.smem %s0, 7
  %s15 = sld [smem:[%s14]]
  %s16 = scalar_lea.smem %s0, 8
  %s17 = sld [smem:[%s16]]
  %s18 = scalar_lea.smem %s0, 9
  %s19 = sld [smem:[%s18]]
  %s20 = scalar_lea.smem %s0, 10
  %s21 = sld [smem:[%s20]]
  %s22 = scalar_lea.smem %s0, 11
  %s23 = sld [smem:[%s22]]
  %s24 = scalar_lea.smem %s0, 12
  %s25 = sld [smem:[%s24]]
  %s26 = scalar_lea.smem %s0, 13
  %s27 = sld [smem:[%s26]]
  %s28 = scalar_lea.smem %s0, 14
  %s29 = sld [smem:[%s28]]
  %s30 = scalar_lea.smem %s0, 15
  %s31 = sld [smem:[%s30]]
  %s32 = scalar_lea.smem %s0, 16
  %s33 = sld [smem:[%s32]]
  %s34 = scalar_lea.smem %s0, 17
  %s35 = sld [smem:[%s34]]
  %s36 = scalar_lea.smem %s0, 18
  %s37 = sld [smem:[%s36]]
  %s38 = scalar_lea.smem %s0, 19
  %s39 = sld [smem:[%s38]]
  %s40 = scalar_lea.smem %s0, 20
  %s41 = sld [smem:[%s40]]
  %s42 = scalar_lea.smem %s0, 21
  %s43 = sld [smem:[%s42]]
  %s44 = scalar_lea.smem %s0, 22
  %s45 = sld [smem:[%s44]]
  %s46 = scalar_lea.smem %s0, 23
  %s47 = sld [smem:[%s46]]
  %s48 = scalar_lea.smem %s0, 24
  %s49 = sld [smem:[%s48]]
  %s50 = scalar_lea.smem %s0, 25
  %s51 = sld [smem:[%s50]]
  %s52 = scalar_lea.smem %s0, 26
  %s53 = sld [smem:[%s52]]
  %s54 = scalar_lea.smem %s0, 27
  %s55 = sld [smem:[%s54]]
  %s56 = scalar_lea.smem %s0, 28
  %s57 = sld [smem:[%s56]]
  %s58 = scalar_lea.smem %s0, 29
  %s59 = sld [smem:[%s58]]
  %s60 = scalar_lea.smem %s0, 30
  %s61 = sld [smem:[%s60]]
  %s62 = scalar_lea.smem %s0, 31
  %s63 = sld [smem:[%s62]]
  %s64 = scalar_lea.smem %s0, 32
  %s65 = sld [smem:[%s64]]
  %s66 = scalar_lea.smem %s0, 33
  %s67 = sld [smem:[%s66]]
  %s68 = scalar_lea.smem %s0, 34
  %s69 = sld [smem:[%s68]]
  %s70 = scalar_lea.smem %s0, 35
  %s71 = sld [smem:[%s70]]
  %s72 = scalar_lea.smem %s0, 36
  %s73 = sld [smem:[%s72]]
  %s74 = scalar_lea.smem %s0, 37
  %s75 = sld [smem:[%s74]]
  %s76 = scalar_lea.smem %s0, 38
  %s77 = sld [smem:[%s76]]
  %s78 = scalar_lea.smem %s0, 39
  %s79 = sld [smem:[%s78]]
  %s80 = scalar_lea.smem %s0, 40
  %s81 = sld [smem:[%s80]]
  %s82 = scalar_lea.smem %s0, 41
  %s83 = sld [smem:[%s82]]
  %s84 = scalar_lea.smem %s0, 42
  %s85 = sld [smem:[%s84]]
  %s86 = scalar_lea.smem %s0, 43
  %s87 = sld [smem:[%s86]]
  %s88 = scalar_lea.smem %s0, 44
  %s89 = sld [smem:[%s88]]
  %s90 = scalar_lea.smem %s0, 45
  %s91 = sld [smem:[%s90]]
  %s92 = scalar_lea.smem %s0, 46
  %s93 = sld [smem:[%s92]]
  %s94 = scalar_lea.smem %s0, 47
  %s95 = sld [smem:[%s94]]
  %s96 = scalar_lea.smem %s0, 48
  %s97 = sld [smem:[%s96]]
  %s98 = scalar_lea.smem %s0, 49
  %s99 = sld [smem:[%s98]]
  %100 = xla_tuple %s97, %s99
  %s101 = sld [smem:[#allocation0]]
  $region370: #{forward.1} parent=0
    _
  %s103 = ssub.s32 1, %s101
  %s104 = scalar_select 0, %s103, %s101
  $region1: #{forward.1} parent=0
    #allocation2 [shape = 'u8[49152]{0}', space=vmem, size = 0xc000, scoped, tag = 'input window, operand 2, single buffered']
    #allocation3 [shape = 's32[1]{0}', space=sflag, size = 0x4, scoped, tag = 'scoped memory for forward.1']
    #allocation4 [shape = 's32[1]{0}', space=sflag, size = 0x4, scoped, tag = 'scoped memory for forward.1']
    #allocation5 [shape = 'u8[49152]{0}', space=vmem, size = 0xc000, scoped, tag = 'input window, operand 3, single buffered']
    #allocation6 [shape = 's32[1]{0}', space=sflag, size = 0x4, scoped, tag = 'scoped memory for forward.1']
    #allocation7 [shape = 'u8[1024]{0}', space=vmem, size = 0x400, scoped, tag = 'input window, operand 4, single buffered']
    #allocation8 [shape = 'u8[24576]{0}', space=vmem, size = 0x6000, scoped, tag = 'input window, operand 5, single buffered']
    #allocation9 [shape = 's32[1]{0}', space=sflag, size = 0x4, scoped, tag = 'scoped memory for forward.1']
    #allocation10 [shape = 'u8[393216]{0}', space=vmem, size = 0x60000, scoped, tag = 'input window, operand 6, single buffered']
    #allocation11 [shape = 'u8[1024]{0}', space=vmem, size = 0x400, scoped, tag = 'input window, operand 7, single buffered']
    #allocation12 [shape = 's32[1]{0}', space=sflag, size = 0x4, scoped, tag = 'scoped memory for forward.1']
    #allocation13 [shape = 'u8[65536]{0}', space=vmem, size = 0x10000, scoped, tag = 'input window, operand 8, single buffered']
    #allocation14 [shape = 'u8[512]{0}', space=vmem, size = 0x400, scoped, tag = 'input window, operand 9, single buffered']
    #allocation15 [shape = 's32[1]{0}', space=sflag, size = 0x4, scoped, tag = 'scoped memory for forward.1']
    #allocation16 [shape = 'u8[24576]{0}', space=vmem, size = 0x6000, scoped, tag = 'input window, operand 10, single buffered']
    #allocation17 [shape = 'u8[196608]{0}', space=vmem, size = 0x30000, scoped, tag = 'input window, operand 11, single buffered']
    #allocation18 [shape = 's32[1]{0}', space=sflag, size = 0x4, scoped, tag = 'scoped memory for forward.1']
    #allocation19 [shape = 'u8[1024]{0}', space=vmem, size = 0x400, scoped, tag = 'input window, operand 12, single buffered']
    #allocation20 [shape = 'u8[12288]{0}', space=vmem, size = 0x3000, scoped, tag = 'input window, operand 13, single buffered']
    #allocation21 [shape = 's32[1]{0}', space=sflag, size = 0x4, scoped, tag = 'scoped memory for forward.1']
    #allocation22 [shape = 'u8[393216]{0}', space=vmem, size = 0x60000, scoped, tag = 'input window, operand 14, single buffered']
    #allocation23 [shape = 'u8[1024]{0}', space=vmem, size = 0x400, scoped, tag = 'input window, operand 15, single buffered']
    #allocation24 [shape = 's32[1]{0}', space=sflag, size = 0x4, scoped, tag = 'scoped memory for forward.1']
    #allocation25 [shape = 'u8[65536]{0}', space=vmem, size = 0x10000, scoped, tag = 'input window, operand 16, single buffered']
    #allocation26 [shape = 'u8[512]{0}', space=vmem, size = 0x400, scoped, tag = 'input window, operand 17, single buffered']
    #allocation27 [shape = 's32[1]{0}', space=sflag, size = 0x4, scoped, tag = 'scoped memory for forward.1']
    #allocation28 [shape = 'u8[12288]{0}', space=vmem, size = 0x3000, scoped, tag = 'input window, operand 18, single buffered']
    #allocation29 [shape = 'u8[196608]{0}', space=vmem, size = 0x30000, scoped, tag = 'input window, operand 19, single buffered']
    #allocation30 [shape = 's32[1]{0}', space=sflag, size = 0x4, scoped, tag = 'scoped memory for forward.1']
    #allocation31 [shape = 'u8[1024]{0}', space=vmem, size = 0x400, scoped, tag = 'input window, operand 20, single buffered']
    #allocation32 [shape = 'u8[6144]{0}', space=vmem, size = 0x1800, scoped, tag = 'input window, operand 21, single buffered']
    #allocation33 [shape = 's32[1]{0}', space=sflag, size = 0x4, scoped, tag = 'scoped memory for forward.1']
    #allocation34 [shape = 'u8[393216]{0}', space=vmem, size = 0x60000, scoped, tag = 'input window, operand 22, single buffered']
    #allocation35 [shape = 'u8[1024]{0}', space=vmem, size = 0x400, scoped, tag = 'input window, operand 23, single buffered']
    #allocation36 [shape = 's32[1]{0}', space=sflag, size = 0x4, scoped, tag = 'scoped memory for forward.1']
    #allocation37 [shape = 'u8[65536]{0}', space=vmem, size = 0x10000, scoped, tag = 'input window, operand 24, single buffered']
    #allocation38 [shape = 'u8[512]{0}', space=vmem, size = 0x400, scoped, tag = 'input window, operand 25, single buffered']
    #allocation39 [shape = 's32[1]{0}', space=sflag, size = 0x4, scoped, tag = 'scoped memory for forward.1']
    #allocation40 [shape = 'u8[6144]{0}', space=vmem, size = 0x1800, scoped, tag = 'input window, operand 26, single buffered']
    #allocation41 [shape = 'u8[1024]{0}', space=vmem, size = 0x400, scoped, tag = 'input window, operand 28, single buffered']
    #allocation42 [shape = 's32[1]{0}', space=sflag, size = 0x4, scoped, tag = 'scoped memory for forward.1']
    #allocation43 [shape = 'u8[3072]{0}', space=vmem, size = 0xc00, scoped, tag = 'input window, operand 29, single buffered']
    #allocation44 [shape = 'u8[393216]{0}', space=vmem, size = 0x60000, scoped, tag = 'input window, operand 30, single buffered']
    #allocation45 [shape = 's32[1]{0}', space=sflag, size = 0x4, scoped, tag = 'scoped memory for forward.1']
    #allocation46 [shape = 'u8[1024]{0}', space=vmem, size = 0x400, scoped, tag = 'input window, operand 31, single buffered']
    #allocation47 [shape = 'u8[65536]{0}', space=vmem, size = 0x10000, scoped, tag = 'input window, operand 32, single buffered']
    #allocation48 [shape = 's32[1]{0}', space=sflag, size = 0x4, scoped, tag = 'scoped memory for forward.1']
    #allocation49 [shape = 'u8[512]{0}', space=vmem, size = 0x400, scoped, tag = 'input window, operand 33, single buffered']
    #allocation50 [shape = 'u8[3072]{0}', space=vmem, size = 0xc00, scoped, tag = 'input window, operand 34, single buffered']
    #allocation51 [shape = 's32[1]{0}', space=sflag, size = 0x4, scoped, tag = 'scoped memory for forward.1']
    #allocation52 [shape = 'u8[196608]{0}', space=vmem, size = 0x30000, scoped, tag = 'input window, operand 35, single buffered']
    #allocation53 [shape = 'u8[1024]{0}', space=vmem, size = 0x400, scoped, tag = 'input window, operand 36, single buffered']
    #allocation54 [shape = 's32[1]{0}', space=sflag, size = 0x4, scoped, tag = 'scoped memory for forward.1']
    #allocation55 [shape = 'u8[393216]{0}', space=vmem, size = 0x60000, scoped, tag = 'input window, operand 38, single buffered']
    #allocation56 [shape = 'u8[1024]{0}', space=vmem, size = 0x400, scoped, tag = 'input window, operand 39, single buffered']
    #allocation57 [shape = 's32[1]{0}', space=sflag, size = 0x4, scoped, tag = 'scoped memory for forward.1']
    #allocation58 [shape = 'u8[65536]{0}', space=vmem, size = 0x10000, scoped, tag = 'input window, operand 40, single buffered']
    #allocation59 [shape = 'u8[512]{0}', space=vmem, size = 0x400, scoped, tag = 'input window, operand 41, single buffered']
    #allocation60 [shape = 's32[1]{0}', space=sflag, size = 0x4, scoped, tag = 'scoped memory for forward.1']
    #allocation61 [shape = 'u8[196608]{0}', space=vmem, size = 0x30000, scoped, tag = 'input window, operand 43, single buffered']
    #allocation62 [shape = 'u8[262144]{0}', space=vmem, size = 0x40000, scoped, tag = 'input window, operand 46, single buffered']
    #allocation63 [shape = 's32[1]{0}', space=sflag, size = 0x4, scoped, tag = 'scoped memory for forward.1']
    #allocation64 [shape = 'u8[2048]{0}', space=vmem, size = 0x800, scoped, tag = 'output window, operand 0, single buffered']
    #allocation65 [shape = 'u8[1024]{0}', space=vmem, size = 0x400, scoped, tag = 'output window, operand 1, single buffered']
    #allocation66 [shape = 's32[1]{0}', space=sflag, size = 0x4, scoped, tag = 'scoped memory for forward.1']
    %105 = vsyncpa [#allocation3], 0
    %106 = vsyncpa [#allocation6], 0
    %107 = vsyncpa [#allocation9], 0
    %108 = vsyncpa [#allocation12], 0
    %109 = vsyncpa [#allocation15], 0
    %110 = vsyncpa [#allocation18], 0
    %111 = vsyncpa [#allocation21], 0
    %112 = vsyncpa [#allocation24], 0
    %113 = vsyncpa [#allocation27], 0
    %114 = vsyncpa [#allocation30], 0
    %115 = vsyncpa [#allocation33], 0
    %116 = vsyncpa [#allocation36], 0
    %117 = vsyncpa [#allocation39], 0
    %118 = vsyncpa [#allocation42], 0
    %119 = vsyncpa [#allocation45], 0
    %120 = vsyncpa [#allocation48], 0
    %121 = vsyncpa [#allocation51], 0
    %122 = vsyncpa [#allocation54], 0
    %123 = vsyncpa [#allocation57], 0
    %124 = vsyncpa [#allocation60], 0
    %125 = vsyncpa [#allocation63], 0
    %126 = vsyncpa [#allocation4], 0
    %127 = vsyncpa [#allocation66], 0
    // Predicated region
    $region2: #{forward.1} parent=1 // pred_check
      _
    $region3: #{forward.1} parent=1 // pred_check_branch
      %129 = sbr.rel (0) target = $region5
    $region4: #{forward.1} parent=1 // pred_region
      _
    $region5: #{forward.1} parent=1 // pred_fallthru
      _
    // Predicated region
    $region6: #{forward.1} parent=1 // pred_check
      _
    $region7: #{forward.1} parent=1 // pred_check_branch
      %131 = sbr.rel (0) target = $region9
    $region8: #{forward.1} parent=1 // pred_region
      _
    $region9: #{forward.1} parent=1 // pred_fallthru
      _
    // Predicated region
    $region10: #{forward.1} parent=1 // pred_check
      _
    $region11: #{forward.1} parent=1 // pred_check_branch
      %133 = sbr.rel (0) target = $region13
    $region12: #{forward.1} parent=1 // pred_region
      %s135 = ssub.s32 1536, 1536
      %136 = vsyncadd [#allocation3], %s135
      %s137 = sshll.u32 [#allocation2], 4
      %s138 = int_to_ptr.vmem [resolvable:$true] %s137
      %143 = dma.hbm_to_vmem [thread:$0]  %s5, 1536, %s138, [#allocation3], 64, 64, 4
    $region13: #{forward.1} parent=1 // pred_fallthru
      _
    // Predicated region
    $region14: #{forward.1} parent=1 // pred_check
      _
    $region15: #{forward.1} parent=1 // pred_check_branch
      %145 = sbr.rel (0) target = $region17
    $region16: #{forward.1} parent=1 // pred_region
      %s147 = ssub.s32 1536, 1536
      %148 = vsyncadd [#allocation6], %s147
      %s149 = sshll.u32 [#allocation5], 4
      %s150 = int_to_ptr.vmem [resolvable:$true] %s149
      %155 = dma.hbm_to_vmem [thread:$0]  %s7, 1536, %s150, [#allocation6], 128, 128, 8
    $region17: #{forward.1} parent=1 // pred_fallthru
      _
    // Predicated region
    $region18: #{forward.1} parent=1 // pred_check
      _
    $region19: #{forward.1} parent=1 // pred_check_branch
      %157 = sbr.rel (0) target = $region21
    $region20: #{forward.1} parent=1 // pred_region
      %s159 = ssub.s32 32, 32
      %160 = vsyncadd [#allocation6], %s159
      %s162 = sshll.u32 [#allocation7], 4
      %s163 = int_to_ptr.vmem [resolvable:$true] %s162
      %165 = dma.hbm_to_vmem [thread:$0]  %s9, 32, %s163, [#allocation6]
    $region21: #{forward.1} parent=1 // pred_fallthru
      _
    // Predicated region
    $region22: #{forward.1} parent=1 // pred_check
      _
    $region23: #{forward.1} parent=1 // pred_check_branch
      %167 = sbr.rel (0) target = $region25
    $region24: #{forward.1} parent=1 // pred_region
      %s169 = ssub.s32 768, 768
      %170 = vsyncadd [#allocation9], %s169
      %s171 = sshll.u32 [#allocation8], 4
      %s172 = int_to_ptr.vmem [resolvable:$true] %s171
      %177 = dma.hbm_to_vmem [thread:$0]  %s11, 768, %s172, [#allocation9], 64, 64, 4
    $region25: #{forward.1} parent=1 // pred_fallthru
      _
    // Predicated region
    $region26: #{forward.1} parent=1 // pred_check
      _
    $region27: #{forward.1} parent=1 // pred_check_branch
      %179 = sbr.rel (0) target = $region29
    $region28: #{forward.1} parent=1 // pred_region
      %s181 = ssub.s32 12288, 12288
      %182 = vsyncadd [#allocation9], %s181
      %s183 = sshll.u32 [#allocation10], 4
      %s184 = int_to_ptr.vmem [resolvable:$true] %s183
      %189 = dma.hbm_to_vmem [thread:$0]  %s13, 12288, %s184, [#allocation9], 128, 128, 8
    $region29: #{forward.1} parent=1 // pred_fallthru
      _
    // Predicated region
    $region30: #{forward.1} parent=1 // pred_check
      _
    $region31: #{forward.1} parent=1 // pred_check_branch
      %191 = sbr.rel (0) target = $region33
    $region32: #{forward.1} parent=1 // pred_region
      %s193 = ssub.s32 32, 32
      %194 = vsyncadd [#allocation12], %s193
      %s196 = sshll.u32 [#allocation11], 4
      %s197 = int_to_ptr.vmem [resolvable:$true] %s196
      %199 = dma.hbm_to_vmem [thread:$0]  %s15, 32, %s197, [#allocation12]
    $region33: #{forward.1} parent=1 // pred_fallthru
      _
    // Predicated region
    $region34: #{forward.1} parent=1 // pred_check
      _
    $region35: #{forward.1} parent=1 // pred_check_branch
      %201 = sbr.rel (0) target = $region37
    $region36: #{forward.1} parent=1 // pred_region
      %s203 = ssub.s32 2048, 2048
      %204 = vsyncadd [#allocation12], %s203
      %s205 = sshll.u32 [#allocation13], 4
      %s206 = int_to_ptr.vmem [resolvable:$true] %s205
      %211 = dma.hbm_to_vmem [thread:$0]  %s17, 2048, %s206, [#allocation12], 64, 64, 4
    $region37: #{forward.1} parent=1 // pred_fallthru
      _
    // Predicated region
    $region38: #{forward.1} parent=1 // pred_check
      _
    $region39: #{forward.1} parent=1 // pred_check_branch
      %213 = sbr.rel (0) target = $region41
    $region40: #{forward.1} parent=1 // pred_region
      %s215 = ssub.s32 16, 16
      %216 = vsyncadd [#allocation15], %s215
      %s218 = sshll.u32 [#allocation14], 4
      %s219 = int_to_ptr.vmem [resolvable:$true] %s218
      %221 = dma.hbm_to_vmem [thread:$0]  %s19, 16, %s219, [#allocation15]
    $region41: #{forward.1} parent=1 // pred_fallthru
      _
    // Predicated region
    $region42: #{forward.1} parent=1 // pred_check
      _
    $region43: #{forward.1} parent=1 // pred_check_branch
      %223 = sbr.rel (0) target = $region45
    $region44: #{forward.1} parent=1 // pred_region
      %s225 = ssub.s32 768, 768
      %226 = vsyncadd [#allocation15], %s225
      %s227 = sshll.u32 [#allocation16], 4
      %s228 = int_to_ptr.vmem [resolvable:$true] %s227
      %233 = dma.hbm_to_vmem [thread:$0]  %s21, 768, %s228, [#allocation15], 64, 64, 4
    $region45: #{forward.1} parent=1 // pred_fallthru
      _
    // Predicated region
    $region46: #{forward.1} parent=1 // pred_check
      _
    $region47: #{forward.1} parent=1 // pred_check_branch
      %235 = sbr.rel (0) target = $region49
    $region48: #{forward.1} parent=1 // pred_region
      %s237 = ssub.s32 6144, 6144
      %238 = vsyncadd [#allocation18], %s237
      %s239 = sshll.u32 [#allocation17], 4
      %s240 = int_to_ptr.vmem [resolvable:$true] %s239
      %245 = dma.hbm_to_vmem [thread:$0]  %s23, 6144, %s240, [#allocation18], 128, 128, 8
    $region49: #{forward.1} parent=1 // pred_fallthru
      _
    // Predicated region
    $region50: #{forward.1} parent=1 // pred_check
      _
    $region51: #{forward.1} parent=1 // pred_check_branch
      %247 = sbr.rel (0) target = $region53
    $region52: #{forward.1} parent=1 // pred_region
      %s249 = ssub.s32 32, 32
      %250 = vsyncadd [#allocation18], %s249
      %s252 = sshll.u32 [#allocation19], 4
      %s253 = int_to_ptr.vmem [resolvable:$true] %s252
      %255 = dma.hbm_to_vmem [thread:$0]  %s25, 32, %s253, [#allocation18]
    $region53: #{forward.1} parent=1 // pred_fallthru
      _
    // Predicated region
    $region54: #{forward.1} parent=1 // pred_check
      _
    $region55: #{forward.1} parent=1 // pred_check_branch
      %257 = sbr.rel (0) target = $region57
    $region56: #{forward.1} parent=1 // pred_region
      %s259 = ssub.s32 384, 384
      %260 = vsyncadd [#allocation21], %s259
      %s261 = sshll.u32 [#allocation20], 4
      %s262 = int_to_ptr.vmem [resolvable:$true] %s261
      %267 = dma.hbm_to_vmem [thread:$0]  %s27, 384, %s262, [#allocation21], 64, 64, 4
    $region57: #{forward.1} parent=1 // pred_fallthru
      _
    // Predicated region
    $region58: #{forward.1} parent=1 // pred_check
      _
    $region59: #{forward.1} parent=1 // pred_check_branch
      %269 = sbr.rel (0) target = $region61
    $region60: #{forward.1} parent=1 // pred_region
      %s271 = ssub.s32 12288, 12288
      %272 = vsyncadd [#allocation21], %s271
      %s273 = sshll.u32 [#allocation22], 4
      %s274 = int_to_ptr.vmem [resolvable:$true] %s273
      %279 = dma.hbm_to_vmem [thread:$0]  %s29, 12288, %s274, [#allocation21], 128, 128, 8
    $region61: #{forward.1} parent=1 // pred_fallthru
      _
    // Predicated region
    $region62: #{forward.1} parent=1 // pred_check
      _
    $region63: #{forward.1} parent=1 // pred_check_branch
      %281 = sbr.rel (0) target = $region65
    $region64: #{forward.1} parent=1 // pred_region
      %s283 = ssub.s32 32, 32
      %284 = vsyncadd [#allocation24], %s283
      %s286 = sshll.u32 [#allocation23], 4
      %s287 = int_to_ptr.vmem [resolvable:$true] %s286
      %289 = dma.hbm_to_vmem [thread:$0]  %s31, 32, %s287, [#allocation24]
    $region65: #{forward.1} parent=1 // pred_fallthru
      _
    // Predicated region
    $region66: #{forward.1} parent=1 // pred_check
      _
    $region67: #{forward.1} parent=1 // pred_check_branch
      %291 = sbr.rel (0) target = $region69
    $region68: #{forward.1} parent=1 // pred_region
      %s293 = ssub.s32 2048, 2048
      %294 = vsyncadd [#allocation24], %s293
      %s295 = sshll.u32 [#allocation25], 4
      %s296 = int_to_ptr.vmem [resolvable:$true] %s295
      %301 = dma.hbm_to_vmem [thread:$0]  %s33, 2048, %s296, [#allocation24], 64, 64, 4
    $region69: #{forward.1} parent=1 // pred_fallthru
      _
    // Predicated region
    $region70: #{forward.1} parent=1 // pred_check
      _
    $region71: #{forward.1} parent=1 // pred_check_branch
      %303 = sbr.rel (0) target = $region73
    $region72: #{forward.1} parent=1 // pred_region
      %s305 = ssub.s32 16, 16
      %306 = vsyncadd [#allocation27], %s305
      %s308 = sshll.u32 [#allocation26], 4
      %s309 = int_to_ptr.vmem [resolvable:$true] %s308
      %311 = dma.hbm_to_vmem [thread:$0]  %s35, 16, %s309, [#allocation27]
    $region73: #{forward.1} parent=1 // pred_fallthru
      _
    // Predicated region
    $region74: #{forward.1} parent=1 // pred_check
      _
    $region75: #{forward.1} parent=1 // pred_check_branch
      %313 = sbr.rel (0) target = $region77
    $region76: #{forward.1} parent=1 // pred_region
      %s315 = ssub.s32 384, 384
      %316 = vsyncadd [#allocation27], %s315
      %s317 = sshll.u32 [#allocation28], 4
      %s318 = int_to_ptr.vmem [resolvable:$true] %s317
      %323 = dma.hbm_to_vmem [thread:$0]  %s37, 384, %s318, [#allocation27], 64, 64, 4
    $region77: #{forward.1} parent=1 // pred_fallthru
      _
    // Predicated region
    $region78: #{forward.1} parent=1 // pred_check
      _
    $region79: #{forward.1} parent=1 // pred_check_branch
      %325 = sbr.rel (0) target = $region81
    $region80: #{forward.1} parent=1 // pred_region
      %s327 = ssub.s32 6144, 6144
      %328 = vsyncadd [#allocation30], %s327
      %s329 = sshll.u32 [#allocation29], 4
      %s330 = int_to_ptr.vmem [resolvable:$true] %s329
      %335 = dma.hbm_to_vmem [thread:$0]  %s39, 6144, %s330, [#allocation30], 128, 128, 8
    $region81: #{forward.1} parent=1 // pred_fallthru
      _
    // Predicated region
    $region82: #{forward.1} parent=1 // pred_check
      _
    $region83: #{forward.1} parent=1 // pred_check_branch
      %337 = sbr.rel (0) target = $region85
    $region84: #{forward.1} parent=1 // pred_region
      %s339 = ssub.s32 32, 32
      %340 = vsyncadd [#allocation30], %s339
      %s342 = sshll.u32 [#allocation31], 4
      %s343 = int_to_ptr.vmem [resolvable:$true] %s342
      %345 = dma.hbm_to_vmem [thread:$0]  %s41, 32, %s343, [#allocation30]
    $region85: #{forward.1} parent=1 // pred_fallthru
      _
    // Predicated region
    $region86: #{forward.1} parent=1 // pred_check
      _
    $region87: #{forward.1} parent=1 // pred_check_branch
      %347 = sbr.rel (0) target = $region89
    $region88: #{forward.1} parent=1 // pred_region
      %s349 = ssub.s32 192, 192
      %350 = vsyncadd [#allocation33], %s349
      %s351 = sshll.u32 [#allocation32], 4
      %s352 = int_to_ptr.vmem [resolvable:$true] %s351
      %357 = dma.hbm_to_vmem [thread:$0]  %s43, 192, %s352, [#allocation33], 64, 64, 4
    $region89: #{forward.1} parent=1 // pred_fallthru
      _
    // Predicated region
    $region90: #{forward.1} parent=1 // pred_check
      _
    $region91: #{forward.1} parent=1 // pred_check_branch
      %359 = sbr.rel (0) target = $region93
    $region92: #{forward.1} parent=1 // pred_region
      %s361 = ssub.s32 12288, 12288
      %362 = vsyncadd [#allocation33], %s361
      %s363 = sshll.u32 [#allocation34], 4
      %s364 = int_to_ptr.vmem [resolvable:$true] %s363
      %369 = dma.hbm_to_vmem [thread:$0]  %s45, 12288, %s364, [#allocation33], 128, 128, 8
    $region93: #{forward.1} parent=1 // pred_fallthru
      _
    // Predicated region
    $region94: #{forward.1} parent=1 // pred_check
      _
    $region95: #{forward.1} parent=1 // pred_check_branch
      %371 = sbr.rel (0) target = $region97
    $region96: #{forward.1} parent=1 // pred_region
      %s373 = ssub.s32 32, 32
      %374 = vsyncadd [#allocation36], %s373
      %s376 = sshll.u32 [#allocation35], 4
      %s377 = int_to_ptr.vmem [resolvable:$true] %s376
      %379 = dma.hbm_to_vmem [thread:$0]  %s47, 32, %s377, [#allocation36]
    $region97: #{forward.1} parent=1 // pred_fallthru
      _
    // Predicated region
    $region98: #{forward.1} parent=1 // pred_check
      _
    $region99: #{forward.1} parent=1 // pred_check_branch
      %381 = sbr.rel (0) target = $region101
    $region100: #{forward.1} parent=1 // pred_region
      %s383 = ssub.s32 2048, 2048
      %384 = vsyncadd [#allocation36], %s383
      %s385 = sshll.u32 [#allocation37], 4
      %s386 = int_to_ptr.vmem [resolvable:$true] %s385
      %391 = dma.hbm_to_vmem [thread:$0]  %s49, 2048, %s386, [#allocation36], 64, 64, 4
    $region101: #{forward.1} parent=1 // pred_fallthru
      _
    // Predicated region
    $region102: #{forward.1} parent=1 // pred_check
      _
    $region103: #{forward.1} parent=1 // pred_check_branch
      %393 = sbr.rel (0) target = $region105
    $region104: #{forward.1} parent=1 // pred_region
      %s395 = ssub.s32 16, 16
      %396 = vsyncadd [#allocation39], %s395
      %s398 = sshll.u32 [#allocation38], 4
      %s399 = int_to_ptr.vmem [resolvable:$true] %s398
      %401 = dma.hbm_to_vmem [thread:$0]  %s51, 16, %s399, [#allocation39]
    $region105: #{forward.1} parent=1 // pred_fallthru
      _
    // Predicated region
    $region106: #{forward.1} parent=1 // pred_check
      _
    $region107: #{forward.1} parent=1 // pred_check_branch
      %403 = sbr.rel (0) target = $region109
    $region108: #{forward.1} parent=1 // pred_region
      %s405 = ssub.s32 192, 192
      %406 = vsyncadd [#allocation39], %s405
      %s407 = sshll.u32 [#allocation40], 4
      %s408 = int_to_ptr.vmem [resolvable:$true] %s407
      %413 = dma.hbm_to_vmem [thread:$0]  %s53, 192, %s408, [#allocation39], 64, 64, 4
    $region109: #{forward.1} parent=1 // pred_fallthru
      _
    // Predicated region
    $region110: #{forward.1} parent=1 // pred_check
      _
    $region111: #{forward.1} parent=1 // pred_check_branch
      %415 = sbr.rel (0) target = $region113
    $region112: #{forward.1} parent=1 // pred_region
      _
    $region113: #{forward.1} parent=1 // pred_fallthru
      _
    // Predicated region
    $region114: #{forward.1} parent=1 // pred_check
      _
    $region115: #{forward.1} parent=1 // pred_check_branch
      %417 = sbr.rel (0) target = $region117
    $region116: #{forward.1} parent=1 // pred_region
      %s419 = ssub.s32 32, 32
      %420 = vsyncadd [#allocation42], %s419
      %s422 = sshll.u32 [#allocation41], 4
      %s423 = int_to_ptr.vmem [resolvable:$true] %s422
      %425 = dma.hbm_to_vmem [thread:$0]  %s57, 32, %s423, [#allocation42]
    $region117: #{forward.1} parent=1 // pred_fallthru
      _
    // Predicated region
    $region118: #{forward.1} parent=1 // pred_check
      _
    $region119: #{forward.1} parent=1 // pred_check_branch
      %427 = sbr.rel (0) target = $region121
    $region120: #{forward.1} parent=1 // pred_region
      %s429 = ssub.s32 96, 96
      %430 = vsyncadd [#allocation42], %s429
      %s431 = sshll.u32 [#allocation43], 4
      %s432 = int_to_ptr.vmem [resolvable:$true] %s431
      %437 = dma.hbm_to_vmem [thread:$0]  %s59, 96, %s432, [#allocation42], 32, 32, 2
    $region121: #{forward.1} parent=1 // pred_fallthru
      _
    // Predicated region
    $region122: #{forward.1} parent=1 // pred_check
      _
    $region123: #{forward.1} parent=1 // pred_check_branch
      %439 = sbr.rel (0) target = $region125
    $region124: #{forward.1} parent=1 // pred_region
      %s441 = ssub.s32 12288, 12288
      %442 = vsyncadd [#allocation45], %s441
      %s443 = sshll.u32 [#allocation44], 4
      %s444 = int_to_ptr.vmem [resolvable:$true] %s443
      %449 = dma.hbm_to_vmem [thread:$0]  %s61, 12288, %s444, [#allocation45], 128, 128, 8
    $region125: #{forward.1} parent=1 // pred_fallthru
      _
    // Predicated region
    $region126: #{forward.1} parent=1 // pred_check
      _
    $region127: #{forward.1} parent=1 // pred_check_branch
      %451 = sbr.rel (0) target = $region129
    $region128: #{forward.1} parent=1 // pred_region
      %s453 = ssub.s32 32, 32
      %454 = vsyncadd [#allocation45], %s453
      %s456 = sshll.u32 [#allocation46], 4
      %s457 = int_to_ptr.vmem [resolvable:$true] %s456
      %459 = dma.hbm_to_vmem [thread:$0]  %s63, 32, %s457, [#allocation45]
    $region129: #{forward.1} parent=1 // pred_fallthru
      _
    // Predicated region
    $region130: #{forward.1} parent=1 // pred_check
      _
    $region131: #{forward.1} parent=1 // pred_check_branch
      %461 = sbr.rel (0) target = $region133
    $region132: #{forward.1} parent=1 // pred_region
      %s463 = ssub.s32 2048, 2048
      %464 = vsyncadd [#allocation48], %s463
      %s465 = sshll.u32 [#allocation47], 4
      %s466 = int_to_ptr.vmem [resolvable:$true] %s465
      %471 = dma.hbm_to_vmem [thread:$0]  %s65, 2048, %s466, [#allocation48], 64, 64, 4
    $region133: #{forward.1} parent=1 // pred_fallthru
      _
    // Predicated region
    $region134: #{forward.1} parent=1 // pred_check
      _
    $region135: #{forward.1} parent=1 // pred_check_branch
      %473 = sbr.rel (0) target = $region137
    $region136: #{forward.1} parent=1 // pred_region
      %s475 = ssub.s32 16, 16
      %476 = vsyncadd [#allocation48], %s475
      %s478 = sshll.u32 [#allocation49], 4
      %s479 = int_to_ptr.vmem [resolvable:$true] %s478
      %481 = dma.hbm_to_vmem [thread:$0]  %s67, 16, %s479, [#allocation48]
    $region137: #{forward.1} parent=1 // pred_fallthru
      _
    // Predicated region
    $region138: #{forward.1} parent=1 // pred_check
      _
    $region139: #{forward.1} parent=1 // pred_check_branch
      %483 = sbr.rel (0) target = $region141
    $region140: #{forward.1} parent=1 // pred_region
      %s485 = ssub.s32 96, 96
      %486 = vsyncadd [#allocation51], %s485
      %s487 = sshll.u32 [#allocation50], 4
      %s488 = int_to_ptr.vmem [resolvable:$true] %s487
      %493 = dma.hbm_to_vmem [thread:$0]  %s69, 96, %s488, [#allocation51], 32, 32, 2
    $region141: #{forward.1} parent=1 // pred_fallthru
      _
    // Predicated region
    $region142: #{forward.1} parent=1 // pred_check
      _
    $region143: #{forward.1} parent=1 // pred_check_branch
      %495 = sbr.rel (0) target = $region145
    $region144: #{forward.1} parent=1 // pred_region
      %s497 = ssub.s32 6144, 6144
      %498 = vsyncadd [#allocation51], %s497
      %s499 = sshll.u32 [#allocation52], 4
      %s500 = int_to_ptr.vmem [resolvable:$true] %s499
      %505 = dma.hbm_to_vmem [thread:$0]  %s71, 6144, %s500, [#allocation51], 128, 128, 8
    $region145: #{forward.1} parent=1 // pred_fallthru
      _
    // Predicated region
    $region146: #{forward.1} parent=1 // pred_check
      _
    $region147: #{forward.1} parent=1 // pred_check_branch
      %507 = sbr.rel (0) target = $region149
    $region148: #{forward.1} parent=1 // pred_region
      %s509 = ssub.s32 32, 32
      %510 = vsyncadd [#allocation54], %s509
      %s512 = sshll.u32 [#allocation53], 4
      %s513 = int_to_ptr.vmem [resolvable:$true] %s512
      %515 = dma.hbm_to_vmem [thread:$0]  %s73, 32, %s513, [#allocation54]
    $region149: #{forward.1} parent=1 // pred_fallthru
      _
    // Predicated region
    $region150: #{forward.1} parent=1 // pred_check
      _
    $region151: #{forward.1} parent=1 // pred_check_branch
      %517 = sbr.rel (0) target = $region153
    $region152: #{forward.1} parent=1 // pred_region
      _
    $region153: #{forward.1} parent=1 // pred_fallthru
      _
    // Predicated region
    $region154: #{forward.1} parent=1 // pred_check
      _
    $region155: #{forward.1} parent=1 // pred_check_branch
      %519 = sbr.rel (0) target = $region157
    $region156: #{forward.1} parent=1 // pred_region
      %s521 = ssub.s32 12288, 12288
      %522 = vsyncadd [#allocation54], %s521
      %s523 = sshll.u32 [#allocation55], 4
      %s524 = int_to_ptr.vmem [resolvable:$true] %s523
      %529 = dma.hbm_to_vmem [thread:$0]  %s77, 12288, %s524, [#allocation54], 128, 128, 8
    $region157: #{forward.1} parent=1 // pred_fallthru
      _
    // Predicated region
    $region158: #{forward.1} parent=1 // pred_check
      _
    $region159: #{forward.1} parent=1 // pred_check_branch
      %531 = sbr.rel (0) target = $region161
    $region160: #{forward.1} parent=1 // pred_region
      %s533 = ssub.s32 32, 32
      %534 = vsyncadd [#allocation57], %s533
      %s536 = sshll.u32 [#allocation56], 4
      %s537 = int_to_ptr.vmem [resolvable:$true] %s536
      %539 = dma.hbm_to_vmem [thread:$0]  %s79, 32, %s537, [#allocation57]
    $region161: #{forward.1} parent=1 // pred_fallthru
      _
    // Predicated region
    $region162: #{forward.1} parent=1 // pred_check
      _
    $region163: #{forward.1} parent=1 // pred_check_branch
      %541 = sbr.rel (0) target = $region165
    $region164: #{forward.1} parent=1 // pred_region
      %s543 = ssub.s32 2048, 2048
      %544 = vsyncadd [#allocation57], %s543
      %s545 = sshll.u32 [#allocation58], 4
      %s546 = int_to_ptr.vmem [resolvable:$true] %s545
      %551 = dma.hbm_to_vmem [thread:$0]  %s81, 2048, %s546, [#allocation57], 64, 64, 4
    $region165: #{forward.1} parent=1 // pred_fallthru
      _
    // Predicated region
    $region166: #{forward.1} parent=1 // pred_check
      _
    $region167: #{forward.1} parent=1 // pred_check_branch
      %553 = sbr.rel (0) target = $region169
    $region168: #{forward.1} parent=1 // pred_region
      %s555 = ssub.s32 16, 16
      %556 = vsyncadd [#allocation60], %s555
      %s558 = sshll.u32 [#allocation59], 4
      %s559 = int_to_ptr.vmem [resolvable:$true] %s558
      %561 = dma.hbm_to_vmem [thread:$0]  %s83, 16, %s559, [#allocation60]
    $region169: #{forward.1} parent=1 // pred_fallthru
      _
    // Predicated region
    $region170: #{forward.1} parent=1 // pred_check
      _
    $region171: #{forward.1} parent=1 // pred_check_branch
      %563 = sbr.rel (0) target = $region173
    $region172: #{forward.1} parent=1 // pred_region
      _
    $region173: #{forward.1} parent=1 // pred_fallthru
      _
    // Predicated region
    $region174: #{forward.1} parent=1 // pred_check
      _
    $region175: #{forward.1} parent=1 // pred_check_branch
      %565 = sbr.rel (0) target = $region177
    $region176: #{forward.1} parent=1 // pred_region
      %s567 = ssub.s32 6144, 6144
      %568 = vsyncadd [#allocation60], %s567
      %s569 = sshll.u32 [#allocation61], 4
      %s570 = int_to_ptr.vmem [resolvable:$true] %s569
      %575 = dma.hbm_to_vmem [thread:$0]  %s87, 6144, %s570, [#allocation60], 128, 128, 8
    $region177: #{forward.1} parent=1 // pred_fallthru
      _
    // Predicated region
    $region178: #{forward.1} parent=1 // pred_check
      _
    $region179: #{forward.1} parent=1 // pred_check_branch
      %577 = sbr.rel (0) target = $region181
    $region180: #{forward.1} parent=1 // pred_region
      _
    $region181: #{forward.1} parent=1 // pred_fallthru
      _
    // Predicated region
    $region182: #{forward.1} parent=1 // pred_check
      _
    $region183: #{forward.1} parent=1 // pred_check_branch
      %579 = sbr.rel (0) target = $region185
    $region184: #{forward.1} parent=1 // pred_region
      _
    $region185: #{forward.1} parent=1 // pred_fallthru
      _
    // Predicated region
    $region186: #{forward.1} parent=1 // pred_check
      _
    $region187: #{forward.1} parent=1 // pred_check_branch
      %581 = sbr.rel (0) target = $region189
    $region188: #{forward.1} parent=1 // pred_region
      %s583 = ssub.s32 8192, 8192
      %584 = vsyncadd [#allocation63], %s583
      %s585 = sshll.u32 [#allocation62], 4
      %s586 = int_to_ptr.vmem [resolvable:$true] %s585
      %591 = dma.hbm_to_vmem [thread:$0]  %s93, 8192, %s586, [#allocation63], 256, 256, 16
    $region189: #{forward.1} parent=1 // pred_fallthru
      _
    // Predicated region
    $region190: #{forward.1} parent=1 // pred_check
      _
    $region191: #{forward.1} parent=1 // pred_check_branch
      %593 = sbr.rel (0) target = $region193
    $region192: #{forward.1} parent=1 // pred_region
      _
    $region193: #{forward.1} parent=1 // pred_fallthru
      _
    // Predicated region
    $region194: #{forward.1} parent=1 // pred_check
      _
    $region195: #{forward.1} parent=1 // pred_check_branch
      %595 = sbr.rel (0) target = $region197
    $region196: #{forward.1} parent=1 // pred_region
      %596 = dma.done [#allocation3], 1536
    $region197: #{forward.1} parent=1 // pred_fallthru
      _
    // Predicated region
    $region198: #{forward.1} parent=1 // pred_check
      _
    $region199: #{forward.1} parent=1 // pred_check_branch
      %598 = sbr.rel (0) target = $region201
    $region200: #{forward.1} parent=1 // pred_region
      %599 = dma.done [#allocation6], 1536
    $region201: #{forward.1} parent=1 // pred_fallthru
      _
    // Predicated region
    $region202: #{forward.1} parent=1 // pred_check
      _
    $region203: #{forward.1} parent=1 // pred_check_branch
      %601 = sbr.rel (0) target = $region205
    $region204: #{forward.1} parent=1 // pred_region
      %602 = dma.done [#allocation6], 32
    $region205: #{forward.1} parent=1 // pred_fallthru
      _
    // Predicated region
    $region206: #{forward.1} parent=1 // pred_check
      _
    $region207: #{forward.1} parent=1 // pred_check_branch
      %604 = sbr.rel (0) target = $region209
    $region208: #{forward.1} parent=1 // pred_region
      %605 = dma.done [#allocation9], 768
    $region209: #{forward.1} parent=1 // pred_fallthru
      _
    // Predicated region
    $region210: #{forward.1} parent=1 // pred_check
      _
    $region211: #{forward.1} parent=1 // pred_check_branch
      %607 = sbr.rel (0) target = $region213
    $region212: #{forward.1} parent=1 // pred_region
      %608 = dma.done [#allocation9], 12288
    $region213: #{forward.1} parent=1 // pred_fallthru
      _
    // Predicated region
    $region214: #{forward.1} parent=1 // pred_check
      _
    $region215: #{forward.1} parent=1 // pred_check_branch
      %610 = sbr.rel (0) target = $region217
    $region216: #{forward.1} parent=1 // pred_region
      %611 = dma.done [#allocation12], 32
    $region217: #{forward.1} parent=1 // pred_fallthru
      _
    // Predicated region
    $region218: #{forward.1} parent=1 // pred_check
      _
    $region219: #{forward.1} parent=1 // pred_check_branch
      %613 = sbr.rel (0) target = $region221
    $region220: #{forward.1} parent=1 // pred_region
      %614 = dma.done [#allocation12], 2048
    $region221: #{forward.1} parent=1 // pred_fallthru
      _
    // Predicated region
    $region222: #{forward.1} parent=1 // pred_check
      _
    $region223: #{forward.1} parent=1 // pred_check_branch
      %616 = sbr.rel (0) target = $region225
    $region224: #{forward.1} parent=1 // pred_region
      %617 = dma.done [#allocation15], 16
    $region225: #{forward.1} parent=1 // pred_fallthru
      _
    // Predicated region
    $region226: #{forward.1} parent=1 // pred_check
      _
    $region227: #{forward.1} parent=1 // pred_check_branch
      %619 = sbr.rel (0) target = $region229
    $region228: #{forward.1} parent=1 // pred_region
      %620 = dma.done [#allocation15], 768
    $region229: #{forward.1} parent=1 // pred_fallthru
      _
    // Predicated region
    $region230: #{forward.1} parent=1 // pred_check
      _
    $region231: #{forward.1} parent=1 // pred_check_branch
      %622 = sbr.rel (0) target = $region233
    $region232: #{forward.1} parent=1 // pred_region
      %623 = dma.done [#allocation18], 6144
    $region233: #{forward.1} parent=1 // pred_fallthru
      _
    // Predicated region
    $region234: #{forward.1} parent=1 // pred_check
      _
    $region235: #{forward.1} parent=1 // pred_check_branch
      %625 = sbr.rel (0) target = $region237
    $region236: #{forward.1} parent=1 // pred_region
      %626 = dma.done [#allocation18], 32
    $region237: #{forward.1} parent=1 // pred_fallthru
      _
    // Predicated region
    $region238: #{forward.1} parent=1 // pred_check
      _
    $region239: #{forward.1} parent=1 // pred_check_branch
      %628 = sbr.rel (0) target = $region241
    $region240: #{forward.1} parent=1 // pred_region
      %629 = dma.done [#allocation21], 384
    $region241: #{forward.1} parent=1 // pred_fallthru
      _
    // Predicated region
    $region242: #{forward.1} parent=1 // pred_check
      _
    $region243: #{forward.1} parent=1 // pred_check_branch
      %631 = sbr.rel (0) target = $region245
    $region244: #{forward.1} parent=1 // pred_region
      %632 = dma.done [#allocation21], 12288
    $region245: #{forward.1} parent=1 // pred_fallthru
      _
    // Predicated region
    $region246: #{forward.1} parent=1 // pred_check
      _
    $region247: #{forward.1} parent=1 // pred_check_branch
      %634 = sbr.rel (0) target = $region249
    $region248: #{forward.1} parent=1 // pred_region
      %635 = dma.done [#allocation24], 32
    $region249: #{forward.1} parent=1 // pred_fallthru
      _
    // Predicated region
    $region250: #{forward.1} parent=1 // pred_check
      _
    $region251: #{forward.1} parent=1 // pred_check_branch
      %637 = sbr.rel (0) target = $region253
    $region252: #{forward.1} parent=1 // pred_region
      %638 = dma.done [#allocation24], 2048
    $region253: #{forward.1} parent=1 // pred_fallthru
      _
    // Predicated region
    $region254: #{forward.1} parent=1 // pred_check
      _
    $region255: #{forward.1} parent=1 // pred_check_branch
      %640 = sbr.rel (0) target = $region257
    $region256: #{forward.1} parent=1 // pred_region
      %641 = dma.done [#allocation27], 16
    $region257: #{forward.1} parent=1 // pred_fallthru
      _
    // Predicated region
    $region258: #{forward.1} parent=1 // pred_check
      _
    $region259: #{forward.1} parent=1 // pred_check_branch
      %643 = sbr.rel (0) target = $region261
    $region260: #{forward.1} parent=1 // pred_region
      %644 = dma.done [#allocation27], 384
    $region261: #{forward.1} parent=1 // pred_fallthru
      _
    // Predicated region
    $region262: #{forward.1} parent=1 // pred_check
      _
    $region263: #{forward.1} parent=1 // pred_check_branch
      %646 = sbr.rel (0) target = $region265
    $region264: #{forward.1} parent=1 // pred_region
      %647 = dma.done [#allocation30], 6144
    $region265: #{forward.1} parent=1 // pred_fallthru
      _
    // Predicated region
    $region266: #{forward.1} parent=1 // pred_check
      _
    $region267: #{forward.1} parent=1 // pred_check_branch
      %649 = sbr.rel (0) target = $region269
    $region268: #{forward.1} parent=1 // pred_region
      %650 = dma.done [#allocation30], 32
    $region269: #{forward.1} parent=1 // pred_fallthru
      _
    // Predicated region
    $region270: #{forward.1} parent=1 // pred_check
      _
    $region271: #{forward.1} parent=1 // pred_check_branch
      %652 = sbr.rel (0) target = $region273
    $region272: #{forward.1} parent=1 // pred_region
      %653 = dma.done [#allocation33], 192
    $region273: #{forward.1} parent=1 // pred_fallthru
      _
    // Predicated region
    $region274: #{forward.1} parent=1 // pred_check
      _
    $region275: #{forward.1} parent=1 // pred_check_branch
      %655 = sbr.rel (0) target = $region277
    $region276: #{forward.1} parent=1 // pred_region
      %656 = dma.done [#allocation33], 12288
    $region277: #{forward.1} parent=1 // pred_fallthru
      _
    // Predicated region
    $region278: #{forward.1} parent=1 // pred_check
      _
    $region279: #{forward.1} parent=1 // pred_check_branch
      %658 = sbr.rel (0) target = $region281
    $region280: #{forward.1} parent=1 // pred_region
      %659 = dma.done [#allocation36], 32
    $region281: #{forward.1} parent=1 // pred_fallthru
      _
    // Predicated region
    $region282: #{forward.1} parent=1 // pred_check
      _
    $region283: #{forward.1} parent=1 // pred_check_branch
      %661 = sbr.rel (0) target = $region285
    $region284: #{forward.1} parent=1 // pred_region
      %662 = dma.done [#allocation36], 2048
    $region285: #{forward.1} parent=1 // pred_fallthru
      _
    // Predicated region
    $region286: #{forward.1} parent=1 // pred_check
      _
    $region287: #{forward.1} parent=1 // pred_check_branch
      %664 = sbr.rel (0) target = $region289
    $region288: #{forward.1} parent=1 // pred_region
      %665 = dma.done [#allocation39], 16
    $region289: #{forward.1} parent=1 // pred_fallthru
      _
    // Predicated region
    $region290: #{forward.1} parent=1 // pred_check
      _
    $region291: #{forward.1} parent=1 // pred_check_branch
      %667 = sbr.rel (0) target = $region293
    $region292: #{forward.1} parent=1 // pred_region
      %668 = dma.done [#allocation39], 192
    $region293: #{forward.1} parent=1 // pred_fallthru
      _
    // Predicated region
    $region294: #{forward.1} parent=1 // pred_check
      _
    $region295: #{forward.1} parent=1 // pred_check_branch
      %670 = sbr.rel (0) target = $region297
    $region296: #{forward.1} parent=1 // pred_region
      %671 = dma.done [#allocation42], 32
    $region297: #{forward.1} parent=1 // pred_fallthru
      _
    // Predicated region
    $region298: #{forward.1} parent=1 // pred_check
      _
    $region299: #{forward.1} parent=1 // pred_check_branch
      %673 = sbr.rel (0) target = $region301
    $region300: #{forward.1} parent=1 // pred_region
      %674 = dma.done [#allocation42], 96
    $region301: #{forward.1} parent=1 // pred_fallthru
      _
    // Predicated region
    $region302: #{forward.1} parent=1 // pred_check
      _
    $region303: #{forward.1} parent=1 // pred_check_branch
      %676 = sbr.rel (0) target = $region305
    $region304: #{forward.1} parent=1 // pred_region
      %677 = dma.done [#allocation45], 12288
    $region305: #{forward.1} parent=1 // pred_fallthru
      _
    // Predicated region
    $region306: #{forward.1} parent=1 // pred_check
      _
    $region307: #{forward.1} parent=1 // pred_check_branch
      %679 = sbr.rel (0) target = $region309
    $region308: #{forward.1} parent=1 // pred_region
      %680 = dma.done [#allocation45], 32
    $region309: #{forward.1} parent=1 // pred_fallthru
      _
    // Predicated region
    $region310: #{forward.1} parent=1 // pred_check
      _
    $region311: #{forward.1} parent=1 // pred_check_branch
      %682 = sbr.rel (0) target = $region313
    $region312: #{forward.1} parent=1 // pred_region
      %683 = dma.done [#allocation48], 2048
    $region313: #{forward.1} parent=1 // pred_fallthru
      _
    // Predicated region
    $region314: #{forward.1} parent=1 // pred_check
      _
    $region315: #{forward.1} parent=1 // pred_check_branch
      %685 = sbr.rel (0) target = $region317
    $region316: #{forward.1} parent=1 // pred_region
      %686 = dma.done [#allocation48], 16
    $region317: #{forward.1} parent=1 // pred_fallthru
      _
    // Predicated region
    $region318: #{forward.1} parent=1 // pred_check
      _
    $region319: #{forward.1} parent=1 // pred_check_branch
      %688 = sbr.rel (0) target = $region321
    $region320: #{forward.1} parent=1 // pred_region
      %689 = dma.done [#allocation51], 96
    $region321: #{forward.1} parent=1 // pred_fallthru
      _
    // Predicated region
    $region322: #{forward.1} parent=1 // pred_check
      _
    $region323: #{forward.1} parent=1 // pred_check_branch
      %691 = sbr.rel (0) target = $region325
    $region324: #{forward.1} parent=1 // pred_region
      %692 = dma.done [#allocation51], 6144
    $region325: #{forward.1} parent=1 // pred_fallthru
      _
    // Predicated region
    $region326: #{forward.1} parent=1 // pred_check
      _
    $region327: #{forward.1} parent=1 // pred_check_branch
      %694 = sbr.rel (0) target = $region329
    $region328: #{forward.1} parent=1 // pred_region
      %695 = dma.done [#allocation54], 32
    $region329: #{forward.1} parent=1 // pred_fallthru
      _
    // Predicated region
    $region330: #{forward.1} parent=1 // pred_check
      _
    $region331: #{forward.1} parent=1 // pred_check_branch
      %697 = sbr.rel (0) target = $region333
    $region332: #{forward.1} parent=1 // pred_region
      %698 = dma.done [#allocation54], 12288
    $region333: #{forward.1} parent=1 // pred_fallthru
      _
    // Predicated region
    $region334: #{forward.1} parent=1 // pred_check
      _
    $region335: #{forward.1} parent=1 // pred_check_branch
      %700 = sbr.rel (0) target = $region337
    $region336: #{forward.1} parent=1 // pred_region
      %701 = dma.done [#allocation57], 32
    $region337: #{forward.1} parent=1 // pred_fallthru
      _
    // Predicated region
    $region338: #{forward.1} parent=1 // pred_check
      _
    $region339: #{forward.1} parent=1 // pred_check_branch
      %703 = sbr.rel (0) target = $region341
    $region340: #{forward.1} parent=1 // pred_region
      %704 = dma.done [#allocation57], 2048
    $region341: #{forward.1} parent=1 // pred_fallthru
      _
    // Predicated region
    $region342: #{forward.1} parent=1 // pred_check
      _
    $region343: #{forward.1} parent=1 // pred_check_branch
      %706 = sbr.rel (0) target = $region345
    $region344: #{forward.1} parent=1 // pred_region
      %707 = dma.done [#allocation60], 16
    $region345: #{forward.1} parent=1 // pred_fallthru
      _
    // Predicated region
    $region346: #{forward.1} parent=1 // pred_check
      _
    $region347: #{forward.1} parent=1 // pred_check_branch
      %709 = sbr.rel (0) target = $region349
    $region348: #{forward.1} parent=1 // pred_region
      %710 = dma.done [#allocation60], 6144
    $region349: #{forward.1} parent=1 // pred_fallthru
      _
    // Predicated region
    $region350: #{forward.1} parent=1 // pred_check
      _
    $region351: #{forward.1} parent=1 // pred_check_branch
      %712 = sbr.rel (0) target = $region353
    $region352: #{forward.1} parent=1 // pred_region
      %713 = dma.done [#allocation63], 8192
    $region353: #{forward.1} parent=1 // pred_fallthru
      _
    %v715 = vld [vmem:[%s1] sm:$0xff]
    %v716 = vld [vmem:[%s1 + $0x8] sm:$0xff]
    %v717 = vld [vmem:[%s1 + $0x10] sm:$0xff]
    %v718 = vld [vmem:[%s1 + $0x18] sm:$0xff]
    %v719 = vld [vmem:[%s1 + $0x20] sm:$0xff]
    %v720 = vld [vmem:[%s1 + $0x28] sm:$0xff]
    %v721 = vld [vmem:[%s1 + $0x30] sm:$0xff]
    %v722 = vld [vmem:[%s1 + $0x38] sm:$0xff]
    %v723 = vpack.c.bf16 %v716, %v715
    %v724 = vpack.c.bf16 %v718, %v717
    %v725 = vpack.c.bf16 %v720, %v719
    %v726 = vpack.c.bf16 %v722, %v721
    %v727 = vld [vmem:[#allocation2] sm:$0xf]
    %v728 = vld [vmem:[#allocation2 + $0x4] sm:$0xf]
    %v729 = vld [vmem:[#allocation2 + $0x8] sm:$0xf]
    %v730 = vld [vmem:[#allocation2 + $0xc] sm:$0xf]
    %v731 = vld [vmem:[#allocation2 + $0x10] sm:$0xf]
    %v732 = vld [vmem:[#allocation2 + $0x14] sm:$0xf]
    %v733 = vld [vmem:[#allocation2 + $0x18] sm:$0xf]
    %v734 = vld [vmem:[#allocation2 + $0x1c] sm:$0xf]
    %v743 = vunpack.c.l.b16 %v727
    %v744 = vunpack.c.l.b16 %v728
    %v745 = vunpack.c.l.b16 %v729
    %v746 = vunpack.c.l.b16 %v730
    %v747 = vunpack.c.l.b16 %v731
    %v748 = vunpack.c.l.b16 %v732
    %v749 = vunpack.c.l.b16 %v733
    %v750 = vunpack.c.l.b16 %v734
    %v751 = vpack.c.b16 %v744, %v743
    %v752 = vpack.c.b16 %v746, %v745
    %v753 = vpack.c.b16 %v748, %v747
    %v754 = vpack.c.b16 %v750, %v749
    %vm755 = vcmask 523264
    %v757 = vsel %vm755, %v751, 0
    %v760 = vsel %vm755, %v752, 0
    %v763 = vsel %vm755, %v753, 0
    %v766 = vsel %vm755, %v754, 0
    %768 = vmatprep.subr.bf16.mxu0 0
    %769 = vmatpush1.bf16.msra.mxu0 %v723
    %770 = vmatprep.subr.bf16.mxu0 0
    %771 = vmatpush1.bf16.msra.mxu0 %v724
    %772 = vmatprep.subr.bf16.mxu0 0
    %773 = vmatpush1.bf16.msra.mxu0 %v725
    %774 = vmatprep.subr.bf16.mxu0 0
    %775 = vmatpush1.bf16.msra.mxu0 %v726
    %776 = vmatprep.subr.bf16.mxu0 0
    %777 = vmatpush1.bf16.msra.mxu0 0
    %778 = vmatprep.subr.bf16.mxu0 0
    %779 = vmatpush1.bf16.msra.mxu0 0
    %780 = vmatprep.subr.bf16.mxu0 0
    %781 = vmatpush1.bf16.msra.mxu0 0
    %782 = vmatprep.subr.bf16.mxu0 0
    %783 = vmatpush1.bf16.msra.mxu0 0
    %784 = vmatprep.subr.bf16.mxu0 0
    %785 = vmatpush1.bf16.msra.mxu0 0
    %786 = vmatprep.subr.bf16.mxu0 0
    %787 = vmatpush1.bf16.msra.mxu0 0
    %788 = vmatprep.subr.bf16.mxu0 0
    %789 = vmatpush1.bf16.msra.mxu0 0
    %790 = vmatprep.subr.bf16.mxu0 0
    %791 = vmatpush1.bf16.msra.mxu0 0
    %792 = vmatprep.subr.bf16.mxu0 0
    %793 = vmatpush1.bf16.msra.mxu0 0
    %794 = vmatprep.subr.bf16.mxu0 0
    %795 = vmatpush1.bf16.msra.mxu0 0
    %796 = vmatprep.subr.bf16.mxu0 0
    %797 = vmatpush1.bf16.msra.mxu0 0
    %798 = vmatprep.subr.bf16.mxu0 0
    %799 = vmatpush1.bf16.msra.mxu0 0
    %800 = vmatprep.mubr.bf16.mxu0 0
    %801 = vmatmul.mubr.bf16.gmra.mrb[0].mxu0 %v757
    %v802 = vpop.f32.mrb[0].mxu0
    %v803 = vadd.f32 0.0, %v802
    %v804 = vpop.f32.mrb[0].mxu0
    %v805 = vpop.f32.mrb[0].mxu0
    %v806 = vadd.f32 0.0, %v805
    %v807 = vpop.f32.mrb[0].mxu0
    %808 = vmatprep.mubr.bf16.mxu0 0
    %809 = vmatmul.mubr.bf16.gmra.mrb[0].mxu0 %v760
    %v810 = vpop.f32.mrb[0].mxu0
    %v811 = vadd.f32 0.0, %v810
    %v812 = vpop.f32.mrb[0].mxu0
    %v813 = vpop.f32.mrb[0].mxu0
    %v814 = vadd.f32 0.0, %v813
    %v815 = vpop.f32.mrb[0].mxu0
    %816 = vmatprep.mubr.bf16.mxu0 0
    %817 = vmatmul.mubr.bf16.gmra.mrb[0].mxu0 %v763
    %v818 = vpop.f32.mrb[0].mxu0
    %v819 = vadd.f32 0.0, %v818
    %v820 = vpop.f32.mrb[0].mxu0
    %v821 = vpop.f32.mrb[0].mxu0
    %v822 = vadd.f32 0.0, %v821
    %v823 = vpop.f32.mrb[0].mxu0
    %824 = vmatprep.mubr.bf16.mxu0 0
    %825 = vmatmul.mubr.bf16.gmra.mrb[0].mxu0 %v766
    %v826 = vpop.f32.mrb[0].mxu0
    %v827 = vadd.f32 0.0, %v826
    %v828 = vpop.f32.mrb[0].mxu0
    %v829 = vpop.f32.mrb[0].mxu0
    %v830 = vadd.f32 0.0, %v829
    %v831 = vpop.f32.mrb[0].mxu0
    %832 = vdwg.mxu0
    %v833 = vpack.c.bf16 %v806, %v803
    %v834 = vpack.c.bf16 %v814, %v811
    %v835 = vpack.c.bf16 %v822, %v819
    %v836 = vpack.c.bf16 %v830, %v827
    %v837 = vld [vmem:[#allocation5] sm:$0xff]
    %v838 = vld [vmem:[#allocation5 + $0x8] sm:$0xff]
    %v839 = vld [vmem:[#allocation5 + $0x10] sm:$0xff]
    %v840 = vld [vmem:[#allocation5 + $0x18] sm:$0xff]
    %s841 = scalar_lea.vmem [#allocation2], 32
    %v842 = vld [vmem:[%s841] sm:$0xf]
    %v843 = vld [vmem:[%s841 + $0x4] sm:$0xf]
    %v844 = vld [vmem:[%s841 + $0x8] sm:$0xf]
    %v845 = vld [vmem:[%s841 + $0xc] sm:$0xf]
    %v846 = vld [vmem:[%s841 + $0x10] sm:$0xf]
    %v847 = vld [vmem:[%s841 + $0x14] sm:$0xf]
    %v848 = vld [vmem:[%s841 + $0x18] sm:$0xf]
    %v849 = vld [vmem:[%s841 + $0x1c] sm:$0xf]
    %v858 = vunpack.c.l.b16 %v842
    %v859 = vunpack.c.l.b16 %v843
    %v860 = vunpack.c.l.b16 %v844
    %v861 = vunpack.c.l.b16 %v845
    %v862 = vunpack.c.l.b16 %v846
    %v863 = vunpack.c.l.b16 %v847
    %v864 = vunpack.c.l.b16 %v848
    %v865 = vunpack.c.l.b16 %v849
    %v866 = vpack.c.b16 %v859, %v858
    %v867 = vpack.c.b16 %v861, %v860
    %v868 = vpack.c.b16 %v863, %v862
    %v869 = vpack.c.b16 %v865, %v864
    %v871 = vsel %vm755, %v866, 0
    %v874 = vsel %vm755, %v867, 0
    %v877 = vsel %vm755, %v868, 0
    %v880 = vsel %vm755, %v869, 0
    %882 = vmatprep.subr.bf16.mxu0 0
    %883 = vmatpush1.bf16.msra.mxu0 %v723
    %884 = vmatprep.subr.bf16.mxu0 0
    %885 = vmatpush1.bf16.msra.mxu0 %v724
    %886 = vmatprep.subr.bf16.mxu0 0
    %887 = vmatpush1.bf16.msra.mxu0 %v725
    %888 = vmatprep.subr.bf16.mxu0 0
    %889 = vmatpush1.bf16.msra.mxu0 %v726
    %890 = vmatprep.subr.bf16.mxu0 0
    %891 = vmatpush1.bf16.msra.mxu0 0
    %892 = vmatprep.subr.bf16.mxu0 0
    %893 = vmatpush1.bf16.msra.mxu0 0
    %894 = vmatprep.subr.bf16.mxu0 0
    %895 = vmatpush1.bf16.msra.mxu0 0
    %896 = vmatprep.subr.bf16.mxu0 0
    %897 = vmatpush1.bf16.msra.mxu0 0
    %898 = vmatprep.subr.bf16.mxu0 0
    %899 = vmatpush1.bf16.msra.mxu0 0
    %900 = vmatprep.subr.bf16.mxu0 0
    %901 = vmatpush1.bf16.msra.mxu0 0
    %902 = vmatprep.subr.bf16.mxu0 0
    %903 = vmatpush1.bf16.msra.mxu0 0
    %904 = vmatprep.subr.bf16.mxu0 0
    %905 = vmatpush1.bf16.msra.mxu0 0
    %906 = vmatprep.subr.bf16.mxu0 0
    %907 = vmatpush1.bf16.msra.mxu0 0
    %908 = vmatprep.subr.bf16.mxu0 0
    %909 = vmatpush1.bf16.msra.mxu0 0
    %910 = vmatprep.subr.bf16.mxu0 0
    %911 = vmatpush1.bf16.msra.mxu0 0
    %912 = vmatprep.subr.bf16.mxu0 0
    %913 = vmatpush1.bf16.msra.mxu0 0
    %914 = vmatprep.mubr.bf16.mxu0 0
    %915 = vmatmul.mubr.bf16.gmra.mrb[0].mxu0 %v871
    %v916 = vpop.f32.mrb[0].mxu0
    %v917 = vadd.f32 0.0, %v916
    %v918 = vpop.f32.mrb[0].mxu0
    %v919 = vpop.f32.mrb[0].mxu0
    %v920 = vadd.f32 0.0, %v919
    %v921 = vpop.f32.mrb[0].mxu0
    %922 = vmatprep.mubr.bf16.mxu0 0
    %923 = vmatmul.mubr.bf16.gmra.mrb[0].mxu0 %v874
    %v924 = vpop.f32.mrb[0].mxu0
    %v925 = vadd.f32 0.0, %v924
    %v926 = vpop.f32.mrb[0].mxu0
    %v927 = vpop.f32.mrb[0].mxu0
    %v928 = vadd.f32 0.0, %v927
    %v929 = vpop.f32.mrb[0].mxu0
    %930 = vmatprep.mubr.bf16.mxu0 0
    %931 = vmatmul.mubr.bf16.gmra.mrb[0].mxu0 %v877
    %v932 = vpop.f32.mrb[0].mxu0
    %v933 = vadd.f32 0.0, %v932
    %v934 = vpop.f32.mrb[0].mxu0
    %v935 = vpop.f32.mrb[0].mxu0
    %v936 = vadd.f32 0.0, %v935
    %v937 = vpop.f32.mrb[0].mxu0
    %938 = vmatprep.mubr.bf16.mxu0 0
    %939 = vmatmul.mubr.bf16.gmra.mrb[0].mxu0 %v880
    %v940 = vpop.f32.mrb[0].mxu0
    %v941 = vadd.f32 0.0, %v940
    %v942 = vpop.f32.mrb[0].mxu0
    %v943 = vpop.f32.mrb[0].mxu0
    %v944 = vadd.f32 0.0, %v943
    %v945 = vpop.f32.mrb[0].mxu0
    %946 = vdwg.mxu0
    %v947 = vpack.c.bf16 %v920, %v917
    %v948 = vpack.c.bf16 %v928, %v925
    %v949 = vpack.c.bf16 %v936, %v933
    %v950 = vpack.c.bf16 %v944, %v941
    %s951 = scalar_lea.vmem [#allocation5], 32
    %v952 = vld [vmem:[%s951] sm:$0xff]
    %v953 = vld [vmem:[%s951 + $0x8] sm:$0xff]
    %v954 = vld [vmem:[%s951 + $0x10] sm:$0xff]
    %v955 = vld [vmem:[%s951 + $0x18] sm:$0xff]
    %v960 = vunpack.c.l.b16 %v952
    %v961 = vunpack.c.h.b16 %v952
    %v962 = vunpack.c.l.b16 %v953
    %v963 = vunpack.c.h.b16 %v953
    %v964 = vunpack.c.l.b16 %v954
    %v965 = vunpack.c.h.b16 %v954
    %v966 = vunpack.c.l.b16 %v955
    %v967 = vunpack.c.h.b16 %v955
    %v968 = vpack.c.b16 %v962, %v960
    %v969 = vpack.c.b16 %v963, %v961
    %v970 = vpack.c.b16 %v966, %v964
    %v971 = vpack.c.b16 %v967, %v965
    %vm976 = vcmask 261120
    %v978 = vsel %vm976, %v947, 0
    %v981 = vsel %vm976, %v948, 0
    %v984 = vsel %vm976, %v949, 0
    %v987 = vsel %vm976, %v950, 0
    %989 = vmatprep.subr.bf16.mxu0 %v969
    %990 = vmatpush1.bf16.msra.mxu0 %v968
    %991 = vmatprep.subr.bf16.mxu0 %v971
    %992 = vmatpush1.bf16.msra.mxu0 %v970
    %993 = vmatprep.subr.bf16.mxu0 0
    %994 = vmatpush1.bf16.msra.mxu0 0
    %995 = vmatprep.subr.bf16.mxu0 0
    %996 = vmatpush1.bf16.msra.mxu0 0
    %997 = vmatprep.subr.bf16.mxu0 0
    %998 = vmatpush1.bf16.msra.mxu0 0
    %999 = vmatprep.subr.bf16.mxu0 0
    %1000 = vmatpush1.bf16.msra.mxu0 0
    %1001 = vmatprep.subr.bf16.mxu0 0
    %1002 = vmatpush1.bf16.msra.mxu0 0
    %1003 = vmatprep.subr.bf16.mxu0 0
    %1004 = vmatpush1.bf16.msra.mxu0 0
    %1005 = vmatprep.subr.bf16.mxu0 0
    %1006 = vmatpush1.bf16.msra.mxu0 0
    %1007 = vmatprep.subr.bf16.mxu0 0
    %1008 = vmatpush1.bf16.msra.mxu0 0
    %1009 = vmatprep.subr.bf16.mxu0 0
    %1010 = vmatpush1.bf16.msra.mxu0 0
    %1011 = vmatprep.subr.bf16.mxu0 0
    %1012 = vmatpush1.bf16.msra.mxu0 0
    %1013 = vmatprep.subr.bf16.mxu0 0
    %1014 = vmatpush1.bf16.msra.mxu0 0
    %1015 = vmatprep.subr.bf16.mxu0 0
    %1016 = vmatpush1.bf16.msra.mxu0 0
    %1017 = vmatprep.subr.bf16.mxu0 0
    %1018 = vmatpush1.bf16.msra.mxu0 0
    %1019 = vmatprep.subr.bf16.mxu0 0
    %1020 = vmatpush1.bf16.msra.mxu0 0
    %1021 = vmatprep.mubr.bf16.mxu0 0
    %1022 = vmatmul.mubr.bf16.gmra.mrb[0].mxu0 %v978
    %v1023 = vpop.f32.mrb[0].mxu0
    %v1024 = vadd.f32 0.0, %v1023
    %v1025 = vpop.f32.mrb[0].mxu0
    %v1026 = vadd.f32 0.0, %v1025
    %v1027 = vpop.f32.mrb[0].mxu0
    %v1028 = vadd.f32 0.0, %v1027
    %v1029 = vpop.f32.mrb[0].mxu0
    %v1030 = vadd.f32 0.0, %v1029
    %1031 = vmatprep.mubr.bf16.mxu0 0
    %1032 = vmatmul.mubr.bf16.gmra.mrb[0].mxu0 %v981
    %v1033 = vpop.f32.mrb[0].mxu0
    %v1034 = vadd.f32 0.0, %v1033
    %v1035 = vpop.f32.mrb[0].mxu0
    %v1036 = vadd.f32 0.0, %v1035
    %v1037 = vpop.f32.mrb[0].mxu0
    %v1038 = vadd.f32 0.0, %v1037
    %v1039 = vpop.f32.mrb[0].mxu0
    %v1040 = vadd.f32 0.0, %v1039
    %1041 = vmatprep.mubr.bf16.mxu0 0
    %1042 = vmatmul.mubr.bf16.gmra.mrb[0].mxu0 %v984
    %v1043 = vpop.f32.mrb[0].mxu0
    %v1044 = vadd.f32 0.0, %v1043
    %v1045 = vpop.f32.mrb[0].mxu0
    %v1046 = vadd.f32 0.0, %v1045
    %v1047 = vpop.f32.mrb[0].mxu0
    %v1048 = vadd.f32 0.0, %v1047
    %v1049 = vpop.f32.mrb[0].mxu0
    %v1050 = vadd.f32 0.0, %v1049
    %1051 = vmatprep.mubr.bf16.mxu0 0
    %1052 = vmatmul.mubr.bf16.gmra.mrb[0].mxu0 %v987
    %v1053 = vpop.f32.mrb[0].mxu0
    %v1054 = vadd.f32 0.0, %v1053
    %v1055 = vpop.f32.mrb[0].mxu0
    %v1056 = vadd.f32 0.0, %v1055
    %v1057 = vpop.f32.mrb[0].mxu0
    %v1058 = vadd.f32 0.0, %v1057
    %v1059 = vpop.f32.mrb[0].mxu0
    %v1060 = vadd.f32 0.0, %v1059
    %1061 = vdwg.mxu0
    %v1066 = vunpack.c.l.b16 %v837
    %v1067 = vunpack.c.h.b16 %v837
    %v1068 = vunpack.c.l.b16 %v838
    %v1069 = vunpack.c.h.b16 %v838
    %v1070 = vunpack.c.l.b16 %v839
    %v1071 = vunpack.c.h.b16 %v839
    %v1072 = vunpack.c.l.b16 %v840
    %v1073 = vunpack.c.h.b16 %v840
    %v1074 = vpack.c.b16 %v1068, %v1066
    %v1075 = vpack.c.b16 %v1069, %v1067
    %v1076 = vpack.c.b16 %v1072, %v1070
    %v1077 = vpack.c.b16 %v1073, %v1071
    %v1083 = vsel %vm976, %v833, 0
    %v1086 = vsel %vm976, %v834, 0
    %v1089 = vsel %vm976, %v835, 0
    %v1092 = vsel %vm976, %v836, 0
    %1094 = vmatprep.subr.bf16.mxu0 %v1075
    %1095 = vmatpush1.bf16.msra.mxu0 %v1074
    %1096 = vmatprep.subr.bf16.mxu0 %v1077
    %1097 = vmatpush1.bf16.msra.mxu0 %v1076
    %1098 = vmatprep.subr.bf16.mxu0 0
    %1099 = vmatpush1.bf16.msra.mxu0 0
    %1100 = vmatprep.subr.bf16.mxu0 0
    %1101 = vmatpush1.bf16.msra.mxu0 0
    %1102 = vmatprep.subr.bf16.mxu0 0
    %1103 = vmatpush1.bf16.msra.mxu0 0
    %1104 = vmatprep.subr.bf16.mxu0 0
    %1105 = vmatpush1.bf16.msra.mxu0 0
    %1106 = vmatprep.subr.bf16.mxu0 0
    %1107 = vmatpush1.bf16.msra.mxu0 0
    %1108 = vmatprep.subr.bf16.mxu0 0
    %1109 = vmatpush1.bf16.msra.mxu0 0
    %1110 = vmatprep.subr.bf16.mxu0 0
    %1111 = vmatpush1.bf16.msra.mxu0 0
    %1112 = vmatprep.subr.bf16.mxu0 0
    %1113 = vmatpush1.bf16.msra.mxu0 0
    %1114 = vmatprep.subr.bf16.mxu0 0
    %1115 = vmatpush1.bf16.msra.mxu0 0
    %1116 = vmatprep.subr.bf16.mxu0 0
    %1117 = vmatpush1.bf16.msra.mxu0 0
    %1118 = vmatprep.subr.bf16.mxu0 0
    %1119 = vmatpush1.bf16.msra.mxu0 0
    %1120 = vmatprep.subr.bf16.mxu0 0
    %1121 = vmatpush1.bf16.msra.mxu0 0
    %1122 = vmatprep.subr.bf16.mxu0 0
    %1123 = vmatpush1.bf16.msra.mxu0 0
    %1124 = vmatprep.subr.bf16.mxu0 0
    %1125 = vmatpush1.bf16.msra.mxu0 0
    %1126 = vmatprep.mubr.bf16.mxu0 0
    %1127 = vmatmul.mubr.bf16.gmra.mrb[0].mxu0 %v1083
    %v1128 = vpop.f32.mrb[0].mxu0
    %v1129 = vadd.f32 %v1024, %v1128
    %v1130 = vpop.f32.mrb[0].mxu0
    %v1131 = vadd.f32 %v1026, %v1130
    %v1132 = vpop.f32.mrb[0].mxu0
    %v1133 = vadd.f32 %v1028, %v1132
    %v1134 = vpop.f32.mrb[0].mxu0
    %v1135 = vadd.f32 %v1030, %v1134
    %1136 = vmatprep.mubr.bf16.mxu0 0
    %1137 = vmatmul.mubr.bf16.gmra.mrb[0].mxu0 %v1086
    %v1138 = vpop.f32.mrb[0].mxu0
    %v1139 = vadd.f32 %v1034, %v1138
    %v1140 = vpop.f32.mrb[0].mxu0
    %v1141 = vadd.f32 %v1036, %v1140
    %v1142 = vpop.f32.mrb[0].mxu0
    %v1143 = vadd.f32 %v1038, %v1142
    %v1144 = vpop.f32.mrb[0].mxu0
    %v1145 = vadd.f32 %v1040, %v1144
    %1146 = vmatprep.mubr.bf16.mxu0 0
    %1147 = vmatmul.mubr.bf16.gmra.mrb[0].mxu0 %v1089
    %v1148 = vpop.f32.mrb[0].mxu0
    %v1149 = vadd.f32 %v1044, %v1148
    %v1150 = vpop.f32.mrb[0].mxu0
    %v1151 = vadd.f32 %v1046, %v1150
    %v1152 = vpop.f32.mrb[0].mxu0
    %v1153 = vadd.f32 %v1048, %v1152
    %v1154 = vpop.f32.mrb[0].mxu0
    %v1155 = vadd.f32 %v1050, %v1154
    %1156 = vmatprep.mubr.bf16.mxu0 0
    %1157 = vmatmul.mubr.bf16.gmra.mrb[0].mxu0 %v1092
    %v1158 = vpop.f32.mrb[0].mxu0
    %v1159 = vadd.f32 %v1054, %v1158
    %v1160 = vpop.f32.mrb[0].mxu0
    %v1161 = vadd.f32 %v1056, %v1160
    %v1162 = vpop.f32.mrb[0].mxu0
    %v1163 = vadd.f32 %v1058, %v1162
    %v1164 = vpop.f32.mrb[0].mxu0
    %v1165 = vadd.f32 %v1060, %v1164
    %1166 = vdwg.mxu0
    %s1167 = scalar_lea.vmem [#allocation2], 64
    %v1168 = vld [vmem:[%s1167] sm:$0xf]
    %v1169 = vld [vmem:[%s1167 + $0x4] sm:$0xf]
    %v1170 = vld [vmem:[%s1167 + $0x8] sm:$0xf]
    %v1171 = vld [vmem:[%s1167 + $0xc] sm:$0xf]
    %v1172 = vld [vmem:[%s1167 + $0x10] sm:$0xf]
    %v1173 = vld [vmem:[%s1167 + $0x14] sm:$0xf]
    %v1174 = vld [vmem:[%s1167 + $0x18] sm:$0xf]
    %v1175 = vld [vmem:[%s1167 + $0x1c] sm:$0xf]
    %v1184 = vunpack.c.l.b16 %v1168
    %v1185 = vunpack.c.l.b16 %v1169
    %v1186 = vunpack.c.l.b16 %v1170
    %v1187 = vunpack.c.l.b16 %v1171
    %v1188 = vunpack.c.l.b16 %v1172
    %v1189 = vunpack.c.l.b16 %v1173
    %v1190 = vunpack.c.l.b16 %v1174
    %v1191 = vunpack.c.l.b16 %v1175
    %v1192 = vpack.c.b16 %v1185, %v1184
    %v1193 = vpack.c.b16 %v1187, %v1186
    %v1194 = vpack.c.b16 %v1189, %v1188
    %v1195 = vpack.c.b16 %v1191, %v1190
    %v1197 = vsel %vm755, %v1192, 0
    %v1200 = vsel %vm755, %v1193, 0
    %v1203 = vsel %vm755, %v1194, 0
    %v1206 = vsel %vm755, %v1195, 0
    %1208 = vmatprep.subr.bf16.mxu0 0
    %1209 = vmatpush1.bf16.msra.mxu0 %v723
    %1210 = vmatprep.subr.bf16.mxu0 0
    %1211 = vmatpush1.bf16.msra.mxu0 %v724
    %1212 = vmatprep.subr.bf16.mxu0 0
    %1213 = vmatpush1.bf16.msra.mxu0 %v725
    %1214 = vmatprep.subr.bf16.mxu0 0
    %1215 = vmatpush1.bf16.msra.mxu0 %v726
    %1216 = vmatprep.subr.bf16.mxu0 0
    %1217 = vmatpush1.bf16.msra.mxu0 0
    %1218 = vmatprep.subr.bf16.mxu0 0
    %1219 = vmatpush1.bf16.msra.mxu0 0
    %1220 = vmatprep.subr.bf16.mxu0 0
    %1221 = vmatpush1.bf16.msra.mxu0 0
    %1222 = vmatprep.subr.bf16.mxu0 0
    %1223 = vmatpush1.bf16.msra.mxu0 0
    %1224 = vmatprep.subr.bf16.mxu0 0
    %1225 = vmatpush1.bf16.msra.mxu0 0
    %1226 = vmatprep.subr.bf16.mxu0 0
    %1227 = vmatpush1.bf16.msra.mxu0 0
    %1228 = vmatprep.subr.bf16.mxu0 0
    %1229 = vmatpush1.bf16.msra.mxu0 0
    %1230 = vmatprep.subr.bf16.mxu0 0
    %1231 = vmatpush1.bf16.msra.mxu0 0
    %1232 = vmatprep.subr.bf16.mxu0 0
    %1233 = vmatpush1.bf16.msra.mxu0 0
    %1234 = vmatprep.subr.bf16.mxu0 0
    %1235 = vmatpush1.bf16.msra.mxu0 0
    %1236 = vmatprep.subr.bf16.mxu0 0
    %1237 = vmatpush1.bf16.msra.mxu0 0
    %1238 = vmatprep.subr.bf16.mxu0 0
    %1239 = vmatpush1.bf16.msra.mxu0 0
    %1240 = vmatprep.mubr.bf16.mxu0 0
    %1241 = vmatmul.mubr.bf16.gmra.mrb[0].mxu0 %v1197
    %v1242 = vpop.f32.mrb[0].mxu0
    %v1243 = vadd.f32 0.0, %v1242
    %v1244 = vpop.f32.mrb[0].mxu0
    %v1245 = vpop.f32.mrb[0].mxu0
    %v1246 = vadd.f32 0.0, %v1245
    %v1247 = vpop.f32.mrb[0].mxu0
    %1248 = vmatprep.mubr.bf16.mxu0 0
    %1249 = vmatmul.mubr.bf16.gmra.mrb[0].mxu0 %v1200
    %v1250 = vpop.f32.mrb[0].mxu0
    %v1251 = vadd.f32 0.0, %v1250
    %v1252 = vpop.f32.mrb[0].mxu0
    %v1253 = vpop.f32.mrb[0].mxu0
    %v1254 = vadd.f32 0.0, %v1253
    %v1255 = vpop.f32.mrb[0].mxu0
    %1256 = vmatprep.mubr.bf16.mxu0 0
    %1257 = vmatmul.mubr.bf16.gmra.mrb[0].mxu0 %v1203
    %v1258 = vpop.f32.mrb[0].mxu0
    %v1259 = vadd.f32 0.0, %v1258
    %v1260 = vpop.f32.mrb[0].mxu0
    %v1261 = vpop.f32.mrb[0].mxu0
    %v1262 = vadd.f32 0.0, %v1261
    %v1263 = vpop.f32.mrb[0].mxu0
    %1264 = vmatprep.mubr.bf16.mxu0 0
    %1265 = vmatmul.mubr.bf16.gmra.mrb[0].mxu0 %v1206
    %v1266 = vpop.f32.mrb[0].mxu0
    %v1267 = vadd.f32 0.0, %v1266
    %v1268 = vpop.f32.mrb[0].mxu0
    %v1269 = vpop.f32.mrb[0].mxu0
    %v1270 = vadd.f32 0.0, %v1269
    %v1271 = vpop.f32.mrb[0].mxu0
    %1272 = vdwg.mxu0
    %v1273 = vpack.c.bf16 %v1246, %v1243
    %v1274 = vpack.c.bf16 %v1254, %v1251
    %v1275 = vpack.c.bf16 %v1262, %v1259
    %v1276 = vpack.c.bf16 %v1270, %v1267
    %s1277 = scalar_lea.vmem [#allocation5], 64
    %v1278 = vld [vmem:[%s1277] sm:$0xff]
    %v1279 = vld [vmem:[%s1277 + $0x8] sm:$0xff]
    %v1280 = vld [vmem:[%s1277 + $0x10] sm:$0xff]
    %v1281 = vld [vmem:[%s1277 + $0x18] sm:$0xff]
    %v1286 = vunpack.c.l.b16 %v1278
    %v1287 = vunpack.c.h.b16 %v1278
    %v1288 = vunpack.c.l.b16 %v1279
    %v1289 = vunpack.c.h.b16 %v1279
    %v1290 = vunpack.c.l.b16 %v1280
    %v1291 = vunpack.c.h.b16 %v1280
    %v1292 = vunpack.c.l.b16 %v1281
    %v1293 = vunpack.c.h.b16 %v1281
    %v1294 = vpack.c.b16 %v1288, %v1286
    %v1295 = vpack.c.b16 %v1289, %v1287
    %v1296 = vpack.c.b16 %v1292, %v1290
    %v1297 = vpack.c.b16 %v1293, %v1291
    %v1303 = vsel %vm976, %v1273, 0
    %v1306 = vsel %vm976, %v1274, 0
    %v1309 = vsel %vm976, %v1275, 0
    %v1312 = vsel %vm976, %v1276, 0
    %1314 = vmatprep.subr.bf16.mxu0 %v1295
    %1315 = vmatpush1.bf16.msra.mxu0 %v1294
    %1316 = vmatprep.subr.bf16.mxu0 %v1297
    %1317 = vmatpush1.bf16.msra.mxu0 %v1296
    %1318 = vmatprep.subr.bf16.mxu0 0
    %1319 = vmatpush1.bf16.msra.mxu0 0
    %1320 = vmatprep.subr.bf16.mxu0 0
    %1321 = vmatpush1.bf16.msra.mxu0 0
    %1322 = vmatprep.subr.bf16.mxu0 0
    %1323 = vmatpush1.bf16.msra.mxu0 0
    %1324 = vmatprep.subr.bf16.mxu0 0
    %1325 = vmatpush1.bf16.msra.mxu0 0
    %1326 = vmatprep.subr.bf16.mxu0 0
    %1327 = vmatpush1.bf16.msra.mxu0 0
    %1328 = vmatprep.subr.bf16.mxu0 0
    %1329 = vmatpush1.bf16.msra.mxu0 0
    %1330 = vmatprep.subr.bf16.mxu0 0
    %1331 = vmatpush1.bf16.msra.mxu0 0
    %1332 = vmatprep.subr.bf16.mxu0 0
    %1333 = vmatpush1.bf16.msra.mxu0 0
    %1334 = vmatprep.subr.bf16.mxu0 0
    %1335 = vmatpush1.bf16.msra.mxu0 0
    %1336 = vmatprep.subr.bf16.mxu0 0
    %1337 = vmatpush1.bf16.msra.mxu0 0
    %1338 = vmatprep.subr.bf16.mxu0 0
    %1339 = vmatpush1.bf16.msra.mxu0 0
    %1340 = vmatprep.subr.bf16.mxu0 0
    %1341 = vmatpush1.bf16.msra.mxu0 0
    %1342 = vmatprep.subr.bf16.mxu0 0
    %1343 = vmatpush1.bf16.msra.mxu0 0
    %1344 = vmatprep.subr.bf16.mxu0 0
    %1345 = vmatpush1.bf16.msra.mxu0 0
    %1346 = vmatprep.mubr.bf16.mxu0 0
    %1347 = vmatmul.mubr.bf16.gmra.mrb[0].mxu0 %v1303
    %v1348 = vpop.f32.mrb[0].mxu0
    %v1349 = vadd.f32 0.0, %v1348
    %v1350 = vpop.f32.mrb[0].mxu0
    %v1351 = vadd.f32 0.0, %v1350
    %v1352 = vpop.f32.mrb[0].mxu0
    %v1353 = vadd.f32 0.0, %v1352
    %v1354 = vpop.f32.mrb[0].mxu0
    %v1355 = vadd.f32 0.0, %v1354
    %1356 = vmatprep.mubr.bf16.mxu0 0
    %1357 = vmatmul.mubr.bf16.gmra.mrb[0].mxu0 %v1306
    %v1358 = vpop.f32.mrb[0].mxu0
    %v1359 = vadd.f32 0.0, %v1358
    %v1360 = vpop.f32.mrb[0].mxu0
    %v1361 = vadd.f32 0.0, %v1360
    %v1362 = vpop.f32.mrb[0].mxu0
    %v1363 = vadd.f32 0.0, %v1362
    %v1364 = vpop.f32.mrb[0].mxu0
    %v1365 = vadd.f32 0.0, %v1364
    %1366 = vmatprep.mubr.bf16.mxu0 0
    %1367 = vmatmul.mubr.bf16.gmra.mrb[0].mxu0 %v1309
    %v1368 = vpop.f32.mrb[0].mxu0
    %v1369 = vadd.f32 0.0, %v1368
    %v1370 = vpop.f32.mrb[0].mxu0
    %v1371 = vadd.f32 0.0, %v1370
    %v1372 = vpop.f32.mrb[0].mxu0
    %v1373 = vadd.f32 0.0, %v1372
    %v1374 = vpop.f32.mrb[0].mxu0
    %v1375 = vadd.f32 0.0, %v1374
    %1376 = vmatprep.mubr.bf16.mxu0 0
    %1377 = vmatmul.mubr.bf16.gmra.mrb[0].mxu0 %v1312
    %v1378 = vpop.f32.mrb[0].mxu0
    %v1379 = vadd.f32 0.0, %v1378
    %v1380 = vpop.f32.mrb[0].mxu0
    %v1381 = vadd.f32 0.0, %v1380
    %v1382 = vpop.f32.mrb[0].mxu0
    %v1383 = vadd.f32 0.0, %v1382
    %v1384 = vpop.f32.mrb[0].mxu0
    %v1385 = vadd.f32 0.0, %v1384
    %1386 = vdwg.mxu0
    %v1387 = vadd.f32 %v1129, %v1349
    %v1388 = vadd.f32 %v1131, %v1351
    %v1389 = vadd.f32 %v1133, %v1353
    %v1390 = vadd.f32 %v1135, %v1355
    %v1391 = vadd.f32 %v1139, %v1359
    %v1392 = vadd.f32 %v1141, %v1361
    %v1393 = vadd.f32 %v1143, %v1363
    %v1394 = vadd.f32 %v1145, %v1365
    %v1395 = vadd.f32 %v1149, %v1369
    %v1396 = vadd.f32 %v1151, %v1371
    %v1397 = vadd.f32 %v1153, %v1373
    %v1398 = vadd.f32 %v1155, %v1375
    %v1399 = vadd.f32 %v1159, %v1379
    %v1400 = vadd.f32 %v1161, %v1381
    %v1401 = vadd.f32 %v1163, %v1383
    %v1402 = vadd.f32 %v1165, %v1385
    %v1403 = vld [vmem:[#allocation7] sm:$0x3]
    %v1405 = vlaneseq
    %v1406 = vshrl.u32 %v1405, 7
    %v1407 = vsub.s32 0, %v1406
    %v1408 = vrot.slane %v1403, %v1407
    %v1409 = vlaneseq
    %v1410 = vshrl.u32 %v1409, 7
    %v1411 = vsub.s32 1, %v1410
    %v1412 = vrot.slane %v1403, %v1411
    %v1415 = vadd.f32 %v1387, %v1408
    %v1416 = vadd.f32 %v1388, %v1412
    %v1417 = vadd.f32 %v1389, %v1408
    %v1418 = vadd.f32 %v1390, %v1412
    %v1419 = vadd.f32 %v1391, %v1408
    %v1420 = vadd.f32 %v1392, %v1412
    %v1421 = vadd.f32 %v1393, %v1408
    %v1422 = vadd.f32 %v1394, %v1412
    %v1423 = vadd.f32 %v1395, %v1408
    %v1424 = vadd.f32 %v1396, %v1412
    %v1425 = vadd.f32 %v1397, %v1408
    %v1426 = vadd.f32 %v1398, %v1412
    %v1427 = vadd.f32 %v1399, %v1408
    %v1428 = vadd.f32 %v1400, %v1412
    %v1429 = vadd.f32 %v1401, %v1408
    %v1430 = vadd.f32 %v1402, %v1412
    %vm1431 = vcmp.ge.f32.partialorder %v1415, 0.0
    %vm1432 = vcmp.ge.f32.partialorder %v1416, 0.0
    %vm1433 = vcmp.ge.f32.partialorder %v1417, 0.0
    %vm1434 = vcmp.ge.f32.partialorder %v1418, 0.0
    %vm1435 = vcmp.ge.f32.partialorder %v1419, 0.0
    %vm1436 = vcmp.ge.f32.partialorder %v1420, 0.0
    %vm1437 = vcmp.ge.f32.partialorder %v1421, 0.0
    %vm1438 = vcmp.ge.f32.partialorder %v1422, 0.0
    %vm1439 = vcmp.ge.f32.partialorder %v1423, 0.0
    %vm1440 = vcmp.ge.f32.partialorder %v1424, 0.0
    %vm1441 = vcmp.ge.f32.partialorder %v1425, 0.0
    %vm1442 = vcmp.ge.f32.partialorder %v1426, 0.0
    %vm1443 = vcmp.ge.f32.partialorder %v1427, 0.0
    %vm1444 = vcmp.ge.f32.partialorder %v1428, 0.0
    %vm1445 = vcmp.ge.f32.partialorder %v1429, 0.0
    %vm1446 = vcmp.ge.f32.partialorder %v1430, 0.0
    %v1447 = vmul.f32 %v1415, 0.1
    %v1448 = vmul.f32 %v1416, 0.1
    %v1449 = vmul.f32 %v1417, 0.1
    %v1450 = vmul.f32 %v1418, 0.1
    %v1451 = vmul.f32 %v1419, 0.1
    %v1452 = vmul.f32 %v1420, 0.1
    %v1453 = vmul.f32 %v1421, 0.1
    %v1454 = vmul.f32 %v1422, 0.1
    %v1455 = vmul.f32 %v1423, 0.1
    %v1456 = vmul.f32 %v1424, 0.1
    %v1457 = vmul.f32 %v1425, 0.1
    %v1458 = vmul.f32 %v1426, 0.1
    %v1459 = vmul.f32 %v1427, 0.1
    %v1460 = vmul.f32 %v1428, 0.1
    %v1461 = vmul.f32 %v1429, 0.1
    %v1462 = vmul.f32 %v1430, 0.1
    %v1463 = vsel %vm1431, %v1415, %v1447
    %v1464 = vsel %vm1432, %v1416, %v1448
    %v1465 = vsel %vm1433, %v1417, %v1449
    %v1466 = vsel %vm1434, %v1418, %v1450
    %v1467 = vsel %vm1435, %v1419, %v1451
    %v1468 = vsel %vm1436, %v1420, %v1452
    %v1469 = vsel %vm1437, %v1421, %v1453
    %v1470 = vsel %vm1438, %v1422, %v1454
    %v1471 = vsel %vm1439, %v1423, %v1455
    %v1472 = vsel %vm1440, %v1424, %v1456
    %v1473 = vsel %vm1441, %v1425, %v1457
    %v1474 = vsel %vm1442, %v1426, %v1458
    %v1475 = vsel %vm1443, %v1427, %v1459
    %v1476 = vsel %vm1444, %v1428, %v1460
    %v1477 = vsel %vm1445, %v1429, %v1461
    %v1478 = vsel %vm1446, %v1430, %v1462
    %v1479 = vpack.c.bf16 %v1465, %v1463
    %v1480 = vpack.c.bf16 %v1466, %v1464
    %v1481 = vpack.c.bf16 %v1469, %v1467
    %v1482 = vpack.c.bf16 %v1470, %v1468
    %v1483 = vpack.c.bf16 %v1473, %v1471
    %v1484 = vpack.c.bf16 %v1474, %v1472
    %v1485 = vpack.c.bf16 %v1477, %v1475
    %v1486 = vpack.c.bf16 %v1478, %v1476
    %v1487 = vld [vmem:[#allocation8] sm:$0xf]
    %v1488 = vld [vmem:[#allocation8 + $0x4] sm:$0xf]
    %v1489 = vld [vmem:[#allocation8 + $0x8] sm:$0xf]
    %v1490 = vld [vmem:[#allocation8 + $0xc] sm:$0xf]
    %v1495 = vunpack.c.l.b16 %v1487
    %v1496 = vunpack.c.l.b16 %v1488
    %v1497 = vunpack.c.l.b16 %v1489
    %v1498 = vunpack.c.l.b16 %v1490
    %v1499 = vpack.c.b16 %v1496, %v1495
    %v1500 = vpack.c.b16 %v1498, %v1497
    %v1502 = vsel %vm755, %v1499, 0
    %v1505 = vsel %vm755, %v1500, 0
    %1507 = vmatprep.subr.bf16.mxu0 %v1480
    %1508 = vmatpush1.bf16.msra.mxu0 %v1479
    %1509 = vmatprep.subr.bf16.mxu0 %v1482
    %1510 = vmatpush1.bf16.msra.mxu0 %v1481
    %1511 = vmatprep.subr.bf16.mxu0 %v1484
    %1512 = vmatpush1.bf16.msra.mxu0 %v1483
    %1513 = vmatprep.subr.bf16.mxu0 %v1486
    %1514 = vmatpush1.bf16.msra.mxu0 %v1485
    %1515 = vmatprep.subr.bf16.mxu0 0
    %1516 = vmatpush1.bf16.msra.mxu0 0
    %1517 = vmatprep.subr.bf16.mxu0 0
    %1518 = vmatpush1.bf16.msra.mxu0 0
    %1519 = vmatprep.subr.bf16.mxu0 0
    %1520 = vmatpush1.bf16.msra.mxu0 0
    %1521 = vmatprep.subr.bf16.mxu0 0
    %1522 = vmatpush1.bf16.msra.mxu0 0
    %1523 = vmatprep.subr.bf16.mxu0 0
    %1524 = vmatpush1.bf16.msra.mxu0 0
    %1525 = vmatprep.subr.bf16.mxu0 0
    %1526 = vmatpush1.bf16.msra.mxu0 0
    %1527 = vmatprep.subr.bf16.mxu0 0
    %1528 = vmatpush1.bf16.msra.mxu0 0
    %1529 = vmatprep.subr.bf16.mxu0 0
    %1530 = vmatpush1.bf16.msra.mxu0 0
    %1531 = vmatprep.subr.bf16.mxu0 0
    %1532 = vmatpush1.bf16.msra.mxu0 0
    %1533 = vmatprep.subr.bf16.mxu0 0
    %1534 = vmatpush1.bf16.msra.mxu0 0
    %1535 = vmatprep.subr.bf16.mxu0 0
    %1536 = vmatpush1.bf16.msra.mxu0 0
    %1537 = vmatprep.subr.bf16.mxu0 0
    %1538 = vmatpush1.bf16.msra.mxu0 0
    %1539 = vmatprep.mubr.bf16.mxu0 0
    %1540 = vmatmul.mubr.bf16.gmra.mrb[0].mxu0 %v1502
    %v1541 = vpop.f32.mrb[0].mxu0
    %v1542 = vadd.f32 0.0, %v1541
    %v1543 = vpop.f32.mrb[0].mxu0
    %v1544 = vadd.f32 0.0, %v1543
    %v1545 = vpop.f32.mrb[0].mxu0
    %v1546 = vadd.f32 0.0, %v1545
    %v1547 = vpop.f32.mrb[0].mxu0
    %v1548 = vadd.f32 0.0, %v1547
    %1549 = vmatprep.mubr.bf16.mxu0 0
    %1550 = vmatmul.mubr.bf16.gmra.mrb[0].mxu0 %v1505
    %v1551 = vpop.f32.mrb[0].mxu0
    %v1552 = vadd.f32 0.0, %v1551
    %v1553 = vpop.f32.mrb[0].mxu0
    %v1554 = vadd.f32 0.0, %v1553
    %v1555 = vpop.f32.mrb[0].mxu0
    %v1556 = vadd.f32 0.0, %v1555
    %v1557 = vpop.f32.mrb[0].mxu0
    %v1558 = vadd.f32 0.0, %v1557
    %1559 = vdwg.mxu0
    %v1560 = vpack.c.bf16 %v1546, %v1542
    %v1561 = vpack.c.bf16 %v1548, %v1544
    %v1562 = vpack.c.bf16 %v1556, %v1552
    %v1563 = vpack.c.bf16 %v1558, %v1554
    %v1564 = vld [vmem:[#allocation10] sm:$0xff]
    %v1565 = vld [vmem:[#allocation10 + $0x8] sm:$0xff]
    %v1566 = vld [vmem:[#allocation10 + $0x10] sm:$0xff]
    %v1567 = vld [vmem:[#allocation10 + $0x18] sm:$0xff]
    %v1568 = vld [vmem:[#allocation10 + $0x20] sm:$0xff]
    %v1569 = vld [vmem:[#allocation10 + $0x28] sm:$0xff]
    %v1570 = vld [vmem:[#allocation10 + $0x30] sm:$0xff]
    %v1571 = vld [vmem:[#allocation10 + $0x38] sm:$0xff]
    %v1572 = vld [vmem:[#allocation10 + $0x40] sm:$0xff]
    %v1573 = vld [vmem:[#allocation10 + $0x48] sm:$0xff]
    %v1574 = vld [vmem:[#allocation10 + $0x50] sm:$0xff]
    %v1575 = vld [vmem:[#allocation10 + $0x58] sm:$0xff]
    %v1576 = vld [vmem:[#allocation10 + $0x60] sm:$0xff]
    %v1577 = vld [vmem:[#allocation10 + $0x68] sm:$0xff]
    %v1578 = vld [vmem:[#allocation10 + $0x70] sm:$0xff]
    %v1579 = vld [vmem:[#allocation10 + $0x78] sm:$0xff]
    %v1580 = vld [vmem:[#allocation10 + $0x80] sm:$0xff]
    %v1581 = vld [vmem:[#allocation10 + $0x88] sm:$0xff]
    %v1582 = vld [vmem:[#allocation10 + $0x90] sm:$0xff]
    %v1583 = vld [vmem:[#allocation10 + $0x98] sm:$0xff]
    %v1584 = vld [vmem:[#allocation10 + $0xa0] sm:$0xff]
    %v1585 = vld [vmem:[#allocation10 + $0xa8] sm:$0xff]
    %v1586 = vld [vmem:[#allocation10 + $0xb0] sm:$0xff]
    %v1587 = vld [vmem:[#allocation10 + $0xb8] sm:$0xff]
    %v1588 = vld [vmem:[#allocation10 + $0xc0] sm:$0xff]
    %v1589 = vld [vmem:[#allocation10 + $0xc8] sm:$0xff]
    %v1590 = vld [vmem:[#allocation10 + $0xd0] sm:$0xff]
    %v1591 = vld [vmem:[#allocation10 + $0xd8] sm:$0xff]
    %v1592 = vld [vmem:[#allocation10 + $0xe0] sm:$0xff]
    %v1593 = vld [vmem:[#allocation10 + $0xe8] sm:$0xff]
    %v1594 = vld [vmem:[#allocation10 + $0xf0] sm:$0xff]
    %v1595 = vld [vmem:[#allocation10 + $0xf8] sm:$0xff]
    %s1596 = scalar_lea.vmem [#allocation8], 16
    %v1597 = vld [vmem:[%s1596] sm:$0xf]
    %v1598 = vld [vmem:[%s1596 + $0x4] sm:$0xf]
    %v1599 = vld [vmem:[%s1596 + $0x8] sm:$0xf]
    %v1600 = vld [vmem:[%s1596 + $0xc] sm:$0xf]
    %v1605 = vunpack.c.l.b16 %v1597
    %v1606 = vunpack.c.l.b16 %v1598
    %v1607 = vunpack.c.l.b16 %v1599
    %v1608 = vunpack.c.l.b16 %v1600
    %v1609 = vpack.c.b16 %v1606, %v1605
    %v1610 = vpack.c.b16 %v1608, %v1607
    %v1612 = vsel %vm755, %v1609, 0
    %v1615 = vsel %vm755, %v1610, 0
    %1617 = vmatprep.subr.bf16.mxu0 %v1480
    %1618 = vmatpush1.bf16.msra.mxu0 %v1479
    %1619 = vmatprep.subr.bf16.mxu0 %v1482
    %1620 = vmatpush1.bf16.msra.mxu0 %v1481
    %1621 = vmatprep.subr.bf16.mxu0 %v1484
    %1622 = vmatpush1.bf16.msra.mxu0 %v1483
    %1623 = vmatprep.subr.bf16.mxu0 %v1486
    %1624 = vmatpush1.bf16.msra.mxu0 %v1485
    %1625 = vmatprep.subr.bf16.mxu0 0
    %1626 = vmatpush1.bf16.msra.mxu0 0
    %1627 = vmatprep.subr.bf16.mxu0 0
    %1628 = vmatpush1.bf16.msra.mxu0 0
    %1629 = vmatprep.subr.bf16.mxu0 0
    %1630 = vmatpush1.bf16.msra.mxu0 0
    %1631 = vmatprep.subr.bf16.mxu0 0
    %1632 = vmatpush1.bf16.msra.mxu0 0
    %1633 = vmatprep.subr.bf16.mxu0 0
    %1634 = vmatpush1.bf16.msra.mxu0 0
    %1635 = vmatprep.subr.bf16.mxu0 0
    %1636 = vmatpush1.bf16.msra.mxu0 0
    %1637 = vmatprep.subr.bf16.mxu0 0
    %1638 = vmatpush1.bf16.msra.mxu0 0
    %1639 = vmatprep.subr.bf16.mxu0 0
    %1640 = vmatpush1.bf16.msra.mxu0 0
    %1641 = vmatprep.subr.bf16.mxu0 0
    %1642 = vmatpush1.bf16.msra.mxu0 0
    %1643 = vmatprep.subr.bf16.mxu0 0
    %1644 = vmatpush1.bf16.msra.mxu0 0
    %1645 = vmatprep.subr.bf16.mxu0 0
    %1646 = vmatpush1.bf16.msra.mxu0 0
    %1647 = vmatprep.subr.bf16.mxu0 0
    %1648 = vmatpush1.bf16.msra.mxu0 0
    %1649 = vmatprep.mubr.bf16.mxu0 0
    %1650 = vmatmul.mubr.bf16.gmra.mrb[0].mxu0 %v1612
    %v1651 = vpop.f32.mrb[0].mxu0
    %v1652 = vadd.f32 0.0, %v1651
    %v1653 = vpop.f32.mrb[0].mxu0
    %v1654 = vadd.f32 0.0, %v1653
    %v1655 = vpop.f32.mrb[0].mxu0
    %v1656 = vadd.f32 0.0, %v1655
    %v1657 = vpop.f32.mrb[0].mxu0
    %v1658 = vadd.f32 0.0, %v1657
    %1659 = vmatprep.mubr.bf16.mxu0 0
    %1660 = vmatmul.mubr.bf16.gmra.mrb[0].mxu0 %v1615
    %v1661 = vpop.f32.mrb[0].mxu0
    %v1662 = vadd.f32 0.0, %v1661
    %v1663 = vpop.f32.mrb[0].mxu0
    %v1664 = vadd.f32 0.0, %v1663
    %v1665 = vpop.f32.mrb[0].mxu0
    %v1666 = vadd.f32 0.0, %v1665
    %v1667 = vpop.f32.mrb[0].mxu0
    %v1668 = vadd.f32 0.0, %v1667
    %1669 = vdwg.mxu0
    %v1670 = vpack.c.bf16 %v1656, %v1652
    %v1671 = vpack.c.bf16 %v1658, %v1654
    %v1672 = vpack.c.bf16 %v1666, %v1662
    %v1673 = vpack.c.bf16 %v1668, %v1664
    %s1674 = scalar_lea.vmem [#allocation10], 256
    %v1675 = vld [vmem:[%s1674] sm:$0xff]
    %v1676 = vld [vmem:[%s1674 + $0x8] sm:$0xff]
    %v1677 = vld [vmem:[%s1674 + $0x10] sm:$0xff]
    %v1678 = vld [vmem:[%s1674 + $0x18] sm:$0xff]
    %v1679 = vld [vmem:[%s1674 + $0x20] sm:$0xff]
    %v1680 = vld [vmem:[%s1674 + $0x28] sm:$0xff]
    %v1681 = vld [vmem:[%s1674 + $0x30] sm:$0xff]
    %v1682 = vld [vmem:[%s1674 + $0x38] sm:$0xff]
    %v1683 = vld [vmem:[%s1674 + $0x40] sm:$0xff]
    %v1684 = vld [vmem:[%s1674 + $0x48] sm:$0xff]
    %v1685 = vld [vmem:[%s1674 + $0x50] sm:$0xff]
    %v1686 = vld [vmem:[%s1674 + $0x58] sm:$0xff]
    %v1687 = vld [vmem:[%s1674 + $0x60] sm:$0xff]
    %v1688 = vld [vmem:[%s1674 + $0x68] sm:$0xff]
    %v1689 = vld [vmem:[%s1674 + $0x70] sm:$0xff]
    %v1690 = vld [vmem:[%s1674 + $0x78] sm:$0xff]
    %v1691 = vld [vmem:[%s1674 + $0x80] sm:$0xff]
    %v1692 = vld [vmem:[%s1674 + $0x88] sm:$0xff]
    %v1693 = vld [vmem:[%s1674 + $0x90] sm:$0xff]
    %v1694 = vld [vmem:[%s1674 + $0x98] sm:$0xff]
    %v1695 = vld [vmem:[%s1674 + $0xa0] sm:$0xff]
    %v1696 = vld [vmem:[%s1674 + $0xa8] sm:$0xff]
    %v1697 = vld [vmem:[%s1674 + $0xb0] sm:$0xff]
    %v1698 = vld [vmem:[%s1674 + $0xb8] sm:$0xff]
    %v1699 = vld [vmem:[%s1674 + $0xc0] sm:$0xff]
    %v1700 = vld [vmem:[%s1674 + $0xc8] sm:$0xff]
    %v1701 = vld [vmem:[%s1674 + $0xd0] sm:$0xff]
    %v1702 = vld [vmem:[%s1674 + $0xd8] sm:$0xff]
    %v1703 = vld [vmem:[%s1674 + $0xe0] sm:$0xff]
    %v1704 = vld [vmem:[%s1674 + $0xe8] sm:$0xff]
    %v1705 = vld [vmem:[%s1674 + $0xf0] sm:$0xff]
    %v1706 = vld [vmem:[%s1674 + $0xf8] sm:$0xff]
    %v1739 = vunpack.c.l.b16 %v1675
    %v1740 = vunpack.c.h.b16 %v1675
    %v1741 = vunpack.c.l.b16 %v1676
    %v1742 = vunpack.c.h.b16 %v1676
    %v1743 = vunpack.c.l.b16 %v1677
    %v1744 = vunpack.c.h.b16 %v1677
    %v1745 = vunpack.c.l.b16 %v1678
    %v1746 = vunpack.c.h.b16 %v1678
    %v1747 = vunpack.c.l.b16 %v1679
    %v1748 = vunpack.c.h.b16 %v1679
    %v1749 = vunpack.c.l.b16 %v1680
    %v1750 = vunpack.c.h.b16 %v1680
    %v1751 = vunpack.c.l.b16 %v1681
    %v1752 = vunpack.c.h.b16 %v1681
    %v1753 = vunpack.c.l.b16 %v1682
    %v1754 = vunpack.c.h.b16 %v1682
    %v1755 = vunpack.c.l.b16 %v1683
    %v1756 = vunpack.c.h.b16 %v1683
    %v1757 = vunpack.c.l.b16 %v1684
    %v1758 = vunpack.c.h.b16 %v1684
    %v1759 = vunpack.c.l.b16 %v1685
    %v1760 = vunpack.c.h.b16 %v1685
    %v1761 = vunpack.c.l.b16 %v1686
    %v1762 = vunpack.c.h.b16 %v1686
    %v1763 = vunpack.c.l.b16 %v1687
    %v1764 = vunpack.c.h.b16 %v1687
    %v1765 = vunpack.c.l.b16 %v1688
    %v1766 = vunpack.c.h.b16 %v1688
    %v1767 = vunpack.c.l.b16 %v1689
    %v1768 = vunpack.c.h.b16 %v1689
    %v1769 = vunpack.c.l.b16 %v1690
    %v1770 = vunpack.c.h.b16 %v1690
    %v1771 = vunpack.c.l.b16 %v1691
    %v1772 = vunpack.c.h.b16 %v1691
    %v1773 = vunpack.c.l.b16 %v1692
    %v1774 = vunpack.c.h.b16 %v1692
    %v1775 = vunpack.c.l.b16 %v1693
    %v1776 = vunpack.c.h.b16 %v1693
    %v1777 = vunpack.c.l.b16 %v1694
    %v1778 = vunpack.c.h.b16 %v1694
    %v1779 = vunpack.c.l.b16 %v1695
    %v1780 = vunpack.c.h.b16 %v1695
    %v1781 = vunpack.c.l.b16 %v1696
    %v1782 = vunpack.c.h.b16 %v1696
    %v1783 = vunpack.c.l.b16 %v1697
    %v1784 = vunpack.c.h.b16 %v1697
    %v1785 = vunpack.c.l.b16 %v1698
    %v1786 = vunpack.c.h.b16 %v1698
    %v1787 = vunpack.c.l.b16 %v1699
    %v1788 = vunpack.c.h.b16 %v1699
    %v1789 = vunpack.c.l.b16 %v1700
    %v1790 = vunpack.c.h.b16 %v1700
    %v1791 = vunpack.c.l.b16 %v1701
    %v1792 = vunpack.c.h.b16 %v1701
    %v1793 = vunpack.c.l.b16 %v1702
    %v1794 = vunpack.c.h.b16 %v1702
    %v1795 = vunpack.c.l.b16 %v1703
    %v1796 = vunpack.c.h.b16 %v1703
    %v1797 = vunpack.c.l.b16 %v1704
    %v1798 = vunpack.c.h.b16 %v1704
    %v1799 = vunpack.c.l.b16 %v1705
    %v1800 = vunpack.c.h.b16 %v1705
    %v1801 = vunpack.c.l.b16 %v1706
    %v1802 = vunpack.c.h.b16 %v1706
    %v1803 = vpack.c.b16 %v1741, %v1739
    %v1804 = vpack.c.b16 %v1742, %v1740
    %v1805 = vpack.c.b16 %v1745, %v1743
    %v1806 = vpack.c.b16 %v1746, %v1744
    %v1807 = vpack.c.b16 %v1749, %v1747
    %v1808 = vpack.c.b16 %v1750, %v1748
    %v1809 = vpack.c.b16 %v1753, %v1751
    %v1810 = vpack.c.b16 %v1754, %v1752
    %v1811 = vpack.c.b16 %v1757, %v1755
    %v1812 = vpack.c.b16 %v1758, %v1756
    %v1813 = vpack.c.b16 %v1761, %v1759
    %v1814 = vpack.c.b16 %v1762, %v1760
    %v1815 = vpack.c.b16 %v1765, %v1763
    %v1816 = vpack.c.b16 %v1766, %v1764
    %v1817 = vpack.c.b16 %v1769, %v1767
    %v1818 = vpack.c.b16 %v1770, %v1768
    %v1819 = vpack.c.b16 %v1773, %v1771
    %v1820 = vpack.c.b16 %v1774, %v1772
    %v1821 = vpack.c.b16 %v1777, %v1775
    %v1822 = vpack.c.b16 %v1778, %v1776
    %v1823 = vpack.c.b16 %v1781, %v1779
    %v1824 = vpack.c.b16 %v1782, %v1780
    %v1825 = vpack.c.b16 %v1785, %v1783
    %v1826 = vpack.c.b16 %v1786, %v1784
    %v1827 = vpack.c.b16 %v1789, %v1787
    %v1828 = vpack.c.b16 %v1790, %v1788
    %v1829 = vpack.c.b16 %v1793, %v1791
    %v1830 = vpack.c.b16 %v1794, %v1792
    %v1831 = vpack.c.b16 %v1797, %v1795
    %v1832 = vpack.c.b16 %v1798, %v1796
    %v1833 = vpack.c.b16 %v1801, %v1799
    %v1834 = vpack.c.b16 %v1802, %v1800
    %1867 = vmatprep.subr.bf16.mxu0 %v1804
    %1868 = vmatpush1.bf16.msra.mxu0 %v1803
    %1869 = vmatprep.subr.bf16.mxu0 %v1806
    %1870 = vmatpush1.bf16.msra.mxu0 %v1805
    %1871 = vmatprep.subr.bf16.mxu0 %v1808
    %1872 = vmatpush1.bf16.msra.mxu0 %v1807
    %1873 = vmatprep.subr.bf16.mxu0 %v1810
    %1874 = vmatpush1.bf16.msra.mxu0 %v1809
    %1875 = vmatprep.subr.bf16.mxu0 %v1812
    %1876 = vmatpush1.bf16.msra.mxu0 %v1811
    %1877 = vmatprep.subr.bf16.mxu0 %v1814
    %1878 = vmatpush1.bf16.msra.mxu0 %v1813
    %1879 = vmatprep.subr.bf16.mxu0 %v1816
    %1880 = vmatpush1.bf16.msra.mxu0 %v1815
    %1881 = vmatprep.subr.bf16.mxu0 %v1818
    %1882 = vmatpush1.bf16.msra.mxu0 %v1817
    %1883 = vmatprep.subr.bf16.mxu0 %v1820
    %1884 = vmatpush1.bf16.msra.mxu0 %v1819
    %1885 = vmatprep.subr.bf16.mxu0 %v1822
    %1886 = vmatpush1.bf16.msra.mxu0 %v1821
    %1887 = vmatprep.subr.bf16.mxu0 %v1824
    %1888 = vmatpush1.bf16.msra.mxu0 %v1823
    %1889 = vmatprep.subr.bf16.mxu0 %v1826
    %1890 = vmatpush1.bf16.msra.mxu0 %v1825
    %1891 = vmatprep.subr.bf16.mxu0 %v1828
    %1892 = vmatpush1.bf16.msra.mxu0 %v1827
    %1893 = vmatprep.subr.bf16.mxu0 %v1830
    %1894 = vmatpush1.bf16.msra.mxu0 %v1829
    %1895 = vmatprep.subr.bf16.mxu0 %v1832
    %1896 = vmatpush1.bf16.msra.mxu0 %v1831
    %1897 = vmatprep.subr.bf16.mxu0 %v1834
    %1898 = vmatpush1.bf16.msra.mxu0 %v1833
    %1899 = vmatprep.mubr.bf16.mxu0 %v1671
    %1900 = vmatmul.mubr.bf16.gmra.mrb[0].mxu0 %v1670
    %v1901 = vpop.f32.mrb[0].mxu0
    %v1902 = vadd.f32 0.0, %v1901
    %v1903 = vpop.f32.mrb[0].mxu0
    %v1904 = vadd.f32 0.0, %v1903
    %v1905 = vpop.f32.mrb[0].mxu0
    %v1906 = vadd.f32 0.0, %v1905
    %v1907 = vpop.f32.mrb[0].mxu0
    %v1908 = vadd.f32 0.0, %v1907
    %1909 = vmatprep.mubr.bf16.mxu0 %v1673
    %1910 = vmatmul.mubr.bf16.gmra.mrb[0].mxu0 %v1672
    %v1911 = vpop.f32.mrb[0].mxu0
    %v1912 = vadd.f32 0.0, %v1911
    %v1913 = vpop.f32.mrb[0].mxu0
    %v1914 = vadd.f32 0.0, %v1913
    %v1915 = vpop.f32.mrb[0].mxu0
    %v1916 = vadd.f32 0.0, %v1915
    %v1917 = vpop.f32.mrb[0].mxu0
    %v1918 = vadd.f32 0.0, %v1917
    %1919 = vdwg.mxu0
    %v1952 = vunpack.c.l.b16 %v1564
    %v1953 = vunpack.c.h.b16 %v1564
    %v1954 = vunpack.c.l.b16 %v1565
    %v1955 = vunpack.c.h.b16 %v1565
    %v1956 = vunpack.c.l.b16 %v1566
    %v1957 = vunpack.c.h.b16 %v1566
    %v1958 = vunpack.c.l.b16 %v1567
    %v1959 = vunpack.c.h.b16 %v1567
    %v1960 = vunpack.c.l.b16 %v1568
    %v1961 = vunpack.c.h.b16 %v1568
    %v1962 = vunpack.c.l.b16 %v1569
    %v1963 = vunpack.c.h.b16 %v1569
    %v1964 = vunpack.c.l.b16 %v1570
    %v1965 = vunpack.c.h.b16 %v1570
    %v1966 = vunpack.c.l.b16 %v1571
    %v1967 = vunpack.c.h.b16 %v1571
    %v1968 = vunpack.c.l.b16 %v1572
    %v1969 = vunpack.c.h.b16 %v1572
    %v1970 = vunpack.c.l.b16 %v1573
    %v1971 = vunpack.c.h.b16 %v1573
    %v1972 = vunpack.c.l.b16 %v1574
    %v1973 = vunpack.c.h.b16 %v1574
    %v1974 = vunpack.c.l.b16 %v1575
    %v1975 = vunpack.c.h.b16 %v1575
    %v1976 = vunpack.c.l.b16 %v1576
    %v1977 = vunpack.c.h.b16 %v1576
    %v1978 = vunpack.c.l.b16 %v1577
    %v1979 = vunpack.c.h.b16 %v1577
    %v1980 = vunpack.c.l.b16 %v1578
    %v1981 = vunpack.c.h.b16 %v1578
    %v1982 = vunpack.c.l.b16 %v1579
    %v1983 = vunpack.c.h.b16 %v1579
    %v1984 = vunpack.c.l.b16 %v1580
    %v1985 = vunpack.c.h.b16 %v1580
    %v1986 = vunpack.c.l.b16 %v1581
    %v1987 = vunpack.c.h.b16 %v1581
    %v1988 = vunpack.c.l.b16 %v1582
    %v1989 = vunpack.c.h.b16 %v1582
    %v1990 = vunpack.c.l.b16 %v1583
    %v1991 = vunpack.c.h.b16 %v1583
    %v1992 = vunpack.c.l.b16 %v1584
    %v1993 = vunpack.c.h.b16 %v1584
    %v1994 = vunpack.c.l.b16 %v1585
    %v1995 = vunpack.c.h.b16 %v1585
    %v1996 = vunpack.c.l.b16 %v1586
    %v1997 = vunpack.c.h.b16 %v1586
    %v1998 = vunpack.c.l.b16 %v1587
    %v1999 = vunpack.c.h.b16 %v1587
    %v2000 = vunpack.c.l.b16 %v1588
    %v2001 = vunpack.c.h.b16 %v1588
    %v2002 = vunpack.c.l.b16 %v1589
    %v2003 = vunpack.c.h.b16 %v1589
    %v2004 = vunpack.c.l.b16 %v1590
    %v2005 = vunpack.c.h.b16 %v1590
    %v2006 = vunpack.c.l.b16 %v1591
    %v2007 = vunpack.c.h.b16 %v1591
    %v2008 = vunpack.c.l.b16 %v1592
    %v2009 = vunpack.c.h.b16 %v1592
    %v2010 = vunpack.c.l.b16 %v1593
    %v2011 = vunpack.c.h.b16 %v1593
    %v2012 = vunpack.c.l.b16 %v1594
    %v2013 = vunpack.c.h.b16 %v1594
    %v2014 = vunpack.c.l.b16 %v1595
    %v2015 = vunpack.c.h.b16 %v1595
    %v2016 = vpack.c.b16 %v1954, %v1952
    %v2017 = vpack.c.b16 %v1955, %v1953
    %v2018 = vpack.c.b16 %v1958, %v1956
    %v2019 = vpack.c.b16 %v1959, %v1957
    %v2020 = vpack.c.b16 %v1962, %v1960
    %v2021 = vpack.c.b16 %v1963, %v1961
    %v2022 = vpack.c.b16 %v1966, %v1964
    %v2023 = vpack.c.b16 %v1967, %v1965
    %v2024 = vpack.c.b16 %v1970, %v1968
    %v2025 = vpack.c.b16 %v1971, %v1969
    %v2026 = vpack.c.b16 %v1974, %v1972
    %v2027 = vpack.c.b16 %v1975, %v1973
    %v2028 = vpack.c.b16 %v1978, %v1976
    %v2029 = vpack.c.b16 %v1979, %v1977
    %v2030 = vpack.c.b16 %v1982, %v1980
    %v2031 = vpack.c.b16 %v1983, %v1981
    %v2032 = vpack.c.b16 %v1986, %v1984
    %v2033 = vpack.c.b16 %v1987, %v1985
    %v2034 = vpack.c.b16 %v1990, %v1988
    %v2035 = vpack.c.b16 %v1991, %v1989
    %v2036 = vpack.c.b16 %v1994, %v1992
    %v2037 = vpack.c.b16 %v1995, %v1993
    %v2038 = vpack.c.b16 %v1998, %v1996
    %v2039 = vpack.c.b16 %v1999, %v1997
    %v2040 = vpack.c.b16 %v2002, %v2000
    %v2041 = vpack.c.b16 %v2003, %v2001
    %v2042 = vpack.c.b16 %v2006, %v2004
    %v2043 = vpack.c.b16 %v2007, %v2005
    %v2044 = vpack.c.b16 %v2010, %v2008
    %v2045 = vpack.c.b16 %v2011, %v2009
    %v2046 = vpack.c.b16 %v2014, %v2012
    %v2047 = vpack.c.b16 %v2015, %v2013
    %2080 = vmatprep.subr.bf16.mxu0 %v2017
    %2081 = vmatpush1.bf16.msra.mxu0 %v2016
    %2082 = vmatprep.subr.bf16.mxu0 %v2019
    %2083 = vmatpush1.bf16.msra.mxu0 %v2018
    %2084 = vmatprep.subr.bf16.mxu0 %v2021
    %2085 = vmatpush1.bf16.msra.mxu0 %v2020
    %2086 = vmatprep.subr.bf16.mxu0 %v2023
    %2087 = vmatpush1.bf16.msra.mxu0 %v2022
    %2088 = vmatprep.subr.bf16.mxu0 %v2025
    %2089 = vmatpush1.bf16.msra.mxu0 %v2024
    %2090 = vmatprep.subr.bf16.mxu0 %v2027
    %2091 = vmatpush1.bf16.msra.mxu0 %v2026
    %2092 = vmatprep.subr.bf16.mxu0 %v2029
    %2093 = vmatpush1.bf16.msra.mxu0 %v2028
    %2094 = vmatprep.subr.bf16.mxu0 %v2031
    %2095 = vmatpush1.bf16.msra.mxu0 %v2030
    %2096 = vmatprep.subr.bf16.mxu0 %v2033
    %2097 = vmatpush1.bf16.msra.mxu0 %v2032
    %2098 = vmatprep.subr.bf16.mxu0 %v2035
    %2099 = vmatpush1.bf16.msra.mxu0 %v2034
    %2100 = vmatprep.subr.bf16.mxu0 %v2037
    %2101 = vmatpush1.bf16.msra.mxu0 %v2036
    %2102 = vmatprep.subr.bf16.mxu0 %v2039
    %2103 = vmatpush1.bf16.msra.mxu0 %v2038
    %2104 = vmatprep.subr.bf16.mxu0 %v2041
    %2105 = vmatpush1.bf16.msra.mxu0 %v2040
    %2106 = vmatprep.subr.bf16.mxu0 %v2043
    %2107 = vmatpush1.bf16.msra.mxu0 %v2042
    %2108 = vmatprep.subr.bf16.mxu0 %v2045
    %2109 = vmatpush1.bf16.msra.mxu0 %v2044
    %2110 = vmatprep.subr.bf16.mxu0 %v2047
    %2111 = vmatpush1.bf16.msra.mxu0 %v2046
    %2112 = vmatprep.mubr.bf16.mxu0 %v1561
    %2113 = vmatmul.mubr.bf16.gmra.mrb[0].mxu0 %v1560
    %v2114 = vpop.f32.mrb[0].mxu0
    %v2115 = vadd.f32 %v1902, %v2114
    %v2116 = vpop.f32.mrb[0].mxu0
    %v2117 = vadd.f32 %v1904, %v2116
    %v2118 = vpop.f32.mrb[0].mxu0
    %v2119 = vadd.f32 %v1906, %v2118
    %v2120 = vpop.f32.mrb[0].mxu0
    %v2121 = vadd.f32 %v1908, %v2120
    %2122 = vmatprep.mubr.bf16.mxu0 %v1563
    %2123 = vmatmul.mubr.bf16.gmra.mrb[0].mxu0 %v1562
    %v2124 = vpop.f32.mrb[0].mxu0
    %v2125 = vadd.f32 %v1912, %v2124
    %v2126 = vpop.f32.mrb[0].mxu0
    %v2127 = vadd.f32 %v1914, %v2126
    %v2128 = vpop.f32.mrb[0].mxu0
    %v2129 = vadd.f32 %v1916, %v2128
    %v2130 = vpop.f32.mrb[0].mxu0
    %v2131 = vadd.f32 %v1918, %v2130
    %2132 = vdwg.mxu0
    %s2133 = scalar_lea.vmem [#allocation8], 32
    %v2134 = vld [vmem:[%s2133] sm:$0xf]
    %v2135 = vld [vmem:[%s2133 + $0x4] sm:$0xf]
    %v2136 = vld [vmem:[%s2133 + $0x8] sm:$0xf]
    %v2137 = vld [vmem:[%s2133 + $0xc] sm:$0xf]
    %v2142 = vunpack.c.l.b16 %v2134
    %v2143 = vunpack.c.l.b16 %v2135
    %v2144 = vunpack.c.l.b16 %v2136
    %v2145 = vunpack.c.l.b16 %v2137
    %v2146 = vpack.c.b16 %v2143, %v2142
    %v2147 = vpack.c.b16 %v2145, %v2144
    %v2149 = vsel %vm755, %v2146, 0
    %v2152 = vsel %vm755, %v2147, 0
    %2154 = vmatprep.subr.bf16.mxu0 %v1480
    %2155 = vmatpush1.bf16.msra.mxu0 %v1479
    %2156 = vmatprep.subr.bf16.mxu0 %v1482
    %2157 = vmatpush1.bf16.msra.mxu0 %v1481
    %2158 = vmatprep.subr.bf16.mxu0 %v1484
    %2159 = vmatpush1.bf16.msra.mxu0 %v1483
    %2160 = vmatprep.subr.bf16.mxu0 %v1486
    %2161 = vmatpush1.bf16.msra.mxu0 %v1485
    %2162 = vmatprep.subr.bf16.mxu0 0
    %2163 = vmatpush1.bf16.msra.mxu0 0
    %2164 = vmatprep.subr.bf16.mxu0 0
    %2165 = vmatpush1.bf16.msra.mxu0 0
    %2166 = vmatprep.subr.bf16.mxu0 0
    %2167 = vmatpush1.bf16.msra.mxu0 0
    %2168 = vmatprep.subr.bf16.mxu0 0
    %2169 = vmatpush1.bf16.msra.mxu0 0
    %2170 = vmatprep.subr.bf16.mxu0 0
    %2171 = vmatpush1.bf16.msra.mxu0 0
    %2172 = vmatprep.subr.bf16.mxu0 0
    %2173 = vmatpush1.bf16.msra.mxu0 0
    %2174 = vmatprep.subr.bf16.mxu0 0
    %2175 = vmatpush1.bf16.msra.mxu0 0
    %2176 = vmatprep.subr.bf16.mxu0 0
    %2177 = vmatpush1.bf16.msra.mxu0 0
    %2178 = vmatprep.subr.bf16.mxu0 0
    %2179 = vmatpush1.bf16.msra.mxu0 0
    %2180 = vmatprep.subr.bf16.mxu0 0
    %2181 = vmatpush1.bf16.msra.mxu0 0
    %2182 = vmatprep.subr.bf16.mxu0 0
    %2183 = vmatpush1.bf16.msra.mxu0 0
    %2184 = vmatprep.subr.bf16.mxu0 0
    %2185 = vmatpush1.bf16.msra.mxu0 0
    %2186 = vmatprep.mubr.bf16.mxu0 0
    %2187 = vmatmul.mubr.bf16.gmra.mrb[0].mxu0 %v2149
    %v2188 = vpop.f32.mrb[0].mxu0
    %v2189 = vadd.f32 0.0, %v2188
    %v2190 = vpop.f32.mrb[0].mxu0
    %v2191 = vadd.f32 0.0, %v2190
    %v2192 = vpop.f32.mrb[0].mxu0
    %v2193 = vadd.f32 0.0, %v2192
    %v2194 = vpop.f32.mrb[0].mxu0
    %v2195 = vadd.f32 0.0, %v2194
    %2196 = vmatprep.mubr.bf16.mxu0 0
    %2197 = vmatmul.mubr.bf16.gmra.mrb[0].mxu0 %v2152
    %v2198 = vpop.f32.mrb[0].mxu0
    %v2199 = vadd.f32 0.0, %v2198
    %v2200 = vpop.f32.mrb[0].mxu0
    %v2201 = vadd.f32 0.0, %v2200
    %v2202 = vpop.f32.mrb[0].mxu0
    %v2203 = vadd.f32 0.0, %v2202
    %v2204 = vpop.f32.mrb[0].mxu0
    %v2205 = vadd.f32 0.0, %v2204
    %2206 = vdwg.mxu0
    %v2207 = vpack.c.bf16 %v2193, %v2189
    %v2208 = vpack.c.bf16 %v2195, %v2191
    %v2209 = vpack.c.bf16 %v2203, %v2199
    %v2210 = vpack.c.bf16 %v2205, %v2201
    %s2211 = scalar_lea.vmem [#allocation10], 512
    %v2212 = vld [vmem:[%s2211] sm:$0xff]
    %v2213 = vld [vmem:[%s2211 + $0x8] sm:$0xff]
    %v2214 = vld [vmem:[%s2211 + $0x10] sm:$0xff]
    %v2215 = vld [vmem:[%s2211 + $0x18] sm:$0xff]
    %v2216 = vld [vmem:[%s2211 + $0x20] sm:$0xff]
    %v2217 = vld [vmem:[%s2211 + $0x28] sm:$0xff]
    %v2218 = vld [vmem:[%s2211 + $0x30] sm:$0xff]
    %v2219 = vld [vmem:[%s2211 + $0x38] sm:$0xff]
    %v2220 = vld [vmem:[%s2211 + $0x40] sm:$0xff]
    %v2221 = vld [vmem:[%s2211 + $0x48] sm:$0xff]
    %v2222 = vld [vmem:[%s2211 + $0x50] sm:$0xff]
    %v2223 = vld [vmem:[%s2211 + $0x58] sm:$0xff]
    %v2224 = vld [vmem:[%s2211 + $0x60] sm:$0xff]
    %v2225 = vld [vmem:[%s2211 + $0x68] sm:$0xff]
    %v2226 = vld [vmem:[%s2211 + $0x70] sm:$0xff]
    %v2227 = vld [vmem:[%s2211 + $0x78] sm:$0xff]
    %v2228 = vld [vmem:[%s2211 + $0x80] sm:$0xff]
    %v2229 = vld [vmem:[%s2211 + $0x88] sm:$0xff]
    %v2230 = vld [vmem:[%s2211 + $0x90] sm:$0xff]
    %v2231 = vld [vmem:[%s2211 + $0x98] sm:$0xff]
    %v2232 = vld [vmem:[%s2211 + $0xa0] sm:$0xff]
    %v2233 = vld [vmem:[%s2211 + $0xa8] sm:$0xff]
    %v2234 = vld [vmem:[%s2211 + $0xb0] sm:$0xff]
    %v2235 = vld [vmem:[%s2211 + $0xb8] sm:$0xff]
    %v2236 = vld [vmem:[%s2211 + $0xc0] sm:$0xff]
    %v2237 = vld [vmem:[%s2211 + $0xc8] sm:$0xff]
    %v2238 = vld [vmem:[%s2211 + $0xd0] sm:$0xff]
    %v2239 = vld [vmem:[%s2211 + $0xd8] sm:$0xff]
    %v2240 = vld [vmem:[%s2211 + $0xe0] sm:$0xff]
    %v2241 = vld [vmem:[%s2211 + $0xe8] sm:$0xff]
    %v2242 = vld [vmem:[%s2211 + $0xf0] sm:$0xff]
    %v2243 = vld [vmem:[%s2211 + $0xf8] sm:$0xff]
    %v2276 = vunpack.c.l.b16 %v2212
    %v2277 = vunpack.c.h.b16 %v2212
    %v2278 = vunpack.c.l.b16 %v2213
    %v2279 = vunpack.c.h.b16 %v2213
    %v2280 = vunpack.c.l.b16 %v2214
    %v2281 = vunpack.c.h.b16 %v2214
    %v2282 = vunpack.c.l.b16 %v2215
    %v2283 = vunpack.c.h.b16 %v2215
    %v2284 = vunpack.c.l.b16 %v2216
    %v2285 = vunpack.c.h.b16 %v2216
    %v2286 = vunpack.c.l.b16 %v2217
    %v2287 = vunpack.c.h.b16 %v2217
    %v2288 = vunpack.c.l.b16 %v2218
    %v2289 = vunpack.c.h.b16 %v2218
    %v2290 = vunpack.c.l.b16 %v2219
    %v2291 = vunpack.c.h.b16 %v2219
    %v2292 = vunpack.c.l.b16 %v2220
    %v2293 = vunpack.c.h.b16 %v2220
    %v2294 = vunpack.c.l.b16 %v2221
    %v2295 = vunpack.c.h.b16 %v2221
    %v2296 = vunpack.c.l.b16 %v2222
    %v2297 = vunpack.c.h.b16 %v2222
    %v2298 = vunpack.c.l.b16 %v2223
    %v2299 = vunpack.c.h.b16 %v2223
    %v2300 = vunpack.c.l.b16 %v2224
    %v2301 = vunpack.c.h.b16 %v2224
    %v2302 = vunpack.c.l.b16 %v2225
    %v2303 = vunpack.c.h.b16 %v2225
    %v2304 = vunpack.c.l.b16 %v2226
    %v2305 = vunpack.c.h.b16 %v2226
    %v2306 = vunpack.c.l.b16 %v2227
    %v2307 = vunpack.c.h.b16 %v2227
    %v2308 = vunpack.c.l.b16 %v2228
    %v2309 = vunpack.c.h.b16 %v2228
    %v2310 = vunpack.c.l.b16 %v2229
    %v2311 = vunpack.c.h.b16 %v2229
    %v2312 = vunpack.c.l.b16 %v2230
    %v2313 = vunpack.c.h.b16 %v2230
    %v2314 = vunpack.c.l.b16 %v2231
    %v2315 = vunpack.c.h.b16 %v2231
    %v2316 = vunpack.c.l.b16 %v2232
    %v2317 = vunpack.c.h.b16 %v2232
    %v2318 = vunpack.c.l.b16 %v2233
    %v2319 = vunpack.c.h.b16 %v2233
    %v2320 = vunpack.c.l.b16 %v2234
    %v2321 = vunpack.c.h.b16 %v2234
    %v2322 = vunpack.c.l.b16 %v2235
    %v2323 = vunpack.c.h.b16 %v2235
    %v2324 = vunpack.c.l.b16 %v2236
    %v2325 = vunpack.c.h.b16 %v2236
    %v2326 = vunpack.c.l.b16 %v2237
    %v2327 = vunpack.c.h.b16 %v2237
    %v2328 = vunpack.c.l.b16 %v2238
    %v2329 = vunpack.c.h.b16 %v2238
    %v2330 = vunpack.c.l.b16 %v2239
    %v2331 = vunpack.c.h.b16 %v2239
    %v2332 = vunpack.c.l.b16 %v2240
    %v2333 = vunpack.c.h.b16 %v2240
    %v2334 = vunpack.c.l.b16 %v2241
    %v2335 = vunpack.c.h.b16 %v2241
    %v2336 = vunpack.c.l.b16 %v2242
    %v2337 = vunpack.c.h.b16 %v2242
    %v2338 = vunpack.c.l.b16 %v2243
    %v2339 = vunpack.c.h.b16 %v2243
    %v2340 = vpack.c.b16 %v2278, %v2276
    %v2341 = vpack.c.b16 %v2279, %v2277
    %v2342 = vpack.c.b16 %v2282, %v2280
    %v2343 = vpack.c.b16 %v2283, %v2281
    %v2344 = vpack.c.b16 %v2286, %v2284
    %v2345 = vpack.c.b16 %v2287, %v2285
    %v2346 = vpack.c.b16 %v2290, %v2288
    %v2347 = vpack.c.b16 %v2291, %v2289
    %v2348 = vpack.c.b16 %v2294, %v2292
    %v2349 = vpack.c.b16 %v2295, %v2293
    %v2350 = vpack.c.b16 %v2298, %v2296
    %v2351 = vpack.c.b16 %v2299, %v2297
    %v2352 = vpack.c.b16 %v2302, %v2300
    %v2353 = vpack.c.b16 %v2303, %v2301
    %v2354 = vpack.c.b16 %v2306, %v2304
    %v2355 = vpack.c.b16 %v2307, %v2305
    %v2356 = vpack.c.b16 %v2310, %v2308
    %v2357 = vpack.c.b16 %v2311, %v2309
    %v2358 = vpack.c.b16 %v2314, %v2312
    %v2359 = vpack.c.b16 %v2315, %v2313
    %v2360 = vpack.c.b16 %v2318, %v2316
    %v2361 = vpack.c.b16 %v2319, %v2317
    %v2362 = vpack.c.b16 %v2322, %v2320
    %v2363 = vpack.c.b16 %v2323, %v2321
    %v2364 = vpack.c.b16 %v2326, %v2324
    %v2365 = vpack.c.b16 %v2327, %v2325
    %v2366 = vpack.c.b16 %v2330, %v2328
    %v2367 = vpack.c.b16 %v2331, %v2329
    %v2368 = vpack.c.b16 %v2334, %v2332
    %v2369 = vpack.c.b16 %v2335, %v2333
    %v2370 = vpack.c.b16 %v2338, %v2336
    %v2371 = vpack.c.b16 %v2339, %v2337
    %2404 = vmatprep.subr.bf16.mxu0 %v2341
    %2405 = vmatpush1.bf16.msra.mxu0 %v2340
    %2406 = vmatprep.subr.bf16.mxu0 %v2343
    %2407 = vmatpush1.bf16.msra.mxu0 %v2342
    %2408 = vmatprep.subr.bf16.mxu0 %v2345
    %2409 = vmatpush1.bf16.msra.mxu0 %v2344
    %2410 = vmatprep.subr.bf16.mxu0 %v2347
    %2411 = vmatpush1.bf16.msra.mxu0 %v2346
    %2412 = vmatprep.subr.bf16.mxu0 %v2349
    %2413 = vmatpush1.bf16.msra.mxu0 %v2348
    %2414 = vmatprep.subr.bf16.mxu0 %v2351
    %2415 = vmatpush1.bf16.msra.mxu0 %v2350
    %2416 = vmatprep.subr.bf16.mxu0 %v2353
    %2417 = vmatpush1.bf16.msra.mxu0 %v2352
    %2418 = vmatprep.subr.bf16.mxu0 %v2355
    %2419 = vmatpush1.bf16.msra.mxu0 %v2354
    %2420 = vmatprep.subr.bf16.mxu0 %v2357
    %2421 = vmatpush1.bf16.msra.mxu0 %v2356
    %2422 = vmatprep.subr.bf16.mxu0 %v2359
    %2423 = vmatpush1.bf16.msra.mxu0 %v2358
    %2424 = vmatprep.subr.bf16.mxu0 %v2361
    %2425 = vmatpush1.bf16.msra.mxu0 %v2360
    %2426 = vmatprep.subr.bf16.mxu0 %v2363
    %2427 = vmatpush1.bf16.msra.mxu0 %v2362
    %2428 = vmatprep.subr.bf16.mxu0 %v2365
    %2429 = vmatpush1.bf16.msra.mxu0 %v2364
    %2430 = vmatprep.subr.bf16.mxu0 %v2367
    %2431 = vmatpush1.bf16.msra.mxu0 %v2366
    %2432 = vmatprep.subr.bf16.mxu0 %v2369
    %2433 = vmatpush1.bf16.msra.mxu0 %v2368
    %2434 = vmatprep.subr.bf16.mxu0 %v2371
    %2435 = vmatpush1.bf16.msra.mxu0 %v2370
    %2436 = vmatprep.mubr.bf16.mxu0 %v2208
    %2437 = vmatmul.mubr.bf16.gmra.mrb[0].mxu0 %v2207
    %v2438 = vpop.f32.mrb[0].mxu0
    %v2439 = vadd.f32 0.0, %v2438
    %v2440 = vpop.f32.mrb[0].mxu0
    %v2441 = vadd.f32 0.0, %v2440
    %v2442 = vpop.f32.mrb[0].mxu0
    %v2443 = vadd.f32 0.0, %v2442
    %v2444 = vpop.f32.mrb[0].mxu0
    %v2445 = vadd.f32 0.0, %v2444
    %2446 = vmatprep.mubr.bf16.mxu0 %v2210
    %2447 = vmatmul.mubr.bf16.gmra.mrb[0].mxu0 %v2209
    %v2448 = vpop.f32.mrb[0].mxu0
    %v2449 = vadd.f32 0.0, %v2448
    %v2450 = vpop.f32.mrb[0].mxu0
    %v2451 = vadd.f32 0.0, %v2450
    %v2452 = vpop.f32.mrb[0].mxu0
    %v2453 = vadd.f32 0.0, %v2452
    %v2454 = vpop.f32.mrb[0].mxu0
    %v2455 = vadd.f32 0.0, %v2454
    %2456 = vdwg.mxu0
    %v2457 = vadd.f32 %v2115, %v2439
    %v2458 = vadd.f32 %v2117, %v2441
    %v2459 = vadd.f32 %v2119, %v2443
    %v2460 = vadd.f32 %v2121, %v2445
    %v2461 = vadd.f32 %v2125, %v2449
    %v2462 = vadd.f32 %v2127, %v2451
    %v2463 = vadd.f32 %v2129, %v2453
    %v2464 = vadd.f32 %v2131, %v2455
    %v2465 = vld [vmem:[#allocation11] sm:$0x3]
    %v2467 = vlaneseq
    %v2468 = vshrl.u32 %v2467, 7
    %v2469 = vsub.s32 0, %v2468
    %v2470 = vrot.slane %v2465, %v2469
    %v2471 = vlaneseq
    %v2472 = vshrl.u32 %v2471, 7
    %v2473 = vsub.s32 1, %v2472
    %v2474 = vrot.slane %v2465, %v2473
    %v2477 = vadd.f32 %v2457, %v2470
    %v2478 = vadd.f32 %v2458, %v2474
    %v2479 = vadd.f32 %v2459, %v2470
    %v2480 = vadd.f32 %v2460, %v2474
    %v2481 = vadd.f32 %v2461, %v2470
    %v2482 = vadd.f32 %v2462, %v2474
    %v2483 = vadd.f32 %v2463, %v2470
    %v2484 = vadd.f32 %v2464, %v2474
    %vm2485 = vcmp.ge.f32.partialorder %v2477, 0.0
    %vm2486 = vcmp.ge.f32.partialorder %v2478, 0.0
    %vm2487 = vcmp.ge.f32.partialorder %v2479, 0.0
    %vm2488 = vcmp.ge.f32.partialorder %v2480, 0.0
    %vm2489 = vcmp.ge.f32.partialorder %v2481, 0.0
    %vm2490 = vcmp.ge.f32.partialorder %v2482, 0.0
    %vm2491 = vcmp.ge.f32.partialorder %v2483, 0.0
    %vm2492 = vcmp.ge.f32.partialorder %v2484, 0.0
    %v2493 = vmul.f32 %v2477, 0.1
    %v2494 = vmul.f32 %v2478, 0.1
    %v2495 = vmul.f32 %v2479, 0.1
    %v2496 = vmul.f32 %v2480, 0.1
    %v2497 = vmul.f32 %v2481, 0.1
    %v2498 = vmul.f32 %v2482, 0.1
    %v2499 = vmul.f32 %v2483, 0.1
    %v2500 = vmul.f32 %v2484, 0.1
    %v2501 = vsel %vm2485, %v2477, %v2493
    %v2502 = vsel %vm2486, %v2478, %v2494
    %v2503 = vsel %vm2487, %v2479, %v2495
    %v2504 = vsel %vm2488, %v2480, %v2496
    %v2505 = vsel %vm2489, %v2481, %v2497
    %v2506 = vsel %vm2490, %v2482, %v2498
    %v2507 = vsel %vm2491, %v2483, %v2499
    %v2508 = vsel %vm2492, %v2484, %v2500
    %v2509 = vpack.c.bf16 %v2503, %v2501
    %v2510 = vpack.c.bf16 %v2504, %v2502
    %v2511 = vpack.c.bf16 %v2507, %v2505
    %v2512 = vpack.c.bf16 %v2508, %v2506
    %v2513 = vld [vmem:[#allocation13] sm:$0xf]
    %v2514 = vld [vmem:[#allocation13 + $0x4] sm:$0xf]
    %v2515 = vld [vmem:[#allocation13 + $0x8] sm:$0xf]
    %v2516 = vld [vmem:[#allocation13 + $0xc] sm:$0xf]
    %v2517 = vld [vmem:[#allocation13 + $0x10] sm:$0xf]
    %v2518 = vld [vmem:[#allocation13 + $0x14] sm:$0xf]
    %v2519 = vld [vmem:[#allocation13 + $0x18] sm:$0xf]
    %v2520 = vld [vmem:[#allocation13 + $0x1c] sm:$0xf]
    %v2521 = vld [vmem:[#allocation13 + $0x20] sm:$0xf]
    %v2522 = vld [vmem:[#allocation13 + $0x24] sm:$0xf]
    %v2523 = vld [vmem:[#allocation13 + $0x28] sm:$0xf]
    %v2524 = vld [vmem:[#allocation13 + $0x2c] sm:$0xf]
    %v2525 = vld [vmem:[#allocation13 + $0x30] sm:$0xf]
    %v2526 = vld [vmem:[#allocation13 + $0x34] sm:$0xf]
    %v2527 = vld [vmem:[#allocation13 + $0x38] sm:$0xf]
    %v2528 = vld [vmem:[#allocation13 + $0x3c] sm:$0xf]
    %v2529 = vld [vmem:[#allocation13 + $0x40] sm:$0xf]
    %v2530 = vld [vmem:[#allocation13 + $0x44] sm:$0xf]
    %v2531 = vld [vmem:[#allocation13 + $0x48] sm:$0xf]
    %v2532 = vld [vmem:[#allocation13 + $0x4c] sm:$0xf]
    %v2533 = vld [vmem:[#allocation13 + $0x50] sm:$0xf]
    %v2534 = vld [vmem:[#allocation13 + $0x54] sm:$0xf]
    %v2535 = vld [vmem:[#allocation13 + $0x58] sm:$0xf]
    %v2536 = vld [vmem:[#allocation13 + $0x5c] sm:$0xf]
    %v2537 = vld [vmem:[#allocation13 + $0x60] sm:$0xf]
    %v2538 = vld [vmem:[#allocation13 + $0x64] sm:$0xf]
    %v2539 = vld [vmem:[#allocation13 + $0x68] sm:$0xf]
    %v2540 = vld [vmem:[#allocation13 + $0x6c] sm:$0xf]
    %v2541 = vld [vmem:[#allocation13 + $0x70] sm:$0xf]
    %v2542 = vld [vmem:[#allocation13 + $0x74] sm:$0xf]
    %v2543 = vld [vmem:[#allocation13 + $0x78] sm:$0xf]
    %v2544 = vld [vmem:[#allocation13 + $0x7c] sm:$0xf]
    %v2545 = vld [vmem:[#allocation14] sm:$0x1]
    %v2547 = vlaneseq
    %v2548 = vshrl.u32 %v2547, 7
    %v2549 = vsub.s32 0, %v2548
    %v2550 = vrot.slane %v2545, %v2549
    %v2584 = vunpack.c.l.b16 %v2513
    %v2585 = vunpack.c.l.b16 %v2514
    %v2586 = vunpack.c.l.b16 %v2515
    %v2587 = vunpack.c.l.b16 %v2516
    %v2588 = vunpack.c.l.b16 %v2517
    %v2589 = vunpack.c.l.b16 %v2518
    %v2590 = vunpack.c.l.b16 %v2519
    %v2591 = vunpack.c.l.b16 %v2520
    %v2592 = vunpack.c.l.b16 %v2521
    %v2593 = vunpack.c.l.b16 %v2522
    %v2594 = vunpack.c.l.b16 %v2523
    %v2595 = vunpack.c.l.b16 %v2524
    %v2596 = vunpack.c.l.b16 %v2525
    %v2597 = vunpack.c.l.b16 %v2526
    %v2598 = vunpack.c.l.b16 %v2527
    %v2599 = vunpack.c.l.b16 %v2528
    %v2600 = vunpack.c.l.b16 %v2529
    %v2601 = vunpack.c.l.b16 %v2530
    %v2602 = vunpack.c.l.b16 %v2531
    %v2603 = vunpack.c.l.b16 %v2532
    %v2604 = vunpack.c.l.b16 %v2533
    %v2605 = vunpack.c.l.b16 %v2534
    %v2606 = vunpack.c.l.b16 %v2535
    %v2607 = vunpack.c.l.b16 %v2536
    %v2608 = vunpack.c.l.b16 %v2537
    %v2609 = vunpack.c.l.b16 %v2538
    %v2610 = vunpack.c.l.b16 %v2539
    %v2611 = vunpack.c.l.b16 %v2540
    %v2612 = vunpack.c.l.b16 %v2541
    %v2613 = vunpack.c.l.b16 %v2542
    %v2614 = vunpack.c.l.b16 %v2543
    %v2615 = vunpack.c.l.b16 %v2544
    %v2616 = vpack.c.b16 %v2585, %v2584
    %v2617 = vpack.c.b16 %v2587, %v2586
    %v2618 = vpack.c.b16 %v2589, %v2588
    %v2619 = vpack.c.b16 %v2591, %v2590
    %v2620 = vpack.c.b16 %v2593, %v2592
    %v2621 = vpack.c.b16 %v2595, %v2594
    %v2622 = vpack.c.b16 %v2597, %v2596
    %v2623 = vpack.c.b16 %v2599, %v2598
    %v2624 = vpack.c.b16 %v2601, %v2600
    %v2625 = vpack.c.b16 %v2603, %v2602
    %v2626 = vpack.c.b16 %v2605, %v2604
    %v2627 = vpack.c.b16 %v2607, %v2606
    %v2628 = vpack.c.b16 %v2609, %v2608
    %v2629 = vpack.c.b16 %v2611, %v2610
    %v2630 = vpack.c.b16 %v2613, %v2612
    %v2631 = vpack.c.b16 %v2615, %v2614
    %2648 = vmatprep.subr.bf16.mxu0 0
    %2649 = vmatpush1.bf16.msra.mxu0 %v2616
    %2650 = vmatprep.subr.bf16.mxu0 0
    %2651 = vmatpush1.bf16.msra.mxu0 %v2617
    %2652 = vmatprep.subr.bf16.mxu0 0
    %2653 = vmatpush1.bf16.msra.mxu0 %v2618
    %2654 = vmatprep.subr.bf16.mxu0 0
    %2655 = vmatpush1.bf16.msra.mxu0 %v2619
    %2656 = vmatprep.subr.bf16.mxu0 0
    %2657 = vmatpush1.bf16.msra.mxu0 %v2620
    %2658 = vmatprep.subr.bf16.mxu0 0
    %2659 = vmatpush1.bf16.msra.mxu0 %v2621
    %2660 = vmatprep.subr.bf16.mxu0 0
    %2661 = vmatpush1.bf16.msra.mxu0 %v2622
    %2662 = vmatprep.subr.bf16.mxu0 0
    %2663 = vmatpush1.bf16.msra.mxu0 %v2623
    %2664 = vmatprep.subr.bf16.mxu0 0
    %2665 = vmatpush1.bf16.msra.mxu0 %v2624
    %2666 = vmatprep.subr.bf16.mxu0 0
    %2667 = vmatpush1.bf16.msra.mxu0 %v2625
    %2668 = vmatprep.subr.bf16.mxu0 0
    %2669 = vmatpush1.bf16.msra.mxu0 %v2626
    %2670 = vmatprep.subr.bf16.mxu0 0
    %2671 = vmatpush1.bf16.msra.mxu0 %v2627
    %2672 = vmatprep.subr.bf16.mxu0 0
    %2673 = vmatpush1.bf16.msra.mxu0 %v2628
    %2674 = vmatprep.subr.bf16.mxu0 0
    %2675 = vmatpush1.bf16.msra.mxu0 %v2629
    %2676 = vmatprep.subr.bf16.mxu0 0
    %2677 = vmatpush1.bf16.msra.mxu0 %v2630
    %2678 = vmatprep.subr.bf16.mxu0 0
    %2679 = vmatpush1.bf16.msra.mxu0 %v2631
    %2680 = vmatprep.mubr.bf16.mxu0 %v2510
    %2681 = vmatmul.mubr.bf16.gmra.mrb[0].mxu0 %v2509
    %v2682 = vpop.f32.mrb[0].mxu0
    %v2683 = vadd.f32 %v2550, %v2682
    %v2684 = vpop.f32.mrb[0].mxu0
    %v2685 = vpop.f32.mrb[0].mxu0
    %v2686 = vadd.f32 %v2550, %v2685
    %v2687 = vpop.f32.mrb[0].mxu0
    %2688 = vmatprep.mubr.bf16.mxu0 %v2512
    %2689 = vmatmul.mubr.bf16.gmra.mrb[0].mxu0 %v2511
    %v2690 = vpop.f32.mrb[0].mxu0
    %v2691 = vadd.f32 %v2550, %v2690
    %v2692 = vpop.f32.mrb[0].mxu0
    %v2693 = vpop.f32.mrb[0].mxu0
    %v2694 = vadd.f32 %v2550, %v2693
    %v2695 = vpop.f32.mrb[0].mxu0
    %2696 = vdwg.mxu0
    %vm2697 = vcmp.ge.f32.partialorder %v2683, 0.0
    %vm2698 = vcmp.ge.f32.partialorder %v2686, 0.0
    %vm2699 = vcmp.ge.f32.partialorder %v2691, 0.0
    %vm2700 = vcmp.ge.f32.partialorder %v2694, 0.0
    %v2701 = vmul.f32 %v2683, 0.1
    %v2702 = vmul.f32 %v2686, 0.1
    %v2703 = vmul.f32 %v2691, 0.1
    %v2704 = vmul.f32 %v2694, 0.1
    %v2705 = vsel %vm2697, %v2683, %v2701
    %v2706 = vsel %vm2698, %v2686, %v2702
    %v2707 = vsel %vm2699, %v2691, %v2703
    %v2708 = vsel %vm2700, %v2694, %v2704
    %v2709 = vpack.c.bf16 %v2706, %v2705
    %v2710 = vpack.c.bf16 %v2708, %v2707
    %v2711 = vld [vmem:[#allocation16] sm:$0xf]
    %v2712 = vld [vmem:[#allocation16 + $0x4] sm:$0xf]
    %v2713 = vld [vmem:[#allocation16 + $0x8] sm:$0xf]
    %v2714 = vld [vmem:[#allocation16 + $0xc] sm:$0xf]
    %v2719 = vunpack.c.l.b16 %v2711
    %v2720 = vunpack.c.l.b16 %v2712
    %v2721 = vunpack.c.l.b16 %v2713
    %v2722 = vunpack.c.l.b16 %v2714
    %v2723 = vpack.c.b16 %v2720, %v2719
    %v2724 = vpack.c.b16 %v2722, %v2721
    %v2726 = vsel %vm976, %v2723, 0
    %v2729 = vsel %vm976, %v2724, 0
    %2731 = vmatprep.subr.bf16.mxu0 0
    %2732 = vmatpush1.bf16.msra.mxu0 %v2709
    %2733 = vmatprep.subr.bf16.mxu0 0
    %2734 = vmatpush1.bf16.msra.mxu0 %v2710
    %2735 = vmatprep.subr.bf16.mxu0 0
    %2736 = vmatpush1.bf16.msra.mxu0 0
    %2737 = vmatprep.subr.bf16.mxu0 0
    %2738 = vmatpush1.bf16.msra.mxu0 0
    %2739 = vmatprep.subr.bf16.mxu0 0
    %2740 = vmatpush1.bf16.msra.mxu0 0
    %2741 = vmatprep.subr.bf16.mxu0 0
    %2742 = vmatpush1.bf16.msra.mxu0 0
    %2743 = vmatprep.subr.bf16.mxu0 0
    %2744 = vmatpush1.bf16.msra.mxu0 0
    %2745 = vmatprep.subr.bf16.mxu0 0
    %2746 = vmatpush1.bf16.msra.mxu0 0
    %2747 = vmatprep.subr.bf16.mxu0 0
    %2748 = vmatpush1.bf16.msra.mxu0 0
    %2749 = vmatprep.subr.bf16.mxu0 0
    %2750 = vmatpush1.bf16.msra.mxu0 0
    %2751 = vmatprep.subr.bf16.mxu0 0
    %2752 = vmatpush1.bf16.msra.mxu0 0
    %2753 = vmatprep.subr.bf16.mxu0 0
    %2754 = vmatpush1.bf16.msra.mxu0 0
    %2755 = vmatprep.subr.bf16.mxu0 0
    %2756 = vmatpush1.bf16.msra.mxu0 0
    %2757 = vmatprep.subr.bf16.mxu0 0
    %2758 = vmatpush1.bf16.msra.mxu0 0
    %2759 = vmatprep.subr.bf16.mxu0 0
    %2760 = vmatpush1.bf16.msra.mxu0 0
    %2761 = vmatprep.subr.bf16.mxu0 0
    %2762 = vmatpush1.bf16.msra.mxu0 0
    %2763 = vmatprep.mubr.bf16.mxu0 0
    %2764 = vmatmul.mubr.bf16.gmra.mrb[0].mxu0 %v2726
    %v2765 = vpop.f32.mrb[0].mxu0
    %v2766 = vadd.f32 0.0, %v2765
    %v2767 = vpop.f32.mrb[0].mxu0
    %v2768 = vpop.f32.mrb[0].mxu0
    %v2769 = vadd.f32 0.0, %v2768
    %v2770 = vpop.f32.mrb[0].mxu0
    %2771 = vmatprep.mubr.bf16.mxu0 0
    %2772 = vmatmul.mubr.bf16.gmra.mrb[0].mxu0 %v2729
    %v2773 = vpop.f32.mrb[0].mxu0
    %v2774 = vadd.f32 0.0, %v2773
    %v2775 = vpop.f32.mrb[0].mxu0
    %v2776 = vpop.f32.mrb[0].mxu0
    %v2777 = vadd.f32 0.0, %v2776
    %v2778 = vpop.f32.mrb[0].mxu0
    %2779 = vdwg.mxu0
    %v2780 = vpack.c.bf16 %v2769, %v2766
    %v2781 = vpack.c.bf16 %v2777, %v2774
    %v2782 = vld [vmem:[#allocation17] sm:$0xff]
    %v2783 = vld [vmem:[#allocation17 + $0x8] sm:$0xff]
    %v2784 = vld [vmem:[#allocation17 + $0x10] sm:$0xff]
    %v2785 = vld [vmem:[#allocation17 + $0x18] sm:$0xff]
    %v2786 = vld [vmem:[#allocation17 + $0x20] sm:$0xff]
    %v2787 = vld [vmem:[#allocation17 + $0x28] sm:$0xff]
    %v2788 = vld [vmem:[#allocation17 + $0x30] sm:$0xff]
    %v2789 = vld [vmem:[#allocation17 + $0x38] sm:$0xff]
    %v2790 = vld [vmem:[#allocation17 + $0x40] sm:$0xff]
    %v2791 = vld [vmem:[#allocation17 + $0x48] sm:$0xff]
    %v2792 = vld [vmem:[#allocation17 + $0x50] sm:$0xff]
    %v2793 = vld [vmem:[#allocation17 + $0x58] sm:$0xff]
    %v2794 = vld [vmem:[#allocation17 + $0x60] sm:$0xff]
    %v2795 = vld [vmem:[#allocation17 + $0x68] sm:$0xff]
    %v2796 = vld [vmem:[#allocation17 + $0x70] sm:$0xff]
    %v2797 = vld [vmem:[#allocation17 + $0x78] sm:$0xff]
    %s2798 = scalar_lea.vmem [#allocation16], 16
    %v2799 = vld [vmem:[%s2798] sm:$0xf]
    %v2800 = vld [vmem:[%s2798 + $0x4] sm:$0xf]
    %v2801 = vld [vmem:[%s2798 + $0x8] sm:$0xf]
    %v2802 = vld [vmem:[%s2798 + $0xc] sm:$0xf]
    %v2807 = vunpack.c.l.b16 %v2799
    %v2808 = vunpack.c.l.b16 %v2800
    %v2809 = vunpack.c.l.b16 %v2801
    %v2810 = vunpack.c.l.b16 %v2802
    %v2811 = vpack.c.b16 %v2808, %v2807
    %v2812 = vpack.c.b16 %v2810, %v2809
    %v2814 = vsel %vm976, %v2811, 0
    %v2817 = vsel %vm976, %v2812, 0
    %2819 = vmatprep.subr.bf16.mxu0 0
    %2820 = vmatpush1.bf16.msra.mxu0 %v2709
    %2821 = vmatprep.subr.bf16.mxu0 0
    %2822 = vmatpush1.bf16.msra.mxu0 %v2710
    %2823 = vmatprep.subr.bf16.mxu0 0
    %2824 = vmatpush1.bf16.msra.mxu0 0
    %2825 = vmatprep.subr.bf16.mxu0 0
    %2826 = vmatpush1.bf16.msra.mxu0 0
    %2827 = vmatprep.subr.bf16.mxu0 0
    %2828 = vmatpush1.bf16.msra.mxu0 0
    %2829 = vmatprep.subr.bf16.mxu0 0
    %2830 = vmatpush1.bf16.msra.mxu0 0
    %2831 = vmatprep.subr.bf16.mxu0 0
    %2832 = vmatpush1.bf16.msra.mxu0 0
    %2833 = vmatprep.subr.bf16.mxu0 0
    %2834 = vmatpush1.bf16.msra.mxu0 0
    %2835 = vmatprep.subr.bf16.mxu0 0
    %2836 = vmatpush1.bf16.msra.mxu0 0
    %2837 = vmatprep.subr.bf16.mxu0 0
    %2838 = vmatpush1.bf16.msra.mxu0 0
    %2839 = vmatprep.subr.bf16.mxu0 0
    %2840 = vmatpush1.bf16.msra.mxu0 0
    %2841 = vmatprep.subr.bf16.mxu0 0
    %2842 = vmatpush1.bf16.msra.mxu0 0
    %2843 = vmatprep.subr.bf16.mxu0 0
    %2844 = vmatpush1.bf16.msra.mxu0 0
    %2845 = vmatprep.subr.bf16.mxu0 0
    %2846 = vmatpush1.bf16.msra.mxu0 0
    %2847 = vmatprep.subr.bf16.mxu0 0
    %2848 = vmatpush1.bf16.msra.mxu0 0
    %2849 = vmatprep.subr.bf16.mxu0 0
    %2850 = vmatpush1.bf16.msra.mxu0 0
    %2851 = vmatprep.mubr.bf16.mxu0 0
    %2852 = vmatmul.mubr.bf16.gmra.mrb[0].mxu0 %v2814
    %v2853 = vpop.f32.mrb[0].mxu0
    %v2854 = vadd.f32 0.0, %v2853
    %v2855 = vpop.f32.mrb[0].mxu0
    %v2856 = vpop.f32.mrb[0].mxu0
    %v2857 = vadd.f32 0.0, %v2856
    %v2858 = vpop.f32.mrb[0].mxu0
    %2859 = vmatprep.mubr.bf16.mxu0 0
    %2860 = vmatmul.mubr.bf16.gmra.mrb[0].mxu0 %v2817
    %v2861 = vpop.f32.mrb[0].mxu0
    %v2862 = vadd.f32 0.0, %v2861
    %v2863 = vpop.f32.mrb[0].mxu0
    %v2864 = vpop.f32.mrb[0].mxu0
    %v2865 = vadd.f32 0.0, %v2864
    %v2866 = vpop.f32.mrb[0].mxu0
    %2867 = vdwg.mxu0
    %v2868 = vpack.c.bf16 %v2857, %v2854
    %v2869 = vpack.c.bf16 %v2865, %v2862
    %s2870 = scalar_lea.vmem [#allocation17], 128
    %v2871 = vld [vmem:[%s2870] sm:$0xff]
    %v2872 = vld [vmem:[%s2870 + $0x8] sm:$0xff]
    %v2873 = vld [vmem:[%s2870 + $0x10] sm:$0xff]
    %v2874 = vld [vmem:[%s2870 + $0x18] sm:$0xff]
    %v2875 = vld [vmem:[%s2870 + $0x20] sm:$0xff]
    %v2876 = vld [vmem:[%s2870 + $0x28] sm:$0xff]
    %v2877 = vld [vmem:[%s2870 + $0x30] sm:$0xff]
    %v2878 = vld [vmem:[%s2870 + $0x38] sm:$0xff]
    %v2879 = vld [vmem:[%s2870 + $0x40] sm:$0xff]
    %v2880 = vld [vmem:[%s2870 + $0x48] sm:$0xff]
    %v2881 = vld [vmem:[%s2870 + $0x50] sm:$0xff]
    %v2882 = vld [vmem:[%s2870 + $0x58] sm:$0xff]
    %v2883 = vld [vmem:[%s2870 + $0x60] sm:$0xff]
    %v2884 = vld [vmem:[%s2870 + $0x68] sm:$0xff]
    %v2885 = vld [vmem:[%s2870 + $0x70] sm:$0xff]
    %v2886 = vld [vmem:[%s2870 + $0x78] sm:$0xff]
    %v2903 = vunpack.c.l.b16 %v2871
    %v2904 = vunpack.c.h.b16 %v2871
    %v2905 = vunpack.c.l.b16 %v2872
    %v2906 = vunpack.c.h.b16 %v2872
    %v2907 = vunpack.c.l.b16 %v2873
    %v2908 = vunpack.c.h.b16 %v2873
    %v2909 = vunpack.c.l.b16 %v2874
    %v2910 = vunpack.c.h.b16 %v2874
    %v2911 = vunpack.c.l.b16 %v2875
    %v2912 = vunpack.c.h.b16 %v2875
    %v2913 = vunpack.c.l.b16 %v2876
    %v2914 = vunpack.c.h.b16 %v2876
    %v2915 = vunpack.c.l.b16 %v2877
    %v2916 = vunpack.c.h.b16 %v2877
    %v2917 = vunpack.c.l.b16 %v2878
    %v2918 = vunpack.c.h.b16 %v2878
    %v2919 = vunpack.c.l.b16 %v2879
    %v2920 = vunpack.c.h.b16 %v2879
    %v2921 = vunpack.c.l.b16 %v2880
    %v2922 = vunpack.c.h.b16 %v2880
    %v2923 = vunpack.c.l.b16 %v2881
    %v2924 = vunpack.c.h.b16 %v2881
    %v2925 = vunpack.c.l.b16 %v2882
    %v2926 = vunpack.c.h.b16 %v2882
    %v2927 = vunpack.c.l.b16 %v2883
    %v2928 = vunpack.c.h.b16 %v2883
    %v2929 = vunpack.c.l.b16 %v2884
    %v2930 = vunpack.c.h.b16 %v2884
    %v2931 = vunpack.c.l.b16 %v2885
    %v2932 = vunpack.c.h.b16 %v2885
    %v2933 = vunpack.c.l.b16 %v2886
    %v2934 = vunpack.c.h.b16 %v2886
    %v2935 = vpack.c.b16 %v2905, %v2903
    %v2936 = vpack.c.b16 %v2906, %v2904
    %v2937 = vpack.c.b16 %v2909, %v2907
    %v2938 = vpack.c.b16 %v2910, %v2908
    %v2939 = vpack.c.b16 %v2913, %v2911
    %v2940 = vpack.c.b16 %v2914, %v2912
    %v2941 = vpack.c.b16 %v2917, %v2915
    %v2942 = vpack.c.b16 %v2918, %v2916
    %v2943 = vpack.c.b16 %v2921, %v2919
    %v2944 = vpack.c.b16 %v2922, %v2920
    %v2945 = vpack.c.b16 %v2925, %v2923
    %v2946 = vpack.c.b16 %v2926, %v2924
    %v2947 = vpack.c.b16 %v2929, %v2927
    %v2948 = vpack.c.b16 %v2930, %v2928
    %v2949 = vpack.c.b16 %v2933, %v2931
    %v2950 = vpack.c.b16 %v2934, %v2932
    %2967 = vmatprep.subr.bf16.mxu0 %v2936
    %2968 = vmatpush1.bf16.msra.mxu0 %v2935
    %2969 = vmatprep.subr.bf16.mxu0 %v2938
    %2970 = vmatpush1.bf16.msra.mxu0 %v2937
    %2971 = vmatprep.subr.bf16.mxu0 %v2940
    %2972 = vmatpush1.bf16.msra.mxu0 %v2939
    %2973 = vmatprep.subr.bf16.mxu0 %v2942
    %2974 = vmatpush1.bf16.msra.mxu0 %v2941
    %2975 = vmatprep.subr.bf16.mxu0 %v2944
    %2976 = vmatpush1.bf16.msra.mxu0 %v2943
    %2977 = vmatprep.subr.bf16.mxu0 %v2946
    %2978 = vmatpush1.bf16.msra.mxu0 %v2945
    %2979 = vmatprep.subr.bf16.mxu0 %v2948
    %2980 = vmatpush1.bf16.msra.mxu0 %v2947
    %2981 = vmatprep.subr.bf16.mxu0 %v2950
    %2982 = vmatpush1.bf16.msra.mxu0 %v2949
    %2983 = vmatprep.subr.bf16.mxu0 0
    %2984 = vmatpush1.bf16.msra.mxu0 0
    %2985 = vmatprep.subr.bf16.mxu0 0
    %2986 = vmatpush1.bf16.msra.mxu0 0
    %2987 = vmatprep.subr.bf16.mxu0 0
    %2988 = vmatpush1.bf16.msra.mxu0 0
    %2989 = vmatprep.subr.bf16.mxu0 0
    %2990 = vmatpush1.bf16.msra.mxu0 0
    %2991 = vmatprep.subr.bf16.mxu0 0
    %2992 = vmatpush1.bf16.msra.mxu0 0
    %2993 = vmatprep.subr.bf16.mxu0 0
    %2994 = vmatpush1.bf16.msra.mxu0 0
    %2995 = vmatprep.subr.bf16.mxu0 0
    %2996 = vmatpush1.bf16.msra.mxu0 0
    %2997 = vmatprep.subr.bf16.mxu0 0
    %2998 = vmatpush1.bf16.msra.mxu0 0
    %2999 = vmatprep.mubr.bf16.mxu0 0
    %3000 = vmatmul.mubr.bf16.gmra.mrb[0].mxu0 %v2868
    %v3001 = vpop.f32.mrb[0].mxu0
    %v3002 = vadd.f32 0.0, %v3001
    %v3003 = vpop.f32.mrb[0].mxu0
    %v3004 = vadd.f32 0.0, %v3003
    %v3005 = vpop.f32.mrb[0].mxu0
    %v3006 = vadd.f32 0.0, %v3005
    %v3007 = vpop.f32.mrb[0].mxu0
    %v3008 = vadd.f32 0.0, %v3007
    %3009 = vmatprep.mubr.bf16.mxu0 0
    %3010 = vmatmul.mubr.bf16.gmra.mrb[0].mxu0 %v2869
    %v3011 = vpop.f32.mrb[0].mxu0
    %v3012 = vadd.f32 0.0, %v3011
    %v3013 = vpop.f32.mrb[0].mxu0
    %v3014 = vadd.f32 0.0, %v3013
    %v3015 = vpop.f32.mrb[0].mxu0
    %v3016 = vadd.f32 0.0, %v3015
    %v3017 = vpop.f32.mrb[0].mxu0
    %v3018 = vadd.f32 0.0, %v3017
    %3019 = vdwg.mxu0
    %v3036 = vunpack.c.l.b16 %v2782
    %v3037 = vunpack.c.h.b16 %v2782
    %v3038 = vunpack.c.l.b16 %v2783
    %v3039 = vunpack.c.h.b16 %v2783
    %v3040 = vunpack.c.l.b16 %v2784
    %v3041 = vunpack.c.h.b16 %v2784
    %v3042 = vunpack.c.l.b16 %v2785
    %v3043 = vunpack.c.h.b16 %v2785
    %v3044 = vunpack.c.l.b16 %v2786
    %v3045 = vunpack.c.h.b16 %v2786
    %v3046 = vunpack.c.l.b16 %v2787
    %v3047 = vunpack.c.h.b16 %v2787
    %v3048 = vunpack.c.l.b16 %v2788
    %v3049 = vunpack.c.h.b16 %v2788
    %v3050 = vunpack.c.l.b16 %v2789
    %v3051 = vunpack.c.h.b16 %v2789
    %v3052 = vunpack.c.l.b16 %v2790
    %v3053 = vunpack.c.h.b16 %v2790
    %v3054 = vunpack.c.l.b16 %v2791
    %v3055 = vunpack.c.h.b16 %v2791
    %v3056 = vunpack.c.l.b16 %v2792
    %v3057 = vunpack.c.h.b16 %v2792
    %v3058 = vunpack.c.l.b16 %v2793
    %v3059 = vunpack.c.h.b16 %v2793
    %v3060 = vunpack.c.l.b16 %v2794
    %v3061 = vunpack.c.h.b16 %v2794
    %v3062 = vunpack.c.l.b16 %v2795
    %v3063 = vunpack.c.h.b16 %v2795
    %v3064 = vunpack.c.l.b16 %v2796
    %v3065 = vunpack.c.h.b16 %v2796
    %v3066 = vunpack.c.l.b16 %v2797
    %v3067 = vunpack.c.h.b16 %v2797
    %v3068 = vpack.c.b16 %v3038, %v3036
    %v3069 = vpack.c.b16 %v3039, %v3037
    %v3070 = vpack.c.b16 %v3042, %v3040
    %v3071 = vpack.c.b16 %v3043, %v3041
    %v3072 = vpack.c.b16 %v3046, %v3044
    %v3073 = vpack.c.b16 %v3047, %v3045
    %v3074 = vpack.c.b16 %v3050, %v3048
    %v3075 = vpack.c.b16 %v3051, %v3049
    %v3076 = vpack.c.b16 %v3054, %v3052
    %v3077 = vpack.c.b16 %v3055, %v3053
    %v3078 = vpack.c.b16 %v3058, %v3056
    %v3079 = vpack.c.b16 %v3059, %v3057
    %v3080 = vpack.c.b16 %v3062, %v3060
    %v3081 = vpack.c.b16 %v3063, %v3061
    %v3082 = vpack.c.b16 %v3066, %v3064
    %v3083 = vpack.c.b16 %v3067, %v3065
    %3100 = vmatprep.subr.bf16.mxu0 %v3069
    %3101 = vmatpush1.bf16.msra.mxu0 %v3068
    %3102 = vmatprep.subr.bf16.mxu0 %v3071
    %3103 = vmatpush1.bf16.msra.mxu0 %v3070
    %3104 = vmatprep.subr.bf16.mxu0 %v3073
    %3105 = vmatpush1.bf16.msra.mxu0 %v3072
    %3106 = vmatprep.subr.bf16.mxu0 %v3075
    %3107 = vmatpush1.bf16.msra.mxu0 %v3074
    %3108 = vmatprep.subr.bf16.mxu0 %v3077
    %3109 = vmatpush1.bf16.msra.mxu0 %v3076
    %3110 = vmatprep.subr.bf16.mxu0 %v3079
    %3111 = vmatpush1.bf16.msra.mxu0 %v3078
    %3112 = vmatprep.subr.bf16.mxu0 %v3081
    %3113 = vmatpush1.bf16.msra.mxu0 %v3080
    %3114 = vmatprep.subr.bf16.mxu0 %v3083
    %3115 = vmatpush1.bf16.msra.mxu0 %v3082
    %3116 = vmatprep.subr.bf16.mxu0 0
    %3117 = vmatpush1.bf16.msra.mxu0 0
    %3118 = vmatprep.subr.bf16.mxu0 0
    %3119 = vmatpush1.bf16.msra.mxu0 0
    %3120 = vmatprep.subr.bf16.mxu0 0
    %3121 = vmatpush1.bf16.msra.mxu0 0
    %3122 = vmatprep.subr.bf16.mxu0 0
    %3123 = vmatpush1.bf16.msra.mxu0 0
    %3124 = vmatprep.subr.bf16.mxu0 0
    %3125 = vmatpush1.bf16.msra.mxu0 0
    %3126 = vmatprep.subr.bf16.mxu0 0
    %3127 = vmatpush1.bf16.msra.mxu0 0
    %3128 = vmatprep.subr.bf16.mxu0 0
    %3129 = vmatpush1.bf16.msra.mxu0 0
    %3130 = vmatprep.subr.bf16.mxu0 0
    %3131 = vmatpush1.bf16.msra.mxu0 0
    %3132 = vmatprep.mubr.bf16.mxu0 0
    %3133 = vmatmul.mubr.bf16.gmra.mrb[0].mxu0 %v2780
    %v3134 = vpop.f32.mrb[0].mxu0
    %v3135 = vadd.f32 %v3002, %v3134
    %v3136 = vpop.f32.mrb[0].mxu0
    %v3137 = vadd.f32 %v3004, %v3136
    %v3138 = vpop.f32.mrb[0].mxu0
    %v3139 = vadd.f32 %v3006, %v3138
    %v3140 = vpop.f32.mrb[0].mxu0
    %v3141 = vadd.f32 %v3008, %v3140
    %3142 = vmatprep.mubr.bf16.mxu0 0
    %3143 = vmatmul.mubr.bf16.gmra.mrb[0].mxu0 %v2781
    %v3144 = vpop.f32.mrb[0].mxu0
    %v3145 = vadd.f32 %v3012, %v3144
    %v3146 = vpop.f32.mrb[0].mxu0
    %v3147 = vadd.f32 %v3014, %v3146
    %v3148 = vpop.f32.mrb[0].mxu0
    %v3149 = vadd.f32 %v3016, %v3148
    %v3150 = vpop.f32.mrb[0].mxu0
    %v3151 = vadd.f32 %v3018, %v3150
    %3152 = vdwg.mxu0
    %s3153 = scalar_lea.vmem [#allocation16], 32
    %v3154 = vld [vmem:[%s3153] sm:$0xf]
    %v3155 = vld [vmem:[%s3153 + $0x4] sm:$0xf]
    %v3156 = vld [vmem:[%s3153 + $0x8] sm:$0xf]
    %v3157 = vld [vmem:[%s3153 + $0xc] sm:$0xf]
    %v3162 = vunpack.c.l.b16 %v3154
    %v3163 = vunpack.c.l.b16 %v3155
    %v3164 = vunpack.c.l.b16 %v3156
    %v3165 = vunpack.c.l.b16 %v3157
    %v3166 = vpack.c.b16 %v3163, %v3162
    %v3167 = vpack.c.b16 %v3165, %v3164
    %v3169 = vsel %vm976, %v3166, 0
    %v3172 = vsel %vm976, %v3167, 0
    %3174 = vmatprep.subr.bf16.mxu0 0
    %3175 = vmatpush1.bf16.msra.mxu0 %v2709
    %3176 = vmatprep.subr.bf16.mxu0 0
    %3177 = vmatpush1.bf16.msra.mxu0 %v2710
    %3178 = vmatprep.subr.bf16.mxu0 0
    %3179 = vmatpush1.bf16.msra.mxu0 0
    %3180 = vmatprep.subr.bf16.mxu0 0
    %3181 = vmatpush1.bf16.msra.mxu0 0
    %3182 = vmatprep.subr.bf16.mxu0 0
    %3183 = vmatpush1.bf16.msra.mxu0 0
    %3184 = vmatprep.subr.bf16.mxu0 0
    %3185 = vmatpush1.bf16.msra.mxu0 0
    %3186 = vmatprep.subr.bf16.mxu0 0
    %3187 = vmatpush1.bf16.msra.mxu0 0
    %3188 = vmatprep.subr.bf16.mxu0 0
    %3189 = vmatpush1.bf16.msra.mxu0 0
    %3190 = vmatprep.subr.bf16.mxu0 0
    %3191 = vmatpush1.bf16.msra.mxu0 0
    %3192 = vmatprep.subr.bf16.mxu0 0
    %3193 = vmatpush1.bf16.msra.mxu0 0
    %3194 = vmatprep.subr.bf16.mxu0 0
    %3195 = vmatpush1.bf16.msra.mxu0 0
    %3196 = vmatprep.subr.bf16.mxu0 0
    %3197 = vmatpush1.bf16.msra.mxu0 0
    %3198 = vmatprep.subr.bf16.mxu0 0
    %3199 = vmatpush1.bf16.msra.mxu0 0
    %3200 = vmatprep.subr.bf16.mxu0 0
    %3201 = vmatpush1.bf16.msra.mxu0 0
    %3202 = vmatprep.subr.bf16.mxu0 0
    %3203 = vmatpush1.bf16.msra.mxu0 0
    %3204 = vmatprep.subr.bf16.mxu0 0
    %3205 = vmatpush1.bf16.msra.mxu0 0
    %3206 = vmatprep.mubr.bf16.mxu0 0
    %3207 = vmatmul.mubr.bf16.gmra.mrb[0].mxu0 %v3169
    %v3208 = vpop.f32.mrb[0].mxu0
    %v3209 = vadd.f32 0.0, %v3208
    %v3210 = vpop.f32.mrb[0].mxu0
    %v3211 = vpop.f32.mrb[0].mxu0
    %v3212 = vadd.f32 0.0, %v3211
    %v3213 = vpop.f32.mrb[0].mxu0
    %3214 = vmatprep.mubr.bf16.mxu0 0
    %3215 = vmatmul.mubr.bf16.gmra.mrb[0].mxu0 %v3172
    %v3216 = vpop.f32.mrb[0].mxu0
    %v3217 = vadd.f32 0.0, %v3216
    %v3218 = vpop.f32.mrb[0].mxu0
    %v3219 = vpop.f32.mrb[0].mxu0
    %v3220 = vadd.f32 0.0, %v3219
    %v3221 = vpop.f32.mrb[0].mxu0
    %3222 = vdwg.mxu0
    %v3223 = vpack.c.bf16 %v3212, %v3209
    %v3224 = vpack.c.bf16 %v3220, %v3217
    %s3225 = scalar_lea.vmem [#allocation17], 256
    %v3226 = vld [vmem:[%s3225] sm:$0xff]
    %v3227 = vld [vmem:[%s3225 + $0x8] sm:$0xff]
    %v3228 = vld [vmem:[%s3225 + $0x10] sm:$0xff]
    %v3229 = vld [vmem:[%s3225 + $0x18] sm:$0xff]
    %v3230 = vld [vmem:[%s3225 + $0x20] sm:$0xff]
    %v3231 = vld [vmem:[%s3225 + $0x28] sm:$0xff]
    %v3232 = vld [vmem:[%s3225 + $0x30] sm:$0xff]
    %v3233 = vld [vmem:[%s3225 + $0x38] sm:$0xff]
    %v3234 = vld [vmem:[%s3225 + $0x40] sm:$0xff]
    %v3235 = vld [vmem:[%s3225 + $0x48] sm:$0xff]
    %v3236 = vld [vmem:[%s3225 + $0x50] sm:$0xff]
    %v3237 = vld [vmem:[%s3225 + $0x58] sm:$0xff]
    %v3238 = vld [vmem:[%s3225 + $0x60] sm:$0xff]
    %v3239 = vld [vmem:[%s3225 + $0x68] sm:$0xff]
    %v3240 = vld [vmem:[%s3225 + $0x70] sm:$0xff]
    %v3241 = vld [vmem:[%s3225 + $0x78] sm:$0xff]
    %v3258 = vunpack.c.l.b16 %v3226
    %v3259 = vunpack.c.h.b16 %v3226
    %v3260 = vunpack.c.l.b16 %v3227
    %v3261 = vunpack.c.h.b16 %v3227
    %v3262 = vunpack.c.l.b16 %v3228
    %v3263 = vunpack.c.h.b16 %v3228
    %v3264 = vunpack.c.l.b16 %v3229
    %v3265 = vunpack.c.h.b16 %v3229
    %v3266 = vunpack.c.l.b16 %v3230
    %v3267 = vunpack.c.h.b16 %v3230
    %v3268 = vunpack.c.l.b16 %v3231
    %v3269 = vunpack.c.h.b16 %v3231
    %v3270 = vunpack.c.l.b16 %v3232
    %v3271 = vunpack.c.h.b16 %v3232
    %v3272 = vunpack.c.l.b16 %v3233
    %v3273 = vunpack.c.h.b16 %v3233
    %v3274 = vunpack.c.l.b16 %v3234
    %v3275 = vunpack.c.h.b16 %v3234
    %v3276 = vunpack.c.l.b16 %v3235
    %v3277 = vunpack.c.h.b16 %v3235
    %v3278 = vunpack.c.l.b16 %v3236
    %v3279 = vunpack.c.h.b16 %v3236
    %v3280 = vunpack.c.l.b16 %v3237
    %v3281 = vunpack.c.h.b16 %v3237
    %v3282 = vunpack.c.l.b16 %v3238
    %v3283 = vunpack.c.h.b16 %v3238
    %v3284 = vunpack.c.l.b16 %v3239
    %v3285 = vunpack.c.h.b16 %v3239
    %v3286 = vunpack.c.l.b16 %v3240
    %v3287 = vunpack.c.h.b16 %v3240
    %v3288 = vunpack.c.l.b16 %v3241
    %v3289 = vunpack.c.h.b16 %v3241
    %v3290 = vpack.c.b16 %v3260, %v3258
    %v3291 = vpack.c.b16 %v3261, %v3259
    %v3292 = vpack.c.b16 %v3264, %v3262
    %v3293 = vpack.c.b16 %v3265, %v3263
    %v3294 = vpack.c.b16 %v3268, %v3266
    %v3295 = vpack.c.b16 %v3269, %v3267
    %v3296 = vpack.c.b16 %v3272, %v3270
    %v3297 = vpack.c.b16 %v3273, %v3271
    %v3298 = vpack.c.b16 %v3276, %v3274
    %v3299 = vpack.c.b16 %v3277, %v3275
    %v3300 = vpack.c.b16 %v3280, %v3278
    %v3301 = vpack.c.b16 %v3281, %v3279
    %v3302 = vpack.c.b16 %v3284, %v3282
    %v3303 = vpack.c.b16 %v3285, %v3283
    %v3304 = vpack.c.b16 %v3288, %v3286
    %v3305 = vpack.c.b16 %v3289, %v3287
    %3322 = vmatprep.subr.bf16.mxu0 %v3291
    %3323 = vmatpush1.bf16.msra.mxu0 %v3290
    %3324 = vmatprep.subr.bf16.mxu0 %v3293
    %3325 = vmatpush1.bf16.msra.mxu0 %v3292
    %3326 = vmatprep.subr.bf16.mxu0 %v3295
    %3327 = vmatpush1.bf16.msra.mxu0 %v3294
    %3328 = vmatprep.subr.bf16.mxu0 %v3297
    %3329 = vmatpush1.bf16.msra.mxu0 %v3296
    %3330 = vmatprep.subr.bf16.mxu0 %v3299
    %3331 = vmatpush1.bf16.msra.mxu0 %v3298
    %3332 = vmatprep.subr.bf16.mxu0 %v3301
    %3333 = vmatpush1.bf16.msra.mxu0 %v3300
    %3334 = vmatprep.subr.bf16.mxu0 %v3303
    %3335 = vmatpush1.bf16.msra.mxu0 %v3302
    %3336 = vmatprep.subr.bf16.mxu0 %v3305
    %3337 = vmatpush1.bf16.msra.mxu0 %v3304
    %3338 = vmatprep.subr.bf16.mxu0 0
    %3339 = vmatpush1.bf16.msra.mxu0 0
    %3340 = vmatprep.subr.bf16.mxu0 0
    %3341 = vmatpush1.bf16.msra.mxu0 0
    %3342 = vmatprep.subr.bf16.mxu0 0
    %3343 = vmatpush1.bf16.msra.mxu0 0
    %3344 = vmatprep.subr.bf16.mxu0 0
    %3345 = vmatpush1.bf16.msra.mxu0 0
    %3346 = vmatprep.subr.bf16.mxu0 0
    %3347 = vmatpush1.bf16.msra.mxu0 0
    %3348 = vmatprep.subr.bf16.mxu0 0
    %3349 = vmatpush1.bf16.msra.mxu0 0
    %3350 = vmatprep.subr.bf16.mxu0 0
    %3351 = vmatpush1.bf16.msra.mxu0 0
    %3352 = vmatprep.subr.bf16.mxu0 0
    %3353 = vmatpush1.bf16.msra.mxu0 0
    %3354 = vmatprep.mubr.bf16.mxu0 0
    %3355 = vmatmul.mubr.bf16.gmra.mrb[0].mxu0 %v3223
    %v3356 = vpop.f32.mrb[0].mxu0
    %v3357 = vadd.f32 0.0, %v3356
    %v3358 = vpop.f32.mrb[0].mxu0
    %v3359 = vadd.f32 0.0, %v3358
    %v3360 = vpop.f32.mrb[0].mxu0
    %v3361 = vadd.f32 0.0, %v3360
    %v3362 = vpop.f32.mrb[0].mxu0
    %v3363 = vadd.f32 0.0, %v3362
    %3364 = vmatprep.mubr.bf16.mxu0 0
    %3365 = vmatmul.mubr.bf16.gmra.mrb[0].mxu0 %v3224
    %v3366 = vpop.f32.mrb[0].mxu0
    %v3367 = vadd.f32 0.0, %v3366
    %v3368 = vpop.f32.mrb[0].mxu0
    %v3369 = vadd.f32 0.0, %v3368
    %v3370 = vpop.f32.mrb[0].mxu0
    %v3371 = vadd.f32 0.0, %v3370
    %v3372 = vpop.f32.mrb[0].mxu0
    %v3373 = vadd.f32 0.0, %v3372
    %3374 = vdwg.mxu0
    %v3375 = vadd.f32 %v3135, %v3357
    %v3376 = vadd.f32 %v3137, %v3359
    %v3377 = vadd.f32 %v3139, %v3361
    %v3378 = vadd.f32 %v3141, %v3363
    %v3379 = vadd.f32 %v3145, %v3367
    %v3380 = vadd.f32 %v3147, %v3369
    %v3381 = vadd.f32 %v3149, %v3371
    %v3382 = vadd.f32 %v3151, %v3373
    %v3383 = vld [vmem:[#allocation19] sm:$0x3]
    %v3385 = vlaneseq
    %v3386 = vshrl.u32 %v3385, 7
    %v3387 = vsub.s32 0, %v3386
    %v3388 = vrot.slane %v3383, %v3387
    %v3389 = vlaneseq
    %v3390 = vshrl.u32 %v3389, 7
    %v3391 = vsub.s32 1, %v3390
    %v3392 = vrot.slane %v3383, %v3391
    %v3395 = vadd.f32 %v3375, %v3388
    %v3396 = vadd.f32 %v3376, %v3392
    %v3397 = vadd.f32 %v3377, %v3388
    %v3398 = vadd.f32 %v3378, %v3392
    %v3399 = vadd.f32 %v3379, %v3388
    %v3400 = vadd.f32 %v3380, %v3392
    %v3401 = vadd.f32 %v3381, %v3388
    %v3402 = vadd.f32 %v3382, %v3392
    %vm3403 = vcmp.ge.f32.partialorder %v3395, 0.0
    %vm3404 = vcmp.ge.f32.partialorder %v3396, 0.0
    %vm3405 = vcmp.ge.f32.partialorder %v3397, 0.0
    %vm3406 = vcmp.ge.f32.partialorder %v3398, 0.0
    %vm3407 = vcmp.ge.f32.partialorder %v3399, 0.0
    %vm3408 = vcmp.ge.f32.partialorder %v3400, 0.0
    %vm3409 = vcmp.ge.f32.partialorder %v3401, 0.0
    %vm3410 = vcmp.ge.f32.partialorder %v3402, 0.0
    %v3411 = vmul.f32 %v3395, 0.1
    %v3412 = vmul.f32 %v3396, 0.1
    %v3413 = vmul.f32 %v3397, 0.1
    %v3414 = vmul.f32 %v3398, 0.1
    %v3415 = vmul.f32 %v3399, 0.1
    %v3416 = vmul.f32 %v3400, 0.1
    %v3417 = vmul.f32 %v3401, 0.1
    %v3418 = vmul.f32 %v3402, 0.1
    %v3419 = vsel %vm3403, %v3395, %v3411
    %v3420 = vsel %vm3404, %v3396, %v3412
    %v3421 = vsel %vm3405, %v3397, %v3413
    %v3422 = vsel %vm3406, %v3398, %v3414
    %v3423 = vsel %vm3407, %v3399, %v3415
    %v3424 = vsel %vm3408, %v3400, %v3416
    %v3425 = vsel %vm3409, %v3401, %v3417
    %v3426 = vsel %vm3410, %v3402, %v3418
    %v3427 = vadd.f32 %v3419, %v2501
    %v3428 = vadd.f32 %v3420, %v2502
    %v3429 = vadd.f32 %v3421, %v2503
    %v3430 = vadd.f32 %v3422, %v2504
    %v3431 = vadd.f32 %v3423, %v2505
    %v3432 = vadd.f32 %v3424, %v2506
    %v3433 = vadd.f32 %v3425, %v2507
    %v3434 = vadd.f32 %v3426, %v2508
    %v3435 = vpack.c.bf16 %v3429, %v3427
    %v3436 = vpack.c.bf16 %v3430, %v3428
    %v3437 = vpack.c.bf16 %v3433, %v3431
    %v3438 = vpack.c.bf16 %v3434, %v3432
    %v3439 = vld [vmem:[#allocation20] sm:$0xf]
    %v3440 = vld [vmem:[#allocation20 + $0x4] sm:$0xf]
    %v3443 = vunpack.c.l.b16 %v3439
    %v3444 = vunpack.c.l.b16 %v3440
    %v3445 = vpack.c.b16 %v3444, %v3443
    %v3447 = vsel %vm976, %v3445, 0
    %3449 = vmatprep.subr.bf16.mxu0 %v3436
    %3450 = vmatpush1.bf16.msra.mxu0 %v3435
    %3451 = vmatprep.subr.bf16.mxu0 %v3438
    %3452 = vmatpush1.bf16.msra.mxu0 %v3437
    %3453 = vmatprep.subr.bf16.mxu0 0
    %3454 = vmatpush1.bf16.msra.mxu0 0
    %3455 = vmatprep.subr.bf16.mxu0 0
    %3456 = vmatpush1.bf16.msra.mxu0 0
    %3457 = vmatprep.subr.bf16.mxu0 0
    %3458 = vmatpush1.bf16.msra.mxu0 0
    %3459 = vmatprep.subr.bf16.mxu0 0
    %3460 = vmatpush1.bf16.msra.mxu0 0
    %3461 = vmatprep.subr.bf16.mxu0 0
    %3462 = vmatpush1.bf16.msra.mxu0 0
    %3463 = vmatprep.subr.bf16.mxu0 0
    %3464 = vmatpush1.bf16.msra.mxu0 0
    %3465 = vmatprep.subr.bf16.mxu0 0
    %3466 = vmatpush1.bf16.msra.mxu0 0
    %3467 = vmatprep.subr.bf16.mxu0 0
    %3468 = vmatpush1.bf16.msra.mxu0 0
    %3469 = vmatprep.subr.bf16.mxu0 0
    %3470 = vmatpush1.bf16.msra.mxu0 0
    %3471 = vmatprep.subr.bf16.mxu0 0
    %3472 = vmatpush1.bf16.msra.mxu0 0
    %3473 = vmatprep.subr.bf16.mxu0 0
    %3474 = vmatpush1.bf16.msra.mxu0 0
    %3475 = vmatprep.subr.bf16.mxu0 0
    %3476 = vmatpush1.bf16.msra.mxu0 0
    %3477 = vmatprep.subr.bf16.mxu0 0
    %3478 = vmatpush1.bf16.msra.mxu0 0
    %3479 = vmatprep.subr.bf16.mxu0 0
    %3480 = vmatpush1.bf16.msra.mxu0 0
    %3481 = vmatprep.mubr.bf16.mxu0 0
    %3482 = vmatmul.mubr.bf16.gmra.mrb[0].mxu0 %v3447
    %v3483 = vpop.f32.mrb[0].mxu0
    %v3484 = vadd.f32 0.0, %v3483
    %v3485 = vpop.f32.mrb[0].mxu0
    %v3486 = vadd.f32 0.0, %v3485
    %v3487 = vpop.f32.mrb[0].mxu0
    %v3488 = vadd.f32 0.0, %v3487
    %v3489 = vpop.f32.mrb[0].mxu0
    %v3490 = vadd.f32 0.0, %v3489
    %3491 = vdwg.mxu0
    %v3492 = vpack.c.bf16 %v3488, %v3484
    %v3493 = vpack.c.bf16 %v3490, %v3486
    %v3494 = vld [vmem:[#allocation22] sm:$0xff]
    %v3495 = vld [vmem:[#allocation22 + $0x8] sm:$0xff]
    %v3496 = vld [vmem:[#allocation22 + $0x10] sm:$0xff]
    %v3497 = vld [vmem:[#allocation22 + $0x18] sm:$0xff]
    %v3498 = vld [vmem:[#allocation22 + $0x20] sm:$0xff]
    %v3499 = vld [vmem:[#allocation22 + $0x28] sm:$0xff]
    %v3500 = vld [vmem:[#allocation22 + $0x30] sm:$0xff]
    %v3501 = vld [vmem:[#allocation22 + $0x38] sm:$0xff]
    %v3502 = vld [vmem:[#allocation22 + $0x40] sm:$0xff]
    %v3503 = vld [vmem:[#allocation22 + $0x48] sm:$0xff]
    %v3504 = vld [vmem:[#allocation22 + $0x50] sm:$0xff]
    %v3505 = vld [vmem:[#allocation22 + $0x58] sm:$0xff]
    %v3506 = vld [vmem:[#allocation22 + $0x60] sm:$0xff]
    %v3507 = vld [vmem:[#allocation22 + $0x68] sm:$0xff]
    %v3508 = vld [vmem:[#allocation22 + $0x70] sm:$0xff]
    %v3509 = vld [vmem:[#allocation22 + $0x78] sm:$0xff]
    %v3510 = vld [vmem:[#allocation22 + $0x80] sm:$0xff]
    %v3511 = vld [vmem:[#allocation22 + $0x88] sm:$0xff]
    %v3512 = vld [vmem:[#allocation22 + $0x90] sm:$0xff]
    %v3513 = vld [vmem:[#allocation22 + $0x98] sm:$0xff]
    %v3514 = vld [vmem:[#allocation22 + $0xa0] sm:$0xff]
    %v3515 = vld [vmem:[#allocation22 + $0xa8] sm:$0xff]
    %v3516 = vld [vmem:[#allocation22 + $0xb0] sm:$0xff]
    %v3517 = vld [vmem:[#allocation22 + $0xb8] sm:$0xff]
    %v3518 = vld [vmem:[#allocation22 + $0xc0] sm:$0xff]
    %v3519 = vld [vmem:[#allocation22 + $0xc8] sm:$0xff]
    %v3520 = vld [vmem:[#allocation22 + $0xd0] sm:$0xff]
    %v3521 = vld [vmem:[#allocation22 + $0xd8] sm:$0xff]
    %v3522 = vld [vmem:[#allocation22 + $0xe0] sm:$0xff]
    %v3523 = vld [vmem:[#allocation22 + $0xe8] sm:$0xff]
    %v3524 = vld [vmem:[#allocation22 + $0xf0] sm:$0xff]
    %v3525 = vld [vmem:[#allocation22 + $0xf8] sm:$0xff]
    %s3526 = scalar_lea.vmem [#allocation20], 8
    %v3527 = vld [vmem:[%s3526] sm:$0xf]
    %v3528 = vld [vmem:[%s3526 + $0x4] sm:$0xf]
    %v3531 = vunpack.c.l.b16 %v3527
    %v3532 = vunpack.c.l.b16 %v3528
    %v3533 = vpack.c.b16 %v3532, %v3531
    %v3535 = vsel %vm976, %v3533, 0
    %3537 = vmatprep.subr.bf16.mxu0 %v3436
    %3538 = vmatpush1.bf16.msra.mxu0 %v3435
    %3539 = vmatprep.subr.bf16.mxu0 %v3438
    %3540 = vmatpush1.bf16.msra.mxu0 %v3437
    %3541 = vmatprep.subr.bf16.mxu0 0
    %3542 = vmatpush1.bf16.msra.mxu0 0
    %3543 = vmatprep.subr.bf16.mxu0 0
    %3544 = vmatpush1.bf16.msra.mxu0 0
    %3545 = vmatprep.subr.bf16.mxu0 0
    %3546 = vmatpush1.bf16.msra.mxu0 0
    %3547 = vmatprep.subr.bf16.mxu0 0
    %3548 = vmatpush1.bf16.msra.mxu0 0
    %3549 = vmatprep.subr.bf16.mxu0 0
    %3550 = vmatpush1.bf16.msra.mxu0 0
    %3551 = vmatprep.subr.bf16.mxu0 0
    %3552 = vmatpush1.bf16.msra.mxu0 0
    %3553 = vmatprep.subr.bf16.mxu0 0
    %3554 = vmatpush1.bf16.msra.mxu0 0
    %3555 = vmatprep.subr.bf16.mxu0 0
    %3556 = vmatpush1.bf16.msra.mxu0 0
    %3557 = vmatprep.subr.bf16.mxu0 0
    %3558 = vmatpush1.bf16.msra.mxu0 0
    %3559 = vmatprep.subr.bf16.mxu0 0
    %3560 = vmatpush1.bf16.msra.mxu0 0
    %3561 = vmatprep.subr.bf16.mxu0 0
    %3562 = vmatpush1.bf16.msra.mxu0 0
    %3563 = vmatprep.subr.bf16.mxu0 0
    %3564 = vmatpush1.bf16.msra.mxu0 0
    %3565 = vmatprep.subr.bf16.mxu0 0
    %3566 = vmatpush1.bf16.msra.mxu0 0
    %3567 = vmatprep.subr.bf16.mxu0 0
    %3568 = vmatpush1.bf16.msra.mxu0 0
    %3569 = vmatprep.mubr.bf16.mxu0 0
    %3570 = vmatmul.mubr.bf16.gmra.mrb[0].mxu0 %v3535
    %v3571 = vpop.f32.mrb[0].mxu0
    %v3572 = vadd.f32 0.0, %v3571
    %v3573 = vpop.f32.mrb[0].mxu0
    %v3574 = vadd.f32 0.0, %v3573
    %v3575 = vpop.f32.mrb[0].mxu0
    %v3576 = vadd.f32 0.0, %v3575
    %v3577 = vpop.f32.mrb[0].mxu0
    %v3578 = vadd.f32 0.0, %v3577
    %3579 = vdwg.mxu0
    %v3580 = vpack.c.bf16 %v3576, %v3572
    %v3581 = vpack.c.bf16 %v3578, %v3574
    %s3582 = scalar_lea.vmem [#allocation22], 256
    %v3583 = vld [vmem:[%s3582] sm:$0xff]
    %v3584 = vld [vmem:[%s3582 + $0x8] sm:$0xff]
    %v3585 = vld [vmem:[%s3582 + $0x10] sm:$0xff]
    %v3586 = vld [vmem:[%s3582 + $0x18] sm:$0xff]
    %v3587 = vld [vmem:[%s3582 + $0x20] sm:$0xff]
    %v3588 = vld [vmem:[%s3582 + $0x28] sm:$0xff]
    %v3589 = vld [vmem:[%s3582 + $0x30] sm:$0xff]
    %v3590 = vld [vmem:[%s3582 + $0x38] sm:$0xff]
    %v3591 = vld [vmem:[%s3582 + $0x40] sm:$0xff]
    %v3592 = vld [vmem:[%s3582 + $0x48] sm:$0xff]
    %v3593 = vld [vmem:[%s3582 + $0x50] sm:$0xff]
    %v3594 = vld [vmem:[%s3582 + $0x58] sm:$0xff]
    %v3595 = vld [vmem:[%s3582 + $0x60] sm:$0xff]
    %v3596 = vld [vmem:[%s3582 + $0x68] sm:$0xff]
    %v3597 = vld [vmem:[%s3582 + $0x70] sm:$0xff]
    %v3598 = vld [vmem:[%s3582 + $0x78] sm:$0xff]
    %v3599 = vld [vmem:[%s3582 + $0x80] sm:$0xff]
    %v3600 = vld [vmem:[%s3582 + $0x88] sm:$0xff]
    %v3601 = vld [vmem:[%s3582 + $0x90] sm:$0xff]
    %v3602 = vld [vmem:[%s3582 + $0x98] sm:$0xff]
    %v3603 = vld [vmem:[%s3582 + $0xa0] sm:$0xff]
    %v3604 = vld [vmem:[%s3582 + $0xa8] sm:$0xff]
    %v3605 = vld [vmem:[%s3582 + $0xb0] sm:$0xff]
    %v3606 = vld [vmem:[%s3582 + $0xb8] sm:$0xff]
    %v3607 = vld [vmem:[%s3582 + $0xc0] sm:$0xff]
    %v3608 = vld [vmem:[%s3582 + $0xc8] sm:$0xff]
    %v3609 = vld [vmem:[%s3582 + $0xd0] sm:$0xff]
    %v3610 = vld [vmem:[%s3582 + $0xd8] sm:$0xff]
    %v3611 = vld [vmem:[%s3582 + $0xe0] sm:$0xff]
    %v3612 = vld [vmem:[%s3582 + $0xe8] sm:$0xff]
    %v3613 = vld [vmem:[%s3582 + $0xf0] sm:$0xff]
    %v3614 = vld [vmem:[%s3582 + $0xf8] sm:$0xff]
    %v3647 = vunpack.c.l.b16 %v3583
    %v3648 = vunpack.c.h.b16 %v3583
    %v3649 = vunpack.c.l.b16 %v3584
    %v3650 = vunpack.c.h.b16 %v3584
    %v3651 = vunpack.c.l.b16 %v3585
    %v3652 = vunpack.c.h.b16 %v3585
    %v3653 = vunpack.c.l.b16 %v3586
    %v3654 = vunpack.c.h.b16 %v3586
    %v3655 = vunpack.c.l.b16 %v3587
    %v3656 = vunpack.c.h.b16 %v3587
    %v3657 = vunpack.c.l.b16 %v3588
    %v3658 = vunpack.c.h.b16 %v3588
    %v3659 = vunpack.c.l.b16 %v3589
    %v3660 = vunpack.c.h.b16 %v3589
    %v3661 = vunpack.c.l.b16 %v3590
    %v3662 = vunpack.c.h.b16 %v3590
    %v3663 = vunpack.c.l.b16 %v3591
    %v3664 = vunpack.c.h.b16 %v3591
    %v3665 = vunpack.c.l.b16 %v3592
    %v3666 = vunpack.c.h.b16 %v3592
    %v3667 = vunpack.c.l.b16 %v3593
    %v3668 = vunpack.c.h.b16 %v3593
    %v3669 = vunpack.c.l.b16 %v3594
    %v3670 = vunpack.c.h.b16 %v3594
    %v3671 = vunpack.c.l.b16 %v3595
    %v3672 = vunpack.c.h.b16 %v3595
    %v3673 = vunpack.c.l.b16 %v3596
    %v3674 = vunpack.c.h.b16 %v3596
    %v3675 = vunpack.c.l.b16 %v3597
    %v3676 = vunpack.c.h.b16 %v3597
    %v3677 = vunpack.c.l.b16 %v3598
    %v3678 = vunpack.c.h.b16 %v3598
    %v3679 = vunpack.c.l.b16 %v3599
    %v3680 = vunpack.c.h.b16 %v3599
    %v3681 = vunpack.c.l.b16 %v3600
    %v3682 = vunpack.c.h.b16 %v3600
    %v3683 = vunpack.c.l.b16 %v3601
    %v3684 = vunpack.c.h.b16 %v3601
    %v3685 = vunpack.c.l.b16 %v3602
    %v3686 = vunpack.c.h.b16 %v3602
    %v3687 = vunpack.c.l.b16 %v3603
    %v3688 = vunpack.c.h.b16 %v3603
    %v3689 = vunpack.c.l.b16 %v3604
    %v3690 = vunpack.c.h.b16 %v3604
    %v3691 = vunpack.c.l.b16 %v3605
    %v3692 = vunpack.c.h.b16 %v3605
    %v3693 = vunpack.c.l.b16 %v3606
    %v3694 = vunpack.c.h.b16 %v3606
    %v3695 = vunpack.c.l.b16 %v3607
    %v3696 = vunpack.c.h.b16 %v3607
    %v3697 = vunpack.c.l.b16 %v3608
    %v3698 = vunpack.c.h.b16 %v3608
    %v3699 = vunpack.c.l.b16 %v3609
    %v3700 = vunpack.c.h.b16 %v3609
    %v3701 = vunpack.c.l.b16 %v3610
    %v3702 = vunpack.c.h.b16 %v3610
    %v3703 = vunpack.c.l.b16 %v3611
    %v3704 = vunpack.c.h.b16 %v3611
    %v3705 = vunpack.c.l.b16 %v3612
    %v3706 = vunpack.c.h.b16 %v3612
    %v3707 = vunpack.c.l.b16 %v3613
    %v3708 = vunpack.c.h.b16 %v3613
    %v3709 = vunpack.c.l.b16 %v3614
    %v3710 = vunpack.c.h.b16 %v3614
    %v3711 = vpack.c.b16 %v3649, %v3647
    %v3712 = vpack.c.b16 %v3650, %v3648
    %v3713 = vpack.c.b16 %v3653, %v3651
    %v3714 = vpack.c.b16 %v3654, %v3652
    %v3715 = vpack.c.b16 %v3657, %v3655
    %v3716 = vpack.c.b16 %v3658, %v3656
    %v3717 = vpack.c.b16 %v3661, %v3659
    %v3718 = vpack.c.b16 %v3662, %v3660
    %v3719 = vpack.c.b16 %v3665, %v3663
    %v3720 = vpack.c.b16 %v3666, %v3664
    %v3721 = vpack.c.b16 %v3669, %v3667
    %v3722 = vpack.c.b16 %v3670, %v3668
    %v3723 = vpack.c.b16 %v3673, %v3671
    %v3724 = vpack.c.b16 %v3674, %v3672
    %v3725 = vpack.c.b16 %v3677, %v3675
    %v3726 = vpack.c.b16 %v3678, %v3676
    %v3727 = vpack.c.b16 %v3681, %v3679
    %v3728 = vpack.c.b16 %v3682, %v3680
    %v3729 = vpack.c.b16 %v3685, %v3683
    %v3730 = vpack.c.b16 %v3686, %v3684
    %v3731 = vpack.c.b16 %v3689, %v3687
    %v3732 = vpack.c.b16 %v3690, %v3688
    %v3733 = vpack.c.b16 %v3693, %v3691
    %v3734 = vpack.c.b16 %v3694, %v3692
    %v3735 = vpack.c.b16 %v3697, %v3695
    %v3736 = vpack.c.b16 %v3698, %v3696
    %v3737 = vpack.c.b16 %v3701, %v3699
    %v3738 = vpack.c.b16 %v3702, %v3700
    %v3739 = vpack.c.b16 %v3705, %v3703
    %v3740 = vpack.c.b16 %v3706, %v3704
    %v3741 = vpack.c.b16 %v3709, %v3707
    %v3742 = vpack.c.b16 %v3710, %v3708
    %3775 = vmatprep.subr.bf16.mxu0 %v3712
    %3776 = vmatpush1.bf16.msra.mxu0 %v3711
    %3777 = vmatprep.subr.bf16.mxu0 %v3714
    %3778 = vmatpush1.bf16.msra.mxu0 %v3713
    %3779 = vmatprep.subr.bf16.mxu0 %v3716
    %3780 = vmatpush1.bf16.msra.mxu0 %v3715
    %3781 = vmatprep.subr.bf16.mxu0 %v3718
    %3782 = vmatpush1.bf16.msra.mxu0 %v3717
    %3783 = vmatprep.subr.bf16.mxu0 %v3720
    %3784 = vmatpush1.bf16.msra.mxu0 %v3719
    %3785 = vmatprep.subr.bf16.mxu0 %v3722
    %3786 = vmatpush1.bf16.msra.mxu0 %v3721
    %3787 = vmatprep.subr.bf16.mxu0 %v3724
    %3788 = vmatpush1.bf16.msra.mxu0 %v3723
    %3789 = vmatprep.subr.bf16.mxu0 %v3726
    %3790 = vmatpush1.bf16.msra.mxu0 %v3725
    %3791 = vmatprep.subr.bf16.mxu0 %v3728
    %3792 = vmatpush1.bf16.msra.mxu0 %v3727
    %3793 = vmatprep.subr.bf16.mxu0 %v3730
    %3794 = vmatpush1.bf16.msra.mxu0 %v3729
    %3795 = vmatprep.subr.bf16.mxu0 %v3732
    %3796 = vmatpush1.bf16.msra.mxu0 %v3731
    %3797 = vmatprep.subr.bf16.mxu0 %v3734
    %3798 = vmatpush1.bf16.msra.mxu0 %v3733
    %3799 = vmatprep.subr.bf16.mxu0 %v3736
    %3800 = vmatpush1.bf16.msra.mxu0 %v3735
    %3801 = vmatprep.subr.bf16.mxu0 %v3738
    %3802 = vmatpush1.bf16.msra.mxu0 %v3737
    %3803 = vmatprep.subr.bf16.mxu0 %v3740
    %3804 = vmatpush1.bf16.msra.mxu0 %v3739
    %3805 = vmatprep.subr.bf16.mxu0 %v3742
    %3806 = vmatpush1.bf16.msra.mxu0 %v3741
    %3807 = vmatprep.mubr.bf16.mxu0 %v3581
    %3808 = vmatmul.mubr.bf16.gmra.mrb[0].mxu0 %v3580
    %v3809 = vpop.f32.mrb[0].mxu0
    %v3810 = vadd.f32 0.0, %v3809
    %v3811 = vpop.f32.mrb[0].mxu0
    %v3812 = vadd.f32 0.0, %v3811
    %v3813 = vpop.f32.mrb[0].mxu0
    %v3814 = vadd.f32 0.0, %v3813
    %v3815 = vpop.f32.mrb[0].mxu0
    %v3816 = vadd.f32 0.0, %v3815
    %3817 = vdwg.mxu0
    %v3850 = vunpack.c.l.b16 %v3494
    %v3851 = vunpack.c.h.b16 %v3494
    %v3852 = vunpack.c.l.b16 %v3495
    %v3853 = vunpack.c.h.b16 %v3495
    %v3854 = vunpack.c.l.b16 %v3496
    %v3855 = vunpack.c.h.b16 %v3496
    %v3856 = vunpack.c.l.b16 %v3497
    %v3857 = vunpack.c.h.b16 %v3497
    %v3858 = vunpack.c.l.b16 %v3498
    %v3859 = vunpack.c.h.b16 %v3498
    %v3860 = vunpack.c.l.b16 %v3499
    %v3861 = vunpack.c.h.b16 %v3499
    %v3862 = vunpack.c.l.b16 %v3500
    %v3863 = vunpack.c.h.b16 %v3500
    %v3864 = vunpack.c.l.b16 %v3501
    %v3865 = vunpack.c.h.b16 %v3501
    %v3866 = vunpack.c.l.b16 %v3502
    %v3867 = vunpack.c.h.b16 %v3502
    %v3868 = vunpack.c.l.b16 %v3503
    %v3869 = vunpack.c.h.b16 %v3503
    %v3870 = vunpack.c.l.b16 %v3504
    %v3871 = vunpack.c.h.b16 %v3504
    %v3872 = vunpack.c.l.b16 %v3505
    %v3873 = vunpack.c.h.b16 %v3505
    %v3874 = vunpack.c.l.b16 %v3506
    %v3875 = vunpack.c.h.b16 %v3506
    %v3876 = vunpack.c.l.b16 %v3507
    %v3877 = vunpack.c.h.b16 %v3507
    %v3878 = vunpack.c.l.b16 %v3508
    %v3879 = vunpack.c.h.b16 %v3508
    %v3880 = vunpack.c.l.b16 %v3509
    %v3881 = vunpack.c.h.b16 %v3509
    %v3882 = vunpack.c.l.b16 %v3510
    %v3883 = vunpack.c.h.b16 %v3510
    %v3884 = vunpack.c.l.b16 %v3511
    %v3885 = vunpack.c.h.b16 %v3511
    %v3886 = vunpack.c.l.b16 %v3512
    %v3887 = vunpack.c.h.b16 %v3512
    %v3888 = vunpack.c.l.b16 %v3513
    %v3889 = vunpack.c.h.b16 %v3513
    %v3890 = vunpack.c.l.b16 %v3514
    %v3891 = vunpack.c.h.b16 %v3514
    %v3892 = vunpack.c.l.b16 %v3515
    %v3893 = vunpack.c.h.b16 %v3515
    %v3894 = vunpack.c.l.b16 %v3516
    %v3895 = vunpack.c.h.b16 %v3516
    %v3896 = vunpack.c.l.b16 %v3517
    %v3897 = vunpack.c.h.b16 %v3517
    %v3898 = vunpack.c.l.b16 %v3518
    %v3899 = vunpack.c.h.b16 %v3518
    %v3900 = vunpack.c.l.b16 %v3519
    %v3901 = vunpack.c.h.b16 %v3519
    %v3902 = vunpack.c.l.b16 %v3520
    %v3903 = vunpack.c.h.b16 %v3520
    %v3904 = vunpack.c.l.b16 %v3521
    %v3905 = vunpack.c.h.b16 %v3521
    %v3906 = vunpack.c.l.b16 %v3522
    %v3907 = vunpack.c.h.b16 %v3522
    %v3908 = vunpack.c.l.b16 %v3523
    %v3909 = vunpack.c.h.b16 %v3523
    %v3910 = vunpack.c.l.b16 %v3524
    %v3911 = vunpack.c.h.b16 %v3524
    %v3912 = vunpack.c.l.b16 %v3525
    %v3913 = vunpack.c.h.b16 %v3525
    %v3914 = vpack.c.b16 %v3852, %v3850
    %v3915 = vpack.c.b16 %v3853, %v3851
    %v3916 = vpack.c.b16 %v3856, %v3854
    %v3917 = vpack.c.b16 %v3857, %v3855
    %v3918 = vpack.c.b16 %v3860, %v3858
    %v3919 = vpack.c.b16 %v3861, %v3859
    %v3920 = vpack.c.b16 %v3864, %v3862
    %v3921 = vpack.c.b16 %v3865, %v3863
    %v3922 = vpack.c.b16 %v3868, %v3866
    %v3923 = vpack.c.b16 %v3869, %v3867
    %v3924 = vpack.c.b16 %v3872, %v3870
    %v3925 = vpack.c.b16 %v3873, %v3871
    %v3926 = vpack.c.b16 %v3876, %v3874
    %v3927 = vpack.c.b16 %v3877, %v3875
    %v3928 = vpack.c.b16 %v3880, %v3878
    %v3929 = vpack.c.b16 %v3881, %v3879
    %v3930 = vpack.c.b16 %v3884, %v3882
    %v3931 = vpack.c.b16 %v3885, %v3883
    %v3932 = vpack.c.b16 %v3888, %v3886
    %v3933 = vpack.c.b16 %v3889, %v3887
    %v3934 = vpack.c.b16 %v3892, %v3890
    %v3935 = vpack.c.b16 %v3893, %v3891
    %v3936 = vpack.c.b16 %v3896, %v3894
    %v3937 = vpack.c.b16 %v3897, %v3895
    %v3938 = vpack.c.b16 %v3900, %v3898
    %v3939 = vpack.c.b16 %v3901, %v3899
    %v3940 = vpack.c.b16 %v3904, %v3902
    %v3941 = vpack.c.b16 %v3905, %v3903
    %v3942 = vpack.c.b16 %v3908, %v3906
    %v3943 = vpack.c.b16 %v3909, %v3907
    %v3944 = vpack.c.b16 %v3912, %v3910
    %v3945 = vpack.c.b16 %v3913, %v3911
    %3978 = vmatprep.subr.bf16.mxu0 %v3915
    %3979 = vmatpush1.bf16.msra.mxu0 %v3914
    %3980 = vmatprep.subr.bf16.mxu0 %v3917
    %3981 = vmatpush1.bf16.msra.mxu0 %v3916
    %3982 = vmatprep.subr.bf16.mxu0 %v3919
    %3983 = vmatpush1.bf16.msra.mxu0 %v3918
    %3984 = vmatprep.subr.bf16.mxu0 %v3921
    %3985 = vmatpush1.bf16.msra.mxu0 %v3920
    %3986 = vmatprep.subr.bf16.mxu0 %v3923
    %3987 = vmatpush1.bf16.msra.mxu0 %v3922
    %3988 = vmatprep.subr.bf16.mxu0 %v3925
    %3989 = vmatpush1.bf16.msra.mxu0 %v3924
    %3990 = vmatprep.subr.bf16.mxu0 %v3927
    %3991 = vmatpush1.bf16.msra.mxu0 %v3926
    %3992 = vmatprep.subr.bf16.mxu0 %v3929
    %3993 = vmatpush1.bf16.msra.mxu0 %v3928
    %3994 = vmatprep.subr.bf16.mxu0 %v3931
    %3995 = vmatpush1.bf16.msra.mxu0 %v3930
    %3996 = vmatprep.subr.bf16.mxu0 %v3933
    %3997 = vmatpush1.bf16.msra.mxu0 %v3932
    %3998 = vmatprep.subr.bf16.mxu0 %v3935
    %3999 = vmatpush1.bf16.msra.mxu0 %v3934
    %4000 = vmatprep.subr.bf16.mxu0 %v3937
    %4001 = vmatpush1.bf16.msra.mxu0 %v3936
    %4002 = vmatprep.subr.bf16.mxu0 %v3939
    %4003 = vmatpush1.bf16.msra.mxu0 %v3938
    %4004 = vmatprep.subr.bf16.mxu0 %v3941
    %4005 = vmatpush1.bf16.msra.mxu0 %v3940
    %4006 = vmatprep.subr.bf16.mxu0 %v3943
    %4007 = vmatpush1.bf16.msra.mxu0 %v3942
    %4008 = vmatprep.subr.bf16.mxu0 %v3945
    %4009 = vmatpush1.bf16.msra.mxu0 %v3944
    %4010 = vmatprep.mubr.bf16.mxu0 %v3493
    %4011 = vmatmul.mubr.bf16.gmra.mrb[0].mxu0 %v3492
    %v4012 = vpop.f32.mrb[0].mxu0
    %v4013 = vadd.f32 %v3810, %v4012
    %v4014 = vpop.f32.mrb[0].mxu0
    %v4015 = vadd.f32 %v3812, %v4014
    %v4016 = vpop.f32.mrb[0].mxu0
    %v4017 = vadd.f32 %v3814, %v4016
    %v4018 = vpop.f32.mrb[0].mxu0
    %v4019 = vadd.f32 %v3816, %v4018
    %4020 = vdwg.mxu0
    %s4021 = scalar_lea.vmem [#allocation20], 16
    %v4022 = vld [vmem:[%s4021] sm:$0xf]
    %v4023 = vld [vmem:[%s4021 + $0x4] sm:$0xf]
    %v4026 = vunpack.c.l.b16 %v4022
    %v4027 = vunpack.c.l.b16 %v4023
    %v4028 = vpack.c.b16 %v4027, %v4026
    %v4030 = vsel %vm976, %v4028, 0
    %4032 = vmatprep.subr.bf16.mxu0 %v3436
    %4033 = vmatpush1.bf16.msra.mxu0 %v3435
    %4034 = vmatprep.subr.bf16.mxu0 %v3438
    %4035 = vmatpush1.bf16.msra.mxu0 %v3437
    %4036 = vmatprep.subr.bf16.mxu0 0
    %4037 = vmatpush1.bf16.msra.mxu0 0
    %4038 = vmatprep.subr.bf16.mxu0 0
    %4039 = vmatpush1.bf16.msra.mxu0 0
    %4040 = vmatprep.subr.bf16.mxu0 0
    %4041 = vmatpush1.bf16.msra.mxu0 0
    %4042 = vmatprep.subr.bf16.mxu0 0
    %4043 = vmatpush1.bf16.msra.mxu0 0
    %4044 = vmatprep.subr.bf16.mxu0 0
    %4045 = vmatpush1.bf16.msra.mxu0 0
    %4046 = vmatprep.subr.bf16.mxu0 0
    %4047 = vmatpush1.bf16.msra.mxu0 0
    %4048 = vmatprep.subr.bf16.mxu0 0
    %4049 = vmatpush1.bf16.msra.mxu0 0
    %4050 = vmatprep.subr.bf16.mxu0 0
    %4051 = vmatpush1.bf16.msra.mxu0 0
    %4052 = vmatprep.subr.bf16.mxu0 0
    %4053 = vmatpush1.bf16.msra.mxu0 0
    %4054 = vmatprep.subr.bf16.mxu0 0
    %4055 = vmatpush1.bf16.msra.mxu0 0
    %4056 = vmatprep.subr.bf16.mxu0 0
    %4057 = vmatpush1.bf16.msra.mxu0 0
    %4058 = vmatprep.subr.bf16.mxu0 0
    %4059 = vmatpush1.bf16.msra.mxu0 0
    %4060 = vmatprep.subr.bf16.mxu0 0
    %4061 = vmatpush1.bf16.msra.mxu0 0
    %4062 = vmatprep.subr.bf16.mxu0 0
    %4063 = vmatpush1.bf16.msra.mxu0 0
    %4064 = vmatprep.mubr.bf16.mxu0 0
    %4065 = vmatmul.mubr.bf16.gmra.mrb[0].mxu0 %v4030
    %v4066 = vpop.f32.mrb[0].mxu0
    %v4067 = vadd.f32 0.0, %v4066
    %v4068 = vpop.f32.mrb[0].mxu0
    %v4069 = vadd.f32 0.0, %v4068
    %v4070 = vpop.f32.mrb[0].mxu0
    %v4071 = vadd.f32 0.0, %v4070
    %v4072 = vpop.f32.mrb[0].mxu0
    %v4073 = vadd.f32 0.0, %v4072
    %4074 = vdwg.mxu0
    %v4075 = vpack.c.bf16 %v4071, %v4067
    %v4076 = vpack.c.bf16 %v4073, %v4069
    %s4077 = scalar_lea.vmem [#allocation22], 512
    %v4078 = vld [vmem:[%s4077] sm:$0xff]
    %v4079 = vld [vmem:[%s4077 + $0x8] sm:$0xff]
    %v4080 = vld [vmem:[%s4077 + $0x10] sm:$0xff]
    %v4081 = vld [vmem:[%s4077 + $0x18] sm:$0xff]
    %v4082 = vld [vmem:[%s4077 + $0x20] sm:$0xff]
    %v4083 = vld [vmem:[%s4077 + $0x28] sm:$0xff]
    %v4084 = vld [vmem:[%s4077 + $0x30] sm:$0xff]
    %v4085 = vld [vmem:[%s4077 + $0x38] sm:$0xff]
    %v4086 = vld [vmem:[%s4077 + $0x40] sm:$0xff]
    %v4087 = vld [vmem:[%s4077 + $0x48] sm:$0xff]
    %v4088 = vld [vmem:[%s4077 + $0x50] sm:$0xff]
    %v4089 = vld [vmem:[%s4077 + $0x58] sm:$0xff]
    %v4090 = vld [vmem:[%s4077 + $0x60] sm:$0xff]
    %v4091 = vld [vmem:[%s4077 + $0x68] sm:$0xff]
    %v4092 = vld [vmem:[%s4077 + $0x70] sm:$0xff]
    %v4093 = vld [vmem:[%s4077 + $0x78] sm:$0xff]
    %v4094 = vld [vmem:[%s4077 + $0x80] sm:$0xff]
    %v4095 = vld [vmem:[%s4077 + $0x88] sm:$0xff]
    %v4096 = vld [vmem:[%s4077 + $0x90] sm:$0xff]
    %v4097 = vld [vmem:[%s4077 + $0x98] sm:$0xff]
    %v4098 = vld [vmem:[%s4077 + $0xa0] sm:$0xff]
    %v4099 = vld [vmem:[%s4077 + $0xa8] sm:$0xff]
    %v4100 = vld [vmem:[%s4077 + $0xb0] sm:$0xff]
    %v4101 = vld [vmem:[%s4077 + $0xb8] sm:$0xff]
    %v4102 = vld [vmem:[%s4077 + $0xc0] sm:$0xff]
    %v4103 = vld [vmem:[%s4077 + $0xc8] sm:$0xff]
    %v4104 = vld [vmem:[%s4077 + $0xd0] sm:$0xff]
    %v4105 = vld [vmem:[%s4077 + $0xd8] sm:$0xff]
    %v4106 = vld [vmem:[%s4077 + $0xe0] sm:$0xff]
    %v4107 = vld [vmem:[%s4077 + $0xe8] sm:$0xff]
    %v4108 = vld [vmem:[%s4077 + $0xf0] sm:$0xff]
    %v4109 = vld [vmem:[%s4077 + $0xf8] sm:$0xff]
    %v4142 = vunpack.c.l.b16 %v4078
    %v4143 = vunpack.c.h.b16 %v4078
    %v4144 = vunpack.c.l.b16 %v4079
    %v4145 = vunpack.c.h.b16 %v4079
    %v4146 = vunpack.c.l.b16 %v4080
    %v4147 = vunpack.c.h.b16 %v4080
    %v4148 = vunpack.c.l.b16 %v4081
    %v4149 = vunpack.c.h.b16 %v4081
    %v4150 = vunpack.c.l.b16 %v4082
    %v4151 = vunpack.c.h.b16 %v4082
    %v4152 = vunpack.c.l.b16 %v4083
    %v4153 = vunpack.c.h.b16 %v4083
    %v4154 = vunpack.c.l.b16 %v4084
    %v4155 = vunpack.c.h.b16 %v4084
    %v4156 = vunpack.c.l.b16 %v4085
    %v4157 = vunpack.c.h.b16 %v4085
    %v4158 = vunpack.c.l.b16 %v4086
    %v4159 = vunpack.c.h.b16 %v4086
    %v4160 = vunpack.c.l.b16 %v4087
    %v4161 = vunpack.c.h.b16 %v4087
    %v4162 = vunpack.c.l.b16 %v4088
    %v4163 = vunpack.c.h.b16 %v4088
    %v4164 = vunpack.c.l.b16 %v4089
    %v4165 = vunpack.c.h.b16 %v4089
    %v4166 = vunpack.c.l.b16 %v4090
    %v4167 = vunpack.c.h.b16 %v4090
    %v4168 = vunpack.c.l.b16 %v4091
    %v4169 = vunpack.c.h.b16 %v4091
    %v4170 = vunpack.c.l.b16 %v4092
    %v4171 = vunpack.c.h.b16 %v4092
    %v4172 = vunpack.c.l.b16 %v4093
    %v4173 = vunpack.c.h.b16 %v4093
    %v4174 = vunpack.c.l.b16 %v4094
    %v4175 = vunpack.c.h.b16 %v4094
    %v4176 = vunpack.c.l.b16 %v4095
    %v4177 = vunpack.c.h.b16 %v4095
    %v4178 = vunpack.c.l.b16 %v4096
    %v4179 = vunpack.c.h.b16 %v4096
    %v4180 = vunpack.c.l.b16 %v4097
    %v4181 = vunpack.c.h.b16 %v4097
    %v4182 = vunpack.c.l.b16 %v4098
    %v4183 = vunpack.c.h.b16 %v4098
    %v4184 = vunpack.c.l.b16 %v4099
    %v4185 = vunpack.c.h.b16 %v4099
    %v4186 = vunpack.c.l.b16 %v4100
    %v4187 = vunpack.c.h.b16 %v4100
    %v4188 = vunpack.c.l.b16 %v4101
    %v4189 = vunpack.c.h.b16 %v4101
    %v4190 = vunpack.c.l.b16 %v4102
    %v4191 = vunpack.c.h.b16 %v4102
    %v4192 = vunpack.c.l.b16 %v4103
    %v4193 = vunpack.c.h.b16 %v4103
    %v4194 = vunpack.c.l.b16 %v4104
    %v4195 = vunpack.c.h.b16 %v4104
    %v4196 = vunpack.c.l.b16 %v4105
    %v4197 = vunpack.c.h.b16 %v4105
    %v4198 = vunpack.c.l.b16 %v4106
    %v4199 = vunpack.c.h.b16 %v4106
    %v4200 = vunpack.c.l.b16 %v4107
    %v4201 = vunpack.c.h.b16 %v4107
    %v4202 = vunpack.c.l.b16 %v4108
    %v4203 = vunpack.c.h.b16 %v4108
    %v4204 = vunpack.c.l.b16 %v4109
    %v4205 = vunpack.c.h.b16 %v4109
    %v4206 = vpack.c.b16 %v4144, %v4142
    %v4207 = vpack.c.b16 %v4145, %v4143
    %v4208 = vpack.c.b16 %v4148, %v4146
    %v4209 = vpack.c.b16 %v4149, %v4147
    %v4210 = vpack.c.b16 %v4152, %v4150
    %v4211 = vpack.c.b16 %v4153, %v4151
    %v4212 = vpack.c.b16 %v4156, %v4154
    %v4213 = vpack.c.b16 %v4157, %v4155
    %v4214 = vpack.c.b16 %v4160, %v4158
    %v4215 = vpack.c.b16 %v4161, %v4159
    %v4216 = vpack.c.b16 %v4164, %v4162
    %v4217 = vpack.c.b16 %v4165, %v4163
    %v4218 = vpack.c.b16 %v4168, %v4166
    %v4219 = vpack.c.b16 %v4169, %v4167
    %v4220 = vpack.c.b16 %v4172, %v4170
    %v4221 = vpack.c.b16 %v4173, %v4171
    %v4222 = vpack.c.b16 %v4176, %v4174
    %v4223 = vpack.c.b16 %v4177, %v4175
    %v4224 = vpack.c.b16 %v4180, %v4178
    %v4225 = vpack.c.b16 %v4181, %v4179
    %v4226 = vpack.c.b16 %v4184, %v4182
    %v4227 = vpack.c.b16 %v4185, %v4183
    %v4228 = vpack.c.b16 %v4188, %v4186
    %v4229 = vpack.c.b16 %v4189, %v4187
    %v4230 = vpack.c.b16 %v4192, %v4190
    %v4231 = vpack.c.b16 %v4193, %v4191
    %v4232 = vpack.c.b16 %v4196, %v4194
    %v4233 = vpack.c.b16 %v4197, %v4195
    %v4234 = vpack.c.b16 %v4200, %v4198
    %v4235 = vpack.c.b16 %v4201, %v4199
    %v4236 = vpack.c.b16 %v4204, %v4202
    %v4237 = vpack.c.b16 %v4205, %v4203
    %4270 = vmatprep.subr.bf16.mxu0 %v4207
    %4271 = vmatpush1.bf16.msra.mxu0 %v4206
    %4272 = vmatprep.subr.bf16.mxu0 %v4209
    %4273 = vmatpush1.bf16.msra.mxu0 %v4208
    %4274 = vmatprep.subr.bf16.mxu0 %v4211
    %4275 = vmatpush1.bf16.msra.mxu0 %v4210
    %4276 = vmatprep.subr.bf16.mxu0 %v4213
    %4277 = vmatpush1.bf16.msra.mxu0 %v4212
    %4278 = vmatprep.subr.bf16.mxu0 %v4215
    %4279 = vmatpush1.bf16.msra.mxu0 %v4214
    %4280 = vmatprep.subr.bf16.mxu0 %v4217
    %4281 = vmatpush1.bf16.msra.mxu0 %v4216
    %4282 = vmatprep.subr.bf16.mxu0 %v4219
    %4283 = vmatpush1.bf16.msra.mxu0 %v4218
    %4284 = vmatprep.subr.bf16.mxu0 %v4221
    %4285 = vmatpush1.bf16.msra.mxu0 %v4220
    %4286 = vmatprep.subr.bf16.mxu0 %v4223
    %4287 = vmatpush1.bf16.msra.mxu0 %v4222
    %4288 = vmatprep.subr.bf16.mxu0 %v4225
    %4289 = vmatpush1.bf16.msra.mxu0 %v4224
    %4290 = vmatprep.subr.bf16.mxu0 %v4227
    %4291 = vmatpush1.bf16.msra.mxu0 %v4226
    %4292 = vmatprep.subr.bf16.mxu0 %v4229
    %4293 = vmatpush1.bf16.msra.mxu0 %v4228
    %4294 = vmatprep.subr.bf16.mxu0 %v4231
    %4295 = vmatpush1.bf16.msra.mxu0 %v4230
    %4296 = vmatprep.subr.bf16.mxu0 %v4233
    %4297 = vmatpush1.bf16.msra.mxu0 %v4232
    %4298 = vmatprep.subr.bf16.mxu0 %v4235
    %4299 = vmatpush1.bf16.msra.mxu0 %v4234
    %4300 = vmatprep.subr.bf16.mxu0 %v4237
    %4301 = vmatpush1.bf16.msra.mxu0 %v4236
    %4302 = vmatprep.mubr.bf16.mxu0 %v4076
    %4303 = vmatmul.mubr.bf16.gmra.mrb[0].mxu0 %v4075
    %v4304 = vpop.f32.mrb[0].mxu0
    %v4305 = vadd.f32 0.0, %v4304
    %v4306 = vpop.f32.mrb[0].mxu0
    %v4307 = vadd.f32 0.0, %v4306
    %v4308 = vpop.f32.mrb[0].mxu0
    %v4309 = vadd.f32 0.0, %v4308
    %v4310 = vpop.f32.mrb[0].mxu0
    %v4311 = vadd.f32 0.0, %v4310
    %4312 = vdwg.mxu0
    %v4313 = vadd.f32 %v4013, %v4305
    %v4314 = vadd.f32 %v4015, %v4307
    %v4315 = vadd.f32 %v4017, %v4309
    %v4316 = vadd.f32 %v4019, %v4311
    %v4317 = vld [vmem:[#allocation23] sm:$0x3]
    %v4319 = vlaneseq
    %v4320 = vshrl.u32 %v4319, 7
    %v4321 = vsub.s32 0, %v4320
    %v4322 = vrot.slane %v4317, %v4321
    %v4323 = vlaneseq
    %v4324 = vshrl.u32 %v4323, 7
    %v4325 = vsub.s32 1, %v4324
    %v4326 = vrot.slane %v4317, %v4325
    %v4329 = vadd.f32 %v4313, %v4322
    %v4330 = vadd.f32 %v4314, %v4326
    %v4331 = vadd.f32 %v4315, %v4322
    %v4332 = vadd.f32 %v4316, %v4326
    %vm4333 = vcmp.ge.f32.partialorder %v4329, 0.0
    %vm4334 = vcmp.ge.f32.partialorder %v4330, 0.0
    %vm4335 = vcmp.ge.f32.partialorder %v4331, 0.0
    %vm4336 = vcmp.ge.f32.partialorder %v4332, 0.0
    %v4337 = vmul.f32 %v4329, 0.1
    %v4338 = vmul.f32 %v4330, 0.1
    %v4339 = vmul.f32 %v4331, 0.1
    %v4340 = vmul.f32 %v4332, 0.1
    %v4341 = vsel %vm4333, %v4329, %v4337
    %v4342 = vsel %vm4334, %v4330, %v4338
    %v4343 = vsel %vm4335, %v4331, %v4339
    %v4344 = vsel %vm4336, %v4332, %v4340
    %v4345 = vpack.c.bf16 %v4343, %v4341
    %v4346 = vpack.c.bf16 %v4344, %v4342
    %v4347 = vld [vmem:[#allocation25] sm:$0xf]
    %v4348 = vld [vmem:[#allocation25 + $0x4] sm:$0xf]
    %v4349 = vld [vmem:[#allocation25 + $0x8] sm:$0xf]
    %v4350 = vld [vmem:[#allocation25 + $0xc] sm:$0xf]
    %v4351 = vld [vmem:[#allocation25 + $0x10] sm:$0xf]
    %v4352 = vld [vmem:[#allocation25 + $0x14] sm:$0xf]
    %v4353 = vld [vmem:[#allocation25 + $0x18] sm:$0xf]
    %v4354 = vld [vmem:[#allocation25 + $0x1c] sm:$0xf]
    %v4355 = vld [vmem:[#allocation25 + $0x20] sm:$0xf]
    %v4356 = vld [vmem:[#allocation25 + $0x24] sm:$0xf]
    %v4357 = vld [vmem:[#allocation25 + $0x28] sm:$0xf]
    %v4358 = vld [vmem:[#allocation25 + $0x2c] sm:$0xf]
    %v4359 = vld [vmem:[#allocation25 + $0x30] sm:$0xf]
    %v4360 = vld [vmem:[#allocation25 + $0x34] sm:$0xf]
    %v4361 = vld [vmem:[#allocation25 + $0x38] sm:$0xf]
    %v4362 = vld [vmem:[#allocation25 + $0x3c] sm:$0xf]
    %v4363 = vld [vmem:[#allocation25 + $0x40] sm:$0xf]
    %v4364 = vld [vmem:[#allocation25 + $0x44] sm:$0xf]
    %v4365 = vld [vmem:[#allocation25 + $0x48] sm:$0xf]
    %v4366 = vld [vmem:[#allocation25 + $0x4c] sm:$0xf]
    %v4367 = vld [vmem:[#allocation25 + $0x50] sm:$0xf]
    %v4368 = vld [vmem:[#allocation25 + $0x54] sm:$0xf]
    %v4369 = vld [vmem:[#allocation25 + $0x58] sm:$0xf]
    %v4370 = vld [vmem:[#allocation25 + $0x5c] sm:$0xf]
    %v4371 = vld [vmem:[#allocation25 + $0x60] sm:$0xf]
    %v4372 = vld [vmem:[#allocation25 + $0x64] sm:$0xf]
    %v4373 = vld [vmem:[#allocation25 + $0x68] sm:$0xf]
    %v4374 = vld [vmem:[#allocation25 + $0x6c] sm:$0xf]
    %v4375 = vld [vmem:[#allocation25 + $0x70] sm:$0xf]
    %v4376 = vld [vmem:[#allocation25 + $0x74] sm:$0xf]
    %v4377 = vld [vmem:[#allocation25 + $0x78] sm:$0xf]
    %v4378 = vld [vmem:[#allocation25 + $0x7c] sm:$0xf]
    %v4379 = vld [vmem:[#allocation26] sm:$0x1]
    %v4381 = vlaneseq
    %v4382 = vshrl.u32 %v4381, 7
    %v4383 = vsub.s32 0, %v4382
    %v4384 = vrot.slane %v4379, %v4383
    %v4418 = vunpack.c.l.b16 %v4347
    %v4419 = vunpack.c.l.b16 %v4348
    %v4420 = vunpack.c.l.b16 %v4349
    %v4421 = vunpack.c.l.b16 %v4350
    %v4422 = vunpack.c.l.b16 %v4351
    %v4423 = vunpack.c.l.b16 %v4352
    %v4424 = vunpack.c.l.b16 %v4353
    %v4425 = vunpack.c.l.b16 %v4354
    %v4426 = vunpack.c.l.b16 %v4355
    %v4427 = vunpack.c.l.b16 %v4356
    %v4428 = vunpack.c.l.b16 %v4357
    %v4429 = vunpack.c.l.b16 %v4358
    %v4430 = vunpack.c.l.b16 %v4359
    %v4431 = vunpack.c.l.b16 %v4360
    %v4432 = vunpack.c.l.b16 %v4361
    %v4433 = vunpack.c.l.b16 %v4362
    %v4434 = vunpack.c.l.b16 %v4363
    %v4435 = vunpack.c.l.b16 %v4364
    %v4436 = vunpack.c.l.b16 %v4365
    %v4437 = vunpack.c.l.b16 %v4366
    %v4438 = vunpack.c.l.b16 %v4367
    %v4439 = vunpack.c.l.b16 %v4368
    %v4440 = vunpack.c.l.b16 %v4369
    %v4441 = vunpack.c.l.b16 %v4370
    %v4442 = vunpack.c.l.b16 %v4371
    %v4443 = vunpack.c.l.b16 %v4372
    %v4444 = vunpack.c.l.b16 %v4373
    %v4445 = vunpack.c.l.b16 %v4374
    %v4446 = vunpack.c.l.b16 %v4375
    %v4447 = vunpack.c.l.b16 %v4376
    %v4448 = vunpack.c.l.b16 %v4377
    %v4449 = vunpack.c.l.b16 %v4378
    %v4450 = vpack.c.b16 %v4419, %v4418
    %v4451 = vpack.c.b16 %v4421, %v4420
    %v4452 = vpack.c.b16 %v4423, %v4422
    %v4453 = vpack.c.b16 %v4425, %v4424
    %v4454 = vpack.c.b16 %v4427, %v4426
    %v4455 = vpack.c.b16 %v4429, %v4428
    %v4456 = vpack.c.b16 %v4431, %v4430
    %v4457 = vpack.c.b16 %v4433, %v4432
    %v4458 = vpack.c.b16 %v4435, %v4434
    %v4459 = vpack.c.b16 %v4437, %v4436
    %v4460 = vpack.c.b16 %v4439, %v4438
    %v4461 = vpack.c.b16 %v4441, %v4440
    %v4462 = vpack.c.b16 %v4443, %v4442
    %v4463 = vpack.c.b16 %v4445, %v4444
    %v4464 = vpack.c.b16 %v4447, %v4446
    %v4465 = vpack.c.b16 %v4449, %v4448
    %4482 = vmatprep.subr.bf16.mxu0 0
    %4483 = vmatpush1.bf16.msra.mxu0 %v4450
    %4484 = vmatprep.subr.bf16.mxu0 0
    %4485 = vmatpush1.bf16.msra.mxu0 %v4451
    %4486 = vmatprep.subr.bf16.mxu0 0
    %4487 = vmatpush1.bf16.msra.mxu0 %v4452
    %4488 = vmatprep.subr.bf16.mxu0 0
    %4489 = vmatpush1.bf16.msra.mxu0 %v4453
    %4490 = vmatprep.subr.bf16.mxu0 0
    %4491 = vmatpush1.bf16.msra.mxu0 %v4454
    %4492 = vmatprep.subr.bf16.mxu0 0
    %4493 = vmatpush1.bf16.msra.mxu0 %v4455
    %4494 = vmatprep.subr.bf16.mxu0 0
    %4495 = vmatpush1.bf16.msra.mxu0 %v4456
    %4496 = vmatprep.subr.bf16.mxu0 0
    %4497 = vmatpush1.bf16.msra.mxu0 %v4457
    %4498 = vmatprep.subr.bf16.mxu0 0
    %4499 = vmatpush1.bf16.msra.mxu0 %v4458
    %4500 = vmatprep.subr.bf16.mxu0 0
    %4501 = vmatpush1.bf16.msra.mxu0 %v4459
    %4502 = vmatprep.subr.bf16.mxu0 0
    %4503 = vmatpush1.bf16.msra.mxu0 %v4460
    %4504 = vmatprep.subr.bf16.mxu0 0
    %4505 = vmatpush1.bf16.msra.mxu0 %v4461
    %4506 = vmatprep.subr.bf16.mxu0 0
    %4507 = vmatpush1.bf16.msra.mxu0 %v4462
    %4508 = vmatprep.subr.bf16.mxu0 0
    %4509 = vmatpush1.bf16.msra.mxu0 %v4463
    %4510 = vmatprep.subr.bf16.mxu0 0
    %4511 = vmatpush1.bf16.msra.mxu0 %v4464
    %4512 = vmatprep.subr.bf16.mxu0 0
    %4513 = vmatpush1.bf16.msra.mxu0 %v4465
    %4514 = vmatprep.mubr.bf16.mxu0 %v4346
    %4515 = vmatmul.mubr.bf16.gmra.mrb[0].mxu0 %v4345
    %v4516 = vpop.f32.mrb[0].mxu0
    %v4517 = vadd.f32 %v4384, %v4516
    %v4518 = vpop.f32.mrb[0].mxu0
    %v4519 = vpop.f32.mrb[0].mxu0
    %v4520 = vadd.f32 %v4384, %v4519
    %v4521 = vpop.f32.mrb[0].mxu0
    %4522 = vdwg.mxu0
    %vm4523 = vcmp.ge.f32.partialorder %v4517, 0.0
    %vm4524 = vcmp.ge.f32.partialorder %v4520, 0.0
    %v4525 = vmul.f32 %v4517, 0.1
    %v4526 = vmul.f32 %v4520, 0.1
    %v4527 = vsel %vm4523, %v4517, %v4525
    %v4528 = vsel %vm4524, %v4520, %v4526
    %v4529 = vpack.c.bf16 %v4528, %v4527
    %v4530 = vld [vmem:[#allocation28] sm:$0xf]
    %v4531 = vld [vmem:[#allocation28 + $0x4] sm:$0xf]
    %v4534 = vunpack.c.l.b16 %v4530
    %v4535 = vunpack.c.l.b16 %v4531
    %v4536 = vpack.c.b16 %v4535, %v4534
    %vm4537 = vcmask 130048
    %v4539 = vsel %vm4537, %v4536, 0
    %4541 = vmatprep.subr.bf16.mxu0 0
    %4542 = vmatpush1.bf16.msra.mxu0 %v4529
    %4543 = vmatprep.subr.bf16.mxu0 0
    %4544 = vmatpush1.bf16.msra.mxu0 0
    %4545 = vmatprep.subr.bf16.mxu0 0
    %4546 = vmatpush1.bf16.msra.mxu0 0
    %4547 = vmatprep.subr.bf16.mxu0 0
    %4548 = vmatpush1.bf16.msra.mxu0 0
    %4549 = vmatprep.subr.bf16.mxu0 0
    %4550 = vmatpush1.bf16.msra.mxu0 0
    %4551 = vmatprep.subr.bf16.mxu0 0
    %4552 = vmatpush1.bf16.msra.mxu0 0
    %4553 = vmatprep.subr.bf16.mxu0 0
    %4554 = vmatpush1.bf16.msra.mxu0 0
    %4555 = vmatprep.subr.bf16.mxu0 0
    %4556 = vmatpush1.bf16.msra.mxu0 0
    %4557 = vmatprep.subr.bf16.mxu0 0
    %4558 = vmatpush1.bf16.msra.mxu0 0
    %4559 = vmatprep.subr.bf16.mxu0 0
    %4560 = vmatpush1.bf16.msra.mxu0 0
    %4561 = vmatprep.subr.bf16.mxu0 0
    %4562 = vmatpush1.bf16.msra.mxu0 0
    %4563 = vmatprep.subr.bf16.mxu0 0
    %4564 = vmatpush1.bf16.msra.mxu0 0
    %4565 = vmatprep.subr.bf16.mxu0 0
    %4566 = vmatpush1.bf16.msra.mxu0 0
    %4567 = vmatprep.subr.bf16.mxu0 0
    %4568 = vmatpush1.bf16.msra.mxu0 0
    %4569 = vmatprep.subr.bf16.mxu0 0
    %4570 = vmatpush1.bf16.msra.mxu0 0
    %4571 = vmatprep.subr.bf16.mxu0 0
    %4572 = vmatpush1.bf16.msra.mxu0 0
    %4573 = vmatprep.mubr.bf16.mxu0 0
    %4574 = vmatmul.mubr.bf16.gmra.mrb[0].mxu0 %v4539
    %v4575 = vpop.f32.mrb[0].mxu0
    %v4576 = vadd.f32 0.0, %v4575
    %v4577 = vpop.f32.mrb[0].mxu0
    %v4578 = vpop.f32.mrb[0].mxu0
    %v4579 = vadd.f32 0.0, %v4578
    %v4580 = vpop.f32.mrb[0].mxu0
    %4581 = vdwg.mxu0
    %v4582 = vpack.c.bf16 %v4579, %v4576
    %v4583 = vld [vmem:[#allocation29] sm:$0xff]
    %v4584 = vld [vmem:[#allocation29 + $0x8] sm:$0xff]
    %v4585 = vld [vmem:[#allocation29 + $0x10] sm:$0xff]
    %v4586 = vld [vmem:[#allocation29 + $0x18] sm:$0xff]
    %v4587 = vld [vmem:[#allocation29 + $0x20] sm:$0xff]
    %v4588 = vld [vmem:[#allocation29 + $0x28] sm:$0xff]
    %v4589 = vld [vmem:[#allocation29 + $0x30] sm:$0xff]
    %v4590 = vld [vmem:[#allocation29 + $0x38] sm:$0xff]
    %v4591 = vld [vmem:[#allocation29 + $0x40] sm:$0xff]
    %v4592 = vld [vmem:[#allocation29 + $0x48] sm:$0xff]
    %v4593 = vld [vmem:[#allocation29 + $0x50] sm:$0xff]
    %v4594 = vld [vmem:[#allocation29 + $0x58] sm:$0xff]
    %v4595 = vld [vmem:[#allocation29 + $0x60] sm:$0xff]
    %v4596 = vld [vmem:[#allocation29 + $0x68] sm:$0xff]
    %v4597 = vld [vmem:[#allocation29 + $0x70] sm:$0xff]
    %v4598 = vld [vmem:[#allocation29 + $0x78] sm:$0xff]
    %s4599 = scalar_lea.vmem [#allocation28], 8
    %v4600 = vld [vmem:[%s4599] sm:$0xf]
    %v4601 = vld [vmem:[%s4599 + $0x4] sm:$0xf]
    %v4604 = vunpack.c.l.b16 %v4600
    %v4605 = vunpack.c.l.b16 %v4601
    %v4606 = vpack.c.b16 %v4605, %v4604
    %v4608 = vsel %vm4537, %v4606, 0
    %4610 = vmatprep.subr.bf16.mxu0 0
    %4611 = vmatpush1.bf16.msra.mxu0 %v4529
    %4612 = vmatprep.subr.bf16.mxu0 0
    %4613 = vmatpush1.bf16.msra.mxu0 0
    %4614 = vmatprep.subr.bf16.mxu0 0
    %4615 = vmatpush1.bf16.msra.mxu0 0
    %4616 = vmatprep.subr.bf16.mxu0 0
    %4617 = vmatpush1.bf16.msra.mxu0 0
    %4618 = vmatprep.subr.bf16.mxu0 0
    %4619 = vmatpush1.bf16.msra.mxu0 0
    %4620 = vmatprep.subr.bf16.mxu0 0
    %4621 = vmatpush1.bf16.msra.mxu0 0
    %4622 = vmatprep.subr.bf16.mxu0 0
    %4623 = vmatpush1.bf16.msra.mxu0 0
    %4624 = vmatprep.subr.bf16.mxu0 0
    %4625 = vmatpush1.bf16.msra.mxu0 0
    %4626 = vmatprep.subr.bf16.mxu0 0
    %4627 = vmatpush1.bf16.msra.mxu0 0
    %4628 = vmatprep.subr.bf16.mxu0 0
    %4629 = vmatpush1.bf16.msra.mxu0 0
    %4630 = vmatprep.subr.bf16.mxu0 0
    %4631 = vmatpush1.bf16.msra.mxu0 0
    %4632 = vmatprep.subr.bf16.mxu0 0
    %4633 = vmatpush1.bf16.msra.mxu0 0
    %4634 = vmatprep.subr.bf16.mxu0 0
    %4635 = vmatpush1.bf16.msra.mxu0 0
    %4636 = vmatprep.subr.bf16.mxu0 0
    %4637 = vmatpush1.bf16.msra.mxu0 0
    %4638 = vmatprep.subr.bf16.mxu0 0
    %4639 = vmatpush1.bf16.msra.mxu0 0
    %4640 = vmatprep.subr.bf16.mxu0 0
    %4641 = vmatpush1.bf16.msra.mxu0 0
    %4642 = vmatprep.mubr.bf16.mxu0 0
    %4643 = vmatmul.mubr.bf16.gmra.mrb[0].mxu0 %v4608
    %v4644 = vpop.f32.mrb[0].mxu0
    %v4645 = vadd.f32 0.0, %v4644
    %v4646 = vpop.f32.mrb[0].mxu0
    %v4647 = vpop.f32.mrb[0].mxu0
    %v4648 = vadd.f32 0.0, %v4647
    %v4649 = vpop.f32.mrb[0].mxu0
    %4650 = vdwg.mxu0
    %v4651 = vpack.c.bf16 %v4648, %v4645
    %s4652 = scalar_lea.vmem [#allocation29], 128
    %v4653 = vld [vmem:[%s4652] sm:$0xff]
    %v4654 = vld [vmem:[%s4652 + $0x8] sm:$0xff]
    %v4655 = vld [vmem:[%s4652 + $0x10] sm:$0xff]
    %v4656 = vld [vmem:[%s4652 + $0x18] sm:$0xff]
    %v4657 = vld [vmem:[%s4652 + $0x20] sm:$0xff]
    %v4658 = vld [vmem:[%s4652 + $0x28] sm:$0xff]
    %v4659 = vld [vmem:[%s4652 + $0x30] sm:$0xff]
    %v4660 = vld [vmem:[%s4652 + $0x38] sm:$0xff]
    %v4661 = vld [vmem:[%s4652 + $0x40] sm:$0xff]
    %v4662 = vld [vmem:[%s4652 + $0x48] sm:$0xff]
    %v4663 = vld [vmem:[%s4652 + $0x50] sm:$0xff]
    %v4664 = vld [vmem:[%s4652 + $0x58] sm:$0xff]
    %v4665 = vld [vmem:[%s4652 + $0x60] sm:$0xff]
    %v4666 = vld [vmem:[%s4652 + $0x68] sm:$0xff]
    %v4667 = vld [vmem:[%s4652 + $0x70] sm:$0xff]
    %v4668 = vld [vmem:[%s4652 + $0x78] sm:$0xff]
    %v4685 = vunpack.c.l.b16 %v4653
    %v4686 = vunpack.c.h.b16 %v4653
    %v4687 = vunpack.c.l.b16 %v4654
    %v4688 = vunpack.c.h.b16 %v4654
    %v4689 = vunpack.c.l.b16 %v4655
    %v4690 = vunpack.c.h.b16 %v4655
    %v4691 = vunpack.c.l.b16 %v4656
    %v4692 = vunpack.c.h.b16 %v4656
    %v4693 = vunpack.c.l.b16 %v4657
    %v4694 = vunpack.c.h.b16 %v4657
    %v4695 = vunpack.c.l.b16 %v4658
    %v4696 = vunpack.c.h.b16 %v4658
    %v4697 = vunpack.c.l.b16 %v4659
    %v4698 = vunpack.c.h.b16 %v4659
    %v4699 = vunpack.c.l.b16 %v4660
    %v4700 = vunpack.c.h.b16 %v4660
    %v4701 = vunpack.c.l.b16 %v4661
    %v4702 = vunpack.c.h.b16 %v4661
    %v4703 = vunpack.c.l.b16 %v4662
    %v4704 = vunpack.c.h.b16 %v4662
    %v4705 = vunpack.c.l.b16 %v4663
    %v4706 = vunpack.c.h.b16 %v4663
    %v4707 = vunpack.c.l.b16 %v4664
    %v4708 = vunpack.c.h.b16 %v4664
    %v4709 = vunpack.c.l.b16 %v4665
    %v4710 = vunpack.c.h.b16 %v4665
    %v4711 = vunpack.c.l.b16 %v4666
    %v4712 = vunpack.c.h.b16 %v4666
    %v4713 = vunpack.c.l.b16 %v4667
    %v4714 = vunpack.c.h.b16 %v4667
    %v4715 = vunpack.c.l.b16 %v4668
    %v4716 = vunpack.c.h.b16 %v4668
    %v4717 = vpack.c.b16 %v4687, %v4685
    %v4718 = vpack.c.b16 %v4688, %v4686
    %v4719 = vpack.c.b16 %v4691, %v4689
    %v4720 = vpack.c.b16 %v4692, %v4690
    %v4721 = vpack.c.b16 %v4695, %v4693
    %v4722 = vpack.c.b16 %v4696, %v4694
    %v4723 = vpack.c.b16 %v4699, %v4697
    %v4724 = vpack.c.b16 %v4700, %v4698
    %v4725 = vpack.c.b16 %v4703, %v4701
    %v4726 = vpack.c.b16 %v4704, %v4702
    %v4727 = vpack.c.b16 %v4707, %v4705
    %v4728 = vpack.c.b16 %v4708, %v4706
    %v4729 = vpack.c.b16 %v4711, %v4709
    %v4730 = vpack.c.b16 %v4712, %v4710
    %v4731 = vpack.c.b16 %v4715, %v4713
    %v4732 = vpack.c.b16 %v4716, %v4714
    %4749 = vmatprep.subr.bf16.mxu0 %v4718
    %4750 = vmatpush1.bf16.msra.mxu0 %v4717
    %4751 = vmatprep.subr.bf16.mxu0 %v4720
    %4752 = vmatpush1.bf16.msra.mxu0 %v4719
    %4753 = vmatprep.subr.bf16.mxu0 %v4722
    %4754 = vmatpush1.bf16.msra.mxu0 %v4721
    %4755 = vmatprep.subr.bf16.mxu0 %v4724
    %4756 = vmatpush1.bf16.msra.mxu0 %v4723
    %4757 = vmatprep.subr.bf16.mxu0 %v4726
    %4758 = vmatpush1.bf16.msra.mxu0 %v4725
    %4759 = vmatprep.subr.bf16.mxu0 %v4728
    %4760 = vmatpush1.bf16.msra.mxu0 %v4727
    %4761 = vmatprep.subr.bf16.mxu0 %v4730
    %4762 = vmatpush1.bf16.msra.mxu0 %v4729
    %4763 = vmatprep.subr.bf16.mxu0 %v4732
    %4764 = vmatpush1.bf16.msra.mxu0 %v4731
    %4765 = vmatprep.subr.bf16.mxu0 0
    %4766 = vmatpush1.bf16.msra.mxu0 0
    %4767 = vmatprep.subr.bf16.mxu0 0
    %4768 = vmatpush1.bf16.msra.mxu0 0
    %4769 = vmatprep.subr.bf16.mxu0 0
    %4770 = vmatpush1.bf16.msra.mxu0 0
    %4771 = vmatprep.subr.bf16.mxu0 0
    %4772 = vmatpush1.bf16.msra.mxu0 0
    %4773 = vmatprep.subr.bf16.mxu0 0
    %4774 = vmatpush1.bf16.msra.mxu0 0
    %4775 = vmatprep.subr.bf16.mxu0 0
    %4776 = vmatpush1.bf16.msra.mxu0 0
    %4777 = vmatprep.subr.bf16.mxu0 0
    %4778 = vmatpush1.bf16.msra.mxu0 0
    %4779 = vmatprep.subr.bf16.mxu0 0
    %4780 = vmatpush1.bf16.msra.mxu0 0
    %4781 = vmatprep.mubr.bf16.mxu0 0
    %4782 = vmatmul.mubr.bf16.gmra.mrb[0].mxu0 %v4651
    %v4783 = vpop.f32.mrb[0].mxu0
    %v4784 = vadd.f32 0.0, %v4783
    %v4785 = vpop.f32.mrb[0].mxu0
    %v4786 = vadd.f32 0.0, %v4785
    %v4787 = vpop.f32.mrb[0].mxu0
    %v4788 = vadd.f32 0.0, %v4787
    %v4789 = vpop.f32.mrb[0].mxu0
    %v4790 = vadd.f32 0.0, %v4789
    %4791 = vdwg.mxu0
    %v4808 = vunpack.c.l.b16 %v4583
    %v4809 = vunpack.c.h.b16 %v4583
    %v4810 = vunpack.c.l.b16 %v4584
    %v4811 = vunpack.c.h.b16 %v4584
    %v4812 = vunpack.c.l.b16 %v4585
    %v4813 = vunpack.c.h.b16 %v4585
    %v4814 = vunpack.c.l.b16 %v4586
    %v4815 = vunpack.c.h.b16 %v4586
    %v4816 = vunpack.c.l.b16 %v4587
    %v4817 = vunpack.c.h.b16 %v4587
    %v4818 = vunpack.c.l.b16 %v4588
    %v4819 = vunpack.c.h.b16 %v4588
    %v4820 = vunpack.c.l.b16 %v4589
    %v4821 = vunpack.c.h.b16 %v4589
    %v4822 = vunpack.c.l.b16 %v4590
    %v4823 = vunpack.c.h.b16 %v4590
    %v4824 = vunpack.c.l.b16 %v4591
    %v4825 = vunpack.c.h.b16 %v4591
    %v4826 = vunpack.c.l.b16 %v4592
    %v4827 = vunpack.c.h.b16 %v4592
    %v4828 = vunpack.c.l.b16 %v4593
    %v4829 = vunpack.c.h.b16 %v4593
    %v4830 = vunpack.c.l.b16 %v4594
    %v4831 = vunpack.c.h.b16 %v4594
    %v4832 = vunpack.c.l.b16 %v4595
    %v4833 = vunpack.c.h.b16 %v4595
    %v4834 = vunpack.c.l.b16 %v4596
    %v4835 = vunpack.c.h.b16 %v4596
    %v4836 = vunpack.c.l.b16 %v4597
    %v4837 = vunpack.c.h.b16 %v4597
    %v4838 = vunpack.c.l.b16 %v4598
    %v4839 = vunpack.c.h.b16 %v4598
    %v4840 = vpack.c.b16 %v4810, %v4808
    %v4841 = vpack.c.b16 %v4811, %v4809
    %v4842 = vpack.c.b16 %v4814, %v4812
    %v4843 = vpack.c.b16 %v4815, %v4813
    %v4844 = vpack.c.b16 %v4818, %v4816
    %v4845 = vpack.c.b16 %v4819, %v4817
    %v4846 = vpack.c.b16 %v4822, %v4820
    %v4847 = vpack.c.b16 %v4823, %v4821
    %v4848 = vpack.c.b16 %v4826, %v4824
    %v4849 = vpack.c.b16 %v4827, %v4825
    %v4850 = vpack.c.b16 %v4830, %v4828
    %v4851 = vpack.c.b16 %v4831, %v4829
    %v4852 = vpack.c.b16 %v4834, %v4832
    %v4853 = vpack.c.b16 %v4835, %v4833
    %v4854 = vpack.c.b16 %v4838, %v4836
    %v4855 = vpack.c.b16 %v4839, %v4837
    %4872 = vmatprep.subr.bf16.mxu0 %v4841
    %4873 = vmatpush1.bf16.msra.mxu0 %v4840
    %4874 = vmatprep.subr.bf16.mxu0 %v4843
    %4875 = vmatpush1.bf16.msra.mxu0 %v4842
    %4876 = vmatprep.subr.bf16.mxu0 %v4845
    %4877 = vmatpush1.bf16.msra.mxu0 %v4844
    %4878 = vmatprep.subr.bf16.mxu0 %v4847
    %4879 = vmatpush1.bf16.msra.mxu0 %v4846
    %4880 = vmatprep.subr.bf16.mxu0 %v4849
    %4881 = vmatpush1.bf16.msra.mxu0 %v4848
    %4882 = vmatprep.subr.bf16.mxu0 %v4851
    %4883 = vmatpush1.bf16.msra.mxu0 %v4850
    %4884 = vmatprep.subr.bf16.mxu0 %v4853
    %4885 = vmatpush1.bf16.msra.mxu0 %v4852
    %4886 = vmatprep.subr.bf16.mxu0 %v4855
    %4887 = vmatpush1.bf16.msra.mxu0 %v4854
    %4888 = vmatprep.subr.bf16.mxu0 0
    %4889 = vmatpush1.bf16.msra.mxu0 0
    %4890 = vmatprep.subr.bf16.mxu0 0
    %4891 = vmatpush1.bf16.msra.mxu0 0
    %4892 = vmatprep.subr.bf16.mxu0 0
    %4893 = vmatpush1.bf16.msra.mxu0 0
    %4894 = vmatprep.subr.bf16.mxu0 0
    %4895 = vmatpush1.bf16.msra.mxu0 0
    %4896 = vmatprep.subr.bf16.mxu0 0
    %4897 = vmatpush1.bf16.msra.mxu0 0
    %4898 = vmatprep.subr.bf16.mxu0 0
    %4899 = vmatpush1.bf16.msra.mxu0 0
    %4900 = vmatprep.subr.bf16.mxu0 0
    %4901 = vmatpush1.bf16.msra.mxu0 0
    %4902 = vmatprep.subr.bf16.mxu0 0
    %4903 = vmatpush1.bf16.msra.mxu0 0
    %4904 = vmatprep.mubr.bf16.mxu0 0
    %4905 = vmatmul.mubr.bf16.gmra.mrb[0].mxu0 %v4582
    %v4906 = vpop.f32.mrb[0].mxu0
    %v4907 = vadd.f32 %v4784, %v4906
    %v4908 = vpop.f32.mrb[0].mxu0
    %v4909 = vadd.f32 %v4786, %v4908
    %v4910 = vpop.f32.mrb[0].mxu0
    %v4911 = vadd.f32 %v4788, %v4910
    %v4912 = vpop.f32.mrb[0].mxu0
    %v4913 = vadd.f32 %v4790, %v4912
    %4914 = vdwg.mxu0
    %s4915 = scalar_lea.vmem [#allocation28], 16
    %v4916 = vld [vmem:[%s4915] sm:$0xf]
    %v4917 = vld [vmem:[%s4915 + $0x4] sm:$0xf]
    %v4920 = vunpack.c.l.b16 %v4916
    %v4921 = vunpack.c.l.b16 %v4917
    %v4922 = vpack.c.b16 %v4921, %v4920
    %v4924 = vsel %vm4537, %v4922, 0
    %4926 = vmatprep.subr.bf16.mxu0 0
    %4927 = vmatpush1.bf16.msra.mxu0 %v4529
    %4928 = vmatprep.subr.bf16.mxu0 0
    %4929 = vmatpush1.bf16.msra.mxu0 0
    %4930 = vmatprep.subr.bf16.mxu0 0
    %4931 = vmatpush1.bf16.msra.mxu0 0
    %4932 = vmatprep.subr.bf16.mxu0 0
    %4933 = vmatpush1.bf16.msra.mxu0 0
    %4934 = vmatprep.subr.bf16.mxu0 0
    %4935 = vmatpush1.bf16.msra.mxu0 0
    %4936 = vmatprep.subr.bf16.mxu0 0
    %4937 = vmatpush1.bf16.msra.mxu0 0
    %4938 = vmatprep.subr.bf16.mxu0 0
    %4939 = vmatpush1.bf16.msra.mxu0 0
    %4940 = vmatprep.subr.bf16.mxu0 0
    %4941 = vmatpush1.bf16.msra.mxu0 0
    %4942 = vmatprep.subr.bf16.mxu0 0
    %4943 = vmatpush1.bf16.msra.mxu0 0
    %4944 = vmatprep.subr.bf16.mxu0 0
    %4945 = vmatpush1.bf16.msra.mxu0 0
    %4946 = vmatprep.subr.bf16.mxu0 0
    %4947 = vmatpush1.bf16.msra.mxu0 0
    %4948 = vmatprep.subr.bf16.mxu0 0
    %4949 = vmatpush1.bf16.msra.mxu0 0
    %4950 = vmatprep.subr.bf16.mxu0 0
    %4951 = vmatpush1.bf16.msra.mxu0 0
    %4952 = vmatprep.subr.bf16.mxu0 0
    %4953 = vmatpush1.bf16.msra.mxu0 0
    %4954 = vmatprep.subr.bf16.mxu0 0
    %4955 = vmatpush1.bf16.msra.mxu0 0
    %4956 = vmatprep.subr.bf16.mxu0 0
    %4957 = vmatpush1.bf16.msra.mxu0 0
    %4958 = vmatprep.mubr.bf16.mxu0 0
    %4959 = vmatmul.mubr.bf16.gmra.mrb[0].mxu0 %v4924
    %v4960 = vpop.f32.mrb[0].mxu0
    %v4961 = vadd.f32 0.0, %v4960
    %v4962 = vpop.f32.mrb[0].mxu0
    %v4963 = vpop.f32.mrb[0].mxu0
    %v4964 = vadd.f32 0.0, %v4963
    %v4965 = vpop.f32.mrb[0].mxu0
    %4966 = vdwg.mxu0
    %v4967 = vpack.c.bf16 %v4964, %v4961
    %s4968 = scalar_lea.vmem [#allocation29], 256
    %v4969 = vld [vmem:[%s4968] sm:$0xff]
    %v4970 = vld [vmem:[%s4968 + $0x8] sm:$0xff]
    %v4971 = vld [vmem:[%s4968 + $0x10] sm:$0xff]
    %v4972 = vld [vmem:[%s4968 + $0x18] sm:$0xff]
    %v4973 = vld [vmem:[%s4968 + $0x20] sm:$0xff]
    %v4974 = vld [vmem:[%s4968 + $0x28] sm:$0xff]
    %v4975 = vld [vmem:[%s4968 + $0x30] sm:$0xff]
    %v4976 = vld [vmem:[%s4968 + $0x38] sm:$0xff]
    %v4977 = vld [vmem:[%s4968 + $0x40] sm:$0xff]
    %v4978 = vld [vmem:[%s4968 + $0x48] sm:$0xff]
    %v4979 = vld [vmem:[%s4968 + $0x50] sm:$0xff]
    %v4980 = vld [vmem:[%s4968 + $0x58] sm:$0xff]
    %v4981 = vld [vmem:[%s4968 + $0x60] sm:$0xff]
    %v4982 = vld [vmem:[%s4968 + $0x68] sm:$0xff]
    %v4983 = vld [vmem:[%s4968 + $0x70] sm:$0xff]
    %v4984 = vld [vmem:[%s4968 + $0x78] sm:$0xff]
    %v5001 = vunpack.c.l.b16 %v4969
    %v5002 = vunpack.c.h.b16 %v4969
    %v5003 = vunpack.c.l.b16 %v4970
    %v5004 = vunpack.c.h.b16 %v4970
    %v5005 = vunpack.c.l.b16 %v4971
    %v5006 = vunpack.c.h.b16 %v4971
    %v5007 = vunpack.c.l.b16 %v4972
    %v5008 = vunpack.c.h.b16 %v4972
    %v5009 = vunpack.c.l.b16 %v4973
    %v5010 = vunpack.c.h.b16 %v4973
    %v5011 = vunpack.c.l.b16 %v4974
    %v5012 = vunpack.c.h.b16 %v4974
    %v5013 = vunpack.c.l.b16 %v4975
    %v5014 = vunpack.c.h.b16 %v4975
    %v5015 = vunpack.c.l.b16 %v4976
    %v5016 = vunpack.c.h.b16 %v4976
    %v5017 = vunpack.c.l.b16 %v4977
    %v5018 = vunpack.c.h.b16 %v4977
    %v5019 = vunpack.c.l.b16 %v4978
    %v5020 = vunpack.c.h.b16 %v4978
    %v5021 = vunpack.c.l.b16 %v4979
    %v5022 = vunpack.c.h.b16 %v4979
    %v5023 = vunpack.c.l.b16 %v4980
    %v5024 = vunpack.c.h.b16 %v4980
    %v5025 = vunpack.c.l.b16 %v4981
    %v5026 = vunpack.c.h.b16 %v4981
    %v5027 = vunpack.c.l.b16 %v4982
    %v5028 = vunpack.c.h.b16 %v4982
    %v5029 = vunpack.c.l.b16 %v4983
    %v5030 = vunpack.c.h.b16 %v4983
    %v5031 = vunpack.c.l.b16 %v4984
    %v5032 = vunpack.c.h.b16 %v4984
    %v5033 = vpack.c.b16 %v5003, %v5001
    %v5034 = vpack.c.b16 %v5004, %v5002
    %v5035 = vpack.c.b16 %v5007, %v5005
    %v5036 = vpack.c.b16 %v5008, %v5006
    %v5037 = vpack.c.b16 %v5011, %v5009
    %v5038 = vpack.c.b16 %v5012, %v5010
    %v5039 = vpack.c.b16 %v5015, %v5013
    %v5040 = vpack.c.b16 %v5016, %v5014
    %v5041 = vpack.c.b16 %v5019, %v5017
    %v5042 = vpack.c.b16 %v5020, %v5018
    %v5043 = vpack.c.b16 %v5023, %v5021
    %v5044 = vpack.c.b16 %v5024, %v5022
    %v5045 = vpack.c.b16 %v5027, %v5025
    %v5046 = vpack.c.b16 %v5028, %v5026
    %v5047 = vpack.c.b16 %v5031, %v5029
    %v5048 = vpack.c.b16 %v5032, %v5030
    %5065 = vmatprep.subr.bf16.mxu0 %v5034
    %5066 = vmatpush1.bf16.msra.mxu0 %v5033
    %5067 = vmatprep.subr.bf16.mxu0 %v5036
    %5068 = vmatpush1.bf16.msra.mxu0 %v5035
    %5069 = vmatprep.subr.bf16.mxu0 %v5038
    %5070 = vmatpush1.bf16.msra.mxu0 %v5037
    %5071 = vmatprep.subr.bf16.mxu0 %v5040
    %5072 = vmatpush1.bf16.msra.mxu0 %v5039
    %5073 = vmatprep.subr.bf16.mxu0 %v5042
    %5074 = vmatpush1.bf16.msra.mxu0 %v5041
    %5075 = vmatprep.subr.bf16.mxu0 %v5044
    %5076 = vmatpush1.bf16.msra.mxu0 %v5043
    %5077 = vmatprep.subr.bf16.mxu0 %v5046
    %5078 = vmatpush1.bf16.msra.mxu0 %v5045
    %5079 = vmatprep.subr.bf16.mxu0 %v5048
    %5080 = vmatpush1.bf16.msra.mxu0 %v5047
    %5081 = vmatprep.subr.bf16.mxu0 0
    %5082 = vmatpush1.bf16.msra.mxu0 0
    %5083 = vmatprep.subr.bf16.mxu0 0
    %5084 = vmatpush1.bf16.msra.mxu0 0
    %5085 = vmatprep.subr.bf16.mxu0 0
    %5086 = vmatpush1.bf16.msra.mxu0 0
    %5087 = vmatprep.subr.bf16.mxu0 0
    %5088 = vmatpush1.bf16.msra.mxu0 0
    %5089 = vmatprep.subr.bf16.mxu0 0
    %5090 = vmatpush1.bf16.msra.mxu0 0
    %5091 = vmatprep.subr.bf16.mxu0 0
    %5092 = vmatpush1.bf16.msra.mxu0 0
    %5093 = vmatprep.subr.bf16.mxu0 0
    %5094 = vmatpush1.bf16.msra.mxu0 0
    %5095 = vmatprep.subr.bf16.mxu0 0
    %5096 = vmatpush1.bf16.msra.mxu0 0
    %5097 = vmatprep.mubr.bf16.mxu0 0
    %5098 = vmatmul.mubr.bf16.gmra.mrb[0].mxu0 %v4967
    %v5099 = vpop.f32.mrb[0].mxu0
    %v5100 = vadd.f32 0.0, %v5099
    %v5101 = vpop.f32.mrb[0].mxu0
    %v5102 = vadd.f32 0.0, %v5101
    %v5103 = vpop.f32.mrb[0].mxu0
    %v5104 = vadd.f32 0.0, %v5103
    %v5105 = vpop.f32.mrb[0].mxu0
    %v5106 = vadd.f32 0.0, %v5105
    %5107 = vdwg.mxu0
    %v5108 = vadd.f32 %v4907, %v5100
    %v5109 = vadd.f32 %v4909, %v5102
    %v5110 = vadd.f32 %v4911, %v5104
    %v5111 = vadd.f32 %v4913, %v5106
    %v5112 = vld [vmem:[#allocation31] sm:$0x3]
    %v5114 = vlaneseq
    %v5115 = vshrl.u32 %v5114, 7
    %v5116 = vsub.s32 0, %v5115
    %v5117 = vrot.slane %v5112, %v5116
    %v5118 = vlaneseq
    %v5119 = vshrl.u32 %v5118, 7
    %v5120 = vsub.s32 1, %v5119
    %v5121 = vrot.slane %v5112, %v5120
    %v5124 = vadd.f32 %v5108, %v5117
    %v5125 = vadd.f32 %v5109, %v5121
    %v5126 = vadd.f32 %v5110, %v5117
    %v5127 = vadd.f32 %v5111, %v5121
    %vm5128 = vcmp.ge.f32.partialorder %v5124, 0.0
    %vm5129 = vcmp.ge.f32.partialorder %v5125, 0.0
    %vm5130 = vcmp.ge.f32.partialorder %v5126, 0.0
    %vm5131 = vcmp.ge.f32.partialorder %v5127, 0.0
    %v5132 = vmul.f32 %v5124, 0.1
    %v5133 = vmul.f32 %v5125, 0.1
    %v5134 = vmul.f32 %v5126, 0.1
    %v5135 = vmul.f32 %v5127, 0.1
    %v5136 = vsel %vm5128, %v5124, %v5132
    %v5137 = vsel %vm5129, %v5125, %v5133
    %v5138 = vsel %vm5130, %v5126, %v5134
    %v5139 = vsel %vm5131, %v5127, %v5135
    %v5140 = vadd.f32 %v5136, %v4341
    %v5141 = vadd.f32 %v5137, %v4342
    %v5142 = vadd.f32 %v5138, %v4343
    %v5143 = vadd.f32 %v5139, %v4344
    %v5144 = vpack.c.bf16 %v5142, %v5140
    %v5145 = vpack.c.bf16 %v5143, %v5141
    %v5146 = vld [vmem:[#allocation32] sm:$0xf]
    %v5148 = vsel %vm4537, %v5146, 0
    %5150 = vmatprep.subr.bf16.mxu0 %v5145
    %5151 = vmatpush1.bf16.msra.mxu0 %v5144
    %5152 = vmatprep.subr.bf16.mxu0 0
    %5153 = vmatpush1.bf16.msra.mxu0 0
    %5154 = vmatprep.subr.bf16.mxu0 0
    %5155 = vmatpush1.bf16.msra.mxu0 0
    %5156 = vmatprep.subr.bf16.mxu0 0
    %5157 = vmatpush1.bf16.msra.mxu0 0
    %5158 = vmatprep.subr.bf16.mxu0 0
    %5159 = vmatpush1.bf16.msra.mxu0 0
    %5160 = vmatprep.subr.bf16.mxu0 0
    %5161 = vmatpush1.bf16.msra.mxu0 0
    %5162 = vmatprep.subr.bf16.mxu0 0
    %5163 = vmatpush1.bf16.msra.mxu0 0
    %5164 = vmatprep.subr.bf16.mxu0 0
    %5165 = vmatpush1.bf16.msra.mxu0 0
    %5166 = vmatprep.subr.bf16.mxu0 0
    %5167 = vmatpush1.bf16.msra.mxu0 0
    %5168 = vmatprep.subr.bf16.mxu0 0
    %5169 = vmatpush1.bf16.msra.mxu0 0
    %5170 = vmatprep.subr.bf16.mxu0 0
    %5171 = vmatpush1.bf16.msra.mxu0 0
    %5172 = vmatprep.subr.bf16.mxu0 0
    %5173 = vmatpush1.bf16.msra.mxu0 0
    %5174 = vmatprep.subr.bf16.mxu0 0
    %5175 = vmatpush1.bf16.msra.mxu0 0
    %5176 = vmatprep.subr.bf16.mxu0 0
    %5177 = vmatpush1.bf16.msra.mxu0 0
    %5178 = vmatprep.subr.bf16.mxu0 0
    %5179 = vmatpush1.bf16.msra.mxu0 0
    %5180 = vmatprep.subr.bf16.mxu0 0
    %5181 = vmatpush1.bf16.msra.mxu0 0
    %5182 = vmatprep.mubr.bf16.mxu0 0
    %5183 = vmatmul.mubr.bf16.gmra.mrb[0].mxu0 %v5148
    %v5184 = vpop.f32.mrb[0].mxu0
    %v5185 = vadd.f32 0.0, %v5184
    %v5186 = vpop.f32.mrb[0].mxu0
    %v5187 = vadd.f32 0.0, %v5186
    %v5188 = vpop.f32.mrb[0].mxu0
    %v5189 = vpop.f32.mrb[0].mxu0
    %5190 = vdwg.mxu0
    %v5191 = vpack.c.bf16 %v5185, %v5185
    %v5192 = vpack.c.bf16 %v5187, %v5187
    %v5193 = vld [vmem:[#allocation34] sm:$0xff]
    %v5194 = vld [vmem:[#allocation34 + $0x8] sm:$0xff]
    %v5195 = vld [vmem:[#allocation34 + $0x10] sm:$0xff]
    %v5196 = vld [vmem:[#allocation34 + $0x18] sm:$0xff]
    %v5197 = vld [vmem:[#allocation34 + $0x20] sm:$0xff]
    %v5198 = vld [vmem:[#allocation34 + $0x28] sm:$0xff]
    %v5199 = vld [vmem:[#allocation34 + $0x30] sm:$0xff]
    %v5200 = vld [vmem:[#allocation34 + $0x38] sm:$0xff]
    %v5201 = vld [vmem:[#allocation34 + $0x40] sm:$0xff]
    %v5202 = vld [vmem:[#allocation34 + $0x48] sm:$0xff]
    %v5203 = vld [vmem:[#allocation34 + $0x50] sm:$0xff]
    %v5204 = vld [vmem:[#allocation34 + $0x58] sm:$0xff]
    %v5205 = vld [vmem:[#allocation34 + $0x60] sm:$0xff]
    %v5206 = vld [vmem:[#allocation34 + $0x68] sm:$0xff]
    %v5207 = vld [vmem:[#allocation34 + $0x70] sm:$0xff]
    %v5208 = vld [vmem:[#allocation34 + $0x78] sm:$0xff]
    %v5209 = vld [vmem:[#allocation34 + $0x80] sm:$0xff]
    %v5210 = vld [vmem:[#allocation34 + $0x88] sm:$0xff]
    %v5211 = vld [vmem:[#allocation34 + $0x90] sm:$0xff]
    %v5212 = vld [vmem:[#allocation34 + $0x98] sm:$0xff]
    %v5213 = vld [vmem:[#allocation34 + $0xa0] sm:$0xff]
    %v5214 = vld [vmem:[#allocation34 + $0xa8] sm:$0xff]
    %v5215 = vld [vmem:[#allocation34 + $0xb0] sm:$0xff]
    %v5216 = vld [vmem:[#allocation34 + $0xb8] sm:$0xff]
    %v5217 = vld [vmem:[#allocation34 + $0xc0] sm:$0xff]
    %v5218 = vld [vmem:[#allocation34 + $0xc8] sm:$0xff]
    %v5219 = vld [vmem:[#allocation34 + $0xd0] sm:$0xff]
    %v5220 = vld [vmem:[#allocation34 + $0xd8] sm:$0xff]
    %v5221 = vld [vmem:[#allocation34 + $0xe0] sm:$0xff]
    %v5222 = vld [vmem:[#allocation34 + $0xe8] sm:$0xff]
    %v5223 = vld [vmem:[#allocation34 + $0xf0] sm:$0xff]
    %v5224 = vld [vmem:[#allocation34 + $0xf8] sm:$0xff]
    %s5225 = scalar_lea.vmem [#allocation32], 4
    %v5226 = vld [vmem:[%s5225] sm:$0xf]
    %v5228 = vsel %vm4537, %v5226, 0
    %5230 = vmatprep.subr.bf16.mxu0 %v5145
    %5231 = vmatpush1.bf16.msra.mxu0 %v5144
    %5232 = vmatprep.subr.bf16.mxu0 0
    %5233 = vmatpush1.bf16.msra.mxu0 0
    %5234 = vmatprep.subr.bf16.mxu0 0
    %5235 = vmatpush1.bf16.msra.mxu0 0
    %5236 = vmatprep.subr.bf16.mxu0 0
    %5237 = vmatpush1.bf16.msra.mxu0 0
    %5238 = vmatprep.subr.bf16.mxu0 0
    %5239 = vmatpush1.bf16.msra.mxu0 0
    %5240 = vmatprep.subr.bf16.mxu0 0
    %5241 = vmatpush1.bf16.msra.mxu0 0
    %5242 = vmatprep.subr.bf16.mxu0 0
    %5243 = vmatpush1.bf16.msra.mxu0 0
    %5244 = vmatprep.subr.bf16.mxu0 0
    %5245 = vmatpush1.bf16.msra.mxu0 0
    %5246 = vmatprep.subr.bf16.mxu0 0
    %5247 = vmatpush1.bf16.msra.mxu0 0
    %5248 = vmatprep.subr.bf16.mxu0 0
    %5249 = vmatpush1.bf16.msra.mxu0 0
    %5250 = vmatprep.subr.bf16.mxu0 0
    %5251 = vmatpush1.bf16.msra.mxu0 0
    %5252 = vmatprep.subr.bf16.mxu0 0
    %5253 = vmatpush1.bf16.msra.mxu0 0
    %5254 = vmatprep.subr.bf16.mxu0 0
    %5255 = vmatpush1.bf16.msra.mxu0 0
    %5256 = vmatprep.subr.bf16.mxu0 0
    %5257 = vmatpush1.bf16.msra.mxu0 0
    %5258 = vmatprep.subr.bf16.mxu0 0
    %5259 = vmatpush1.bf16.msra.mxu0 0
    %5260 = vmatprep.subr.bf16.mxu0 0
    %5261 = vmatpush1.bf16.msra.mxu0 0
    %5262 = vmatprep.mubr.bf16.mxu0 0
    %5263 = vmatmul.mubr.bf16.gmra.mrb[0].mxu0 %v5228
    %v5264 = vpop.f32.mrb[0].mxu0
    %v5265 = vadd.f32 0.0, %v5264
    %v5266 = vpop.f32.mrb[0].mxu0
    %v5267 = vadd.f32 0.0, %v5266
    %v5268 = vpop.f32.mrb[0].mxu0
    %v5269 = vpop.f32.mrb[0].mxu0
    %5270 = vdwg.mxu0
    %v5271 = vpack.c.bf16 %v5265, %v5265
    %v5272 = vpack.c.bf16 %v5267, %v5267
    %s5273 = scalar_lea.vmem [#allocation34], 256
    %v5274 = vld [vmem:[%s5273] sm:$0xff]
    %v5275 = vld [vmem:[%s5273 + $0x8] sm:$0xff]
    %v5276 = vld [vmem:[%s5273 + $0x10] sm:$0xff]
    %v5277 = vld [vmem:[%s5273 + $0x18] sm:$0xff]
    %v5278 = vld [vmem:[%s5273 + $0x20] sm:$0xff]
    %v5279 = vld [vmem:[%s5273 + $0x28] sm:$0xff]
    %v5280 = vld [vmem:[%s5273 + $0x30] sm:$0xff]
    %v5281 = vld [vmem:[%s5273 + $0x38] sm:$0xff]
    %v5282 = vld [vmem:[%s5273 + $0x40] sm:$0xff]
    %v5283 = vld [vmem:[%s5273 + $0x48] sm:$0xff]
    %v5284 = vld [vmem:[%s5273 + $0x50] sm:$0xff]
    %v5285 = vld [vmem:[%s5273 + $0x58] sm:$0xff]
    %v5286 = vld [vmem:[%s5273 + $0x60] sm:$0xff]
    %v5287 = vld [vmem:[%s5273 + $0x68] sm:$0xff]
    %v5288 = vld [vmem:[%s5273 + $0x70] sm:$0xff]
    %v5289 = vld [vmem:[%s5273 + $0x78] sm:$0xff]
    %v5290 = vld [vmem:[%s5273 + $0x80] sm:$0xff]
    %v5291 = vld [vmem:[%s5273 + $0x88] sm:$0xff]
    %v5292 = vld [vmem:[%s5273 + $0x90] sm:$0xff]
    %v5293 = vld [vmem:[%s5273 + $0x98] sm:$0xff]
    %v5294 = vld [vmem:[%s5273 + $0xa0] sm:$0xff]
    %v5295 = vld [vmem:[%s5273 + $0xa8] sm:$0xff]
    %v5296 = vld [vmem:[%s5273 + $0xb0] sm:$0xff]
    %v5297 = vld [vmem:[%s5273 + $0xb8] sm:$0xff]
    %v5298 = vld [vmem:[%s5273 + $0xc0] sm:$0xff]
    %v5299 = vld [vmem:[%s5273 + $0xc8] sm:$0xff]
    %v5300 = vld [vmem:[%s5273 + $0xd0] sm:$0xff]
    %v5301 = vld [vmem:[%s5273 + $0xd8] sm:$0xff]
    %v5302 = vld [vmem:[%s5273 + $0xe0] sm:$0xff]
    %v5303 = vld [vmem:[%s5273 + $0xe8] sm:$0xff]
    %v5304 = vld [vmem:[%s5273 + $0xf0] sm:$0xff]
    %v5305 = vld [vmem:[%s5273 + $0xf8] sm:$0xff]
    %v5338 = vunpack.c.l.b16 %v5274
    %v5339 = vunpack.c.h.b16 %v5274
    %v5340 = vunpack.c.l.b16 %v5275
    %v5341 = vunpack.c.h.b16 %v5275
    %v5342 = vunpack.c.l.b16 %v5276
    %v5343 = vunpack.c.h.b16 %v5276
    %v5344 = vunpack.c.l.b16 %v5277
    %v5345 = vunpack.c.h.b16 %v5277
    %v5346 = vunpack.c.l.b16 %v5278
    %v5347 = vunpack.c.h.b16 %v5278
    %v5348 = vunpack.c.l.b16 %v5279
    %v5349 = vunpack.c.h.b16 %v5279
    %v5350 = vunpack.c.l.b16 %v5280
    %v5351 = vunpack.c.h.b16 %v5280
    %v5352 = vunpack.c.l.b16 %v5281
    %v5353 = vunpack.c.h.b16 %v5281
    %v5354 = vunpack.c.l.b16 %v5282
    %v5355 = vunpack.c.h.b16 %v5282
    %v5356 = vunpack.c.l.b16 %v5283
    %v5357 = vunpack.c.h.b16 %v5283
    %v5358 = vunpack.c.l.b16 %v5284
    %v5359 = vunpack.c.h.b16 %v5284
    %v5360 = vunpack.c.l.b16 %v5285
    %v5361 = vunpack.c.h.b16 %v5285
    %v5362 = vunpack.c.l.b16 %v5286
    %v5363 = vunpack.c.h.b16 %v5286
    %v5364 = vunpack.c.l.b16 %v5287
    %v5365 = vunpack.c.h.b16 %v5287
    %v5366 = vunpack.c.l.b16 %v5288
    %v5367 = vunpack.c.h.b16 %v5288
    %v5368 = vunpack.c.l.b16 %v5289
    %v5369 = vunpack.c.h.b16 %v5289
    %v5370 = vunpack.c.l.b16 %v5290
    %v5371 = vunpack.c.h.b16 %v5290
    %v5372 = vunpack.c.l.b16 %v5291
    %v5373 = vunpack.c.h.b16 %v5291
    %v5374 = vunpack.c.l.b16 %v5292
    %v5375 = vunpack.c.h.b16 %v5292
    %v5376 = vunpack.c.l.b16 %v5293
    %v5377 = vunpack.c.h.b16 %v5293
    %v5378 = vunpack.c.l.b16 %v5294
    %v5379 = vunpack.c.h.b16 %v5294
    %v5380 = vunpack.c.l.b16 %v5295
    %v5381 = vunpack.c.h.b16 %v5295
    %v5382 = vunpack.c.l.b16 %v5296
    %v5383 = vunpack.c.h.b16 %v5296
    %v5384 = vunpack.c.l.b16 %v5297
    %v5385 = vunpack.c.h.b16 %v5297
    %v5386 = vunpack.c.l.b16 %v5298
    %v5387 = vunpack.c.h.b16 %v5298
    %v5388 = vunpack.c.l.b16 %v5299
    %v5389 = vunpack.c.h.b16 %v5299
    %v5390 = vunpack.c.l.b16 %v5300
    %v5391 = vunpack.c.h.b16 %v5300
    %v5392 = vunpack.c.l.b16 %v5301
    %v5393 = vunpack.c.h.b16 %v5301
    %v5394 = vunpack.c.l.b16 %v5302
    %v5395 = vunpack.c.h.b16 %v5302
    %v5396 = vunpack.c.l.b16 %v5303
    %v5397 = vunpack.c.h.b16 %v5303
    %v5398 = vunpack.c.l.b16 %v5304
    %v5399 = vunpack.c.h.b16 %v5304
    %v5400 = vunpack.c.l.b16 %v5305
    %v5401 = vunpack.c.h.b16 %v5305
    %v5402 = vpack.c.b16 %v5340, %v5338
    %v5403 = vpack.c.b16 %v5341, %v5339
    %v5404 = vpack.c.b16 %v5344, %v5342
    %v5405 = vpack.c.b16 %v5345, %v5343
    %v5406 = vpack.c.b16 %v5348, %v5346
    %v5407 = vpack.c.b16 %v5349, %v5347
    %v5408 = vpack.c.b16 %v5352, %v5350
    %v5409 = vpack.c.b16 %v5353, %v5351
    %v5410 = vpack.c.b16 %v5356, %v5354
    %v5411 = vpack.c.b16 %v5357, %v5355
    %v5412 = vpack.c.b16 %v5360, %v5358
    %v5413 = vpack.c.b16 %v5361, %v5359
    %v5414 = vpack.c.b16 %v5364, %v5362
    %v5415 = vpack.c.b16 %v5365, %v5363
    %v5416 = vpack.c.b16 %v5368, %v5366
    %v5417 = vpack.c.b16 %v5369, %v5367
    %v5418 = vpack.c.b16 %v5372, %v5370
    %v5419 = vpack.c.b16 %v5373, %v5371
    %v5420 = vpack.c.b16 %v5376, %v5374
    %v5421 = vpack.c.b16 %v5377, %v5375
    %v5422 = vpack.c.b16 %v5380, %v5378
    %v5423 = vpack.c.b16 %v5381, %v5379
    %v5424 = vpack.c.b16 %v5384, %v5382
    %v5425 = vpack.c.b16 %v5385, %v5383
    %v5426 = vpack.c.b16 %v5388, %v5386
    %v5427 = vpack.c.b16 %v5389, %v5387
    %v5428 = vpack.c.b16 %v5392, %v5390
    %v5429 = vpack.c.b16 %v5393, %v5391
    %v5430 = vpack.c.b16 %v5396, %v5394
    %v5431 = vpack.c.b16 %v5397, %v5395
    %v5432 = vpack.c.b16 %v5400, %v5398
    %v5433 = vpack.c.b16 %v5401, %v5399
    %5466 = vmatprep.subr.bf16.mxu0 %v5403
    %5467 = vmatpush1.bf16.msra.mxu0 %v5402
    %5468 = vmatprep.subr.bf16.mxu0 %v5405
    %5469 = vmatpush1.bf16.msra.mxu0 %v5404
    %5470 = vmatprep.subr.bf16.mxu0 %v5407
    %5471 = vmatpush1.bf16.msra.mxu0 %v5406
    %5472 = vmatprep.subr.bf16.mxu0 %v5409
    %5473 = vmatpush1.bf16.msra.mxu0 %v5408
    %5474 = vmatprep.subr.bf16.mxu0 %v5411
    %5475 = vmatpush1.bf16.msra.mxu0 %v5410
    %5476 = vmatprep.subr.bf16.mxu0 %v5413
    %5477 = vmatpush1.bf16.msra.mxu0 %v5412
    %5478 = vmatprep.subr.bf16.mxu0 %v5415
    %5479 = vmatpush1.bf16.msra.mxu0 %v5414
    %5480 = vmatprep.subr.bf16.mxu0 %v5417
    %5481 = vmatpush1.bf16.msra.mxu0 %v5416
    %5482 = vmatprep.subr.bf16.mxu0 %v5419
    %5483 = vmatpush1.bf16.msra.mxu0 %v5418
    %5484 = vmatprep.subr.bf16.mxu0 %v5421
    %5485 = vmatpush1.bf16.msra.mxu0 %v5420
    %5486 = vmatprep.subr.bf16.mxu0 %v5423
    %5487 = vmatpush1.bf16.msra.mxu0 %v5422
    %5488 = vmatprep.subr.bf16.mxu0 %v5425
    %5489 = vmatpush1.bf16.msra.mxu0 %v5424
    %5490 = vmatprep.subr.bf16.mxu0 %v5427
    %5491 = vmatpush1.bf16.msra.mxu0 %v5426
    %5492 = vmatprep.subr.bf16.mxu0 %v5429
    %5493 = vmatpush1.bf16.msra.mxu0 %v5428
    %5494 = vmatprep.subr.bf16.mxu0 %v5431
    %5495 = vmatpush1.bf16.msra.mxu0 %v5430
    %5496 = vmatprep.subr.bf16.mxu0 %v5433
    %5497 = vmatpush1.bf16.msra.mxu0 %v5432
    %5498 = vmatprep.mubr.bf16.mxu0 %v5272
    %5499 = vmatmul.mubr.bf16.gmra.mrb[0].mxu0 %v5271
    %v5500 = vpop.f32.mrb[0].mxu0
    %v5501 = vadd.f32 0.0, %v5500
    %v5502 = vpop.f32.mrb[0].mxu0
    %v5503 = vadd.f32 0.0, %v5502
    %v5504 = vpop.f32.mrb[0].mxu0
    %v5505 = vpop.f32.mrb[0].mxu0
    %5506 = vdwg.mxu0
    %v5539 = vunpack.c.l.b16 %v5193
    %v5540 = vunpack.c.h.b16 %v5193
    %v5541 = vunpack.c.l.b16 %v5194
    %v5542 = vunpack.c.h.b16 %v5194
    %v5543 = vunpack.c.l.b16 %v5195
    %v5544 = vunpack.c.h.b16 %v5195
    %v5545 = vunpack.c.l.b16 %v5196
    %v5546 = vunpack.c.h.b16 %v5196
    %v5547 = vunpack.c.l.b16 %v5197
    %v5548 = vunpack.c.h.b16 %v5197
    %v5549 = vunpack.c.l.b16 %v5198
    %v5550 = vunpack.c.h.b16 %v5198
    %v5551 = vunpack.c.l.b16 %v5199
    %v5552 = vunpack.c.h.b16 %v5199
    %v5553 = vunpack.c.l.b16 %v5200
    %v5554 = vunpack.c.h.b16 %v5200
    %v5555 = vunpack.c.l.b16 %v5201
    %v5556 = vunpack.c.h.b16 %v5201
    %v5557 = vunpack.c.l.b16 %v5202
    %v5558 = vunpack.c.h.b16 %v5202
    %v5559 = vunpack.c.l.b16 %v5203
    %v5560 = vunpack.c.h.b16 %v5203
    %v5561 = vunpack.c.l.b16 %v5204
    %v5562 = vunpack.c.h.b16 %v5204
    %v5563 = vunpack.c.l.b16 %v5205
    %v5564 = vunpack.c.h.b16 %v5205
    %v5565 = vunpack.c.l.b16 %v5206
    %v5566 = vunpack.c.h.b16 %v5206
    %v5567 = vunpack.c.l.b16 %v5207
    %v5568 = vunpack.c.h.b16 %v5207
    %v5569 = vunpack.c.l.b16 %v5208
    %v5570 = vunpack.c.h.b16 %v5208
    %v5571 = vunpack.c.l.b16 %v5209
    %v5572 = vunpack.c.h.b16 %v5209
    %v5573 = vunpack.c.l.b16 %v5210
    %v5574 = vunpack.c.h.b16 %v5210
    %v5575 = vunpack.c.l.b16 %v5211
    %v5576 = vunpack.c.h.b16 %v5211
    %v5577 = vunpack.c.l.b16 %v5212
    %v5578 = vunpack.c.h.b16 %v5212
    %v5579 = vunpack.c.l.b16 %v5213
    %v5580 = vunpack.c.h.b16 %v5213
    %v5581 = vunpack.c.l.b16 %v5214
    %v5582 = vunpack.c.h.b16 %v5214
    %v5583 = vunpack.c.l.b16 %v5215
    %v5584 = vunpack.c.h.b16 %v5215
    %v5585 = vunpack.c.l.b16 %v5216
    %v5586 = vunpack.c.h.b16 %v5216
    %v5587 = vunpack.c.l.b16 %v5217
    %v5588 = vunpack.c.h.b16 %v5217
    %v5589 = vunpack.c.l.b16 %v5218
    %v5590 = vunpack.c.h.b16 %v5218
    %v5591 = vunpack.c.l.b16 %v5219
    %v5592 = vunpack.c.h.b16 %v5219
    %v5593 = vunpack.c.l.b16 %v5220
    %v5594 = vunpack.c.h.b16 %v5220
    %v5595 = vunpack.c.l.b16 %v5221
    %v5596 = vunpack.c.h.b16 %v5221
    %v5597 = vunpack.c.l.b16 %v5222
    %v5598 = vunpack.c.h.b16 %v5222
    %v5599 = vunpack.c.l.b16 %v5223
    %v5600 = vunpack.c.h.b16 %v5223
    %v5601 = vunpack.c.l.b16 %v5224
    %v5602 = vunpack.c.h.b16 %v5224
    %v5603 = vpack.c.b16 %v5541, %v5539
    %v5604 = vpack.c.b16 %v5542, %v5540
    %v5605 = vpack.c.b16 %v5545, %v5543
    %v5606 = vpack.c.b16 %v5546, %v5544
    %v5607 = vpack.c.b16 %v5549, %v5547
    %v5608 = vpack.c.b16 %v5550, %v5548
    %v5609 = vpack.c.b16 %v5553, %v5551
    %v5610 = vpack.c.b16 %v5554, %v5552
    %v5611 = vpack.c.b16 %v5557, %v5555
    %v5612 = vpack.c.b16 %v5558, %v5556
    %v5613 = vpack.c.b16 %v5561, %v5559
    %v5614 = vpack.c.b16 %v5562, %v5560
    %v5615 = vpack.c.b16 %v5565, %v5563
    %v5616 = vpack.c.b16 %v5566, %v5564
    %v5617 = vpack.c.b16 %v5569, %v5567
    %v5618 = vpack.c.b16 %v5570, %v5568
    %v5619 = vpack.c.b16 %v5573, %v5571
    %v5620 = vpack.c.b16 %v5574, %v5572
    %v5621 = vpack.c.b16 %v5577, %v5575
    %v5622 = vpack.c.b16 %v5578, %v5576
    %v5623 = vpack.c.b16 %v5581, %v5579
    %v5624 = vpack.c.b16 %v5582, %v5580
    %v5625 = vpack.c.b16 %v5585, %v5583
    %v5626 = vpack.c.b16 %v5586, %v5584
    %v5627 = vpack.c.b16 %v5589, %v5587
    %v5628 = vpack.c.b16 %v5590, %v5588
    %v5629 = vpack.c.b16 %v5593, %v5591
    %v5630 = vpack.c.b16 %v5594, %v5592
    %v5631 = vpack.c.b16 %v5597, %v5595
    %v5632 = vpack.c.b16 %v5598, %v5596
    %v5633 = vpack.c.b16 %v5601, %v5599
    %v5634 = vpack.c.b16 %v5602, %v5600
    %5667 = vmatprep.subr.bf16.mxu0 %v5604
    %5668 = vmatpush1.bf16.msra.mxu0 %v5603
    %5669 = vmatprep.subr.bf16.mxu0 %v5606
    %5670 = vmatpush1.bf16.msra.mxu0 %v5605
    %5671 = vmatprep.subr.bf16.mxu0 %v5608
    %5672 = vmatpush1.bf16.msra.mxu0 %v5607
    %5673 = vmatprep.subr.bf16.mxu0 %v5610
    %5674 = vmatpush1.bf16.msra.mxu0 %v5609
    %5675 = vmatprep.subr.bf16.mxu0 %v5612
    %5676 = vmatpush1.bf16.msra.mxu0 %v5611
    %5677 = vmatprep.subr.bf16.mxu0 %v5614
    %5678 = vmatpush1.bf16.msra.mxu0 %v5613
    %5679 = vmatprep.subr.bf16.mxu0 %v5616
    %5680 = vmatpush1.bf16.msra.mxu0 %v5615
    %5681 = vmatprep.subr.bf16.mxu0 %v5618
    %5682 = vmatpush1.bf16.msra.mxu0 %v5617
    %5683 = vmatprep.subr.bf16.mxu0 %v5620
    %5684 = vmatpush1.bf16.msra.mxu0 %v5619
    %5685 = vmatprep.subr.bf16.mxu0 %v5622
    %5686 = vmatpush1.bf16.msra.mxu0 %v5621
    %5687 = vmatprep.subr.bf16.mxu0 %v5624
    %5688 = vmatpush1.bf16.msra.mxu0 %v5623
    %5689 = vmatprep.subr.bf16.mxu0 %v5626
    %5690 = vmatpush1.bf16.msra.mxu0 %v5625
    %5691 = vmatprep.subr.bf16.mxu0 %v5628
    %5692 = vmatpush1.bf16.msra.mxu0 %v5627
    %5693 = vmatprep.subr.bf16.mxu0 %v5630
    %5694 = vmatpush1.bf16.msra.mxu0 %v5629
    %5695 = vmatprep.subr.bf16.mxu0 %v5632
    %5696 = vmatpush1.bf16.msra.mxu0 %v5631
    %5697 = vmatprep.subr.bf16.mxu0 %v5634
    %5698 = vmatpush1.bf16.msra.mxu0 %v5633
    %5699 = vmatprep.mubr.bf16.mxu0 %v5192
    %5700 = vmatmul.mubr.bf16.gmra.mrb[0].mxu0 %v5191
    %v5701 = vpop.f32.mrb[0].mxu0
    %v5702 = vadd.f32 %v5501, %v5701
    %v5703 = vpop.f32.mrb[0].mxu0
    %v5704 = vadd.f32 %v5503, %v5703
    %v5705 = vpop.f32.mrb[0].mxu0
    %v5706 = vpop.f32.mrb[0].mxu0
    %5707 = vdwg.mxu0
    %s5708 = scalar_lea.vmem [#allocation32], 8
    %v5709 = vld [vmem:[%s5708] sm:$0xf]
    %v5711 = vsel %vm4537, %v5709, 0
    %5713 = vmatprep.subr.bf16.mxu0 %v5145
    %5714 = vmatpush1.bf16.msra.mxu0 %v5144
    %5715 = vmatprep.subr.bf16.mxu0 0
    %5716 = vmatpush1.bf16.msra.mxu0 0
    %5717 = vmatprep.subr.bf16.mxu0 0
    %5718 = vmatpush1.bf16.msra.mxu0 0
    %5719 = vmatprep.subr.bf16.mxu0 0
    %5720 = vmatpush1.bf16.msra.mxu0 0
    %5721 = vmatprep.subr.bf16.mxu0 0
    %5722 = vmatpush1.bf16.msra.mxu0 0
    %5723 = vmatprep.subr.bf16.mxu0 0
    %5724 = vmatpush1.bf16.msra.mxu0 0
    %5725 = vmatprep.subr.bf16.mxu0 0
    %5726 = vmatpush1.bf16.msra.mxu0 0
    %5727 = vmatprep.subr.bf16.mxu0 0
    %5728 = vmatpush1.bf16.msra.mxu0 0
    %5729 = vmatprep.subr.bf16.mxu0 0
    %5730 = vmatpush1.bf16.msra.mxu0 0
    %5731 = vmatprep.subr.bf16.mxu0 0
    %5732 = vmatpush1.bf16.msra.mxu0 0
    %5733 = vmatprep.subr.bf16.mxu0 0
    %5734 = vmatpush1.bf16.msra.mxu0 0
    %5735 = vmatprep.subr.bf16.mxu0 0
    %5736 = vmatpush1.bf16.msra.mxu0 0
    %5737 = vmatprep.subr.bf16.mxu0 0
    %5738 = vmatpush1.bf16.msra.mxu0 0
    %5739 = vmatprep.subr.bf16.mxu0 0
    %5740 = vmatpush1.bf16.msra.mxu0 0
    %5741 = vmatprep.subr.bf16.mxu0 0
    %5742 = vmatpush1.bf16.msra.mxu0 0
    %5743 = vmatprep.subr.bf16.mxu0 0
    %5744 = vmatpush1.bf16.msra.mxu0 0
    %5745 = vmatprep.mubr.bf16.mxu0 0
    %5746 = vmatmul.mubr.bf16.gmra.mrb[0].mxu0 %v5711
    %v5747 = vpop.f32.mrb[0].mxu0
    %v5748 = vadd.f32 0.0, %v5747
    %v5749 = vpop.f32.mrb[0].mxu0
    %v5750 = vadd.f32 0.0, %v5749
    %v5751 = vpop.f32.mrb[0].mxu0
    %v5752 = vpop.f32.mrb[0].mxu0
    %5753 = vdwg.mxu0
    %v5754 = vpack.c.bf16 %v5748, %v5748
    %v5755 = vpack.c.bf16 %v5750, %v5750
    %s5756 = scalar_lea.vmem [#allocation34], 512
    %v5757 = vld [vmem:[%s5756] sm:$0xff]
    %v5758 = vld [vmem:[%s5756 + $0x8] sm:$0xff]
    %v5759 = vld [vmem:[%s5756 + $0x10] sm:$0xff]
    %v5760 = vld [vmem:[%s5756 + $0x18] sm:$0xff]
    %v5761 = vld [vmem:[%s5756 + $0x20] sm:$0xff]
    %v5762 = vld [vmem:[%s5756 + $0x28] sm:$0xff]
    %v5763 = vld [vmem:[%s5756 + $0x30] sm:$0xff]
    %v5764 = vld [vmem:[%s5756 + $0x38] sm:$0xff]
    %v5765 = vld [vmem:[%s5756 + $0x40] sm:$0xff]
    %v5766 = vld [vmem:[%s5756 + $0x48] sm:$0xff]
    %v5767 = vld [vmem:[%s5756 + $0x50] sm:$0xff]
    %v5768 = vld [vmem:[%s5756 + $0x58] sm:$0xff]
    %v5769 = vld [vmem:[%s5756 + $0x60] sm:$0xff]
    %v5770 = vld [vmem:[%s5756 + $0x68] sm:$0xff]
    %v5771 = vld [vmem:[%s5756 + $0x70] sm:$0xff]
    %v5772 = vld [vmem:[%s5756 + $0x78] sm:$0xff]
    %v5773 = vld [vmem:[%s5756 + $0x80] sm:$0xff]
    %v5774 = vld [vmem:[%s5756 + $0x88] sm:$0xff]
    %v5775 = vld [vmem:[%s5756 + $0x90] sm:$0xff]
    %v5776 = vld [vmem:[%s5756 + $0x98] sm:$0xff]
    %v5777 = vld [vmem:[%s5756 + $0xa0] sm:$0xff]
    %v5778 = vld [vmem:[%s5756 + $0xa8] sm:$0xff]
    %v5779 = vld [vmem:[%s5756 + $0xb0] sm:$0xff]
    %v5780 = vld [vmem:[%s5756 + $0xb8] sm:$0xff]
    %v5781 = vld [vmem:[%s5756 + $0xc0] sm:$0xff]
    %v5782 = vld [vmem:[%s5756 + $0xc8] sm:$0xff]
    %v5783 = vld [vmem:[%s5756 + $0xd0] sm:$0xff]
    %v5784 = vld [vmem:[%s5756 + $0xd8] sm:$0xff]
    %v5785 = vld [vmem:[%s5756 + $0xe0] sm:$0xff]
    %v5786 = vld [vmem:[%s5756 + $0xe8] sm:$0xff]
    %v5787 = vld [vmem:[%s5756 + $0xf0] sm:$0xff]
    %v5788 = vld [vmem:[%s5756 + $0xf8] sm:$0xff]
    %v5821 = vunpack.c.l.b16 %v5757
    %v5822 = vunpack.c.h.b16 %v5757
    %v5823 = vunpack.c.l.b16 %v5758
    %v5824 = vunpack.c.h.b16 %v5758
    %v5825 = vunpack.c.l.b16 %v5759
    %v5826 = vunpack.c.h.b16 %v5759
    %v5827 = vunpack.c.l.b16 %v5760
    %v5828 = vunpack.c.h.b16 %v5760
    %v5829 = vunpack.c.l.b16 %v5761
    %v5830 = vunpack.c.h.b16 %v5761
    %v5831 = vunpack.c.l.b16 %v5762
    %v5832 = vunpack.c.h.b16 %v5762
    %v5833 = vunpack.c.l.b16 %v5763
    %v5834 = vunpack.c.h.b16 %v5763
    %v5835 = vunpack.c.l.b16 %v5764
    %v5836 = vunpack.c.h.b16 %v5764
    %v5837 = vunpack.c.l.b16 %v5765
    %v5838 = vunpack.c.h.b16 %v5765
    %v5839 = vunpack.c.l.b16 %v5766
    %v5840 = vunpack.c.h.b16 %v5766
    %v5841 = vunpack.c.l.b16 %v5767
    %v5842 = vunpack.c.h.b16 %v5767
    %v5843 = vunpack.c.l.b16 %v5768
    %v5844 = vunpack.c.h.b16 %v5768
    %v5845 = vunpack.c.l.b16 %v5769
    %v5846 = vunpack.c.h.b16 %v5769
    %v5847 = vunpack.c.l.b16 %v5770
    %v5848 = vunpack.c.h.b16 %v5770
    %v5849 = vunpack.c.l.b16 %v5771
    %v5850 = vunpack.c.h.b16 %v5771
    %v5851 = vunpack.c.l.b16 %v5772
    %v5852 = vunpack.c.h.b16 %v5772
    %v5853 = vunpack.c.l.b16 %v5773
    %v5854 = vunpack.c.h.b16 %v5773
    %v5855 = vunpack.c.l.b16 %v5774
    %v5856 = vunpack.c.h.b16 %v5774
    %v5857 = vunpack.c.l.b16 %v5775
    %v5858 = vunpack.c.h.b16 %v5775
    %v5859 = vunpack.c.l.b16 %v5776
    %v5860 = vunpack.c.h.b16 %v5776
    %v5861 = vunpack.c.l.b16 %v5777
    %v5862 = vunpack.c.h.b16 %v5777
    %v5863 = vunpack.c.l.b16 %v5778
    %v5864 = vunpack.c.h.b16 %v5778
    %v5865 = vunpack.c.l.b16 %v5779
    %v5866 = vunpack.c.h.b16 %v5779
    %v5867 = vunpack.c.l.b16 %v5780
    %v5868 = vunpack.c.h.b16 %v5780
    %v5869 = vunpack.c.l.b16 %v5781
    %v5870 = vunpack.c.h.b16 %v5781
    %v5871 = vunpack.c.l.b16 %v5782
    %v5872 = vunpack.c.h.b16 %v5782
    %v5873 = vunpack.c.l.b16 %v5783
    %v5874 = vunpack.c.h.b16 %v5783
    %v5875 = vunpack.c.l.b16 %v5784
    %v5876 = vunpack.c.h.b16 %v5784
    %v5877 = vunpack.c.l.b16 %v5785
    %v5878 = vunpack.c.h.b16 %v5785
    %v5879 = vunpack.c.l.b16 %v5786
    %v5880 = vunpack.c.h.b16 %v5786
    %v5881 = vunpack.c.l.b16 %v5787
    %v5882 = vunpack.c.h.b16 %v5787
    %v5883 = vunpack.c.l.b16 %v5788
    %v5884 = vunpack.c.h.b16 %v5788
    %v5885 = vpack.c.b16 %v5823, %v5821
    %v5886 = vpack.c.b16 %v5824, %v5822
    %v5887 = vpack.c.b16 %v5827, %v5825
    %v5888 = vpack.c.b16 %v5828, %v5826
    %v5889 = vpack.c.b16 %v5831, %v5829
    %v5890 = vpack.c.b16 %v5832, %v5830
    %v5891 = vpack.c.b16 %v5835, %v5833
    %v5892 = vpack.c.b16 %v5836, %v5834
    %v5893 = vpack.c.b16 %v5839, %v5837
    %v5894 = vpack.c.b16 %v5840, %v5838
    %v5895 = vpack.c.b16 %v5843, %v5841
    %v5896 = vpack.c.b16 %v5844, %v5842
    %v5897 = vpack.c.b16 %v5847, %v5845
    %v5898 = vpack.c.b16 %v5848, %v5846
    %v5899 = vpack.c.b16 %v5851, %v5849
    %v5900 = vpack.c.b16 %v5852, %v5850
    %v5901 = vpack.c.b16 %v5855, %v5853
    %v5902 = vpack.c.b16 %v5856, %v5854
    %v5903 = vpack.c.b16 %v5859, %v5857
    %v5904 = vpack.c.b16 %v5860, %v5858
    %v5905 = vpack.c.b16 %v5863, %v5861
    %v5906 = vpack.c.b16 %v5864, %v5862
    %v5907 = vpack.c.b16 %v5867, %v5865
    %v5908 = vpack.c.b16 %v5868, %v5866
    %v5909 = vpack.c.b16 %v5871, %v5869
    %v5910 = vpack.c.b16 %v5872, %v5870
    %v5911 = vpack.c.b16 %v5875, %v5873
    %v5912 = vpack.c.b16 %v5876, %v5874
    %v5913 = vpack.c.b16 %v5879, %v5877
    %v5914 = vpack.c.b16 %v5880, %v5878
    %v5915 = vpack.c.b16 %v5883, %v5881
    %v5916 = vpack.c.b16 %v5884, %v5882
    %5949 = vmatprep.subr.bf16.mxu0 %v5886
    %5950 = vmatpush1.bf16.msra.mxu0 %v5885
    %5951 = vmatprep.subr.bf16.mxu0 %v5888
    %5952 = vmatpush1.bf16.msra.mxu0 %v5887
    %5953 = vmatprep.subr.bf16.mxu0 %v5890
    %5954 = vmatpush1.bf16.msra.mxu0 %v5889
    %5955 = vmatprep.subr.bf16.mxu0 %v5892
    %5956 = vmatpush1.bf16.msra.mxu0 %v5891
    %5957 = vmatprep.subr.bf16.mxu0 %v5894
    %5958 = vmatpush1.bf16.msra.mxu0 %v5893
    %5959 = vmatprep.subr.bf16.mxu0 %v5896
    %5960 = vmatpush1.bf16.msra.mxu0 %v5895
    %5961 = vmatprep.subr.bf16.mxu0 %v5898
    %5962 = vmatpush1.bf16.msra.mxu0 %v5897
    %5963 = vmatprep.subr.bf16.mxu0 %v5900
    %5964 = vmatpush1.bf16.msra.mxu0 %v5899
    %5965 = vmatprep.subr.bf16.mxu0 %v5902
    %5966 = vmatpush1.bf16.msra.mxu0 %v5901
    %5967 = vmatprep.subr.bf16.mxu0 %v5904
    %5968 = vmatpush1.bf16.msra.mxu0 %v5903
    %5969 = vmatprep.subr.bf16.mxu0 %v5906
    %5970 = vmatpush1.bf16.msra.mxu0 %v5905
    %5971 = vmatprep.subr.bf16.mxu0 %v5908
    %5972 = vmatpush1.bf16.msra.mxu0 %v5907
    %5973 = vmatprep.subr.bf16.mxu0 %v5910
    %5974 = vmatpush1.bf16.msra.mxu0 %v5909
    %5975 = vmatprep.subr.bf16.mxu0 %v5912
    %5976 = vmatpush1.bf16.msra.mxu0 %v5911
    %5977 = vmatprep.subr.bf16.mxu0 %v5914
    %5978 = vmatpush1.bf16.msra.mxu0 %v5913
    %5979 = vmatprep.subr.bf16.mxu0 %v5916
    %5980 = vmatpush1.bf16.msra.mxu0 %v5915
    %5981 = vmatprep.mubr.bf16.mxu0 %v5755
    %5982 = vmatmul.mubr.bf16.gmra.mrb[0].mxu0 %v5754
    %v5983 = vpop.f32.mrb[0].mxu0
    %v5984 = vadd.f32 0.0, %v5983
    %v5985 = vpop.f32.mrb[0].mxu0
    %v5986 = vadd.f32 0.0, %v5985
    %v5987 = vpop.f32.mrb[0].mxu0
    %v5988 = vpop.f32.mrb[0].mxu0
    %5989 = vdwg.mxu0
    %v5990 = vadd.f32 %v5702, %v5984
    %v5991 = vadd.f32 %v5704, %v5986
    %v5992 = vld [vmem:[#allocation35] sm:$0x3]
    %v5994 = vlaneseq
    %v5995 = vshrl.u32 %v5994, 7
    %v5996 = vsub.s32 0, %v5995
    %v5997 = vrot.slane %v5992, %v5996
    %v5998 = vlaneseq
    %v5999 = vshrl.u32 %v5998, 7
    %v6000 = vsub.s32 1, %v5999
    %v6001 = vrot.slane %v5992, %v6000
    %v6004 = vadd.f32 %v5990, %v5997
    %v6005 = vadd.f32 %v5991, %v6001
    %vm6006 = vcmp.ge.f32.partialorder %v6004, 0.0
    %vm6007 = vcmp.ge.f32.partialorder %v6005, 0.0
    %v6008 = vmul.f32 %v6004, 0.1
    %v6009 = vmul.f32 %v6005, 0.1
    %v6010 = vsel %vm6006, %v6004, %v6008
    %v6011 = vsel %vm6007, %v6005, %v6009
    %v6012 = vpack.c.bf16 %v6010, %v6010
    %v6013 = vpack.c.bf16 %v6011, %v6011
    %v6014 = vld [vmem:[#allocation37] sm:$0xf]
    %v6015 = vld [vmem:[#allocation37 + $0x4] sm:$0xf]
    %v6016 = vld [vmem:[#allocation37 + $0x8] sm:$0xf]
    %v6017 = vld [vmem:[#allocation37 + $0xc] sm:$0xf]
    %v6018 = vld [vmem:[#allocation37 + $0x10] sm:$0xf]
    %v6019 = vld [vmem:[#allocation37 + $0x14] sm:$0xf]
    %v6020 = vld [vmem:[#allocation37 + $0x18] sm:$0xf]
    %v6021 = vld [vmem:[#allocation37 + $0x1c] sm:$0xf]
    %v6022 = vld [vmem:[#allocation37 + $0x20] sm:$0xf]
    %v6023 = vld [vmem:[#allocation37 + $0x24] sm:$0xf]
    %v6024 = vld [vmem:[#allocation37 + $0x28] sm:$0xf]
    %v6025 = vld [vmem:[#allocation37 + $0x2c] sm:$0xf]
    %v6026 = vld [vmem:[#allocation37 + $0x30] sm:$0xf]
    %v6027 = vld [vmem:[#allocation37 + $0x34] sm:$0xf]
    %v6028 = vld [vmem:[#allocation37 + $0x38] sm:$0xf]
    %v6029 = vld [vmem:[#allocation37 + $0x3c] sm:$0xf]
    %v6030 = vld [vmem:[#allocation37 + $0x40] sm:$0xf]
    %v6031 = vld [vmem:[#allocation37 + $0x44] sm:$0xf]
    %v6032 = vld [vmem:[#allocation37 + $0x48] sm:$0xf]
    %v6033 = vld [vmem:[#allocation37 + $0x4c] sm:$0xf]
    %v6034 = vld [vmem:[#allocation37 + $0x50] sm:$0xf]
    %v6035 = vld [vmem:[#allocation37 + $0x54] sm:$0xf]
    %v6036 = vld [vmem:[#allocation37 + $0x58] sm:$0xf]
    %v6037 = vld [vmem:[#allocation37 + $0x5c] sm:$0xf]
    %v6038 = vld [vmem:[#allocation37 + $0x60] sm:$0xf]
    %v6039 = vld [vmem:[#allocation37 + $0x64] sm:$0xf]
    %v6040 = vld [vmem:[#allocation37 + $0x68] sm:$0xf]
    %v6041 = vld [vmem:[#allocation37 + $0x6c] sm:$0xf]
    %v6042 = vld [vmem:[#allocation37 + $0x70] sm:$0xf]
    %v6043 = vld [vmem:[#allocation37 + $0x74] sm:$0xf]
    %v6044 = vld [vmem:[#allocation37 + $0x78] sm:$0xf]
    %v6045 = vld [vmem:[#allocation37 + $0x7c] sm:$0xf]
    %v6046 = vld [vmem:[#allocation38] sm:$0x1]
    %v6048 = vlaneseq
    %v6049 = vshrl.u32 %v6048, 7
    %v6050 = vsub.s32 0, %v6049
    %v6051 = vrot.slane %v6046, %v6050
    %v6085 = vunpack.c.l.b16 %v6014
    %v6086 = vunpack.c.l.b16 %v6015
    %v6087 = vunpack.c.l.b16 %v6016
    %v6088 = vunpack.c.l.b16 %v6017
    %v6089 = vunpack.c.l.b16 %v6018
    %v6090 = vunpack.c.l.b16 %v6019
    %v6091 = vunpack.c.l.b16 %v6020
    %v6092 = vunpack.c.l.b16 %v6021
    %v6093 = vunpack.c.l.b16 %v6022
    %v6094 = vunpack.c.l.b16 %v6023
    %v6095 = vunpack.c.l.b16 %v6024
    %v6096 = vunpack.c.l.b16 %v6025
    %v6097 = vunpack.c.l.b16 %v6026
    %v6098 = vunpack.c.l.b16 %v6027
    %v6099 = vunpack.c.l.b16 %v6028
    %v6100 = vunpack.c.l.b16 %v6029
    %v6101 = vunpack.c.l.b16 %v6030
    %v6102 = vunpack.c.l.b16 %v6031
    %v6103 = vunpack.c.l.b16 %v6032
    %v6104 = vunpack.c.l.b16 %v6033
    %v6105 = vunpack.c.l.b16 %v6034
    %v6106 = vunpack.c.l.b16 %v6035
    %v6107 = vunpack.c.l.b16 %v6036
    %v6108 = vunpack.c.l.b16 %v6037
    %v6109 = vunpack.c.l.b16 %v6038
    %v6110 = vunpack.c.l.b16 %v6039
    %v6111 = vunpack.c.l.b16 %v6040
    %v6112 = vunpack.c.l.b16 %v6041
    %v6113 = vunpack.c.l.b16 %v6042
    %v6114 = vunpack.c.l.b16 %v6043
    %v6115 = vunpack.c.l.b16 %v6044
    %v6116 = vunpack.c.l.b16 %v6045
    %v6117 = vpack.c.b16 %v6086, %v6085
    %v6118 = vpack.c.b16 %v6088, %v6087
    %v6119 = vpack.c.b16 %v6090, %v6089
    %v6120 = vpack.c.b16 %v6092, %v6091
    %v6121 = vpack.c.b16 %v6094, %v6093
    %v6122 = vpack.c.b16 %v6096, %v6095
    %v6123 = vpack.c.b16 %v6098, %v6097
    %v6124 = vpack.c.b16 %v6100, %v6099
    %v6125 = vpack.c.b16 %v6102, %v6101
    %v6126 = vpack.c.b16 %v6104, %v6103
    %v6127 = vpack.c.b16 %v6106, %v6105
    %v6128 = vpack.c.b16 %v6108, %v6107
    %v6129 = vpack.c.b16 %v6110, %v6109
    %v6130 = vpack.c.b16 %v6112, %v6111
    %v6131 = vpack.c.b16 %v6114, %v6113
    %v6132 = vpack.c.b16 %v6116, %v6115
    %6149 = vmatprep.subr.bf16.mxu0 0
    %6150 = vmatpush1.bf16.msra.mxu0 %v6117
    %6151 = vmatprep.subr.bf16.mxu0 0
    %6152 = vmatpush1.bf16.msra.mxu0 %v6118
    %6153 = vmatprep.subr.bf16.mxu0 0
    %6154 = vmatpush1.bf16.msra.mxu0 %v6119
    %6155 = vmatprep.subr.bf16.mxu0 0
    %6156 = vmatpush1.bf16.msra.mxu0 %v6120
    %6157 = vmatprep.subr.bf16.mxu0 0
    %6158 = vmatpush1.bf16.msra.mxu0 %v6121
    %6159 = vmatprep.subr.bf16.mxu0 0
    %6160 = vmatpush1.bf16.msra.mxu0 %v6122
    %6161 = vmatprep.subr.bf16.mxu0 0
    %6162 = vmatpush1.bf16.msra.mxu0 %v6123
    %6163 = vmatprep.subr.bf16.mxu0 0
    %6164 = vmatpush1.bf16.msra.mxu0 %v6124
    %6165 = vmatprep.subr.bf16.mxu0 0
    %6166 = vmatpush1.bf16.msra.mxu0 %v6125
    %6167 = vmatprep.subr.bf16.mxu0 0
    %6168 = vmatpush1.bf16.msra.mxu0 %v6126
    %6169 = vmatprep.subr.bf16.mxu0 0
    %6170 = vmatpush1.bf16.msra.mxu0 %v6127
    %6171 = vmatprep.subr.bf16.mxu0 0
    %6172 = vmatpush1.bf16.msra.mxu0 %v6128
    %6173 = vmatprep.subr.bf16.mxu0 0
    %6174 = vmatpush1.bf16.msra.mxu0 %v6129
    %6175 = vmatprep.subr.bf16.mxu0 0
    %6176 = vmatpush1.bf16.msra.mxu0 %v6130
    %6177 = vmatprep.subr.bf16.mxu0 0
    %6178 = vmatpush1.bf16.msra.mxu0 %v6131
    %6179 = vmatprep.subr.bf16.mxu0 0
    %6180 = vmatpush1.bf16.msra.mxu0 %v6132
    %6181 = vmatprep.mubr.bf16.mxu0 %v6013
    %6182 = vmatmul.mubr.bf16.gmra.mrb[0].mxu0 %v6012
    %v6183 = vpop.f32.mrb[0].mxu0
    %v6184 = vadd.f32 %v6051, %v6183
    %v6185 = vpop.f32.mrb[0].mxu0
    %v6186 = vpop.f32.mrb[0].mxu0
    %v6187 = vpop.f32.mrb[0].mxu0
    %6188 = vdwg.mxu0
    %vm6189 = vcmp.ge.f32.partialorder %v6184, 0.0
    %v6190 = vmul.f32 %v6184, 0.1
    %v6191 = vsel %vm6189, %v6184, %v6190
    %v6192 = vpack.c.bf16 %v6191, %v6191
    %v6193 = vld [vmem:[#allocation40] sm:$0xf]
    %vm6194 = vcmask 64512
    %v6196 = vsel %vm6194, %v6193, 0
    %vm6198 = vcmask 1043456
    %v6200 = vsel %vm6198, %v6192, 0
    %6202 = vmatprep.subr.bf16.mxu0 0
    %6203 = vmatpush1.bf16.msra.mxu0 %v6200
    %6204 = vmatprep.subr.bf16.mxu0 0
    %6205 = vmatpush1.bf16.msra.mxu0 0
    %6206 = vmatprep.subr.bf16.mxu0 0
    %6207 = vmatpush1.bf16.msra.mxu0 0
    %6208 = vmatprep.subr.bf16.mxu0 0
    %6209 = vmatpush1.bf16.msra.mxu0 0
    %6210 = vmatprep.subr.bf16.mxu0 0
    %6211 = vmatpush1.bf16.msra.mxu0 0
    %6212 = vmatprep.subr.bf16.mxu0 0
    %6213 = vmatpush1.bf16.msra.mxu0 0
    %6214 = vmatprep.subr.bf16.mxu0 0
    %6215 = vmatpush1.bf16.msra.mxu0 0
    %6216 = vmatprep.subr.bf16.mxu0 0
    %6217 = vmatpush1.bf16.msra.mxu0 0
    %6218 = vmatprep.subr.bf16.mxu0 0
    %6219 = vmatpush1.bf16.msra.mxu0 0
    %6220 = vmatprep.subr.bf16.mxu0 0
    %6221 = vmatpush1.bf16.msra.mxu0 0
    %6222 = vmatprep.subr.bf16.mxu0 0
    %6223 = vmatpush1.bf16.msra.mxu0 0
    %6224 = vmatprep.subr.bf16.mxu0 0
    %6225 = vmatpush1.bf16.msra.mxu0 0
    %6226 = vmatprep.subr.bf16.mxu0 0
    %6227 = vmatpush1.bf16.msra.mxu0 0
    %6228 = vmatprep.subr.bf16.mxu0 0
    %6229 = vmatpush1.bf16.msra.mxu0 0
    %6230 = vmatprep.subr.bf16.mxu0 0
    %6231 = vmatpush1.bf16.msra.mxu0 0
    %6232 = vmatprep.subr.bf16.mxu0 0
    %6233 = vmatpush1.bf16.msra.mxu0 0
    %6234 = vmatprep.mubr.bf16.mxu0 0
    %6235 = vmatmul.mubr.bf16.gmra.mrb[0].mxu0 %v6196
    %v6236 = vpop.f32.mrb[0].mxu0
    %v6237 = vadd.f32 0.0, %v6236
    %v6238 = vpop.f32.mrb[0].mxu0
    %v6239 = vpop.f32.mrb[0].mxu0
    %v6240 = vpop.f32.mrb[0].mxu0
    %6241 = vdwg.mxu0
    %v6242 = vpack.c.bf16 %v6237, %v6237
    %v6243 = vld [vmem:[%s55] sm:$0xff]
    %v6244 = vld [vmem:[%s55 + $0x8] sm:$0xff]
    %v6245 = vld [vmem:[%s55 + $0x10] sm:$0xff]
    %v6246 = vld [vmem:[%s55 + $0x18] sm:$0xff]
    %v6247 = vld [vmem:[%s55 + $0x20] sm:$0xff]
    %v6248 = vld [vmem:[%s55 + $0x28] sm:$0xff]
    %v6249 = vld [vmem:[%s55 + $0x30] sm:$0xff]
    %v6250 = vld [vmem:[%s55 + $0x38] sm:$0xff]
    %v6251 = vld [vmem:[%s55 + $0x40] sm:$0xff]
    %v6252 = vld [vmem:[%s55 + $0x48] sm:$0xff]
    %v6253 = vld [vmem:[%s55 + $0x50] sm:$0xff]
    %v6254 = vld [vmem:[%s55 + $0x58] sm:$0xff]
    %v6255 = vld [vmem:[%s55 + $0x60] sm:$0xff]
    %v6256 = vld [vmem:[%s55 + $0x68] sm:$0xff]
    %v6257 = vld [vmem:[%s55 + $0x70] sm:$0xff]
    %v6258 = vld [vmem:[%s55 + $0x78] sm:$0xff]
    %s6259 = scalar_lea.vmem [#allocation40], 4
    %v6260 = vld [vmem:[%s6259] sm:$0xf]
    %v6262 = vsel %vm6194, %v6260, 0
    %6264 = vmatprep.subr.bf16.mxu0 0
    %6265 = vmatpush1.bf16.msra.mxu0 %v6200
    %6266 = vmatprep.subr.bf16.mxu0 0
    %6267 = vmatpush1.bf16.msra.mxu0 0
    %6268 = vmatprep.subr.bf16.mxu0 0
    %6269 = vmatpush1.bf16.msra.mxu0 0
    %6270 = vmatprep.subr.bf16.mxu0 0
    %6271 = vmatpush1.bf16.msra.mxu0 0
    %6272 = vmatprep.subr.bf16.mxu0 0
    %6273 = vmatpush1.bf16.msra.mxu0 0
    %6274 = vmatprep.subr.bf16.mxu0 0
    %6275 = vmatpush1.bf16.msra.mxu0 0
    %6276 = vmatprep.subr.bf16.mxu0 0
    %6277 = vmatpush1.bf16.msra.mxu0 0
    %6278 = vmatprep.subr.bf16.mxu0 0
    %6279 = vmatpush1.bf16.msra.mxu0 0
    %6280 = vmatprep.subr.bf16.mxu0 0
    %6281 = vmatpush1.bf16.msra.mxu0 0
    %6282 = vmatprep.subr.bf16.mxu0 0
    %6283 = vmatpush1.bf16.msra.mxu0 0
    %6284 = vmatprep.subr.bf16.mxu0 0
    %6285 = vmatpush1.bf16.msra.mxu0 0
    %6286 = vmatprep.subr.bf16.mxu0 0
    %6287 = vmatpush1.bf16.msra.mxu0 0
    %6288 = vmatprep.subr.bf16.mxu0 0
    %6289 = vmatpush1.bf16.msra.mxu0 0
    %6290 = vmatprep.subr.bf16.mxu0 0
    %6291 = vmatpush1.bf16.msra.mxu0 0
    %6292 = vmatprep.subr.bf16.mxu0 0
    %6293 = vmatpush1.bf16.msra.mxu0 0
    %6294 = vmatprep.subr.bf16.mxu0 0
    %6295 = vmatpush1.bf16.msra.mxu0 0
    %6296 = vmatprep.mubr.bf16.mxu0 0
    %6297 = vmatmul.mubr.bf16.gmra.mrb[0].mxu0 %v6262
    %v6298 = vpop.f32.mrb[0].mxu0
    %v6299 = vadd.f32 0.0, %v6298
    %v6300 = vpop.f32.mrb[0].mxu0
    %v6301 = vpop.f32.mrb[0].mxu0
    %v6302 = vpop.f32.mrb[0].mxu0
    %6303 = vdwg.mxu0
    %v6304 = vpack.c.bf16 %v6299, %v6299
    %s6305 = scalar_lea.vmem %s55, 128
    %v6306 = vld [vmem:[%s6305] sm:$0xff]
    %v6307 = vld [vmem:[%s6305 + $0x8] sm:$0xff]
    %v6308 = vld [vmem:[%s6305 + $0x10] sm:$0xff]
    %v6309 = vld [vmem:[%s6305 + $0x18] sm:$0xff]
    %v6310 = vld [vmem:[%s6305 + $0x20] sm:$0xff]
    %v6311 = vld [vmem:[%s6305 + $0x28] sm:$0xff]
    %v6312 = vld [vmem:[%s6305 + $0x30] sm:$0xff]
    %v6313 = vld [vmem:[%s6305 + $0x38] sm:$0xff]
    %v6314 = vld [vmem:[%s6305 + $0x40] sm:$0xff]
    %v6315 = vld [vmem:[%s6305 + $0x48] sm:$0xff]
    %v6316 = vld [vmem:[%s6305 + $0x50] sm:$0xff]
    %v6317 = vld [vmem:[%s6305 + $0x58] sm:$0xff]
    %v6318 = vld [vmem:[%s6305 + $0x60] sm:$0xff]
    %v6319 = vld [vmem:[%s6305 + $0x68] sm:$0xff]
    %v6320 = vld [vmem:[%s6305 + $0x70] sm:$0xff]
    %v6321 = vld [vmem:[%s6305 + $0x78] sm:$0xff]
    %v6338 = vunpack.c.l.b16 %v6306
    %v6339 = vunpack.c.h.b16 %v6306
    %v6340 = vunpack.c.l.b16 %v6307
    %v6341 = vunpack.c.h.b16 %v6307
    %v6342 = vunpack.c.l.b16 %v6308
    %v6343 = vunpack.c.h.b16 %v6308
    %v6344 = vunpack.c.l.b16 %v6309
    %v6345 = vunpack.c.h.b16 %v6309
    %v6346 = vunpack.c.l.b16 %v6310
    %v6347 = vunpack.c.h.b16 %v6310
    %v6348 = vunpack.c.l.b16 %v6311
    %v6349 = vunpack.c.h.b16 %v6311
    %v6350 = vunpack.c.l.b16 %v6312
    %v6351 = vunpack.c.h.b16 %v6312
    %v6352 = vunpack.c.l.b16 %v6313
    %v6353 = vunpack.c.h.b16 %v6313
    %v6354 = vunpack.c.l.b16 %v6314
    %v6355 = vunpack.c.h.b16 %v6314
    %v6356 = vunpack.c.l.b16 %v6315
    %v6357 = vunpack.c.h.b16 %v6315
    %v6358 = vunpack.c.l.b16 %v6316
    %v6359 = vunpack.c.h.b16 %v6316
    %v6360 = vunpack.c.l.b16 %v6317
    %v6361 = vunpack.c.h.b16 %v6317
    %v6362 = vunpack.c.l.b16 %v6318
    %v6363 = vunpack.c.h.b16 %v6318
    %v6364 = vunpack.c.l.b16 %v6319
    %v6365 = vunpack.c.h.b16 %v6319
    %v6366 = vunpack.c.l.b16 %v6320
    %v6367 = vunpack.c.h.b16 %v6320
    %v6368 = vunpack.c.l.b16 %v6321
    %v6369 = vunpack.c.h.b16 %v6321
    %v6370 = vpack.c.b16 %v6340, %v6338
    %v6371 = vpack.c.b16 %v6341, %v6339
    %v6372 = vpack.c.b16 %v6344, %v6342
    %v6373 = vpack.c.b16 %v6345, %v6343
    %v6374 = vpack.c.b16 %v6348, %v6346
    %v6375 = vpack.c.b16 %v6349, %v6347
    %v6376 = vpack.c.b16 %v6352, %v6350
    %v6377 = vpack.c.b16 %v6353, %v6351
    %v6378 = vpack.c.b16 %v6356, %v6354
    %v6379 = vpack.c.b16 %v6357, %v6355
    %v6380 = vpack.c.b16 %v6360, %v6358
    %v6381 = vpack.c.b16 %v6361, %v6359
    %v6382 = vpack.c.b16 %v6364, %v6362
    %v6383 = vpack.c.b16 %v6365, %v6363
    %v6384 = vpack.c.b16 %v6368, %v6366
    %v6385 = vpack.c.b16 %v6369, %v6367
    %6402 = vmatprep.subr.bf16.mxu0 %v6371
    %6403 = vmatpush1.bf16.msra.mxu0 %v6370
    %6404 = vmatprep.subr.bf16.mxu0 %v6373
    %6405 = vmatpush1.bf16.msra.mxu0 %v6372
    %6406 = vmatprep.subr.bf16.mxu0 %v6375
    %6407 = vmatpush1.bf16.msra.mxu0 %v6374
    %6408 = vmatprep.subr.bf16.mxu0 %v6377
    %6409 = vmatpush1.bf16.msra.mxu0 %v6376
    %6410 = vmatprep.subr.bf16.mxu0 %v6379
    %6411 = vmatpush1.bf16.msra.mxu0 %v6378
    %6412 = vmatprep.subr.bf16.mxu0 %v6381
    %6413 = vmatpush1.bf16.msra.mxu0 %v6380
    %6414 = vmatprep.subr.bf16.mxu0 %v6383
    %6415 = vmatpush1.bf16.msra.mxu0 %v6382
    %6416 = vmatprep.subr.bf16.mxu0 %v6385
    %6417 = vmatpush1.bf16.msra.mxu0 %v6384
    %6418 = vmatprep.subr.bf16.mxu0 0
    %6419 = vmatpush1.bf16.msra.mxu0 0
    %6420 = vmatprep.subr.bf16.mxu0 0
    %6421 = vmatpush1.bf16.msra.mxu0 0
    %6422 = vmatprep.subr.bf16.mxu0 0
    %6423 = vmatpush1.bf16.msra.mxu0 0
    %6424 = vmatprep.subr.bf16.mxu0 0
    %6425 = vmatpush1.bf16.msra.mxu0 0
    %6426 = vmatprep.subr.bf16.mxu0 0
    %6427 = vmatpush1.bf16.msra.mxu0 0
    %6428 = vmatprep.subr.bf16.mxu0 0
    %6429 = vmatpush1.bf16.msra.mxu0 0
    %6430 = vmatprep.subr.bf16.mxu0 0
    %6431 = vmatpush1.bf16.msra.mxu0 0
    %6432 = vmatprep.subr.bf16.mxu0 0
    %6433 = vmatpush1.bf16.msra.mxu0 0
    %6434 = vmatprep.mubr.bf16.mxu0 0
    %6435 = vmatmul.mubr.bf16.gmra.mrb[0].mxu0 %v6304
    %v6436 = vpop.f32.mrb[0].mxu0
    %v6437 = vadd.f32 0.0, %v6436
    %v6438 = vpop.f32.mrb[0].mxu0
    %v6439 = vadd.f32 0.0, %v6438
    %v6440 = vpop.f32.mrb[0].mxu0
    %v6441 = vpop.f32.mrb[0].mxu0
    %6442 = vdwg.mxu0
    %v6459 = vunpack.c.l.b16 %v6243
    %v6460 = vunpack.c.h.b16 %v6243
    %v6461 = vunpack.c.l.b16 %v6244
    %v6462 = vunpack.c.h.b16 %v6244
    %v6463 = vunpack.c.l.b16 %v6245
    %v6464 = vunpack.c.h.b16 %v6245
    %v6465 = vunpack.c.l.b16 %v6246
    %v6466 = vunpack.c.h.b16 %v6246
    %v6467 = vunpack.c.l.b16 %v6247
    %v6468 = vunpack.c.h.b16 %v6247
    %v6469 = vunpack.c.l.b16 %v6248
    %v6470 = vunpack.c.h.b16 %v6248
    %v6471 = vunpack.c.l.b16 %v6249
    %v6472 = vunpack.c.h.b16 %v6249
    %v6473 = vunpack.c.l.b16 %v6250
    %v6474 = vunpack.c.h.b16 %v6250
    %v6475 = vunpack.c.l.b16 %v6251
    %v6476 = vunpack.c.h.b16 %v6251
    %v6477 = vunpack.c.l.b16 %v6252
    %v6478 = vunpack.c.h.b16 %v6252
    %v6479 = vunpack.c.l.b16 %v6253
    %v6480 = vunpack.c.h.b16 %v6253
    %v6481 = vunpack.c.l.b16 %v6254
    %v6482 = vunpack.c.h.b16 %v6254
    %v6483 = vunpack.c.l.b16 %v6255
    %v6484 = vunpack.c.h.b16 %v6255
    %v6485 = vunpack.c.l.b16 %v6256
    %v6486 = vunpack.c.h.b16 %v6256
    %v6487 = vunpack.c.l.b16 %v6257
    %v6488 = vunpack.c.h.b16 %v6257
    %v6489 = vunpack.c.l.b16 %v6258
    %v6490 = vunpack.c.h.b16 %v6258
    %v6491 = vpack.c.b16 %v6461, %v6459
    %v6492 = vpack.c.b16 %v6462, %v6460
    %v6493 = vpack.c.b16 %v6465, %v6463
    %v6494 = vpack.c.b16 %v6466, %v6464
    %v6495 = vpack.c.b16 %v6469, %v6467
    %v6496 = vpack.c.b16 %v6470, %v6468
    %v6497 = vpack.c.b16 %v6473, %v6471
    %v6498 = vpack.c.b16 %v6474, %v6472
    %v6499 = vpack.c.b16 %v6477, %v6475
    %v6500 = vpack.c.b16 %v6478, %v6476
    %v6501 = vpack.c.b16 %v6481, %v6479
    %v6502 = vpack.c.b16 %v6482, %v6480
    %v6503 = vpack.c.b16 %v6485, %v6483
    %v6504 = vpack.c.b16 %v6486, %v6484
    %v6505 = vpack.c.b16 %v6489, %v6487
    %v6506 = vpack.c.b16 %v6490, %v6488
    %6523 = vmatprep.subr.bf16.mxu0 %v6492
    %6524 = vmatpush1.bf16.msra.mxu0 %v6491
    %6525 = vmatprep.subr.bf16.mxu0 %v6494
    %6526 = vmatpush1.bf16.msra.mxu0 %v6493
    %6527 = vmatprep.subr.bf16.mxu0 %v6496
    %6528 = vmatpush1.bf16.msra.mxu0 %v6495
    %6529 = vmatprep.subr.bf16.mxu0 %v6498
    %6530 = vmatpush1.bf16.msra.mxu0 %v6497
    %6531 = vmatprep.subr.bf16.mxu0 %v6500
    %6532 = vmatpush1.bf16.msra.mxu0 %v6499
    %6533 = vmatprep.subr.bf16.mxu0 %v6502
    %6534 = vmatpush1.bf16.msra.mxu0 %v6501
    %6535 = vmatprep.subr.bf16.mxu0 %v6504
    %6536 = vmatpush1.bf16.msra.mxu0 %v6503
    %6537 = vmatprep.subr.bf16.mxu0 %v6506
    %6538 = vmatpush1.bf16.msra.mxu0 %v6505
    %6539 = vmatprep.subr.bf16.mxu0 0
    %6540 = vmatpush1.bf16.msra.mxu0 0
    %6541 = vmatprep.subr.bf16.mxu0 0
    %6542 = vmatpush1.bf16.msra.mxu0 0
    %6543 = vmatprep.subr.bf16.mxu0 0
    %6544 = vmatpush1.bf16.msra.mxu0 0
    %6545 = vmatprep.subr.bf16.mxu0 0
    %6546 = vmatpush1.bf16.msra.mxu0 0
    %6547 = vmatprep.subr.bf16.mxu0 0
    %6548 = vmatpush1.bf16.msra.mxu0 0
    %6549 = vmatprep.subr.bf16.mxu0 0
    %6550 = vmatpush1.bf16.msra.mxu0 0
    %6551 = vmatprep.subr.bf16.mxu0 0
    %6552 = vmatpush1.bf16.msra.mxu0 0
    %6553 = vmatprep.subr.bf16.mxu0 0
    %6554 = vmatpush1.bf16.msra.mxu0 0
    %6555 = vmatprep.mubr.bf16.mxu0 0
    %6556 = vmatmul.mubr.bf16.gmra.mrb[0].mxu0 %v6242
    %v6557 = vpop.f32.mrb[0].mxu0
    %v6558 = vadd.f32 %v6437, %v6557
    %v6559 = vpop.f32.mrb[0].mxu0
    %v6560 = vadd.f32 %v6439, %v6559
    %v6561 = vpop.f32.mrb[0].mxu0
    %v6562 = vpop.f32.mrb[0].mxu0
    %6563 = vdwg.mxu0
    %s6564 = scalar_lea.vmem [#allocation40], 8
    %v6565 = vld [vmem:[%s6564] sm:$0xf]
    %v6567 = vsel %vm6194, %v6565, 0
    %6569 = vmatprep.subr.bf16.mxu0 0
    %6570 = vmatpush1.bf16.msra.mxu0 %v6200
    %6571 = vmatprep.subr.bf16.mxu0 0
    %6572 = vmatpush1.bf16.msra.mxu0 0
    %6573 = vmatprep.subr.bf16.mxu0 0
    %6574 = vmatpush1.bf16.msra.mxu0 0
    %6575 = vmatprep.subr.bf16.mxu0 0
    %6576 = vmatpush1.bf16.msra.mxu0 0
    %6577 = vmatprep.subr.bf16.mxu0 0
    %6578 = vmatpush1.bf16.msra.mxu0 0
    %6579 = vmatprep.subr.bf16.mxu0 0
    %6580 = vmatpush1.bf16.msra.mxu0 0
    %6581 = vmatprep.subr.bf16.mxu0 0
    %6582 = vmatpush1.bf16.msra.mxu0 0
    %6583 = vmatprep.subr.bf16.mxu0 0
    %6584 = vmatpush1.bf16.msra.mxu0 0
    %6585 = vmatprep.subr.bf16.mxu0 0
    %6586 = vmatpush1.bf16.msra.mxu0 0
    %6587 = vmatprep.subr.bf16.mxu0 0
    %6588 = vmatpush1.bf16.msra.mxu0 0
    %6589 = vmatprep.subr.bf16.mxu0 0
    %6590 = vmatpush1.bf16.msra.mxu0 0
    %6591 = vmatprep.subr.bf16.mxu0 0
    %6592 = vmatpush1.bf16.msra.mxu0 0
    %6593 = vmatprep.subr.bf16.mxu0 0
    %6594 = vmatpush1.bf16.msra.mxu0 0
    %6595 = vmatprep.subr.bf16.mxu0 0
    %6596 = vmatpush1.bf16.msra.mxu0 0
    %6597 = vmatprep.subr.bf16.mxu0 0
    %6598 = vmatpush1.bf16.msra.mxu0 0
    %6599 = vmatprep.subr.bf16.mxu0 0
    %6600 = vmatpush1.bf16.msra.mxu0 0
    %6601 = vmatprep.mubr.bf16.mxu0 0
    %6602 = vmatmul.mubr.bf16.gmra.mrb[0].mxu0 %v6567
    %v6603 = vpop.f32.mrb[0].mxu0
    %v6604 = vadd.f32 0.0, %v6603
    %v6605 = vpop.f32.mrb[0].mxu0
    %v6606 = vpop.f32.mrb[0].mxu0
    %v6607 = vpop.f32.mrb[0].mxu0
    %6608 = vdwg.mxu0
    %v6609 = vpack.c.bf16 %v6604, %v6604
    %s6610 = scalar_lea.vmem %s55, 256
    %v6611 = vld [vmem:[%s6610] sm:$0xff]
    %v6612 = vld [vmem:[%s6610 + $0x8] sm:$0xff]
    %v6613 = vld [vmem:[%s6610 + $0x10] sm:$0xff]
    %v6614 = vld [vmem:[%s6610 + $0x18] sm:$0xff]
    %v6615 = vld [vmem:[%s6610 + $0x20] sm:$0xff]
    %v6616 = vld [vmem:[%s6610 + $0x28] sm:$0xff]
    %v6617 = vld [vmem:[%s6610 + $0x30] sm:$0xff]
    %v6618 = vld [vmem:[%s6610 + $0x38] sm:$0xff]
    %v6619 = vld [vmem:[%s6610 + $0x40] sm:$0xff]
    %v6620 = vld [vmem:[%s6610 + $0x48] sm:$0xff]
    %v6621 = vld [vmem:[%s6610 + $0x50] sm:$0xff]
    %v6622 = vld [vmem:[%s6610 + $0x58] sm:$0xff]
    %v6623 = vld [vmem:[%s6610 + $0x60] sm:$0xff]
    %v6624 = vld [vmem:[%s6610 + $0x68] sm:$0xff]
    %v6625 = vld [vmem:[%s6610 + $0x70] sm:$0xff]
    %v6626 = vld [vmem:[%s6610 + $0x78] sm:$0xff]
    %v6643 = vunpack.c.l.b16 %v6611
    %v6644 = vunpack.c.h.b16 %v6611
    %v6645 = vunpack.c.l.b16 %v6612
    %v6646 = vunpack.c.h.b16 %v6612
    %v6647 = vunpack.c.l.b16 %v6613
    %v6648 = vunpack.c.h.b16 %v6613
    %v6649 = vunpack.c.l.b16 %v6614
    %v6650 = vunpack.c.h.b16 %v6614
    %v6651 = vunpack.c.l.b16 %v6615
    %v6652 = vunpack.c.h.b16 %v6615
    %v6653 = vunpack.c.l.b16 %v6616
    %v6654 = vunpack.c.h.b16 %v6616
    %v6655 = vunpack.c.l.b16 %v6617
    %v6656 = vunpack.c.h.b16 %v6617
    %v6657 = vunpack.c.l.b16 %v6618
    %v6658 = vunpack.c.h.b16 %v6618
    %v6659 = vunpack.c.l.b16 %v6619
    %v6660 = vunpack.c.h.b16 %v6619
    %v6661 = vunpack.c.l.b16 %v6620
    %v6662 = vunpack.c.h.b16 %v6620
    %v6663 = vunpack.c.l.b16 %v6621
    %v6664 = vunpack.c.h.b16 %v6621
    %v6665 = vunpack.c.l.b16 %v6622
    %v6666 = vunpack.c.h.b16 %v6622
    %v6667 = vunpack.c.l.b16 %v6623
    %v6668 = vunpack.c.h.b16 %v6623
    %v6669 = vunpack.c.l.b16 %v6624
    %v6670 = vunpack.c.h.b16 %v6624
    %v6671 = vunpack.c.l.b16 %v6625
    %v6672 = vunpack.c.h.b16 %v6625
    %v6673 = vunpack.c.l.b16 %v6626
    %v6674 = vunpack.c.h.b16 %v6626
    %v6675 = vpack.c.b16 %v6645, %v6643
    %v6676 = vpack.c.b16 %v6646, %v6644
    %v6677 = vpack.c.b16 %v6649, %v6647
    %v6678 = vpack.c.b16 %v6650, %v6648
    %v6679 = vpack.c.b16 %v6653, %v6651
    %v6680 = vpack.c.b16 %v6654, %v6652
    %v6681 = vpack.c.b16 %v6657, %v6655
    %v6682 = vpack.c.b16 %v6658, %v6656
    %v6683 = vpack.c.b16 %v6661, %v6659
    %v6684 = vpack.c.b16 %v6662, %v6660
    %v6685 = vpack.c.b16 %v6665, %v6663
    %v6686 = vpack.c.b16 %v6666, %v6664
    %v6687 = vpack.c.b16 %v6669, %v6667
    %v6688 = vpack.c.b16 %v6670, %v6668
    %v6689 = vpack.c.b16 %v6673, %v6671
    %v6690 = vpack.c.b16 %v6674, %v6672
    %6707 = vmatprep.subr.bf16.mxu0 %v6676
    %6708 = vmatpush1.bf16.msra.mxu0 %v6675
    %6709 = vmatprep.subr.bf16.mxu0 %v6678
    %6710 = vmatpush1.bf16.msra.mxu0 %v6677
    %6711 = vmatprep.subr.bf16.mxu0 %v6680
    %6712 = vmatpush1.bf16.msra.mxu0 %v6679
    %6713 = vmatprep.subr.bf16.mxu0 %v6682
    %6714 = vmatpush1.bf16.msra.mxu0 %v6681
    %6715 = vmatprep.subr.bf16.mxu0 %v6684
    %6716 = vmatpush1.bf16.msra.mxu0 %v6683
    %6717 = vmatprep.subr.bf16.mxu0 %v6686
    %6718 = vmatpush1.bf16.msra.mxu0 %v6685
    %6719 = vmatprep.subr.bf16.mxu0 %v6688
    %6720 = vmatpush1.bf16.msra.mxu0 %v6687
    %6721 = vmatprep.subr.bf16.mxu0 %v6690
    %6722 = vmatpush1.bf16.msra.mxu0 %v6689
    %6723 = vmatprep.subr.bf16.mxu0 0
    %6724 = vmatpush1.bf16.msra.mxu0 0
    %6725 = vmatprep.subr.bf16.mxu0 0
    %6726 = vmatpush1.bf16.msra.mxu0 0
    %6727 = vmatprep.subr.bf16.mxu0 0
    %6728 = vmatpush1.bf16.msra.mxu0 0
    %6729 = vmatprep.subr.bf16.mxu0 0
    %6730 = vmatpush1.bf16.msra.mxu0 0
    %6731 = vmatprep.subr.bf16.mxu0 0
    %6732 = vmatpush1.bf16.msra.mxu0 0
    %6733 = vmatprep.subr.bf16.mxu0 0
    %6734 = vmatpush1.bf16.msra.mxu0 0
    %6735 = vmatprep.subr.bf16.mxu0 0
    %6736 = vmatpush1.bf16.msra.mxu0 0
    %6737 = vmatprep.subr.bf16.mxu0 0
    %6738 = vmatpush1.bf16.msra.mxu0 0
    %6739 = vmatprep.mubr.bf16.mxu0 0
    %6740 = vmatmul.mubr.bf16.gmra.mrb[0].mxu0 %v6609
    %v6741 = vpop.f32.mrb[0].mxu0
    %v6742 = vadd.f32 0.0, %v6741
    %v6743 = vpop.f32.mrb[0].mxu0
    %v6744 = vadd.f32 0.0, %v6743
    %v6745 = vpop.f32.mrb[0].mxu0
    %v6746 = vpop.f32.mrb[0].mxu0
    %6747 = vdwg.mxu0
    %v6748 = vadd.f32 %v6558, %v6742
    %v6749 = vadd.f32 %v6560, %v6744
    %v6750 = vld [vmem:[#allocation41] sm:$0x3]
    %v6752 = vlaneseq
    %v6753 = vshrl.u32 %v6752, 7
    %v6754 = vsub.s32 0, %v6753
    %v6755 = vrot.slane %v6750, %v6754
    %v6756 = vlaneseq
    %v6757 = vshrl.u32 %v6756, 7
    %v6758 = vsub.s32 1, %v6757
    %v6759 = vrot.slane %v6750, %v6758
    %v6762 = vadd.f32 %v6748, %v6755
    %v6763 = vadd.f32 %v6749, %v6759
    %vm6764 = vcmp.ge.f32.partialorder %v6762, 0.0
    %vm6765 = vcmp.ge.f32.partialorder %v6763, 0.0
    %v6766 = vmul.f32 %v6762, 0.1
    %v6767 = vmul.f32 %v6763, 0.1
    %v6768 = vsel %vm6764, %v6762, %v6766
    %v6769 = vsel %vm6765, %v6763, %v6767
    %v6770 = vadd.f32 %v6768, %v6010
    %v6771 = vadd.f32 %v6769, %v6011
    %v6772 = vpack.c.bf16 %v6770, %v6770
    %v6773 = vpack.c.bf16 %v6771, %v6771
    %v6774 = vld [vmem:[#allocation43] sm:$0x3]
    %v6776 = vsel %vm6194, %v6774, 0
    %v6779 = vsel %vm6198, %v6772, 0
    %v6782 = vsel %vm6198, %v6773, 0
    %6784 = vmatprep.subr.bf16.mxu0 %v6782
    %6785 = vmatpush1.bf16.msra.mxu0 %v6779
    %6786 = vmatprep.subr.bf16.mxu0 0
    %6787 = vmatpush1.bf16.msra.mxu0 0
    %6788 = vmatprep.subr.bf16.mxu0 0
    %6789 = vmatpush1.bf16.msra.mxu0 0
    %6790 = vmatprep.subr.bf16.mxu0 0
    %6791 = vmatpush1.bf16.msra.mxu0 0
    %6792 = vmatprep.subr.bf16.mxu0 0
    %6793 = vmatpush1.bf16.msra.mxu0 0
    %6794 = vmatprep.subr.bf16.mxu0 0
    %6795 = vmatpush1.bf16.msra.mxu0 0
    %6796 = vmatprep.subr.bf16.mxu0 0
    %6797 = vmatpush1.bf16.msra.mxu0 0
    %6798 = vmatprep.subr.bf16.mxu0 0
    %6799 = vmatpush1.bf16.msra.mxu0 0
    %6800 = vmatprep.subr.bf16.mxu0 0
    %6801 = vmatpush1.bf16.msra.mxu0 0
    %6802 = vmatprep.subr.bf16.mxu0 0
    %6803 = vmatpush1.bf16.msra.mxu0 0
    %6804 = vmatprep.subr.bf16.mxu0 0
    %6805 = vmatpush1.bf16.msra.mxu0 0
    %6806 = vmatprep.subr.bf16.mxu0 0
    %6807 = vmatpush1.bf16.msra.mxu0 0
    %6808 = vmatprep.subr.bf16.mxu0 0
    %6809 = vmatpush1.bf16.msra.mxu0 0
    %6810 = vmatprep.subr.bf16.mxu0 0
    %6811 = vmatpush1.bf16.msra.mxu0 0
    %6812 = vmatprep.subr.bf16.mxu0 0
    %6813 = vmatpush1.bf16.msra.mxu0 0
    %6814 = vmatprep.subr.bf16.mxu0 0
    %6815 = vmatpush1.bf16.msra.mxu0 0
    %6816 = vmatprep.mubr.bf16.mxu0 0
    %6817 = vmatmul.mubr.bf16.gmra.mrb[0].mxu0 %v6776
    %v6818 = vpop.f32.mrb[0].mxu0
    %v6819 = vadd.f32 0.0, %v6818
    %v6820 = vpop.f32.mrb[0].mxu0
    %v6821 = vadd.f32 0.0, %v6820
    %v6822 = vpop.f32.mrb[0].mxu0
    %v6823 = vpop.f32.mrb[0].mxu0
    %6824 = vdwg.mxu0
    %v6825 = vpack.c.bf16 %v6819, %v6819
    %v6826 = vpack.c.bf16 %v6821, %v6821
    %v6827 = vld [vmem:[#allocation44] sm:$0xff]
    %v6828 = vld [vmem:[#allocation44 + $0x8] sm:$0xff]
    %v6829 = vld [vmem:[#allocation44 + $0x10] sm:$0xff]
    %v6830 = vld [vmem:[#allocation44 + $0x18] sm:$0xff]
    %v6831 = vld [vmem:[#allocation44 + $0x20] sm:$0xff]
    %v6832 = vld [vmem:[#allocation44 + $0x28] sm:$0xff]
    %v6833 = vld [vmem:[#allocation44 + $0x30] sm:$0xff]
    %v6834 = vld [vmem:[#allocation44 + $0x38] sm:$0xff]
    %v6835 = vld [vmem:[#allocation44 + $0x40] sm:$0xff]
    %v6836 = vld [vmem:[#allocation44 + $0x48] sm:$0xff]
    %v6837 = vld [vmem:[#allocation44 + $0x50] sm:$0xff]
    %v6838 = vld [vmem:[#allocation44 + $0x58] sm:$0xff]
    %v6839 = vld [vmem:[#allocation44 + $0x60] sm:$0xff]
    %v6840 = vld [vmem:[#allocation44 + $0x68] sm:$0xff]
    %v6841 = vld [vmem:[#allocation44 + $0x70] sm:$0xff]
    %v6842 = vld [vmem:[#allocation44 + $0x78] sm:$0xff]
    %v6843 = vld [vmem:[#allocation44 + $0x80] sm:$0xff]
    %v6844 = vld [vmem:[#allocation44 + $0x88] sm:$0xff]
    %v6845 = vld [vmem:[#allocation44 + $0x90] sm:$0xff]
    %v6846 = vld [vmem:[#allocation44 + $0x98] sm:$0xff]
    %v6847 = vld [vmem:[#allocation44 + $0xa0] sm:$0xff]
    %v6848 = vld [vmem:[#allocation44 + $0xa8] sm:$0xff]
    %v6849 = vld [vmem:[#allocation44 + $0xb0] sm:$0xff]
    %v6850 = vld [vmem:[#allocation44 + $0xb8] sm:$0xff]
    %v6851 = vld [vmem:[#allocation44 + $0xc0] sm:$0xff]
    %v6852 = vld [vmem:[#allocation44 + $0xc8] sm:$0xff]
    %v6853 = vld [vmem:[#allocation44 + $0xd0] sm:$0xff]
    %v6854 = vld [vmem:[#allocation44 + $0xd8] sm:$0xff]
    %v6855 = vld [vmem:[#allocation44 + $0xe0] sm:$0xff]
    %v6856 = vld [vmem:[#allocation44 + $0xe8] sm:$0xff]
    %v6857 = vld [vmem:[#allocation44 + $0xf0] sm:$0xff]
    %v6858 = vld [vmem:[#allocation44 + $0xf8] sm:$0xff]
    %s6859 = scalar_lea.vmem [#allocation43], 2
    %v6860 = vld [vmem:[%s6859] sm:$0x3]
    %v6862 = vsel %vm6194, %v6860, 0
    %6864 = vmatprep.subr.bf16.mxu0 %v6782
    %6865 = vmatpush1.bf16.msra.mxu0 %v6779
    %6866 = vmatprep.subr.bf16.mxu0 0
    %6867 = vmatpush1.bf16.msra.mxu0 0
    %6868 = vmatprep.subr.bf16.mxu0 0
    %6869 = vmatpush1.bf16.msra.mxu0 0
    %6870 = vmatprep.subr.bf16.mxu0 0
    %6871 = vmatpush1.bf16.msra.mxu0 0
    %6872 = vmatprep.subr.bf16.mxu0 0
    %6873 = vmatpush1.bf16.msra.mxu0 0
    %6874 = vmatprep.subr.bf16.mxu0 0
    %6875 = vmatpush1.bf16.msra.mxu0 0
    %6876 = vmatprep.subr.bf16.mxu0 0
    %6877 = vmatpush1.bf16.msra.mxu0 0
    %6878 = vmatprep.subr.bf16.mxu0 0
    %6879 = vmatpush1.bf16.msra.mxu0 0
    %6880 = vmatprep.subr.bf16.mxu0 0
    %6881 = vmatpush1.bf16.msra.mxu0 0
    %6882 = vmatprep.subr.bf16.mxu0 0
    %6883 = vmatpush1.bf16.msra.mxu0 0
    %6884 = vmatprep.subr.bf16.mxu0 0
    %6885 = vmatpush1.bf16.msra.mxu0 0
    %6886 = vmatprep.subr.bf16.mxu0 0
    %6887 = vmatpush1.bf16.msra.mxu0 0
    %6888 = vmatprep.subr.bf16.mxu0 0
    %6889 = vmatpush1.bf16.msra.mxu0 0
    %6890 = vmatprep.subr.bf16.mxu0 0
    %6891 = vmatpush1.bf16.msra.mxu0 0
    %6892 = vmatprep.subr.bf16.mxu0 0
    %6893 = vmatpush1.bf16.msra.mxu0 0
    %6894 = vmatprep.subr.bf16.mxu0 0
    %6895 = vmatpush1.bf16.msra.mxu0 0
    %6896 = vmatprep.mubr.bf16.mxu0 0
    %6897 = vmatmul.mubr.bf16.gmra.mrb[0].mxu0 %v6862
    %v6898 = vpop.f32.mrb[0].mxu0
    %v6899 = vadd.f32 0.0, %v6898
    %v6900 = vpop.f32.mrb[0].mxu0
    %v6901 = vadd.f32 0.0, %v6900
    %v6902 = vpop.f32.mrb[0].mxu0
    %v6903 = vpop.f32.mrb[0].mxu0
    %6904 = vdwg.mxu0
    %v6905 = vpack.c.bf16 %v6899, %v6899
    %v6906 = vpack.c.bf16 %v6901, %v6901
    %s6907 = scalar_lea.vmem [#allocation44], 256
    %v6908 = vld [vmem:[%s6907] sm:$0xff]
    %v6909 = vld [vmem:[%s6907 + $0x8] sm:$0xff]
    %v6910 = vld [vmem:[%s6907 + $0x10] sm:$0xff]
    %v6911 = vld [vmem:[%s6907 + $0x18] sm:$0xff]
    %v6912 = vld [vmem:[%s6907 + $0x20] sm:$0xff]
    %v6913 = vld [vmem:[%s6907 + $0x28] sm:$0xff]
    %v6914 = vld [vmem:[%s6907 + $0x30] sm:$0xff]
    %v6915 = vld [vmem:[%s6907 + $0x38] sm:$0xff]
    %v6916 = vld [vmem:[%s6907 + $0x40] sm:$0xff]
    %v6917 = vld [vmem:[%s6907 + $0x48] sm:$0xff]
    %v6918 = vld [vmem:[%s6907 + $0x50] sm:$0xff]
    %v6919 = vld [vmem:[%s6907 + $0x58] sm:$0xff]
    %v6920 = vld [vmem:[%s6907 + $0x60] sm:$0xff]
    %v6921 = vld [vmem:[%s6907 + $0x68] sm:$0xff]
    %v6922 = vld [vmem:[%s6907 + $0x70] sm:$0xff]
    %v6923 = vld [vmem:[%s6907 + $0x78] sm:$0xff]
    %v6924 = vld [vmem:[%s6907 + $0x80] sm:$0xff]
    %v6925 = vld [vmem:[%s6907 + $0x88] sm:$0xff]
    %v6926 = vld [vmem:[%s6907 + $0x90] sm:$0xff]
    %v6927 = vld [vmem:[%s6907 + $0x98] sm:$0xff]
    %v6928 = vld [vmem:[%s6907 + $0xa0] sm:$0xff]
    %v6929 = vld [vmem:[%s6907 + $0xa8] sm:$0xff]
    %v6930 = vld [vmem:[%s6907 + $0xb0] sm:$0xff]
    %v6931 = vld [vmem:[%s6907 + $0xb8] sm:$0xff]
    %v6932 = vld [vmem:[%s6907 + $0xc0] sm:$0xff]
    %v6933 = vld [vmem:[%s6907 + $0xc8] sm:$0xff]
    %v6934 = vld [vmem:[%s6907 + $0xd0] sm:$0xff]
    %v6935 = vld [vmem:[%s6907 + $0xd8] sm:$0xff]
    %v6936 = vld [vmem:[%s6907 + $0xe0] sm:$0xff]
    %v6937 = vld [vmem:[%s6907 + $0xe8] sm:$0xff]
    %v6938 = vld [vmem:[%s6907 + $0xf0] sm:$0xff]
    %v6939 = vld [vmem:[%s6907 + $0xf8] sm:$0xff]
    %v6972 = vunpack.c.l.b16 %v6908
    %v6973 = vunpack.c.h.b16 %v6908
    %v6974 = vunpack.c.l.b16 %v6909
    %v6975 = vunpack.c.h.b16 %v6909
    %v6976 = vunpack.c.l.b16 %v6910
    %v6977 = vunpack.c.h.b16 %v6910
    %v6978 = vunpack.c.l.b16 %v6911
    %v6979 = vunpack.c.h.b16 %v6911
    %v6980 = vunpack.c.l.b16 %v6912
    %v6981 = vunpack.c.h.b16 %v6912
    %v6982 = vunpack.c.l.b16 %v6913
    %v6983 = vunpack.c.h.b16 %v6913
    %v6984 = vunpack.c.l.b16 %v6914
    %v6985 = vunpack.c.h.b16 %v6914
    %v6986 = vunpack.c.l.b16 %v6915
    %v6987 = vunpack.c.h.b16 %v6915
    %v6988 = vunpack.c.l.b16 %v6916
    %v6989 = vunpack.c.h.b16 %v6916
    %v6990 = vunpack.c.l.b16 %v6917
    %v6991 = vunpack.c.h.b16 %v6917
    %v6992 = vunpack.c.l.b16 %v6918
    %v6993 = vunpack.c.h.b16 %v6918
    %v6994 = vunpack.c.l.b16 %v6919
    %v6995 = vunpack.c.h.b16 %v6919
    %v6996 = vunpack.c.l.b16 %v6920
    %v6997 = vunpack.c.h.b16 %v6920
    %v6998 = vunpack.c.l.b16 %v6921
    %v6999 = vunpack.c.h.b16 %v6921
    %v7000 = vunpack.c.l.b16 %v6922
    %v7001 = vunpack.c.h.b16 %v6922
    %v7002 = vunpack.c.l.b16 %v6923
    %v7003 = vunpack.c.h.b16 %v6923
    %v7004 = vunpack.c.l.b16 %v6924
    %v7005 = vunpack.c.h.b16 %v6924
    %v7006 = vunpack.c.l.b16 %v6925
    %v7007 = vunpack.c.h.b16 %v6925
    %v7008 = vunpack.c.l.b16 %v6926
    %v7009 = vunpack.c.h.b16 %v6926
    %v7010 = vunpack.c.l.b16 %v6927
    %v7011 = vunpack.c.h.b16 %v6927
    %v7012 = vunpack.c.l.b16 %v6928
    %v7013 = vunpack.c.h.b16 %v6928
    %v7014 = vunpack.c.l.b16 %v6929
    %v7015 = vunpack.c.h.b16 %v6929
    %v7016 = vunpack.c.l.b16 %v6930
    %v7017 = vunpack.c.h.b16 %v6930
    %v7018 = vunpack.c.l.b16 %v6931
    %v7019 = vunpack.c.h.b16 %v6931
    %v7020 = vunpack.c.l.b16 %v6932
    %v7021 = vunpack.c.h.b16 %v6932
    %v7022 = vunpack.c.l.b16 %v6933
    %v7023 = vunpack.c.h.b16 %v6933
    %v7024 = vunpack.c.l.b16 %v6934
    %v7025 = vunpack.c.h.b16 %v6934
    %v7026 = vunpack.c.l.b16 %v6935
    %v7027 = vunpack.c.h.b16 %v6935
    %v7028 = vunpack.c.l.b16 %v6936
    %v7029 = vunpack.c.h.b16 %v6936
    %v7030 = vunpack.c.l.b16 %v6937
    %v7031 = vunpack.c.h.b16 %v6937
    %v7032 = vunpack.c.l.b16 %v6938
    %v7033 = vunpack.c.h.b16 %v6938
    %v7034 = vunpack.c.l.b16 %v6939
    %v7035 = vunpack.c.h.b16 %v6939
    %v7036 = vpack.c.b16 %v6974, %v6972
    %v7037 = vpack.c.b16 %v6975, %v6973
    %v7038 = vpack.c.b16 %v6978, %v6976
    %v7039 = vpack.c.b16 %v6979, %v6977
    %v7040 = vpack.c.b16 %v6982, %v6980
    %v7041 = vpack.c.b16 %v6983, %v6981
    %v7042 = vpack.c.b16 %v6986, %v6984
    %v7043 = vpack.c.b16 %v6987, %v6985
    %v7044 = vpack.c.b16 %v6990, %v6988
    %v7045 = vpack.c.b16 %v6991, %v6989
    %v7046 = vpack.c.b16 %v6994, %v6992
    %v7047 = vpack.c.b16 %v6995, %v6993
    %v7048 = vpack.c.b16 %v6998, %v6996
    %v7049 = vpack.c.b16 %v6999, %v6997
    %v7050 = vpack.c.b16 %v7002, %v7000
    %v7051 = vpack.c.b16 %v7003, %v7001
    %v7052 = vpack.c.b16 %v7006, %v7004
    %v7053 = vpack.c.b16 %v7007, %v7005
    %v7054 = vpack.c.b16 %v7010, %v7008
    %v7055 = vpack.c.b16 %v7011, %v7009
    %v7056 = vpack.c.b16 %v7014, %v7012
    %v7057 = vpack.c.b16 %v7015, %v7013
    %v7058 = vpack.c.b16 %v7018, %v7016
    %v7059 = vpack.c.b16 %v7019, %v7017
    %v7060 = vpack.c.b16 %v7022, %v7020
    %v7061 = vpack.c.b16 %v7023, %v7021
    %v7062 = vpack.c.b16 %v7026, %v7024
    %v7063 = vpack.c.b16 %v7027, %v7025
    %v7064 = vpack.c.b16 %v7030, %v7028
    %v7065 = vpack.c.b16 %v7031, %v7029
    %v7066 = vpack.c.b16 %v7034, %v7032
    %v7067 = vpack.c.b16 %v7035, %v7033
    %7100 = vmatprep.subr.bf16.mxu0 %v7037
    %7101 = vmatpush1.bf16.msra.mxu0 %v7036
    %7102 = vmatprep.subr.bf16.mxu0 %v7039
    %7103 = vmatpush1.bf16.msra.mxu0 %v7038
    %7104 = vmatprep.subr.bf16.mxu0 %v7041
    %7105 = vmatpush1.bf16.msra.mxu0 %v7040
    %7106 = vmatprep.subr.bf16.mxu0 %v7043
    %7107 = vmatpush1.bf16.msra.mxu0 %v7042
    %7108 = vmatprep.subr.bf16.mxu0 %v7045
    %7109 = vmatpush1.bf16.msra.mxu0 %v7044
    %7110 = vmatprep.subr.bf16.mxu0 %v7047
    %7111 = vmatpush1.bf16.msra.mxu0 %v7046
    %7112 = vmatprep.subr.bf16.mxu0 %v7049
    %7113 = vmatpush1.bf16.msra.mxu0 %v7048
    %7114 = vmatprep.subr.bf16.mxu0 %v7051
    %7115 = vmatpush1.bf16.msra.mxu0 %v7050
    %7116 = vmatprep.subr.bf16.mxu0 %v7053
    %7117 = vmatpush1.bf16.msra.mxu0 %v7052
    %7118 = vmatprep.subr.bf16.mxu0 %v7055
    %7119 = vmatpush1.bf16.msra.mxu0 %v7054
    %7120 = vmatprep.subr.bf16.mxu0 %v7057
    %7121 = vmatpush1.bf16.msra.mxu0 %v7056
    %7122 = vmatprep.subr.bf16.mxu0 %v7059
    %7123 = vmatpush1.bf16.msra.mxu0 %v7058
    %7124 = vmatprep.subr.bf16.mxu0 %v7061
    %7125 = vmatpush1.bf16.msra.mxu0 %v7060
    %7126 = vmatprep.subr.bf16.mxu0 %v7063
    %7127 = vmatpush1.bf16.msra.mxu0 %v7062
    %7128 = vmatprep.subr.bf16.mxu0 %v7065
    %7129 = vmatpush1.bf16.msra.mxu0 %v7064
    %7130 = vmatprep.subr.bf16.mxu0 %v7067
    %7131 = vmatpush1.bf16.msra.mxu0 %v7066
    %7132 = vmatprep.mubr.bf16.mxu0 %v6906
    %7133 = vmatmul.mubr.bf16.gmra.mrb[0].mxu0 %v6905
    %v7134 = vpop.f32.mrb[0].mxu0
    %v7135 = vadd.f32 0.0, %v7134
    %v7136 = vpop.f32.mrb[0].mxu0
    %v7137 = vadd.f32 0.0, %v7136
    %v7138 = vpop.f32.mrb[0].mxu0
    %v7139 = vpop.f32.mrb[0].mxu0
    %7140 = vdwg.mxu0
    %v7173 = vunpack.c.l.b16 %v6827
    %v7174 = vunpack.c.h.b16 %v6827
    %v7175 = vunpack.c.l.b16 %v6828
    %v7176 = vunpack.c.h.b16 %v6828
    %v7177 = vunpack.c.l.b16 %v6829
    %v7178 = vunpack.c.h.b16 %v6829
    %v7179 = vunpack.c.l.b16 %v6830
    %v7180 = vunpack.c.h.b16 %v6830
    %v7181 = vunpack.c.l.b16 %v6831
    %v7182 = vunpack.c.h.b16 %v6831
    %v7183 = vunpack.c.l.b16 %v6832
    %v7184 = vunpack.c.h.b16 %v6832
    %v7185 = vunpack.c.l.b16 %v6833
    %v7186 = vunpack.c.h.b16 %v6833
    %v7187 = vunpack.c.l.b16 %v6834
    %v7188 = vunpack.c.h.b16 %v6834
    %v7189 = vunpack.c.l.b16 %v6835
    %v7190 = vunpack.c.h.b16 %v6835
    %v7191 = vunpack.c.l.b16 %v6836
    %v7192 = vunpack.c.h.b16 %v6836
    %v7193 = vunpack.c.l.b16 %v6837
    %v7194 = vunpack.c.h.b16 %v6837
    %v7195 = vunpack.c.l.b16 %v6838
    %v7196 = vunpack.c.h.b16 %v6838
    %v7197 = vunpack.c.l.b16 %v6839
    %v7198 = vunpack.c.h.b16 %v6839
    %v7199 = vunpack.c.l.b16 %v6840
    %v7200 = vunpack.c.h.b16 %v6840
    %v7201 = vunpack.c.l.b16 %v6841
    %v7202 = vunpack.c.h.b16 %v6841
    %v7203 = vunpack.c.l.b16 %v6842
    %v7204 = vunpack.c.h.b16 %v6842
    %v7205 = vunpack.c.l.b16 %v6843
    %v7206 = vunpack.c.h.b16 %v6843
    %v7207 = vunpack.c.l.b16 %v6844
    %v7208 = vunpack.c.h.b16 %v6844
    %v7209 = vunpack.c.l.b16 %v6845
    %v7210 = vunpack.c.h.b16 %v6845
    %v7211 = vunpack.c.l.b16 %v6846
    %v7212 = vunpack.c.h.b16 %v6846
    %v7213 = vunpack.c.l.b16 %v6847
    %v7214 = vunpack.c.h.b16 %v6847
    %v7215 = vunpack.c.l.b16 %v6848
    %v7216 = vunpack.c.h.b16 %v6848
    %v7217 = vunpack.c.l.b16 %v6849
    %v7218 = vunpack.c.h.b16 %v6849
    %v7219 = vunpack.c.l.b16 %v6850
    %v7220 = vunpack.c.h.b16 %v6850
    %v7221 = vunpack.c.l.b16 %v6851
    %v7222 = vunpack.c.h.b16 %v6851
    %v7223 = vunpack.c.l.b16 %v6852
    %v7224 = vunpack.c.h.b16 %v6852
    %v7225 = vunpack.c.l.b16 %v6853
    %v7226 = vunpack.c.h.b16 %v6853
    %v7227 = vunpack.c.l.b16 %v6854
    %v7228 = vunpack.c.h.b16 %v6854
    %v7229 = vunpack.c.l.b16 %v6855
    %v7230 = vunpack.c.h.b16 %v6855
    %v7231 = vunpack.c.l.b16 %v6856
    %v7232 = vunpack.c.h.b16 %v6856
    %v7233 = vunpack.c.l.b16 %v6857
    %v7234 = vunpack.c.h.b16 %v6857
    %v7235 = vunpack.c.l.b16 %v6858
    %v7236 = vunpack.c.h.b16 %v6858
    %v7237 = vpack.c.b16 %v7175, %v7173
    %v7238 = vpack.c.b16 %v7176, %v7174
    %v7239 = vpack.c.b16 %v7179, %v7177
    %v7240 = vpack.c.b16 %v7180, %v7178
    %v7241 = vpack.c.b16 %v7183, %v7181
    %v7242 = vpack.c.b16 %v7184, %v7182
    %v7243 = vpack.c.b16 %v7187, %v7185
    %v7244 = vpack.c.b16 %v7188, %v7186
    %v7245 = vpack.c.b16 %v7191, %v7189
    %v7246 = vpack.c.b16 %v7192, %v7190
    %v7247 = vpack.c.b16 %v7195, %v7193
    %v7248 = vpack.c.b16 %v7196, %v7194
    %v7249 = vpack.c.b16 %v7199, %v7197
    %v7250 = vpack.c.b16 %v7200, %v7198
    %v7251 = vpack.c.b16 %v7203, %v7201
    %v7252 = vpack.c.b16 %v7204, %v7202
    %v7253 = vpack.c.b16 %v7207, %v7205
    %v7254 = vpack.c.b16 %v7208, %v7206
    %v7255 = vpack.c.b16 %v7211, %v7209
    %v7256 = vpack.c.b16 %v7212, %v7210
    %v7257 = vpack.c.b16 %v7215, %v7213
    %v7258 = vpack.c.b16 %v7216, %v7214
    %v7259 = vpack.c.b16 %v7219, %v7217
    %v7260 = vpack.c.b16 %v7220, %v7218
    %v7261 = vpack.c.b16 %v7223, %v7221
    %v7262 = vpack.c.b16 %v7224, %v7222
    %v7263 = vpack.c.b16 %v7227, %v7225
    %v7264 = vpack.c.b16 %v7228, %v7226
    %v7265 = vpack.c.b16 %v7231, %v7229
    %v7266 = vpack.c.b16 %v7232, %v7230
    %v7267 = vpack.c.b16 %v7235, %v7233
    %v7268 = vpack.c.b16 %v7236, %v7234
    %7301 = vmatprep.subr.bf16.mxu0 %v7238
    %7302 = vmatpush1.bf16.msra.mxu0 %v7237
    %7303 = vmatprep.subr.bf16.mxu0 %v7240
    %7304 = vmatpush1.bf16.msra.mxu0 %v7239
    %7305 = vmatprep.subr.bf16.mxu0 %v7242
    %7306 = vmatpush1.bf16.msra.mxu0 %v7241
    %7307 = vmatprep.subr.bf16.mxu0 %v7244
    %7308 = vmatpush1.bf16.msra.mxu0 %v7243
    %7309 = vmatprep.subr.bf16.mxu0 %v7246
    %7310 = vmatpush1.bf16.msra.mxu0 %v7245
    %7311 = vmatprep.subr.bf16.mxu0 %v7248
    %7312 = vmatpush1.bf16.msra.mxu0 %v7247
    %7313 = vmatprep.subr.bf16.mxu0 %v7250
    %7314 = vmatpush1.bf16.msra.mxu0 %v7249
    %7315 = vmatprep.subr.bf16.mxu0 %v7252
    %7316 = vmatpush1.bf16.msra.mxu0 %v7251
    %7317 = vmatprep.subr.bf16.mxu0 %v7254
    %7318 = vmatpush1.bf16.msra.mxu0 %v7253
    %7319 = vmatprep.subr.bf16.mxu0 %v7256
    %7320 = vmatpush1.bf16.msra.mxu0 %v7255
    %7321 = vmatprep.subr.bf16.mxu0 %v7258
    %7322 = vmatpush1.bf16.msra.mxu0 %v7257
    %7323 = vmatprep.subr.bf16.mxu0 %v7260
    %7324 = vmatpush1.bf16.msra.mxu0 %v7259
    %7325 = vmatprep.subr.bf16.mxu0 %v7262
    %7326 = vmatpush1.bf16.msra.mxu0 %v7261
    %7327 = vmatprep.subr.bf16.mxu0 %v7264
    %7328 = vmatpush1.bf16.msra.mxu0 %v7263
    %7329 = vmatprep.subr.bf16.mxu0 %v7266
    %7330 = vmatpush1.bf16.msra.mxu0 %v7265
    %7331 = vmatprep.subr.bf16.mxu0 %v7268
    %7332 = vmatpush1.bf16.msra.mxu0 %v7267
    %7333 = vmatprep.mubr.bf16.mxu0 %v6826
    %7334 = vmatmul.mubr.bf16.gmra.mrb[0].mxu0 %v6825
    %v7335 = vpop.f32.mrb[0].mxu0
    %v7336 = vadd.f32 %v7135, %v7335
    %v7337 = vpop.f32.mrb[0].mxu0
    %v7338 = vadd.f32 %v7137, %v7337
    %v7339 = vpop.f32.mrb[0].mxu0
    %v7340 = vpop.f32.mrb[0].mxu0
    %7341 = vdwg.mxu0
    %s7342 = scalar_lea.vmem [#allocation43], 4
    %v7343 = vld [vmem:[%s7342] sm:$0x3]
    %v7345 = vsel %vm6194, %v7343, 0
    %7347 = vmatprep.subr.bf16.mxu0 %v6782
    %7348 = vmatpush1.bf16.msra.mxu0 %v6779
    %7349 = vmatprep.subr.bf16.mxu0 0
    %7350 = vmatpush1.bf16.msra.mxu0 0
    %7351 = vmatprep.subr.bf16.mxu0 0
    %7352 = vmatpush1.bf16.msra.mxu0 0
    %7353 = vmatprep.subr.bf16.mxu0 0
    %7354 = vmatpush1.bf16.msra.mxu0 0
    %7355 = vmatprep.subr.bf16.mxu0 0
    %7356 = vmatpush1.bf16.msra.mxu0 0
    %7357 = vmatprep.subr.bf16.mxu0 0
    %7358 = vmatpush1.bf16.msra.mxu0 0
    %7359 = vmatprep.subr.bf16.mxu0 0
    %7360 = vmatpush1.bf16.msra.mxu0 0
    %7361 = vmatprep.subr.bf16.mxu0 0
    %7362 = vmatpush1.bf16.msra.mxu0 0
    %7363 = vmatprep.subr.bf16.mxu0 0
    %7364 = vmatpush1.bf16.msra.mxu0 0
    %7365 = vmatprep.subr.bf16.mxu0 0
    %7366 = vmatpush1.bf16.msra.mxu0 0
    %7367 = vmatprep.subr.bf16.mxu0 0
    %7368 = vmatpush1.bf16.msra.mxu0 0
    %7369 = vmatprep.subr.bf16.mxu0 0
    %7370 = vmatpush1.bf16.msra.mxu0 0
    %7371 = vmatprep.subr.bf16.mxu0 0
    %7372 = vmatpush1.bf16.msra.mxu0 0
    %7373 = vmatprep.subr.bf16.mxu0 0
    %7374 = vmatpush1.bf16.msra.mxu0 0
    %7375 = vmatprep.subr.bf16.mxu0 0
    %7376 = vmatpush1.bf16.msra.mxu0 0
    %7377 = vmatprep.subr.bf16.mxu0 0
    %7378 = vmatpush1.bf16.msra.mxu0 0
    %7379 = vmatprep.mubr.bf16.mxu0 0
    %7380 = vmatmul.mubr.bf16.gmra.mrb[0].mxu0 %v7345
    %v7381 = vpop.f32.mrb[0].mxu0
    %v7382 = vadd.f32 0.0, %v7381
    %v7383 = vpop.f32.mrb[0].mxu0
    %v7384 = vadd.f32 0.0, %v7383
    %v7385 = vpop.f32.mrb[0].mxu0
    %v7386 = vpop.f32.mrb[0].mxu0
    %7387 = vdwg.mxu0
    %v7388 = vpack.c.bf16 %v7382, %v7382
    %v7389 = vpack.c.bf16 %v7384, %v7384
    %s7390 = scalar_lea.vmem [#allocation44], 512
    %v7391 = vld [vmem:[%s7390] sm:$0xff]
    %v7392 = vld [vmem:[%s7390 + $0x8] sm:$0xff]
    %v7393 = vld [vmem:[%s7390 + $0x10] sm:$0xff]
    %v7394 = vld [vmem:[%s7390 + $0x18] sm:$0xff]
    %v7395 = vld [vmem:[%s7390 + $0x20] sm:$0xff]
    %v7396 = vld [vmem:[%s7390 + $0x28] sm:$0xff]
    %v7397 = vld [vmem:[%s7390 + $0x30] sm:$0xff]
    %v7398 = vld [vmem:[%s7390 + $0x38] sm:$0xff]
    %v7399 = vld [vmem:[%s7390 + $0x40] sm:$0xff]
    %v7400 = vld [vmem:[%s7390 + $0x48] sm:$0xff]
    %v7401 = vld [vmem:[%s7390 + $0x50] sm:$0xff]
    %v7402 = vld [vmem:[%s7390 + $0x58] sm:$0xff]
    %v7403 = vld [vmem:[%s7390 + $0x60] sm:$0xff]
    %v7404 = vld [vmem:[%s7390 + $0x68] sm:$0xff]
    %v7405 = vld [vmem:[%s7390 + $0x70] sm:$0xff]
    %v7406 = vld [vmem:[%s7390 + $0x78] sm:$0xff]
    %v7407 = vld [vmem:[%s7390 + $0x80] sm:$0xff]
    %v7408 = vld [vmem:[%s7390 + $0x88] sm:$0xff]
    %v7409 = vld [vmem:[%s7390 + $0x90] sm:$0xff]
    %v7410 = vld [vmem:[%s7390 + $0x98] sm:$0xff]
    %v7411 = vld [vmem:[%s7390 + $0xa0] sm:$0xff]
    %v7412 = vld [vmem:[%s7390 + $0xa8] sm:$0xff]
    %v7413 = vld [vmem:[%s7390 + $0xb0] sm:$0xff]
    %v7414 = vld [vmem:[%s7390 + $0xb8] sm:$0xff]
    %v7415 = vld [vmem:[%s7390 + $0xc0] sm:$0xff]
    %v7416 = vld [vmem:[%s7390 + $0xc8] sm:$0xff]
    %v7417 = vld [vmem:[%s7390 + $0xd0] sm:$0xff]
    %v7418 = vld [vmem:[%s7390 + $0xd8] sm:$0xff]
    %v7419 = vld [vmem:[%s7390 + $0xe0] sm:$0xff]
    %v7420 = vld [vmem:[%s7390 + $0xe8] sm:$0xff]
    %v7421 = vld [vmem:[%s7390 + $0xf0] sm:$0xff]
    %v7422 = vld [vmem:[%s7390 + $0xf8] sm:$0xff]
    %v7455 = vunpack.c.l.b16 %v7391
    %v7456 = vunpack.c.h.b16 %v7391
    %v7457 = vunpack.c.l.b16 %v7392
    %v7458 = vunpack.c.h.b16 %v7392
    %v7459 = vunpack.c.l.b16 %v7393
    %v7460 = vunpack.c.h.b16 %v7393
    %v7461 = vunpack.c.l.b16 %v7394
    %v7462 = vunpack.c.h.b16 %v7394
    %v7463 = vunpack.c.l.b16 %v7395
    %v7464 = vunpack.c.h.b16 %v7395
    %v7465 = vunpack.c.l.b16 %v7396
    %v7466 = vunpack.c.h.b16 %v7396
    %v7467 = vunpack.c.l.b16 %v7397
    %v7468 = vunpack.c.h.b16 %v7397
    %v7469 = vunpack.c.l.b16 %v7398
    %v7470 = vunpack.c.h.b16 %v7398
    %v7471 = vunpack.c.l.b16 %v7399
    %v7472 = vunpack.c.h.b16 %v7399
    %v7473 = vunpack.c.l.b16 %v7400
    %v7474 = vunpack.c.h.b16 %v7400
    %v7475 = vunpack.c.l.b16 %v7401
    %v7476 = vunpack.c.h.b16 %v7401
    %v7477 = vunpack.c.l.b16 %v7402
    %v7478 = vunpack.c.h.b16 %v7402
    %v7479 = vunpack.c.l.b16 %v7403
    %v7480 = vunpack.c.h.b16 %v7403
    %v7481 = vunpack.c.l.b16 %v7404
    %v7482 = vunpack.c.h.b16 %v7404
    %v7483 = vunpack.c.l.b16 %v7405
    %v7484 = vunpack.c.h.b16 %v7405
    %v7485 = vunpack.c.l.b16 %v7406
    %v7486 = vunpack.c.h.b16 %v7406
    %v7487 = vunpack.c.l.b16 %v7407
    %v7488 = vunpack.c.h.b16 %v7407
    %v7489 = vunpack.c.l.b16 %v7408
    %v7490 = vunpack.c.h.b16 %v7408
    %v7491 = vunpack.c.l.b16 %v7409
    %v7492 = vunpack.c.h.b16 %v7409
    %v7493 = vunpack.c.l.b16 %v7410
    %v7494 = vunpack.c.h.b16 %v7410
    %v7495 = vunpack.c.l.b16 %v7411
    %v7496 = vunpack.c.h.b16 %v7411
    %v7497 = vunpack.c.l.b16 %v7412
    %v7498 = vunpack.c.h.b16 %v7412
    %v7499 = vunpack.c.l.b16 %v7413
    %v7500 = vunpack.c.h.b16 %v7413
    %v7501 = vunpack.c.l.b16 %v7414
    %v7502 = vunpack.c.h.b16 %v7414
    %v7503 = vunpack.c.l.b16 %v7415
    %v7504 = vunpack.c.h.b16 %v7415
    %v7505 = vunpack.c.l.b16 %v7416
    %v7506 = vunpack.c.h.b16 %v7416
    %v7507 = vunpack.c.l.b16 %v7417
    %v7508 = vunpack.c.h.b16 %v7417
    %v7509 = vunpack.c.l.b16 %v7418
    %v7510 = vunpack.c.h.b16 %v7418
    %v7511 = vunpack.c.l.b16 %v7419
    %v7512 = vunpack.c.h.b16 %v7419
    %v7513 = vunpack.c.l.b16 %v7420
    %v7514 = vunpack.c.h.b16 %v7420
    %v7515 = vunpack.c.l.b16 %v7421
    %v7516 = vunpack.c.h.b16 %v7421
    %v7517 = vunpack.c.l.b16 %v7422
    %v7518 = vunpack.c.h.b16 %v7422
    %v7519 = vpack.c.b16 %v7457, %v7455
    %v7520 = vpack.c.b16 %v7458, %v7456
    %v7521 = vpack.c.b16 %v7461, %v7459
    %v7522 = vpack.c.b16 %v7462, %v7460
    %v7523 = vpack.c.b16 %v7465, %v7463
    %v7524 = vpack.c.b16 %v7466, %v7464
    %v7525 = vpack.c.b16 %v7469, %v7467
    %v7526 = vpack.c.b16 %v7470, %v7468
    %v7527 = vpack.c.b16 %v7473, %v7471
    %v7528 = vpack.c.b16 %v7474, %v7472
    %v7529 = vpack.c.b16 %v7477, %v7475
    %v7530 = vpack.c.b16 %v7478, %v7476
    %v7531 = vpack.c.b16 %v7481, %v7479
    %v7532 = vpack.c.b16 %v7482, %v7480
    %v7533 = vpack.c.b16 %v7485, %v7483
    %v7534 = vpack.c.b16 %v7486, %v7484
    %v7535 = vpack.c.b16 %v7489, %v7487
    %v7536 = vpack.c.b16 %v7490, %v7488
    %v7537 = vpack.c.b16 %v7493, %v7491
    %v7538 = vpack.c.b16 %v7494, %v7492
    %v7539 = vpack.c.b16 %v7497, %v7495
    %v7540 = vpack.c.b16 %v7498, %v7496
    %v7541 = vpack.c.b16 %v7501, %v7499
    %v7542 = vpack.c.b16 %v7502, %v7500
    %v7543 = vpack.c.b16 %v7505, %v7503
    %v7544 = vpack.c.b16 %v7506, %v7504
    %v7545 = vpack.c.b16 %v7509, %v7507
    %v7546 = vpack.c.b16 %v7510, %v7508
    %v7547 = vpack.c.b16 %v7513, %v7511
    %v7548 = vpack.c.b16 %v7514, %v7512
    %v7549 = vpack.c.b16 %v7517, %v7515
    %v7550 = vpack.c.b16 %v7518, %v7516
    %7583 = vmatprep.subr.bf16.mxu0 %v7520
    %7584 = vmatpush1.bf16.msra.mxu0 %v7519
    %7585 = vmatprep.subr.bf16.mxu0 %v7522
    %7586 = vmatpush1.bf16.msra.mxu0 %v7521
    %7587 = vmatprep.subr.bf16.mxu0 %v7524
    %7588 = vmatpush1.bf16.msra.mxu0 %v7523
    %7589 = vmatprep.subr.bf16.mxu0 %v7526
    %7590 = vmatpush1.bf16.msra.mxu0 %v7525
    %7591 = vmatprep.subr.bf16.mxu0 %v7528
    %7592 = vmatpush1.bf16.msra.mxu0 %v7527
    %7593 = vmatprep.subr.bf16.mxu0 %v7530
    %7594 = vmatpush1.bf16.msra.mxu0 %v7529
    %7595 = vmatprep.subr.bf16.mxu0 %v7532
    %7596 = vmatpush1.bf16.msra.mxu0 %v7531
    %7597 = vmatprep.subr.bf16.mxu0 %v7534
    %7598 = vmatpush1.bf16.msra.mxu0 %v7533
    %7599 = vmatprep.subr.bf16.mxu0 %v7536
    %7600 = vmatpush1.bf16.msra.mxu0 %v7535
    %7601 = vmatprep.subr.bf16.mxu0 %v7538
    %7602 = vmatpush1.bf16.msra.mxu0 %v7537
    %7603 = vmatprep.subr.bf16.mxu0 %v7540
    %7604 = vmatpush1.bf16.msra.mxu0 %v7539
    %7605 = vmatprep.subr.bf16.mxu0 %v7542
    %7606 = vmatpush1.bf16.msra.mxu0 %v7541
    %7607 = vmatprep.subr.bf16.mxu0 %v7544
    %7608 = vmatpush1.bf16.msra.mxu0 %v7543
    %7609 = vmatprep.subr.bf16.mxu0 %v7546
    %7610 = vmatpush1.bf16.msra.mxu0 %v7545
    %7611 = vmatprep.subr.bf16.mxu0 %v7548
    %7612 = vmatpush1.bf16.msra.mxu0 %v7547
    %7613 = vmatprep.subr.bf16.mxu0 %v7550
    %7614 = vmatpush1.bf16.msra.mxu0 %v7549
    %7615 = vmatprep.mubr.bf16.mxu0 %v7389
    %7616 = vmatmul.mubr.bf16.gmra.mrb[0].mxu0 %v7388
    %v7617 = vpop.f32.mrb[0].mxu0
    %v7618 = vadd.f32 0.0, %v7617
    %v7619 = vpop.f32.mrb[0].mxu0
    %v7620 = vadd.f32 0.0, %v7619
    %v7621 = vpop.f32.mrb[0].mxu0
    %v7622 = vpop.f32.mrb[0].mxu0
    %7623 = vdwg.mxu0
    %v7624 = vadd.f32 %v7336, %v7618
    %v7625 = vadd.f32 %v7338, %v7620
    %v7626 = vld [vmem:[#allocation46] sm:$0x3]
    %v7628 = vlaneseq
    %v7629 = vshrl.u32 %v7628, 7
    %v7630 = vsub.s32 0, %v7629
    %v7631 = vrot.slane %v7626, %v7630
    %v7632 = vlaneseq
    %v7633 = vshrl.u32 %v7632, 7
    %v7634 = vsub.s32 1, %v7633
    %v7635 = vrot.slane %v7626, %v7634
    %v7638 = vadd.f32 %v7624, %v7631
    %v7639 = vadd.f32 %v7625, %v7635
    %vm7640 = vcmp.ge.f32.partialorder %v7638, 0.0
    %vm7641 = vcmp.ge.f32.partialorder %v7639, 0.0
    %v7642 = vmul.f32 %v7638, 0.1
    %v7643 = vmul.f32 %v7639, 0.1
    %v7644 = vsel %vm7640, %v7638, %v7642
    %v7645 = vsel %vm7641, %v7639, %v7643
    %v7646 = vpack.c.bf16 %v7644, %v7644
    %v7647 = vpack.c.bf16 %v7645, %v7645
    %v7648 = vld [vmem:[#allocation47] sm:$0xf]
    %v7649 = vld [vmem:[#allocation47 + $0x4] sm:$0xf]
    %v7650 = vld [vmem:[#allocation47 + $0x8] sm:$0xf]
    %v7651 = vld [vmem:[#allocation47 + $0xc] sm:$0xf]
    %v7652 = vld [vmem:[#allocation47 + $0x10] sm:$0xf]
    %v7653 = vld [vmem:[#allocation47 + $0x14] sm:$0xf]
    %v7654 = vld [vmem:[#allocation47 + $0x18] sm:$0xf]
    %v7655 = vld [vmem:[#allocation47 + $0x1c] sm:$0xf]
    %v7656 = vld [vmem:[#allocation47 + $0x20] sm:$0xf]
    %v7657 = vld [vmem:[#allocation47 + $0x24] sm:$0xf]
    %v7658 = vld [vmem:[#allocation47 + $0x28] sm:$0xf]
    %v7659 = vld [vmem:[#allocation47 + $0x2c] sm:$0xf]
    %v7660 = vld [vmem:[#allocation47 + $0x30] sm:$0xf]
    %v7661 = vld [vmem:[#allocation47 + $0x34] sm:$0xf]
    %v7662 = vld [vmem:[#allocation47 + $0x38] sm:$0xf]
    %v7663 = vld [vmem:[#allocation47 + $0x3c] sm:$0xf]
    %v7664 = vld [vmem:[#allocation47 + $0x40] sm:$0xf]
    %v7665 = vld [vmem:[#allocation47 + $0x44] sm:$0xf]
    %v7666 = vld [vmem:[#allocation47 + $0x48] sm:$0xf]
    %v7667 = vld [vmem:[#allocation47 + $0x4c] sm:$0xf]
    %v7668 = vld [vmem:[#allocation47 + $0x50] sm:$0xf]
    %v7669 = vld [vmem:[#allocation47 + $0x54] sm:$0xf]
    %v7670 = vld [vmem:[#allocation47 + $0x58] sm:$0xf]
    %v7671 = vld [vmem:[#allocation47 + $0x5c] sm:$0xf]
    %v7672 = vld [vmem:[#allocation47 + $0x60] sm:$0xf]
    %v7673 = vld [vmem:[#allocation47 + $0x64] sm:$0xf]
    %v7674 = vld [vmem:[#allocation47 + $0x68] sm:$0xf]
    %v7675 = vld [vmem:[#allocation47 + $0x6c] sm:$0xf]
    %v7676 = vld [vmem:[#allocation47 + $0x70] sm:$0xf]
    %v7677 = vld [vmem:[#allocation47 + $0x74] sm:$0xf]
    %v7678 = vld [vmem:[#allocation47 + $0x78] sm:$0xf]
    %v7679 = vld [vmem:[#allocation47 + $0x7c] sm:$0xf]
    %v7680 = vld [vmem:[#allocation49] sm:$0x1]
    %v7682 = vlaneseq
    %v7683 = vshrl.u32 %v7682, 7
    %v7684 = vsub.s32 0, %v7683
    %v7685 = vrot.slane %v7680, %v7684
    %v7719 = vunpack.c.l.b16 %v7648
    %v7720 = vunpack.c.l.b16 %v7649
    %v7721 = vunpack.c.l.b16 %v7650
    %v7722 = vunpack.c.l.b16 %v7651
    %v7723 = vunpack.c.l.b16 %v7652
    %v7724 = vunpack.c.l.b16 %v7653
    %v7725 = vunpack.c.l.b16 %v7654
    %v7726 = vunpack.c.l.b16 %v7655
    %v7727 = vunpack.c.l.b16 %v7656
    %v7728 = vunpack.c.l.b16 %v7657
    %v7729 = vunpack.c.l.b16 %v7658
    %v7730 = vunpack.c.l.b16 %v7659
    %v7731 = vunpack.c.l.b16 %v7660
    %v7732 = vunpack.c.l.b16 %v7661
    %v7733 = vunpack.c.l.b16 %v7662
    %v7734 = vunpack.c.l.b16 %v7663
    %v7735 = vunpack.c.l.b16 %v7664
    %v7736 = vunpack.c.l.b16 %v7665
    %v7737 = vunpack.c.l.b16 %v7666
    %v7738 = vunpack.c.l.b16 %v7667
    %v7739 = vunpack.c.l.b16 %v7668
    %v7740 = vunpack.c.l.b16 %v7669
    %v7741 = vunpack.c.l.b16 %v7670
    %v7742 = vunpack.c.l.b16 %v7671
    %v7743 = vunpack.c.l.b16 %v7672
    %v7744 = vunpack.c.l.b16 %v7673
    %v7745 = vunpack.c.l.b16 %v7674
    %v7746 = vunpack.c.l.b16 %v7675
    %v7747 = vunpack.c.l.b16 %v7676
    %v7748 = vunpack.c.l.b16 %v7677
    %v7749 = vunpack.c.l.b16 %v7678
    %v7750 = vunpack.c.l.b16 %v7679
    %v7751 = vpack.c.b16 %v7720, %v7719
    %v7752 = vpack.c.b16 %v7722, %v7721
    %v7753 = vpack.c.b16 %v7724, %v7723
    %v7754 = vpack.c.b16 %v7726, %v7725
    %v7755 = vpack.c.b16 %v7728, %v7727
    %v7756 = vpack.c.b16 %v7730, %v7729
    %v7757 = vpack.c.b16 %v7732, %v7731
    %v7758 = vpack.c.b16 %v7734, %v7733
    %v7759 = vpack.c.b16 %v7736, %v7735
    %v7760 = vpack.c.b16 %v7738, %v7737
    %v7761 = vpack.c.b16 %v7740, %v7739
    %v7762 = vpack.c.b16 %v7742, %v7741
    %v7763 = vpack.c.b16 %v7744, %v7743
    %v7764 = vpack.c.b16 %v7746, %v7745
    %v7765 = vpack.c.b16 %v7748, %v7747
    %v7766 = vpack.c.b16 %v7750, %v7749
    %7783 = vmatprep.subr.bf16.mxu0 0
    %7784 = vmatpush1.bf16.msra.mxu0 %v7751
    %7785 = vmatprep.subr.bf16.mxu0 0
    %7786 = vmatpush1.bf16.msra.mxu0 %v7752
    %7787 = vmatprep.subr.bf16.mxu0 0
    %7788 = vmatpush1.bf16.msra.mxu0 %v7753
    %7789 = vmatprep.subr.bf16.mxu0 0
    %7790 = vmatpush1.bf16.msra.mxu0 %v7754
    %7791 = vmatprep.subr.bf16.mxu0 0
    %7792 = vmatpush1.bf16.msra.mxu0 %v7755
    %7793 = vmatprep.subr.bf16.mxu0 0
    %7794 = vmatpush1.bf16.msra.mxu0 %v7756
    %7795 = vmatprep.subr.bf16.mxu0 0
    %7796 = vmatpush1.bf16.msra.mxu0 %v7757
    %7797 = vmatprep.subr.bf16.mxu0 0
    %7798 = vmatpush1.bf16.msra.mxu0 %v7758
    %7799 = vmatprep.subr.bf16.mxu0 0
    %7800 = vmatpush1.bf16.msra.mxu0 %v7759
    %7801 = vmatprep.subr.bf16.mxu0 0
    %7802 = vmatpush1.bf16.msra.mxu0 %v7760
    %7803 = vmatprep.subr.bf16.mxu0 0
    %7804 = vmatpush1.bf16.msra.mxu0 %v7761
    %7805 = vmatprep.subr.bf16.mxu0 0
    %7806 = vmatpush1.bf16.msra.mxu0 %v7762
    %7807 = vmatprep.subr.bf16.mxu0 0
    %7808 = vmatpush1.bf16.msra.mxu0 %v7763
    %7809 = vmatprep.subr.bf16.mxu0 0
    %7810 = vmatpush1.bf16.msra.mxu0 %v7764
    %7811 = vmatprep.subr.bf16.mxu0 0
    %7812 = vmatpush1.bf16.msra.mxu0 %v7765
    %7813 = vmatprep.subr.bf16.mxu0 0
    %7814 = vmatpush1.bf16.msra.mxu0 %v7766
    %7815 = vmatprep.mubr.bf16.mxu0 %v7647
    %7816 = vmatmul.mubr.bf16.gmra.mrb[0].mxu0 %v7646
    %v7817 = vpop.f32.mrb[0].mxu0
    %v7818 = vadd.f32 %v7685, %v7817
    %v7819 = vpop.f32.mrb[0].mxu0
    %v7820 = vpop.f32.mrb[0].mxu0
    %v7821 = vpop.f32.mrb[0].mxu0
    %7822 = vdwg.mxu0
    %vm7823 = vcmp.ge.f32.partialorder %v7818, 0.0
    %v7824 = vmul.f32 %v7818, 0.1
    %v7825 = vsel %vm7823, %v7818, %v7824
    %v7826 = vpack.c.bf16 %v7825, %v7825
    %v7827 = vld [vmem:[#allocation50] sm:$0x3]
    %vm7828 = vcmask 31744
    %v7830 = vsel %vm7828, %v7827, 0
    %vm7832 = vcmask 1041408
    %v7834 = vsel %vm7832, %v7826, 0
    %7836 = vmatprep.subr.bf16.mxu0 0
    %7837 = vmatpush1.bf16.msra.mxu0 %v7834
    %7838 = vmatprep.subr.bf16.mxu0 0
    %7839 = vmatpush1.bf16.msra.mxu0 0
    %7840 = vmatprep.subr.bf16.mxu0 0
    %7841 = vmatpush1.bf16.msra.mxu0 0
    %7842 = vmatprep.subr.bf16.mxu0 0
    %7843 = vmatpush1.bf16.msra.mxu0 0
    %7844 = vmatprep.subr.bf16.mxu0 0
    %7845 = vmatpush1.bf16.msra.mxu0 0
    %7846 = vmatprep.subr.bf16.mxu0 0
    %7847 = vmatpush1.bf16.msra.mxu0 0
    %7848 = vmatprep.subr.bf16.mxu0 0
    %7849 = vmatpush1.bf16.msra.mxu0 0
    %7850 = vmatprep.subr.bf16.mxu0 0
    %7851 = vmatpush1.bf16.msra.mxu0 0
    %7852 = vmatprep.subr.bf16.mxu0 0
    %7853 = vmatpush1.bf16.msra.mxu0 0
    %7854 = vmatprep.subr.bf16.mxu0 0
    %7855 = vmatpush1.bf16.msra.mxu0 0
    %7856 = vmatprep.subr.bf16.mxu0 0
    %7857 = vmatpush1.bf16.msra.mxu0 0
    %7858 = vmatprep.subr.bf16.mxu0 0
    %7859 = vmatpush1.bf16.msra.mxu0 0
    %7860 = vmatprep.subr.bf16.mxu0 0
    %7861 = vmatpush1.bf16.msra.mxu0 0
    %7862 = vmatprep.subr.bf16.mxu0 0
    %7863 = vmatpush1.bf16.msra.mxu0 0
    %7864 = vmatprep.subr.bf16.mxu0 0
    %7865 = vmatpush1.bf16.msra.mxu0 0
    %7866 = vmatprep.subr.bf16.mxu0 0
    %7867 = vmatpush1.bf16.msra.mxu0 0
    %7868 = vmatprep.mubr.bf16.mxu0 0
    %7869 = vmatmul.mubr.bf16.gmra.mrb[0].mxu0 %v7830
    %v7870 = vpop.f32.mrb[0].mxu0
    %v7871 = vadd.f32 0.0, %v7870
    %v7872 = vpop.f32.mrb[0].mxu0
    %v7873 = vpop.f32.mrb[0].mxu0
    %v7874 = vpop.f32.mrb[0].mxu0
    %7875 = vdwg.mxu0
    %v7876 = vpack.c.bf16 %v7871, %v7871
    %v7877 = vld [vmem:[#allocation52] sm:$0xff]
    %v7878 = vld [vmem:[#allocation52 + $0x8] sm:$0xff]
    %v7879 = vld [vmem:[#allocation52 + $0x10] sm:$0xff]
    %v7880 = vld [vmem:[#allocation52 + $0x18] sm:$0xff]
    %v7881 = vld [vmem:[#allocation52 + $0x20] sm:$0xff]
    %v7882 = vld [vmem:[#allocation52 + $0x28] sm:$0xff]
    %v7883 = vld [vmem:[#allocation52 + $0x30] sm:$0xff]
    %v7884 = vld [vmem:[#allocation52 + $0x38] sm:$0xff]
    %v7885 = vld [vmem:[#allocation52 + $0x40] sm:$0xff]
    %v7886 = vld [vmem:[#allocation52 + $0x48] sm:$0xff]
    %v7887 = vld [vmem:[#allocation52 + $0x50] sm:$0xff]
    %v7888 = vld [vmem:[#allocation52 + $0x58] sm:$0xff]
    %v7889 = vld [vmem:[#allocation52 + $0x60] sm:$0xff]
    %v7890 = vld [vmem:[#allocation52 + $0x68] sm:$0xff]
    %v7891 = vld [vmem:[#allocation52 + $0x70] sm:$0xff]
    %v7892 = vld [vmem:[#allocation52 + $0x78] sm:$0xff]
    %s7893 = scalar_lea.vmem [#allocation50], 2
    %v7894 = vld [vmem:[%s7893] sm:$0x3]
    %v7896 = vsel %vm7828, %v7894, 0
    %7898 = vmatprep.subr.bf16.mxu0 0
    %7899 = vmatpush1.bf16.msra.mxu0 %v7834
    %7900 = vmatprep.subr.bf16.mxu0 0
    %7901 = vmatpush1.bf16.msra.mxu0 0
    %7902 = vmatprep.subr.bf16.mxu0 0
    %7903 = vmatpush1.bf16.msra.mxu0 0
    %7904 = vmatprep.subr.bf16.mxu0 0
    %7905 = vmatpush1.bf16.msra.mxu0 0
    %7906 = vmatprep.subr.bf16.mxu0 0
    %7907 = vmatpush1.bf16.msra.mxu0 0
    %7908 = vmatprep.subr.bf16.mxu0 0
    %7909 = vmatpush1.bf16.msra.mxu0 0
    %7910 = vmatprep.subr.bf16.mxu0 0
    %7911 = vmatpush1.bf16.msra.mxu0 0
    %7912 = vmatprep.subr.bf16.mxu0 0
    %7913 = vmatpush1.bf16.msra.mxu0 0
    %7914 = vmatprep.subr.bf16.mxu0 0
    %7915 = vmatpush1.bf16.msra.mxu0 0
    %7916 = vmatprep.subr.bf16.mxu0 0
    %7917 = vmatpush1.bf16.msra.mxu0 0
    %7918 = vmatprep.subr.bf16.mxu0 0
    %7919 = vmatpush1.bf16.msra.mxu0 0
    %7920 = vmatprep.subr.bf16.mxu0 0
    %7921 = vmatpush1.bf16.msra.mxu0 0
    %7922 = vmatprep.subr.bf16.mxu0 0
    %7923 = vmatpush1.bf16.msra.mxu0 0
    %7924 = vmatprep.subr.bf16.mxu0 0
    %7925 = vmatpush1.bf16.msra.mxu0 0
    %7926 = vmatprep.subr.bf16.mxu0 0
    %7927 = vmatpush1.bf16.msra.mxu0 0
    %7928 = vmatprep.subr.bf16.mxu0 0
    %7929 = vmatpush1.bf16.msra.mxu0 0
    %7930 = vmatprep.mubr.bf16.mxu0 0
    %7931 = vmatmul.mubr.bf16.gmra.mrb[0].mxu0 %v7896
    %v7932 = vpop.f32.mrb[0].mxu0
    %v7933 = vadd.f32 0.0, %v7932
    %v7934 = vpop.f32.mrb[0].mxu0
    %v7935 = vpop.f32.mrb[0].mxu0
    %v7936 = vpop.f32.mrb[0].mxu0
    %7937 = vdwg.mxu0
    %v7938 = vpack.c.bf16 %v7933, %v7933
    %s7939 = scalar_lea.vmem [#allocation52], 128
    %v7940 = vld [vmem:[%s7939] sm:$0xff]
    %v7941 = vld [vmem:[%s7939 + $0x8] sm:$0xff]
    %v7942 = vld [vmem:[%s7939 + $0x10] sm:$0xff]
    %v7943 = vld [vmem:[%s7939 + $0x18] sm:$0xff]
    %v7944 = vld [vmem:[%s7939 + $0x20] sm:$0xff]
    %v7945 = vld [vmem:[%s7939 + $0x28] sm:$0xff]
    %v7946 = vld [vmem:[%s7939 + $0x30] sm:$0xff]
    %v7947 = vld [vmem:[%s7939 + $0x38] sm:$0xff]
    %v7948 = vld [vmem:[%s7939 + $0x40] sm:$0xff]
    %v7949 = vld [vmem:[%s7939 + $0x48] sm:$0xff]
    %v7950 = vld [vmem:[%s7939 + $0x50] sm:$0xff]
    %v7951 = vld [vmem:[%s7939 + $0x58] sm:$0xff]
    %v7952 = vld [vmem:[%s7939 + $0x60] sm:$0xff]
    %v7953 = vld [vmem:[%s7939 + $0x68] sm:$0xff]
    %v7954 = vld [vmem:[%s7939 + $0x70] sm:$0xff]
    %v7955 = vld [vmem:[%s7939 + $0x78] sm:$0xff]
    %v7972 = vunpack.c.l.b16 %v7940
    %v7973 = vunpack.c.h.b16 %v7940
    %v7974 = vunpack.c.l.b16 %v7941
    %v7975 = vunpack.c.h.b16 %v7941
    %v7976 = vunpack.c.l.b16 %v7942
    %v7977 = vunpack.c.h.b16 %v7942
    %v7978 = vunpack.c.l.b16 %v7943
    %v7979 = vunpack.c.h.b16 %v7943
    %v7980 = vunpack.c.l.b16 %v7944
    %v7981 = vunpack.c.h.b16 %v7944
    %v7982 = vunpack.c.l.b16 %v7945
    %v7983 = vunpack.c.h.b16 %v7945
    %v7984 = vunpack.c.l.b16 %v7946
    %v7985 = vunpack.c.h.b16 %v7946
    %v7986 = vunpack.c.l.b16 %v7947
    %v7987 = vunpack.c.h.b16 %v7947
    %v7988 = vunpack.c.l.b16 %v7948
    %v7989 = vunpack.c.h.b16 %v7948
    %v7990 = vunpack.c.l.b16 %v7949
    %v7991 = vunpack.c.h.b16 %v7949
    %v7992 = vunpack.c.l.b16 %v7950
    %v7993 = vunpack.c.h.b16 %v7950
    %v7994 = vunpack.c.l.b16 %v7951
    %v7995 = vunpack.c.h.b16 %v7951
    %v7996 = vunpack.c.l.b16 %v7952
    %v7997 = vunpack.c.h.b16 %v7952
    %v7998 = vunpack.c.l.b16 %v7953
    %v7999 = vunpack.c.h.b16 %v7953
    %v8000 = vunpack.c.l.b16 %v7954
    %v8001 = vunpack.c.h.b16 %v7954
    %v8002 = vunpack.c.l.b16 %v7955
    %v8003 = vunpack.c.h.b16 %v7955
    %v8004 = vpack.c.b16 %v7974, %v7972
    %v8005 = vpack.c.b16 %v7975, %v7973
    %v8006 = vpack.c.b16 %v7978, %v7976
    %v8007 = vpack.c.b16 %v7979, %v7977
    %v8008 = vpack.c.b16 %v7982, %v7980
    %v8009 = vpack.c.b16 %v7983, %v7981
    %v8010 = vpack.c.b16 %v7986, %v7984
    %v8011 = vpack.c.b16 %v7987, %v7985
    %v8012 = vpack.c.b16 %v7990, %v7988
    %v8013 = vpack.c.b16 %v7991, %v7989
    %v8014 = vpack.c.b16 %v7994, %v7992
    %v8015 = vpack.c.b16 %v7995, %v7993
    %v8016 = vpack.c.b16 %v7998, %v7996
    %v8017 = vpack.c.b16 %v7999, %v7997
    %v8018 = vpack.c.b16 %v8002, %v8000
    %v8019 = vpack.c.b16 %v8003, %v8001
    %8036 = vmatprep.subr.bf16.mxu0 %v8005
    %8037 = vmatpush1.bf16.msra.mxu0 %v8004
    %8038 = vmatprep.subr.bf16.mxu0 %v8007
    %8039 = vmatpush1.bf16.msra.mxu0 %v8006
    %8040 = vmatprep.subr.bf16.mxu0 %v8009
    %8041 = vmatpush1.bf16.msra.mxu0 %v8008
    %8042 = vmatprep.subr.bf16.mxu0 %v8011
    %8043 = vmatpush1.bf16.msra.mxu0 %v8010
    %8044 = vmatprep.subr.bf16.mxu0 %v8013
    %8045 = vmatpush1.bf16.msra.mxu0 %v8012
    %8046 = vmatprep.subr.bf16.mxu0 %v8015
    %8047 = vmatpush1.bf16.msra.mxu0 %v8014
    %8048 = vmatprep.subr.bf16.mxu0 %v8017
    %8049 = vmatpush1.bf16.msra.mxu0 %v8016
    %8050 = vmatprep.subr.bf16.mxu0 %v8019
    %8051 = vmatpush1.bf16.msra.mxu0 %v8018
    %8052 = vmatprep.subr.bf16.mxu0 0
    %8053 = vmatpush1.bf16.msra.mxu0 0
    %8054 = vmatprep.subr.bf16.mxu0 0
    %8055 = vmatpush1.bf16.msra.mxu0 0
    %8056 = vmatprep.subr.bf16.mxu0 0
    %8057 = vmatpush1.bf16.msra.mxu0 0
    %8058 = vmatprep.subr.bf16.mxu0 0
    %8059 = vmatpush1.bf16.msra.mxu0 0
    %8060 = vmatprep.subr.bf16.mxu0 0
    %8061 = vmatpush1.bf16.msra.mxu0 0
    %8062 = vmatprep.subr.bf16.mxu0 0
    %8063 = vmatpush1.bf16.msra.mxu0 0
    %8064 = vmatprep.subr.bf16.mxu0 0
    %8065 = vmatpush1.bf16.msra.mxu0 0
    %8066 = vmatprep.subr.bf16.mxu0 0
    %8067 = vmatpush1.bf16.msra.mxu0 0
    %8068 = vmatprep.mubr.bf16.mxu0 0
    %8069 = vmatmul.mubr.bf16.gmra.mrb[0].mxu0 %v7938
    %v8070 = vpop.f32.mrb[0].mxu0
    %v8071 = vadd.f32 0.0, %v8070
    %v8072 = vpop.f32.mrb[0].mxu0
    %v8073 = vadd.f32 0.0, %v8072
    %v8074 = vpop.f32.mrb[0].mxu0
    %v8075 = vpop.f32.mrb[0].mxu0
    %8076 = vdwg.mxu0
    %v8093 = vunpack.c.l.b16 %v7877
    %v8094 = vunpack.c.h.b16 %v7877
    %v8095 = vunpack.c.l.b16 %v7878
    %v8096 = vunpack.c.h.b16 %v7878
    %v8097 = vunpack.c.l.b16 %v7879
    %v8098 = vunpack.c.h.b16 %v7879
    %v8099 = vunpack.c.l.b16 %v7880
    %v8100 = vunpack.c.h.b16 %v7880
    %v8101 = vunpack.c.l.b16 %v7881
    %v8102 = vunpack.c.h.b16 %v7881
    %v8103 = vunpack.c.l.b16 %v7882
    %v8104 = vunpack.c.h.b16 %v7882
    %v8105 = vunpack.c.l.b16 %v7883
    %v8106 = vunpack.c.h.b16 %v7883
    %v8107 = vunpack.c.l.b16 %v7884
    %v8108 = vunpack.c.h.b16 %v7884
    %v8109 = vunpack.c.l.b16 %v7885
    %v8110 = vunpack.c.h.b16 %v7885
    %v8111 = vunpack.c.l.b16 %v7886
    %v8112 = vunpack.c.h.b16 %v7886
    %v8113 = vunpack.c.l.b16 %v7887
    %v8114 = vunpack.c.h.b16 %v7887
    %v8115 = vunpack.c.l.b16 %v7888
    %v8116 = vunpack.c.h.b16 %v7888
    %v8117 = vunpack.c.l.b16 %v7889
    %v8118 = vunpack.c.h.b16 %v7889
    %v8119 = vunpack.c.l.b16 %v7890
    %v8120 = vunpack.c.h.b16 %v7890
    %v8121 = vunpack.c.l.b16 %v7891
    %v8122 = vunpack.c.h.b16 %v7891
    %v8123 = vunpack.c.l.b16 %v7892
    %v8124 = vunpack.c.h.b16 %v7892
    %v8125 = vpack.c.b16 %v8095, %v8093
    %v8126 = vpack.c.b16 %v8096, %v8094
    %v8127 = vpack.c.b16 %v8099, %v8097
    %v8128 = vpack.c.b16 %v8100, %v8098
    %v8129 = vpack.c.b16 %v8103, %v8101
    %v8130 = vpack.c.b16 %v8104, %v8102
    %v8131 = vpack.c.b16 %v8107, %v8105
    %v8132 = vpack.c.b16 %v8108, %v8106
    %v8133 = vpack.c.b16 %v8111, %v8109
    %v8134 = vpack.c.b16 %v8112, %v8110
    %v8135 = vpack.c.b16 %v8115, %v8113
    %v8136 = vpack.c.b16 %v8116, %v8114
    %v8137 = vpack.c.b16 %v8119, %v8117
    %v8138 = vpack.c.b16 %v8120, %v8118
    %v8139 = vpack.c.b16 %v8123, %v8121
    %v8140 = vpack.c.b16 %v8124, %v8122
    %8157 = vmatprep.subr.bf16.mxu0 %v8126
    %8158 = vmatpush1.bf16.msra.mxu0 %v8125
    %8159 = vmatprep.subr.bf16.mxu0 %v8128
    %8160 = vmatpush1.bf16.msra.mxu0 %v8127
    %8161 = vmatprep.subr.bf16.mxu0 %v8130
    %8162 = vmatpush1.bf16.msra.mxu0 %v8129
    %8163 = vmatprep.subr.bf16.mxu0 %v8132
    %8164 = vmatpush1.bf16.msra.mxu0 %v8131
    %8165 = vmatprep.subr.bf16.mxu0 %v8134
    %8166 = vmatpush1.bf16.msra.mxu0 %v8133
    %8167 = vmatprep.subr.bf16.mxu0 %v8136
    %8168 = vmatpush1.bf16.msra.mxu0 %v8135
    %8169 = vmatprep.subr.bf16.mxu0 %v8138
    %8170 = vmatpush1.bf16.msra.mxu0 %v8137
    %8171 = vmatprep.subr.bf16.mxu0 %v8140
    %8172 = vmatpush1.bf16.msra.mxu0 %v8139
    %8173 = vmatprep.subr.bf16.mxu0 0
    %8174 = vmatpush1.bf16.msra.mxu0 0
    %8175 = vmatprep.subr.bf16.mxu0 0
    %8176 = vmatpush1.bf16.msra.mxu0 0
    %8177 = vmatprep.subr.bf16.mxu0 0
    %8178 = vmatpush1.bf16.msra.mxu0 0
    %8179 = vmatprep.subr.bf16.mxu0 0
    %8180 = vmatpush1.bf16.msra.mxu0 0
    %8181 = vmatprep.subr.bf16.mxu0 0
    %8182 = vmatpush1.bf16.msra.mxu0 0
    %8183 = vmatprep.subr.bf16.mxu0 0
    %8184 = vmatpush1.bf16.msra.mxu0 0
    %8185 = vmatprep.subr.bf16.mxu0 0
    %8186 = vmatpush1.bf16.msra.mxu0 0
    %8187 = vmatprep.subr.bf16.mxu0 0
    %8188 = vmatpush1.bf16.msra.mxu0 0
    %8189 = vmatprep.mubr.bf16.mxu0 0
    %8190 = vmatmul.mubr.bf16.gmra.mrb[0].mxu0 %v7876
    %v8191 = vpop.f32.mrb[0].mxu0
    %v8192 = vadd.f32 %v8071, %v8191
    %v8193 = vpop.f32.mrb[0].mxu0
    %v8194 = vadd.f32 %v8073, %v8193
    %v8195 = vpop.f32.mrb[0].mxu0
    %v8196 = vpop.f32.mrb[0].mxu0
    %8197 = vdwg.mxu0
    %s8198 = scalar_lea.vmem [#allocation50], 4
    %v8199 = vld [vmem:[%s8198] sm:$0x3]
    %v8201 = vsel %vm7828, %v8199, 0
    %8203 = vmatprep.subr.bf16.mxu0 0
    %8204 = vmatpush1.bf16.msra.mxu0 %v7834
    %8205 = vmatprep.subr.bf16.mxu0 0
    %8206 = vmatpush1.bf16.msra.mxu0 0
    %8207 = vmatprep.subr.bf16.mxu0 0
    %8208 = vmatpush1.bf16.msra.mxu0 0
    %8209 = vmatprep.subr.bf16.mxu0 0
    %8210 = vmatpush1.bf16.msra.mxu0 0
    %8211 = vmatprep.subr.bf16.mxu0 0
    %8212 = vmatpush1.bf16.msra.mxu0 0
    %8213 = vmatprep.subr.bf16.mxu0 0
    %8214 = vmatpush1.bf16.msra.mxu0 0
    %8215 = vmatprep.subr.bf16.mxu0 0
    %8216 = vmatpush1.bf16.msra.mxu0 0
    %8217 = vmatprep.subr.bf16.mxu0 0
    %8218 = vmatpush1.bf16.msra.mxu0 0
    %8219 = vmatprep.subr.bf16.mxu0 0
    %8220 = vmatpush1.bf16.msra.mxu0 0
    %8221 = vmatprep.subr.bf16.mxu0 0
    %8222 = vmatpush1.bf16.msra.mxu0 0
    %8223 = vmatprep.subr.bf16.mxu0 0
    %8224 = vmatpush1.bf16.msra.mxu0 0
    %8225 = vmatprep.subr.bf16.mxu0 0
    %8226 = vmatpush1.bf16.msra.mxu0 0
    %8227 = vmatprep.subr.bf16.mxu0 0
    %8228 = vmatpush1.bf16.msra.mxu0 0
    %8229 = vmatprep.subr.bf16.mxu0 0
    %8230 = vmatpush1.bf16.msra.mxu0 0
    %8231 = vmatprep.subr.bf16.mxu0 0
    %8232 = vmatpush1.bf16.msra.mxu0 0
    %8233 = vmatprep.subr.bf16.mxu0 0
    %8234 = vmatpush1.bf16.msra.mxu0 0
    %8235 = vmatprep.mubr.bf16.mxu0 0
    %8236 = vmatmul.mubr.bf16.gmra.mrb[0].mxu0 %v8201
    %v8237 = vpop.f32.mrb[0].mxu0
    %v8238 = vadd.f32 0.0, %v8237
    %v8239 = vpop.f32.mrb[0].mxu0
    %v8240 = vpop.f32.mrb[0].mxu0
    %v8241 = vpop.f32.mrb[0].mxu0
    %8242 = vdwg.mxu0
    %v8243 = vpack.c.bf16 %v8238, %v8238
    %s8244 = scalar_lea.vmem [#allocation52], 256
    %v8245 = vld [vmem:[%s8244] sm:$0xff]
    %v8246 = vld [vmem:[%s8244 + $0x8] sm:$0xff]
    %v8247 = vld [vmem:[%s8244 + $0x10] sm:$0xff]
    %v8248 = vld [vmem:[%s8244 + $0x18] sm:$0xff]
    %v8249 = vld [vmem:[%s8244 + $0x20] sm:$0xff]
    %v8250 = vld [vmem:[%s8244 + $0x28] sm:$0xff]
    %v8251 = vld [vmem:[%s8244 + $0x30] sm:$0xff]
    %v8252 = vld [vmem:[%s8244 + $0x38] sm:$0xff]
    %v8253 = vld [vmem:[%s8244 + $0x40] sm:$0xff]
    %v8254 = vld [vmem:[%s8244 + $0x48] sm:$0xff]
    %v8255 = vld [vmem:[%s8244 + $0x50] sm:$0xff]
    %v8256 = vld [vmem:[%s8244 + $0x58] sm:$0xff]
    %v8257 = vld [vmem:[%s8244 + $0x60] sm:$0xff]
    %v8258 = vld [vmem:[%s8244 + $0x68] sm:$0xff]
    %v8259 = vld [vmem:[%s8244 + $0x70] sm:$0xff]
    %v8260 = vld [vmem:[%s8244 + $0x78] sm:$0xff]
    %v8277 = vunpack.c.l.b16 %v8245
    %v8278 = vunpack.c.h.b16 %v8245
    %v8279 = vunpack.c.l.b16 %v8246
    %v8280 = vunpack.c.h.b16 %v8246
    %v8281 = vunpack.c.l.b16 %v8247
    %v8282 = vunpack.c.h.b16 %v8247
    %v8283 = vunpack.c.l.b16 %v8248
    %v8284 = vunpack.c.h.b16 %v8248
    %v8285 = vunpack.c.l.b16 %v8249
    %v8286 = vunpack.c.h.b16 %v8249
    %v8287 = vunpack.c.l.b16 %v8250
    %v8288 = vunpack.c.h.b16 %v8250
    %v8289 = vunpack.c.l.b16 %v8251
    %v8290 = vunpack.c.h.b16 %v8251
    %v8291 = vunpack.c.l.b16 %v8252
    %v8292 = vunpack.c.h.b16 %v8252
    %v8293 = vunpack.c.l.b16 %v8253
    %v8294 = vunpack.c.h.b16 %v8253
    %v8295 = vunpack.c.l.b16 %v8254
    %v8296 = vunpack.c.h.b16 %v8254
    %v8297 = vunpack.c.l.b16 %v8255
    %v8298 = vunpack.c.h.b16 %v8255
    %v8299 = vunpack.c.l.b16 %v8256
    %v8300 = vunpack.c.h.b16 %v8256
    %v8301 = vunpack.c.l.b16 %v8257
    %v8302 = vunpack.c.h.b16 %v8257
    %v8303 = vunpack.c.l.b16 %v8258
    %v8304 = vunpack.c.h.b16 %v8258
    %v8305 = vunpack.c.l.b16 %v8259
    %v8306 = vunpack.c.h.b16 %v8259
    %v8307 = vunpack.c.l.b16 %v8260
    %v8308 = vunpack.c.h.b16 %v8260
    %v8309 = vpack.c.b16 %v8279, %v8277
    %v8310 = vpack.c.b16 %v8280, %v8278
    %v8311 = vpack.c.b16 %v8283, %v8281
    %v8312 = vpack.c.b16 %v8284, %v8282
    %v8313 = vpack.c.b16 %v8287, %v8285
    %v8314 = vpack.c.b16 %v8288, %v8286
    %v8315 = vpack.c.b16 %v8291, %v8289
    %v8316 = vpack.c.b16 %v8292, %v8290
    %v8317 = vpack.c.b16 %v8295, %v8293
    %v8318 = vpack.c.b16 %v8296, %v8294
    %v8319 = vpack.c.b16 %v8299, %v8297
    %v8320 = vpack.c.b16 %v8300, %v8298
    %v8321 = vpack.c.b16 %v8303, %v8301
    %v8322 = vpack.c.b16 %v8304, %v8302
    %v8323 = vpack.c.b16 %v8307, %v8305
    %v8324 = vpack.c.b16 %v8308, %v8306
    %8341 = vmatprep.subr.bf16.mxu0 %v8310
    %8342 = vmatpush1.bf16.msra.mxu0 %v8309
    %8343 = vmatprep.subr.bf16.mxu0 %v8312
    %8344 = vmatpush1.bf16.msra.mxu0 %v8311
    %8345 = vmatprep.subr.bf16.mxu0 %v8314
    %8346 = vmatpush1.bf16.msra.mxu0 %v8313
    %8347 = vmatprep.subr.bf16.mxu0 %v8316
    %8348 = vmatpush1.bf16.msra.mxu0 %v8315
    %8349 = vmatprep.subr.bf16.mxu0 %v8318
    %8350 = vmatpush1.bf16.msra.mxu0 %v8317
    %8351 = vmatprep.subr.bf16.mxu0 %v8320
    %8352 = vmatpush1.bf16.msra.mxu0 %v8319
    %8353 = vmatprep.subr.bf16.mxu0 %v8322
    %8354 = vmatpush1.bf16.msra.mxu0 %v8321
    %8355 = vmatprep.subr.bf16.mxu0 %v8324
    %8356 = vmatpush1.bf16.msra.mxu0 %v8323
    %8357 = vmatprep.subr.bf16.mxu0 0
    %8358 = vmatpush1.bf16.msra.mxu0 0
    %8359 = vmatprep.subr.bf16.mxu0 0
    %8360 = vmatpush1.bf16.msra.mxu0 0
    %8361 = vmatprep.subr.bf16.mxu0 0
    %8362 = vmatpush1.bf16.msra.mxu0 0
    %8363 = vmatprep.subr.bf16.mxu0 0
    %8364 = vmatpush1.bf16.msra.mxu0 0
    %8365 = vmatprep.subr.bf16.mxu0 0
    %8366 = vmatpush1.bf16.msra.mxu0 0
    %8367 = vmatprep.subr.bf16.mxu0 0
    %8368 = vmatpush1.bf16.msra.mxu0 0
    %8369 = vmatprep.subr.bf16.mxu0 0
    %8370 = vmatpush1.bf16.msra.mxu0 0
    %8371 = vmatprep.subr.bf16.mxu0 0
    %8372 = vmatpush1.bf16.msra.mxu0 0
    %8373 = vmatprep.mubr.bf16.mxu0 0
    %8374 = vmatmul.mubr.bf16.gmra.mrb[0].mxu0 %v8243
    %v8375 = vpop.f32.mrb[0].mxu0
    %v8376 = vadd.f32 0.0, %v8375
    %v8377 = vpop.f32.mrb[0].mxu0
    %v8378 = vadd.f32 0.0, %v8377
    %v8379 = vpop.f32.mrb[0].mxu0
    %v8380 = vpop.f32.mrb[0].mxu0
    %8381 = vdwg.mxu0
    %v8382 = vadd.f32 %v8192, %v8376
    %v8383 = vadd.f32 %v8194, %v8378
    %v8384 = vld [vmem:[#allocation53] sm:$0x3]
    %v8386 = vlaneseq
    %v8387 = vshrl.u32 %v8386, 7
    %v8388 = vsub.s32 0, %v8387
    %v8389 = vrot.slane %v8384, %v8388
    %v8390 = vlaneseq
    %v8391 = vshrl.u32 %v8390, 7
    %v8392 = vsub.s32 1, %v8391
    %v8393 = vrot.slane %v8384, %v8392
    %v8396 = vadd.f32 %v8382, %v8389
    %v8397 = vadd.f32 %v8383, %v8393
    %vm8398 = vcmp.ge.f32.partialorder %v8396, 0.0
    %vm8399 = vcmp.ge.f32.partialorder %v8397, 0.0
    %v8400 = vmul.f32 %v8396, 0.1
    %v8401 = vmul.f32 %v8397, 0.1
    %v8402 = vsel %vm8398, %v8396, %v8400
    %v8403 = vsel %vm8399, %v8397, %v8401
    %v8404 = vadd.f32 %v8402, %v7644
    %v8405 = vadd.f32 %v8403, %v7645
    %v8406 = vpack.c.bf16 %v8404, %v8404
    %v8407 = vpack.c.bf16 %v8405, %v8405
    %v8408 = vld [vmem:[%s75] sm:$0x1]
    %v8410 = vsel %vm7828, %v8408, 0
    %v8413 = vsel %vm7832, %v8406, 0
    %v8416 = vsel %vm7832, %v8407, 0
    %8418 = vmatprep.subr.bf16.mxu0 %v8416
    %8419 = vmatpush1.bf16.msra.mxu0 %v8413
    %8420 = vmatprep.subr.bf16.mxu0 0
    %8421 = vmatpush1.bf16.msra.mxu0 0
    %8422 = vmatprep.subr.bf16.mxu0 0
    %8423 = vmatpush1.bf16.msra.mxu0 0
    %8424 = vmatprep.subr.bf16.mxu0 0
    %8425 = vmatpush1.bf16.msra.mxu0 0
    %8426 = vmatprep.subr.bf16.mxu0 0
    %8427 = vmatpush1.bf16.msra.mxu0 0
    %8428 = vmatprep.subr.bf16.mxu0 0
    %8429 = vmatpush1.bf16.msra.mxu0 0
    %8430 = vmatprep.subr.bf16.mxu0 0
    %8431 = vmatpush1.bf16.msra.mxu0 0
    %8432 = vmatprep.subr.bf16.mxu0 0
    %8433 = vmatpush1.bf16.msra.mxu0 0
    %8434 = vmatprep.subr.bf16.mxu0 0
    %8435 = vmatpush1.bf16.msra.mxu0 0
    %8436 = vmatprep.subr.bf16.mxu0 0
    %8437 = vmatpush1.bf16.msra.mxu0 0
    %8438 = vmatprep.subr.bf16.mxu0 0
    %8439 = vmatpush1.bf16.msra.mxu0 0
    %8440 = vmatprep.subr.bf16.mxu0 0
    %8441 = vmatpush1.bf16.msra.mxu0 0
    %8442 = vmatprep.subr.bf16.mxu0 0
    %8443 = vmatpush1.bf16.msra.mxu0 0
    %8444 = vmatprep.subr.bf16.mxu0 0
    %8445 = vmatpush1.bf16.msra.mxu0 0
    %8446 = vmatprep.subr.bf16.mxu0 0
    %8447 = vmatpush1.bf16.msra.mxu0 0
    %8448 = vmatprep.subr.bf16.mxu0 0
    %8449 = vmatpush1.bf16.msra.mxu0 0
    %8450 = vmatprep.mubr.bf16.mxu0 0
    %8451 = vmatmul.mubr.bf16.gmra.mrb[0].mxu0 %v8410
    %v8452 = vpop.f32.mrb[0].mxu0
    %v8453 = vadd.f32 0.0, %v8452
    %v8454 = vpop.f32.mrb[0].mxu0
    %v8455 = vadd.f32 0.0, %v8454
    %v8456 = vpop.f32.mrb[0].mxu0
    %v8457 = vpop.f32.mrb[0].mxu0
    %8458 = vdwg.mxu0
    %v8459 = vpack.c.bf16 %v8453, %v8453
    %v8460 = vpack.c.bf16 %v8455, %v8455
    %v8461 = vld [vmem:[#allocation55] sm:$0xff]
    %v8462 = vld [vmem:[#allocation55 + $0x8] sm:$0xff]
    %v8463 = vld [vmem:[#allocation55 + $0x10] sm:$0xff]
    %v8464 = vld [vmem:[#allocation55 + $0x18] sm:$0xff]
    %v8465 = vld [vmem:[#allocation55 + $0x20] sm:$0xff]
    %v8466 = vld [vmem:[#allocation55 + $0x28] sm:$0xff]
    %v8467 = vld [vmem:[#allocation55 + $0x30] sm:$0xff]
    %v8468 = vld [vmem:[#allocation55 + $0x38] sm:$0xff]
    %v8469 = vld [vmem:[#allocation55 + $0x40] sm:$0xff]
    %v8470 = vld [vmem:[#allocation55 + $0x48] sm:$0xff]
    %v8471 = vld [vmem:[#allocation55 + $0x50] sm:$0xff]
    %v8472 = vld [vmem:[#allocation55 + $0x58] sm:$0xff]
    %v8473 = vld [vmem:[#allocation55 + $0x60] sm:$0xff]
    %v8474 = vld [vmem:[#allocation55 + $0x68] sm:$0xff]
    %v8475 = vld [vmem:[#allocation55 + $0x70] sm:$0xff]
    %v8476 = vld [vmem:[#allocation55 + $0x78] sm:$0xff]
    %v8477 = vld [vmem:[#allocation55 + $0x80] sm:$0xff]
    %v8478 = vld [vmem:[#allocation55 + $0x88] sm:$0xff]
    %v8479 = vld [vmem:[#allocation55 + $0x90] sm:$0xff]
    %v8480 = vld [vmem:[#allocation55 + $0x98] sm:$0xff]
    %v8481 = vld [vmem:[#allocation55 + $0xa0] sm:$0xff]
    %v8482 = vld [vmem:[#allocation55 + $0xa8] sm:$0xff]
    %v8483 = vld [vmem:[#allocation55 + $0xb0] sm:$0xff]
    %v8484 = vld [vmem:[#allocation55 + $0xb8] sm:$0xff]
    %v8485 = vld [vmem:[#allocation55 + $0xc0] sm:$0xff]
    %v8486 = vld [vmem:[#allocation55 + $0xc8] sm:$0xff]
    %v8487 = vld [vmem:[#allocation55 + $0xd0] sm:$0xff]
    %v8488 = vld [vmem:[#allocation55 + $0xd8] sm:$0xff]
    %v8489 = vld [vmem:[#allocation55 + $0xe0] sm:$0xff]
    %v8490 = vld [vmem:[#allocation55 + $0xe8] sm:$0xff]
    %v8491 = vld [vmem:[#allocation55 + $0xf0] sm:$0xff]
    %v8492 = vld [vmem:[#allocation55 + $0xf8] sm:$0xff]
    %s8493 = scalar_lea.vmem %s75, 1
    %v8494 = vld [vmem:[%s8493] sm:$0x1]
    %v8496 = vsel %vm7828, %v8494, 0
    %8498 = vmatprep.subr.bf16.mxu0 %v8416
    %8499 = vmatpush1.bf16.msra.mxu0 %v8413
    %8500 = vmatprep.subr.bf16.mxu0 0
    %8501 = vmatpush1.bf16.msra.mxu0 0
    %8502 = vmatprep.subr.bf16.mxu0 0
    %8503 = vmatpush1.bf16.msra.mxu0 0
    %8504 = vmatprep.subr.bf16.mxu0 0
    %8505 = vmatpush1.bf16.msra.mxu0 0
    %8506 = vmatprep.subr.bf16.mxu0 0
    %8507 = vmatpush1.bf16.msra.mxu0 0
    %8508 = vmatprep.subr.bf16.mxu0 0
    %8509 = vmatpush1.bf16.msra.mxu0 0
    %8510 = vmatprep.subr.bf16.mxu0 0
    %8511 = vmatpush1.bf16.msra.mxu0 0
    %8512 = vmatprep.subr.bf16.mxu0 0
    %8513 = vmatpush1.bf16.msra.mxu0 0
    %8514 = vmatprep.subr.bf16.mxu0 0
    %8515 = vmatpush1.bf16.msra.mxu0 0
    %8516 = vmatprep.subr.bf16.mxu0 0
    %8517 = vmatpush1.bf16.msra.mxu0 0
    %8518 = vmatprep.subr.bf16.mxu0 0
    %8519 = vmatpush1.bf16.msra.mxu0 0
    %8520 = vmatprep.subr.bf16.mxu0 0
    %8521 = vmatpush1.bf16.msra.mxu0 0
    %8522 = vmatprep.subr.bf16.mxu0 0
    %8523 = vmatpush1.bf16.msra.mxu0 0
    %8524 = vmatprep.subr.bf16.mxu0 0
    %8525 = vmatpush1.bf16.msra.mxu0 0
    %8526 = vmatprep.subr.bf16.mxu0 0
    %8527 = vmatpush1.bf16.msra.mxu0 0
    %8528 = vmatprep.subr.bf16.mxu0 0
    %8529 = vmatpush1.bf16.msra.mxu0 0
    %8530 = vmatprep.mubr.bf16.mxu0 0
    %8531 = vmatmul.mubr.bf16.gmra.mrb[0].mxu0 %v8496
    %v8532 = vpop.f32.mrb[0].mxu0
    %v8533 = vadd.f32 0.0, %v8532
    %v8534 = vpop.f32.mrb[0].mxu0
    %v8535 = vadd.f32 0.0, %v8534
    %v8536 = vpop.f32.mrb[0].mxu0
    %v8537 = vpop.f32.mrb[0].mxu0
    %8538 = vdwg.mxu0
    %v8539 = vpack.c.bf16 %v8533, %v8533
    %v8540 = vpack.c.bf16 %v8535, %v8535
    %s8541 = scalar_lea.vmem [#allocation55], 256
    %v8542 = vld [vmem:[%s8541] sm:$0xff]
    %v8543 = vld [vmem:[%s8541 + $0x8] sm:$0xff]
    %v8544 = vld [vmem:[%s8541 + $0x10] sm:$0xff]
    %v8545 = vld [vmem:[%s8541 + $0x18] sm:$0xff]
    %v8546 = vld [vmem:[%s8541 + $0x20] sm:$0xff]
    %v8547 = vld [vmem:[%s8541 + $0x28] sm:$0xff]
    %v8548 = vld [vmem:[%s8541 + $0x30] sm:$0xff]
    %v8549 = vld [vmem:[%s8541 + $0x38] sm:$0xff]
    %v8550 = vld [vmem:[%s8541 + $0x40] sm:$0xff]
    %v8551 = vld [vmem:[%s8541 + $0x48] sm:$0xff]
    %v8552 = vld [vmem:[%s8541 + $0x50] sm:$0xff]
    %v8553 = vld [vmem:[%s8541 + $0x58] sm:$0xff]
    %v8554 = vld [vmem:[%s8541 + $0x60] sm:$0xff]
    %v8555 = vld [vmem:[%s8541 + $0x68] sm:$0xff]
    %v8556 = vld [vmem:[%s8541 + $0x70] sm:$0xff]
    %v8557 = vld [vmem:[%s8541 + $0x78] sm:$0xff]
    %v8558 = vld [vmem:[%s8541 + $0x80] sm:$0xff]
    %v8559 = vld [vmem:[%s8541 + $0x88] sm:$0xff]
    %v8560 = vld [vmem:[%s8541 + $0x90] sm:$0xff]
    %v8561 = vld [vmem:[%s8541 + $0x98] sm:$0xff]
    %v8562 = vld [vmem:[%s8541 + $0xa0] sm:$0xff]
    %v8563 = vld [vmem:[%s8541 + $0xa8] sm:$0xff]
    %v8564 = vld [vmem:[%s8541 + $0xb0] sm:$0xff]
    %v8565 = vld [vmem:[%s8541 + $0xb8] sm:$0xff]
    %v8566 = vld [vmem:[%s8541 + $0xc0] sm:$0xff]
    %v8567 = vld [vmem:[%s8541 + $0xc8] sm:$0xff]
    %v8568 = vld [vmem:[%s8541 + $0xd0] sm:$0xff]
    %v8569 = vld [vmem:[%s8541 + $0xd8] sm:$0xff]
    %v8570 = vld [vmem:[%s8541 + $0xe0] sm:$0xff]
    %v8571 = vld [vmem:[%s8541 + $0xe8] sm:$0xff]
    %v8572 = vld [vmem:[%s8541 + $0xf0] sm:$0xff]
    %v8573 = vld [vmem:[%s8541 + $0xf8] sm:$0xff]
    %v8606 = vunpack.c.l.b16 %v8542
    %v8607 = vunpack.c.h.b16 %v8542
    %v8608 = vunpack.c.l.b16 %v8543
    %v8609 = vunpack.c.h.b16 %v8543
    %v8610 = vunpack.c.l.b16 %v8544
    %v8611 = vunpack.c.h.b16 %v8544
    %v8612 = vunpack.c.l.b16 %v8545
    %v8613 = vunpack.c.h.b16 %v8545
    %v8614 = vunpack.c.l.b16 %v8546
    %v8615 = vunpack.c.h.b16 %v8546
    %v8616 = vunpack.c.l.b16 %v8547
    %v8617 = vunpack.c.h.b16 %v8547
    %v8618 = vunpack.c.l.b16 %v8548
    %v8619 = vunpack.c.h.b16 %v8548
    %v8620 = vunpack.c.l.b16 %v8549
    %v8621 = vunpack.c.h.b16 %v8549
    %v8622 = vunpack.c.l.b16 %v8550
    %v8623 = vunpack.c.h.b16 %v8550
    %v8624 = vunpack.c.l.b16 %v8551
    %v8625 = vunpack.c.h.b16 %v8551
    %v8626 = vunpack.c.l.b16 %v8552
    %v8627 = vunpack.c.h.b16 %v8552
    %v8628 = vunpack.c.l.b16 %v8553
    %v8629 = vunpack.c.h.b16 %v8553
    %v8630 = vunpack.c.l.b16 %v8554
    %v8631 = vunpack.c.h.b16 %v8554
    %v8632 = vunpack.c.l.b16 %v8555
    %v8633 = vunpack.c.h.b16 %v8555
    %v8634 = vunpack.c.l.b16 %v8556
    %v8635 = vunpack.c.h.b16 %v8556
    %v8636 = vunpack.c.l.b16 %v8557
    %v8637 = vunpack.c.h.b16 %v8557
    %v8638 = vunpack.c.l.b16 %v8558
    %v8639 = vunpack.c.h.b16 %v8558
    %v8640 = vunpack.c.l.b16 %v8559
    %v8641 = vunpack.c.h.b16 %v8559
    %v8642 = vunpack.c.l.b16 %v8560
    %v8643 = vunpack.c.h.b16 %v8560
    %v8644 = vunpack.c.l.b16 %v8561
    %v8645 = vunpack.c.h.b16 %v8561
    %v8646 = vunpack.c.l.b16 %v8562
    %v8647 = vunpack.c.h.b16 %v8562
    %v8648 = vunpack.c.l.b16 %v8563
    %v8649 = vunpack.c.h.b16 %v8563
    %v8650 = vunpack.c.l.b16 %v8564
    %v8651 = vunpack.c.h.b16 %v8564
    %v8652 = vunpack.c.l.b16 %v8565
    %v8653 = vunpack.c.h.b16 %v8565
    %v8654 = vunpack.c.l.b16 %v8566
    %v8655 = vunpack.c.h.b16 %v8566
    %v8656 = vunpack.c.l.b16 %v8567
    %v8657 = vunpack.c.h.b16 %v8567
    %v8658 = vunpack.c.l.b16 %v8568
    %v8659 = vunpack.c.h.b16 %v8568
    %v8660 = vunpack.c.l.b16 %v8569
    %v8661 = vunpack.c.h.b16 %v8569
    %v8662 = vunpack.c.l.b16 %v8570
    %v8663 = vunpack.c.h.b16 %v8570
    %v8664 = vunpack.c.l.b16 %v8571
    %v8665 = vunpack.c.h.b16 %v8571
    %v8666 = vunpack.c.l.b16 %v8572
    %v8667 = vunpack.c.h.b16 %v8572
    %v8668 = vunpack.c.l.b16 %v8573
    %v8669 = vunpack.c.h.b16 %v8573
    %v8670 = vpack.c.b16 %v8608, %v8606
    %v8671 = vpack.c.b16 %v8609, %v8607
    %v8672 = vpack.c.b16 %v8612, %v8610
    %v8673 = vpack.c.b16 %v8613, %v8611
    %v8674 = vpack.c.b16 %v8616, %v8614
    %v8675 = vpack.c.b16 %v8617, %v8615
    %v8676 = vpack.c.b16 %v8620, %v8618
    %v8677 = vpack.c.b16 %v8621, %v8619
    %v8678 = vpack.c.b16 %v8624, %v8622
    %v8679 = vpack.c.b16 %v8625, %v8623
    %v8680 = vpack.c.b16 %v8628, %v8626
    %v8681 = vpack.c.b16 %v8629, %v8627
    %v8682 = vpack.c.b16 %v8632, %v8630
    %v8683 = vpack.c.b16 %v8633, %v8631
    %v8684 = vpack.c.b16 %v8636, %v8634
    %v8685 = vpack.c.b16 %v8637, %v8635
    %v8686 = vpack.c.b16 %v8640, %v8638
    %v8687 = vpack.c.b16 %v8641, %v8639
    %v8688 = vpack.c.b16 %v8644, %v8642
    %v8689 = vpack.c.b16 %v8645, %v8643
    %v8690 = vpack.c.b16 %v8648, %v8646
    %v8691 = vpack.c.b16 %v8649, %v8647
    %v8692 = vpack.c.b16 %v8652, %v8650
    %v8693 = vpack.c.b16 %v8653, %v8651
    %v8694 = vpack.c.b16 %v8656, %v8654
    %v8695 = vpack.c.b16 %v8657, %v8655
    %v8696 = vpack.c.b16 %v8660, %v8658
    %v8697 = vpack.c.b16 %v8661, %v8659
    %v8698 = vpack.c.b16 %v8664, %v8662
    %v8699 = vpack.c.b16 %v8665, %v8663
    %v8700 = vpack.c.b16 %v8668, %v8666
    %v8701 = vpack.c.b16 %v8669, %v8667
    %8734 = vmatprep.subr.bf16.mxu0 %v8671
    %8735 = vmatpush1.bf16.msra.mxu0 %v8670
    %8736 = vmatprep.subr.bf16.mxu0 %v8673
    %8737 = vmatpush1.bf16.msra.mxu0 %v8672
    %8738 = vmatprep.subr.bf16.mxu0 %v8675
    %8739 = vmatpush1.bf16.msra.mxu0 %v8674
    %8740 = vmatprep.subr.bf16.mxu0 %v8677
    %8741 = vmatpush1.bf16.msra.mxu0 %v8676
    %8742 = vmatprep.subr.bf16.mxu0 %v8679
    %8743 = vmatpush1.bf16.msra.mxu0 %v8678
    %8744 = vmatprep.subr.bf16.mxu0 %v8681
    %8745 = vmatpush1.bf16.msra.mxu0 %v8680
    %8746 = vmatprep.subr.bf16.mxu0 %v8683
    %8747 = vmatpush1.bf16.msra.mxu0 %v8682
    %8748 = vmatprep.subr.bf16.mxu0 %v8685
    %8749 = vmatpush1.bf16.msra.mxu0 %v8684
    %8750 = vmatprep.subr.bf16.mxu0 %v8687
    %8751 = vmatpush1.bf16.msra.mxu0 %v8686
    %8752 = vmatprep.subr.bf16.mxu0 %v8689
    %8753 = vmatpush1.bf16.msra.mxu0 %v8688
    %8754 = vmatprep.subr.bf16.mxu0 %v8691
    %8755 = vmatpush1.bf16.msra.mxu0 %v8690
    %8756 = vmatprep.subr.bf16.mxu0 %v8693
    %8757 = vmatpush1.bf16.msra.mxu0 %v8692
    %8758 = vmatprep.subr.bf16.mxu0 %v8695
    %8759 = vmatpush1.bf16.msra.mxu0 %v8694
    %8760 = vmatprep.subr.bf16.mxu0 %v8697
    %8761 = vmatpush1.bf16.msra.mxu0 %v8696
    %8762 = vmatprep.subr.bf16.mxu0 %v8699
    %8763 = vmatpush1.bf16.msra.mxu0 %v8698
    %8764 = vmatprep.subr.bf16.mxu0 %v8701
    %8765 = vmatpush1.bf16.msra.mxu0 %v8700
    %8766 = vmatprep.mubr.bf16.mxu0 %v8540
    %8767 = vmatmul.mubr.bf16.gmra.mrb[0].mxu0 %v8539
    %v8768 = vpop.f32.mrb[0].mxu0
    %v8769 = vadd.f32 0.0, %v8768
    %v8770 = vpop.f32.mrb[0].mxu0
    %v8771 = vadd.f32 0.0, %v8770
    %v8772 = vpop.f32.mrb[0].mxu0
    %v8773 = vpop.f32.mrb[0].mxu0
    %8774 = vdwg.mxu0
    %v8807 = vunpack.c.l.b16 %v8461
    %v8808 = vunpack.c.h.b16 %v8461
    %v8809 = vunpack.c.l.b16 %v8462
    %v8810 = vunpack.c.h.b16 %v8462
    %v8811 = vunpack.c.l.b16 %v8463
    %v8812 = vunpack.c.h.b16 %v8463
    %v8813 = vunpack.c.l.b16 %v8464
    %v8814 = vunpack.c.h.b16 %v8464
    %v8815 = vunpack.c.l.b16 %v8465
    %v8816 = vunpack.c.h.b16 %v8465
    %v8817 = vunpack.c.l.b16 %v8466
    %v8818 = vunpack.c.h.b16 %v8466
    %v8819 = vunpack.c.l.b16 %v8467
    %v8820 = vunpack.c.h.b16 %v8467
    %v8821 = vunpack.c.l.b16 %v8468
    %v8822 = vunpack.c.h.b16 %v8468
    %v8823 = vunpack.c.l.b16 %v8469
    %v8824 = vunpack.c.h.b16 %v8469
    %v8825 = vunpack.c.l.b16 %v8470
    %v8826 = vunpack.c.h.b16 %v8470
    %v8827 = vunpack.c.l.b16 %v8471
    %v8828 = vunpack.c.h.b16 %v8471
    %v8829 = vunpack.c.l.b16 %v8472
    %v8830 = vunpack.c.h.b16 %v8472
    %v8831 = vunpack.c.l.b16 %v8473
    %v8832 = vunpack.c.h.b16 %v8473
    %v8833 = vunpack.c.l.b16 %v8474
    %v8834 = vunpack.c.h.b16 %v8474
    %v8835 = vunpack.c.l.b16 %v8475
    %v8836 = vunpack.c.h.b16 %v8475
    %v8837 = vunpack.c.l.b16 %v8476
    %v8838 = vunpack.c.h.b16 %v8476
    %v8839 = vunpack.c.l.b16 %v8477
    %v8840 = vunpack.c.h.b16 %v8477
    %v8841 = vunpack.c.l.b16 %v8478
    %v8842 = vunpack.c.h.b16 %v8478
    %v8843 = vunpack.c.l.b16 %v8479
    %v8844 = vunpack.c.h.b16 %v8479
    %v8845 = vunpack.c.l.b16 %v8480
    %v8846 = vunpack.c.h.b16 %v8480
    %v8847 = vunpack.c.l.b16 %v8481
    %v8848 = vunpack.c.h.b16 %v8481
    %v8849 = vunpack.c.l.b16 %v8482
    %v8850 = vunpack.c.h.b16 %v8482
    %v8851 = vunpack.c.l.b16 %v8483
    %v8852 = vunpack.c.h.b16 %v8483
    %v8853 = vunpack.c.l.b16 %v8484
    %v8854 = vunpack.c.h.b16 %v8484
    %v8855 = vunpack.c.l.b16 %v8485
    %v8856 = vunpack.c.h.b16 %v8485
    %v8857 = vunpack.c.l.b16 %v8486
    %v8858 = vunpack.c.h.b16 %v8486
    %v8859 = vunpack.c.l.b16 %v8487
    %v8860 = vunpack.c.h.b16 %v8487
    %v8861 = vunpack.c.l.b16 %v8488
    %v8862 = vunpack.c.h.b16 %v8488
    %v8863 = vunpack.c.l.b16 %v8489
    %v8864 = vunpack.c.h.b16 %v8489
    %v8865 = vunpack.c.l.b16 %v8490
    %v8866 = vunpack.c.h.b16 %v8490
    %v8867 = vunpack.c.l.b16 %v8491
    %v8868 = vunpack.c.h.b16 %v8491
    %v8869 = vunpack.c.l.b16 %v8492
    %v8870 = vunpack.c.h.b16 %v8492
    %v8871 = vpack.c.b16 %v8809, %v8807
    %v8872 = vpack.c.b16 %v8810, %v8808
    %v8873 = vpack.c.b16 %v8813, %v8811
    %v8874 = vpack.c.b16 %v8814, %v8812
    %v8875 = vpack.c.b16 %v8817, %v8815
    %v8876 = vpack.c.b16 %v8818, %v8816
    %v8877 = vpack.c.b16 %v8821, %v8819
    %v8878 = vpack.c.b16 %v8822, %v8820
    %v8879 = vpack.c.b16 %v8825, %v8823
    %v8880 = vpack.c.b16 %v8826, %v8824
    %v8881 = vpack.c.b16 %v8829, %v8827
    %v8882 = vpack.c.b16 %v8830, %v8828
    %v8883 = vpack.c.b16 %v8833, %v8831
    %v8884 = vpack.c.b16 %v8834, %v8832
    %v8885 = vpack.c.b16 %v8837, %v8835
    %v8886 = vpack.c.b16 %v8838, %v8836
    %v8887 = vpack.c.b16 %v8841, %v8839
    %v8888 = vpack.c.b16 %v8842, %v8840
    %v8889 = vpack.c.b16 %v8845, %v8843
    %v8890 = vpack.c.b16 %v8846, %v8844
    %v8891 = vpack.c.b16 %v8849, %v8847
    %v8892 = vpack.c.b16 %v8850, %v8848
    %v8893 = vpack.c.b16 %v8853, %v8851
    %v8894 = vpack.c.b16 %v8854, %v8852
    %v8895 = vpack.c.b16 %v8857, %v8855
    %v8896 = vpack.c.b16 %v8858, %v8856
    %v8897 = vpack.c.b16 %v8861, %v8859
    %v8898 = vpack.c.b16 %v8862, %v8860
    %v8899 = vpack.c.b16 %v8865, %v8863
    %v8900 = vpack.c.b16 %v8866, %v8864
    %v8901 = vpack.c.b16 %v8869, %v8867
    %v8902 = vpack.c.b16 %v8870, %v8868
    %8935 = vmatprep.subr.bf16.mxu0 %v8872
    %8936 = vmatpush1.bf16.msra.mxu0 %v8871
    %8937 = vmatprep.subr.bf16.mxu0 %v8874
    %8938 = vmatpush1.bf16.msra.mxu0 %v8873
    %8939 = vmatprep.subr.bf16.mxu0 %v8876
    %8940 = vmatpush1.bf16.msra.mxu0 %v8875
    %8941 = vmatprep.subr.bf16.mxu0 %v8878
    %8942 = vmatpush1.bf16.msra.mxu0 %v8877
    %8943 = vmatprep.subr.bf16.mxu0 %v8880
    %8944 = vmatpush1.bf16.msra.mxu0 %v8879
    %8945 = vmatprep.subr.bf16.mxu0 %v8882
    %8946 = vmatpush1.bf16.msra.mxu0 %v8881
    %8947 = vmatprep.subr.bf16.mxu0 %v8884
    %8948 = vmatpush1.bf16.msra.mxu0 %v8883
    %8949 = vmatprep.subr.bf16.mxu0 %v8886
    %8950 = vmatpush1.bf16.msra.mxu0 %v8885
    %8951 = vmatprep.subr.bf16.mxu0 %v8888
    %8952 = vmatpush1.bf16.msra.mxu0 %v8887
    %8953 = vmatprep.subr.bf16.mxu0 %v8890
    %8954 = vmatpush1.bf16.msra.mxu0 %v8889
    %8955 = vmatprep.subr.bf16.mxu0 %v8892
    %8956 = vmatpush1.bf16.msra.mxu0 %v8891
    %8957 = vmatprep.subr.bf16.mxu0 %v8894
    %8958 = vmatpush1.bf16.msra.mxu0 %v8893
    %8959 = vmatprep.subr.bf16.mxu0 %v8896
    %8960 = vmatpush1.bf16.msra.mxu0 %v8895
    %8961 = vmatprep.subr.bf16.mxu0 %v8898
    %8962 = vmatpush1.bf16.msra.mxu0 %v8897
    %8963 = vmatprep.subr.bf16.mxu0 %v8900
    %8964 = vmatpush1.bf16.msra.mxu0 %v8899
    %8965 = vmatprep.subr.bf16.mxu0 %v8902
    %8966 = vmatpush1.bf16.msra.mxu0 %v8901
    %8967 = vmatprep.mubr.bf16.mxu0 %v8460
    %8968 = vmatmul.mubr.bf16.gmra.mrb[0].mxu0 %v8459
    %v8969 = vpop.f32.mrb[0].mxu0
    %v8970 = vadd.f32 %v8769, %v8969
    %v8971 = vpop.f32.mrb[0].mxu0
    %v8972 = vadd.f32 %v8771, %v8971
    %v8973 = vpop.f32.mrb[0].mxu0
    %v8974 = vpop.f32.mrb[0].mxu0
    %8975 = vdwg.mxu0
    %s8976 = scalar_lea.vmem %s75, 2
    %v8977 = vld [vmem:[%s8976] sm:$0x1]
    %v8979 = vsel %vm7828, %v8977, 0
    %8981 = vmatprep.subr.bf16.mxu0 %v8416
    %8982 = vmatpush1.bf16.msra.mxu0 %v8413
    %8983 = vmatprep.subr.bf16.mxu0 0
    %8984 = vmatpush1.bf16.msra.mxu0 0
    %8985 = vmatprep.subr.bf16.mxu0 0
    %8986 = vmatpush1.bf16.msra.mxu0 0
    %8987 = vmatprep.subr.bf16.mxu0 0
    %8988 = vmatpush1.bf16.msra.mxu0 0
    %8989 = vmatprep.subr.bf16.mxu0 0
    %8990 = vmatpush1.bf16.msra.mxu0 0
    %8991 = vmatprep.subr.bf16.mxu0 0
    %8992 = vmatpush1.bf16.msra.mxu0 0
    %8993 = vmatprep.subr.bf16.mxu0 0
    %8994 = vmatpush1.bf16.msra.mxu0 0
    %8995 = vmatprep.subr.bf16.mxu0 0
    %8996 = vmatpush1.bf16.msra.mxu0 0
    %8997 = vmatprep.subr.bf16.mxu0 0
    %8998 = vmatpush1.bf16.msra.mxu0 0
    %8999 = vmatprep.subr.bf16.mxu0 0
    %9000 = vmatpush1.bf16.msra.mxu0 0
    %9001 = vmatprep.subr.bf16.mxu0 0
    %9002 = vmatpush1.bf16.msra.mxu0 0
    %9003 = vmatprep.subr.bf16.mxu0 0
    %9004 = vmatpush1.bf16.msra.mxu0 0
    %9005 = vmatprep.subr.bf16.mxu0 0
    %9006 = vmatpush1.bf16.msra.mxu0 0
    %9007 = vmatprep.subr.bf16.mxu0 0
    %9008 = vmatpush1.bf16.msra.mxu0 0
    %9009 = vmatprep.subr.bf16.mxu0 0
    %9010 = vmatpush1.bf16.msra.mxu0 0
    %9011 = vmatprep.subr.bf16.mxu0 0
    %9012 = vmatpush1.bf16.msra.mxu0 0
    %9013 = vmatprep.mubr.bf16.mxu0 0
    %9014 = vmatmul.mubr.bf16.gmra.mrb[0].mxu0 %v8979
    %v9015 = vpop.f32.mrb[0].mxu0
    %v9016 = vadd.f32 0.0, %v9015
    %v9017 = vpop.f32.mrb[0].mxu0
    %v9018 = vadd.f32 0.0, %v9017
    %v9019 = vpop.f32.mrb[0].mxu0
    %v9020 = vpop.f32.mrb[0].mxu0
    %9021 = vdwg.mxu0
    %v9022 = vpack.c.bf16 %v9016, %v9016
    %v9023 = vpack.c.bf16 %v9018, %v9018
    %s9024 = scalar_lea.vmem [#allocation55], 512
    %v9025 = vld [vmem:[%s9024] sm:$0xff]
    %v9026 = vld [vmem:[%s9024 + $0x8] sm:$0xff]
    %v9027 = vld [vmem:[%s9024 + $0x10] sm:$0xff]
    %v9028 = vld [vmem:[%s9024 + $0x18] sm:$0xff]
    %v9029 = vld [vmem:[%s9024 + $0x20] sm:$0xff]
    %v9030 = vld [vmem:[%s9024 + $0x28] sm:$0xff]
    %v9031 = vld [vmem:[%s9024 + $0x30] sm:$0xff]
    %v9032 = vld [vmem:[%s9024 + $0x38] sm:$0xff]
    %v9033 = vld [vmem:[%s9024 + $0x40] sm:$0xff]
    %v9034 = vld [vmem:[%s9024 + $0x48] sm:$0xff]
    %v9035 = vld [vmem:[%s9024 + $0x50] sm:$0xff]
    %v9036 = vld [vmem:[%s9024 + $0x58] sm:$0xff]
    %v9037 = vld [vmem:[%s9024 + $0x60] sm:$0xff]
    %v9038 = vld [vmem:[%s9024 + $0x68] sm:$0xff]
    %v9039 = vld [vmem:[%s9024 + $0x70] sm:$0xff]
    %v9040 = vld [vmem:[%s9024 + $0x78] sm:$0xff]
    %v9041 = vld [vmem:[%s9024 + $0x80] sm:$0xff]
    %v9042 = vld [vmem:[%s9024 + $0x88] sm:$0xff]
    %v9043 = vld [vmem:[%s9024 + $0x90] sm:$0xff]
    %v9044 = vld [vmem:[%s9024 + $0x98] sm:$0xff]
    %v9045 = vld [vmem:[%s9024 + $0xa0] sm:$0xff]
    %v9046 = vld [vmem:[%s9024 + $0xa8] sm:$0xff]
    %v9047 = vld [vmem:[%s9024 + $0xb0] sm:$0xff]
    %v9048 = vld [vmem:[%s9024 + $0xb8] sm:$0xff]
    %v9049 = vld [vmem:[%s9024 + $0xc0] sm:$0xff]
    %v9050 = vld [vmem:[%s9024 + $0xc8] sm:$0xff]
    %v9051 = vld [vmem:[%s9024 + $0xd0] sm:$0xff]
    %v9052 = vld [vmem:[%s9024 + $0xd8] sm:$0xff]
    %v9053 = vld [vmem:[%s9024 + $0xe0] sm:$0xff]
    %v9054 = vld [vmem:[%s9024 + $0xe8] sm:$0xff]
    %v9055 = vld [vmem:[%s9024 + $0xf0] sm:$0xff]
    %v9056 = vld [vmem:[%s9024 + $0xf8] sm:$0xff]
    %v9089 = vunpack.c.l.b16 %v9025
    %v9090 = vunpack.c.h.b16 %v9025
    %v9091 = vunpack.c.l.b16 %v9026
    %v9092 = vunpack.c.h.b16 %v9026
    %v9093 = vunpack.c.l.b16 %v9027
    %v9094 = vunpack.c.h.b16 %v9027
    %v9095 = vunpack.c.l.b16 %v9028
    %v9096 = vunpack.c.h.b16 %v9028
    %v9097 = vunpack.c.l.b16 %v9029
    %v9098 = vunpack.c.h.b16 %v9029
    %v9099 = vunpack.c.l.b16 %v9030
    %v9100 = vunpack.c.h.b16 %v9030
    %v9101 = vunpack.c.l.b16 %v9031
    %v9102 = vunpack.c.h.b16 %v9031
    %v9103 = vunpack.c.l.b16 %v9032
    %v9104 = vunpack.c.h.b16 %v9032
    %v9105 = vunpack.c.l.b16 %v9033
    %v9106 = vunpack.c.h.b16 %v9033
    %v9107 = vunpack.c.l.b16 %v9034
    %v9108 = vunpack.c.h.b16 %v9034
    %v9109 = vunpack.c.l.b16 %v9035
    %v9110 = vunpack.c.h.b16 %v9035
    %v9111 = vunpack.c.l.b16 %v9036
    %v9112 = vunpack.c.h.b16 %v9036
    %v9113 = vunpack.c.l.b16 %v9037
    %v9114 = vunpack.c.h.b16 %v9037
    %v9115 = vunpack.c.l.b16 %v9038
    %v9116 = vunpack.c.h.b16 %v9038
    %v9117 = vunpack.c.l.b16 %v9039
    %v9118 = vunpack.c.h.b16 %v9039
    %v9119 = vunpack.c.l.b16 %v9040
    %v9120 = vunpack.c.h.b16 %v9040
    %v9121 = vunpack.c.l.b16 %v9041
    %v9122 = vunpack.c.h.b16 %v9041
    %v9123 = vunpack.c.l.b16 %v9042
    %v9124 = vunpack.c.h.b16 %v9042
    %v9125 = vunpack.c.l.b16 %v9043
    %v9126 = vunpack.c.h.b16 %v9043
    %v9127 = vunpack.c.l.b16 %v9044
    %v9128 = vunpack.c.h.b16 %v9044
    %v9129 = vunpack.c.l.b16 %v9045
    %v9130 = vunpack.c.h.b16 %v9045
    %v9131 = vunpack.c.l.b16 %v9046
    %v9132 = vunpack.c.h.b16 %v9046
    %v9133 = vunpack.c.l.b16 %v9047
    %v9134 = vunpack.c.h.b16 %v9047
    %v9135 = vunpack.c.l.b16 %v9048
    %v9136 = vunpack.c.h.b16 %v9048
    %v9137 = vunpack.c.l.b16 %v9049
    %v9138 = vunpack.c.h.b16 %v9049
    %v9139 = vunpack.c.l.b16 %v9050
    %v9140 = vunpack.c.h.b16 %v9050
    %v9141 = vunpack.c.l.b16 %v9051
    %v9142 = vunpack.c.h.b16 %v9051
    %v9143 = vunpack.c.l.b16 %v9052
    %v9144 = vunpack.c.h.b16 %v9052
    %v9145 = vunpack.c.l.b16 %v9053
    %v9146 = vunpack.c.h.b16 %v9053
    %v9147 = vunpack.c.l.b16 %v9054
    %v9148 = vunpack.c.h.b16 %v9054
    %v9149 = vunpack.c.l.b16 %v9055
    %v9150 = vunpack.c.h.b16 %v9055
    %v9151 = vunpack.c.l.b16 %v9056
    %v9152 = vunpack.c.h.b16 %v9056
    %v9153 = vpack.c.b16 %v9091, %v9089
    %v9154 = vpack.c.b16 %v9092, %v9090
    %v9155 = vpack.c.b16 %v9095, %v9093
    %v9156 = vpack.c.b16 %v9096, %v9094
    %v9157 = vpack.c.b16 %v9099, %v9097
    %v9158 = vpack.c.b16 %v9100, %v9098
    %v9159 = vpack.c.b16 %v9103, %v9101
    %v9160 = vpack.c.b16 %v9104, %v9102
    %v9161 = vpack.c.b16 %v9107, %v9105
    %v9162 = vpack.c.b16 %v9108, %v9106
    %v9163 = vpack.c.b16 %v9111, %v9109
    %v9164 = vpack.c.b16 %v9112, %v9110
    %v9165 = vpack.c.b16 %v9115, %v9113
    %v9166 = vpack.c.b16 %v9116, %v9114
    %v9167 = vpack.c.b16 %v9119, %v9117
    %v9168 = vpack.c.b16 %v9120, %v9118
    %v9169 = vpack.c.b16 %v9123, %v9121
    %v9170 = vpack.c.b16 %v9124, %v9122
    %v9171 = vpack.c.b16 %v9127, %v9125
    %v9172 = vpack.c.b16 %v9128, %v9126
    %v9173 = vpack.c.b16 %v9131, %v9129
    %v9174 = vpack.c.b16 %v9132, %v9130
    %v9175 = vpack.c.b16 %v9135, %v9133
    %v9176 = vpack.c.b16 %v9136, %v9134
    %v9177 = vpack.c.b16 %v9139, %v9137
    %v9178 = vpack.c.b16 %v9140, %v9138
    %v9179 = vpack.c.b16 %v9143, %v9141
    %v9180 = vpack.c.b16 %v9144, %v9142
    %v9181 = vpack.c.b16 %v9147, %v9145
    %v9182 = vpack.c.b16 %v9148, %v9146
    %v9183 = vpack.c.b16 %v9151, %v9149
    %v9184 = vpack.c.b16 %v9152, %v9150
    %9217 = vmatprep.subr.bf16.mxu0 %v9154
    %9218 = vmatpush1.bf16.msra.mxu0 %v9153
    %9219 = vmatprep.subr.bf16.mxu0 %v9156
    %9220 = vmatpush1.bf16.msra.mxu0 %v9155
    %9221 = vmatprep.subr.bf16.mxu0 %v9158
    %9222 = vmatpush1.bf16.msra.mxu0 %v9157
    %9223 = vmatprep.subr.bf16.mxu0 %v9160
    %9224 = vmatpush1.bf16.msra.mxu0 %v9159
    %9225 = vmatprep.subr.bf16.mxu0 %v9162
    %9226 = vmatpush1.bf16.msra.mxu0 %v9161
    %9227 = vmatprep.subr.bf16.mxu0 %v9164
    %9228 = vmatpush1.bf16.msra.mxu0 %v9163
    %9229 = vmatprep.subr.bf16.mxu0 %v9166
    %9230 = vmatpush1.bf16.msra.mxu0 %v9165
    %9231 = vmatprep.subr.bf16.mxu0 %v9168
    %9232 = vmatpush1.bf16.msra.mxu0 %v9167
    %9233 = vmatprep.subr.bf16.mxu0 %v9170
    %9234 = vmatpush1.bf16.msra.mxu0 %v9169
    %9235 = vmatprep.subr.bf16.mxu0 %v9172
    %9236 = vmatpush1.bf16.msra.mxu0 %v9171
    %9237 = vmatprep.subr.bf16.mxu0 %v9174
    %9238 = vmatpush1.bf16.msra.mxu0 %v9173
    %9239 = vmatprep.subr.bf16.mxu0 %v9176
    %9240 = vmatpush1.bf16.msra.mxu0 %v9175
    %9241 = vmatprep.subr.bf16.mxu0 %v9178
    %9242 = vmatpush1.bf16.msra.mxu0 %v9177
    %9243 = vmatprep.subr.bf16.mxu0 %v9180
    %9244 = vmatpush1.bf16.msra.mxu0 %v9179
    %9245 = vmatprep.subr.bf16.mxu0 %v9182
    %9246 = vmatpush1.bf16.msra.mxu0 %v9181
    %9247 = vmatprep.subr.bf16.mxu0 %v9184
    %9248 = vmatpush1.bf16.msra.mxu0 %v9183
    %9249 = vmatprep.mubr.bf16.mxu0 %v9023
    %9250 = vmatmul.mubr.bf16.gmra.mrb[0].mxu0 %v9022
    %v9251 = vpop.f32.mrb[0].mxu0
    %v9252 = vadd.f32 0.0, %v9251
    %v9253 = vpop.f32.mrb[0].mxu0
    %v9254 = vadd.f32 0.0, %v9253
    %v9255 = vpop.f32.mrb[0].mxu0
    %v9256 = vpop.f32.mrb[0].mxu0
    %9257 = vdwg.mxu0
    %v9258 = vadd.f32 %v8970, %v9252
    %v9259 = vadd.f32 %v8972, %v9254
    %v9260 = vld [vmem:[#allocation56] sm:$0x3]
    %v9262 = vlaneseq
    %v9263 = vshrl.u32 %v9262, 7
    %v9264 = vsub.s32 0, %v9263
    %v9265 = vrot.slane %v9260, %v9264
    %v9266 = vlaneseq
    %v9267 = vshrl.u32 %v9266, 7
    %v9268 = vsub.s32 1, %v9267
    %v9269 = vrot.slane %v9260, %v9268
    %v9272 = vadd.f32 %v9258, %v9265
    %v9273 = vadd.f32 %v9259, %v9269
    %vm9274 = vcmp.ge.f32.partialorder %v9272, 0.0
    %vm9275 = vcmp.ge.f32.partialorder %v9273, 0.0
    %v9276 = vmul.f32 %v9272, 0.1
    %v9277 = vmul.f32 %v9273, 0.1
    %v9278 = vsel %vm9274, %v9272, %v9276
    %v9279 = vsel %vm9275, %v9273, %v9277
    %v9280 = vpack.c.bf16 %v9278, %v9278
    %v9281 = vpack.c.bf16 %v9279, %v9279
    %v9282 = vld [vmem:[#allocation58] sm:$0xf]
    %v9283 = vld [vmem:[#allocation58 + $0x4] sm:$0xf]
    %v9284 = vld [vmem:[#allocation58 + $0x8] sm:$0xf]
    %v9285 = vld [vmem:[#allocation58 + $0xc] sm:$0xf]
    %v9286 = vld [vmem:[#allocation58 + $0x10] sm:$0xf]
    %v9287 = vld [vmem:[#allocation58 + $0x14] sm:$0xf]
    %v9288 = vld [vmem:[#allocation58 + $0x18] sm:$0xf]
    %v9289 = vld [vmem:[#allocation58 + $0x1c] sm:$0xf]
    %v9290 = vld [vmem:[#allocation58 + $0x20] sm:$0xf]
    %v9291 = vld [vmem:[#allocation58 + $0x24] sm:$0xf]
    %v9292 = vld [vmem:[#allocation58 + $0x28] sm:$0xf]
    %v9293 = vld [vmem:[#allocation58 + $0x2c] sm:$0xf]
    %v9294 = vld [vmem:[#allocation58 + $0x30] sm:$0xf]
    %v9295 = vld [vmem:[#allocation58 + $0x34] sm:$0xf]
    %v9296 = vld [vmem:[#allocation58 + $0x38] sm:$0xf]
    %v9297 = vld [vmem:[#allocation58 + $0x3c] sm:$0xf]
    %v9298 = vld [vmem:[#allocation58 + $0x40] sm:$0xf]
    %v9299 = vld [vmem:[#allocation58 + $0x44] sm:$0xf]
    %v9300 = vld [vmem:[#allocation58 + $0x48] sm:$0xf]
    %v9301 = vld [vmem:[#allocation58 + $0x4c] sm:$0xf]
    %v9302 = vld [vmem:[#allocation58 + $0x50] sm:$0xf]
    %v9303 = vld [vmem:[#allocation58 + $0x54] sm:$0xf]
    %v9304 = vld [vmem:[#allocation58 + $0x58] sm:$0xf]
    %v9305 = vld [vmem:[#allocation58 + $0x5c] sm:$0xf]
    %v9306 = vld [vmem:[#allocation58 + $0x60] sm:$0xf]
    %v9307 = vld [vmem:[#allocation58 + $0x64] sm:$0xf]
    %v9308 = vld [vmem:[#allocation58 + $0x68] sm:$0xf]
    %v9309 = vld [vmem:[#allocation58 + $0x6c] sm:$0xf]
    %v9310 = vld [vmem:[#allocation58 + $0x70] sm:$0xf]
    %v9311 = vld [vmem:[#allocation58 + $0x74] sm:$0xf]
    %v9312 = vld [vmem:[#allocation58 + $0x78] sm:$0xf]
    %v9313 = vld [vmem:[#allocation58 + $0x7c] sm:$0xf]
    %v9314 = vld [vmem:[#allocation59] sm:$0x1]
    %v9316 = vlaneseq
    %v9317 = vshrl.u32 %v9316, 7
    %v9318 = vsub.s32 0, %v9317
    %v9319 = vrot.slane %v9314, %v9318
    %v9353 = vunpack.c.l.b16 %v9282
    %v9354 = vunpack.c.l.b16 %v9283
    %v9355 = vunpack.c.l.b16 %v9284
    %v9356 = vunpack.c.l.b16 %v9285
    %v9357 = vunpack.c.l.b16 %v9286
    %v9358 = vunpack.c.l.b16 %v9287
    %v9359 = vunpack.c.l.b16 %v9288
    %v9360 = vunpack.c.l.b16 %v9289
    %v9361 = vunpack.c.l.b16 %v9290
    %v9362 = vunpack.c.l.b16 %v9291
    %v9363 = vunpack.c.l.b16 %v9292
    %v9364 = vunpack.c.l.b16 %v9293
    %v9365 = vunpack.c.l.b16 %v9294
    %v9366 = vunpack.c.l.b16 %v9295
    %v9367 = vunpack.c.l.b16 %v9296
    %v9368 = vunpack.c.l.b16 %v9297
    %v9369 = vunpack.c.l.b16 %v9298
    %v9370 = vunpack.c.l.b16 %v9299
    %v9371 = vunpack.c.l.b16 %v9300
    %v9372 = vunpack.c.l.b16 %v9301
    %v9373 = vunpack.c.l.b16 %v9302
    %v9374 = vunpack.c.l.b16 %v9303
    %v9375 = vunpack.c.l.b16 %v9304
    %v9376 = vunpack.c.l.b16 %v9305
    %v9377 = vunpack.c.l.b16 %v9306
    %v9378 = vunpack.c.l.b16 %v9307
    %v9379 = vunpack.c.l.b16 %v9308
    %v9380 = vunpack.c.l.b16 %v9309
    %v9381 = vunpack.c.l.b16 %v9310
    %v9382 = vunpack.c.l.b16 %v9311
    %v9383 = vunpack.c.l.b16 %v9312
    %v9384 = vunpack.c.l.b16 %v9313
    %v9385 = vpack.c.b16 %v9354, %v9353
    %v9386 = vpack.c.b16 %v9356, %v9355
    %v9387 = vpack.c.b16 %v9358, %v9357
    %v9388 = vpack.c.b16 %v9360, %v9359
    %v9389 = vpack.c.b16 %v9362, %v9361
    %v9390 = vpack.c.b16 %v9364, %v9363
    %v9391 = vpack.c.b16 %v9366, %v9365
    %v9392 = vpack.c.b16 %v9368, %v9367
    %v9393 = vpack.c.b16 %v9370, %v9369
    %v9394 = vpack.c.b16 %v9372, %v9371
    %v9395 = vpack.c.b16 %v9374, %v9373
    %v9396 = vpack.c.b16 %v9376, %v9375
    %v9397 = vpack.c.b16 %v9378, %v9377
    %v9398 = vpack.c.b16 %v9380, %v9379
    %v9399 = vpack.c.b16 %v9382, %v9381
    %v9400 = vpack.c.b16 %v9384, %v9383
    %9417 = vmatprep.subr.bf16.mxu0 0
    %9418 = vmatpush1.bf16.msra.mxu0 %v9385
    %9419 = vmatprep.subr.bf16.mxu0 0
    %9420 = vmatpush1.bf16.msra.mxu0 %v9386
    %9421 = vmatprep.subr.bf16.mxu0 0
    %9422 = vmatpush1.bf16.msra.mxu0 %v9387
    %9423 = vmatprep.subr.bf16.mxu0 0
    %9424 = vmatpush1.bf16.msra.mxu0 %v9388
    %9425 = vmatprep.subr.bf16.mxu0 0
    %9426 = vmatpush1.bf16.msra.mxu0 %v9389
    %9427 = vmatprep.subr.bf16.mxu0 0
    %9428 = vmatpush1.bf16.msra.mxu0 %v9390
    %9429 = vmatprep.subr.bf16.mxu0 0
    %9430 = vmatpush1.bf16.msra.mxu0 %v9391
    %9431 = vmatprep.subr.bf16.mxu0 0
    %9432 = vmatpush1.bf16.msra.mxu0 %v9392
    %9433 = vmatprep.subr.bf16.mxu0 0
    %9434 = vmatpush1.bf16.msra.mxu0 %v9393
    %9435 = vmatprep.subr.bf16.mxu0 0
    %9436 = vmatpush1.bf16.msra.mxu0 %v9394
    %9437 = vmatprep.subr.bf16.mxu0 0
    %9438 = vmatpush1.bf16.msra.mxu0 %v9395
    %9439 = vmatprep.subr.bf16.mxu0 0
    %9440 = vmatpush1.bf16.msra.mxu0 %v9396
    %9441 = vmatprep.subr.bf16.mxu0 0
    %9442 = vmatpush1.bf16.msra.mxu0 %v9397
    %9443 = vmatprep.subr.bf16.mxu0 0
    %9444 = vmatpush1.bf16.msra.mxu0 %v9398
    %9445 = vmatprep.subr.bf16.mxu0 0
    %9446 = vmatpush1.bf16.msra.mxu0 %v9399
    %9447 = vmatprep.subr.bf16.mxu0 0
    %9448 = vmatpush1.bf16.msra.mxu0 %v9400
    %9449 = vmatprep.mubr.bf16.mxu0 %v9281
    %9450 = vmatmul.mubr.bf16.gmra.mrb[0].mxu0 %v9280
    %v9451 = vpop.f32.mrb[0].mxu0
    %v9452 = vadd.f32 %v9319, %v9451
    %v9453 = vpop.f32.mrb[0].mxu0
    %v9454 = vpop.f32.mrb[0].mxu0
    %v9455 = vpop.f32.mrb[0].mxu0
    %9456 = vdwg.mxu0
    %vm9457 = vcmp.ge.f32.partialorder %v9452, 0.0
    %v9458 = vmul.f32 %v9452, 0.1
    %v9459 = vsel %vm9457, %v9452, %v9458
    %v9460 = vpack.c.bf16 %v9459, %v9459
    %v9461 = vld [vmem:[%s85] sm:$0x1]
    %vm9462 = vcmask 15360
    %v9464 = vsel %vm9462, %v9461, 0
    %vm9466 = vcmask 1040384
    %v9468 = vsel %vm9466, %v9460, 0
    %9470 = vmatprep.subr.bf16.mxu0 0
    %9471 = vmatpush1.bf16.msra.mxu0 %v9468
    %9472 = vmatprep.subr.bf16.mxu0 0
    %9473 = vmatpush1.bf16.msra.mxu0 0
    %9474 = vmatprep.subr.bf16.mxu0 0
    %9475 = vmatpush1.bf16.msra.mxu0 0
    %9476 = vmatprep.subr.bf16.mxu0 0
    %9477 = vmatpush1.bf16.msra.mxu0 0
    %9478 = vmatprep.subr.bf16.mxu0 0
    %9479 = vmatpush1.bf16.msra.mxu0 0
    %9480 = vmatprep.subr.bf16.mxu0 0
    %9481 = vmatpush1.bf16.msra.mxu0 0
    %9482 = vmatprep.subr.bf16.mxu0 0
    %9483 = vmatpush1.bf16.msra.mxu0 0
    %9484 = vmatprep.subr.bf16.mxu0 0
    %9485 = vmatpush1.bf16.msra.mxu0 0
    %9486 = vmatprep.subr.bf16.mxu0 0
    %9487 = vmatpush1.bf16.msra.mxu0 0
    %9488 = vmatprep.subr.bf16.mxu0 0
    %9489 = vmatpush1.bf16.msra.mxu0 0
    %9490 = vmatprep.subr.bf16.mxu0 0
    %9491 = vmatpush1.bf16.msra.mxu0 0
    %9492 = vmatprep.subr.bf16.mxu0 0
    %9493 = vmatpush1.bf16.msra.mxu0 0
    %9494 = vmatprep.subr.bf16.mxu0 0
    %9495 = vmatpush1.bf16.msra.mxu0 0
    %9496 = vmatprep.subr.bf16.mxu0 0
    %9497 = vmatpush1.bf16.msra.mxu0 0
    %9498 = vmatprep.subr.bf16.mxu0 0
    %9499 = vmatpush1.bf16.msra.mxu0 0
    %9500 = vmatprep.subr.bf16.mxu0 0
    %9501 = vmatpush1.bf16.msra.mxu0 0
    %9502 = vmatprep.mubr.bf16.mxu0 0
    %9503 = vmatmul.mubr.bf16.gmra.mrb[0].mxu0 %v9464
    %v9504 = vpop.f32.mrb[0].mxu0
    %v9505 = vadd.f32 0.0, %v9504
    %v9506 = vpop.f32.mrb[0].mxu0
    %v9507 = vpop.f32.mrb[0].mxu0
    %v9508 = vpop.f32.mrb[0].mxu0
    %9509 = vdwg.mxu0
    %v9510 = vpack.c.bf16 %v9505, %v9505
    %v9511 = vld [vmem:[#allocation61] sm:$0xff]
    %v9512 = vld [vmem:[#allocation61 + $0x8] sm:$0xff]
    %v9513 = vld [vmem:[#allocation61 + $0x10] sm:$0xff]
    %v9514 = vld [vmem:[#allocation61 + $0x18] sm:$0xff]
    %v9515 = vld [vmem:[#allocation61 + $0x20] sm:$0xff]
    %v9516 = vld [vmem:[#allocation61 + $0x28] sm:$0xff]
    %v9517 = vld [vmem:[#allocation61 + $0x30] sm:$0xff]
    %v9518 = vld [vmem:[#allocation61 + $0x38] sm:$0xff]
    %v9519 = vld [vmem:[#allocation61 + $0x40] sm:$0xff]
    %v9520 = vld [vmem:[#allocation61 + $0x48] sm:$0xff]
    %v9521 = vld [vmem:[#allocation61 + $0x50] sm:$0xff]
    %v9522 = vld [vmem:[#allocation61 + $0x58] sm:$0xff]
    %v9523 = vld [vmem:[#allocation61 + $0x60] sm:$0xff]
    %v9524 = vld [vmem:[#allocation61 + $0x68] sm:$0xff]
    %v9525 = vld [vmem:[#allocation61 + $0x70] sm:$0xff]
    %v9526 = vld [vmem:[#allocation61 + $0x78] sm:$0xff]
    %s9527 = scalar_lea.vmem %s85, 1
    %v9528 = vld [vmem:[%s9527] sm:$0x1]
    %v9530 = vsel %vm9462, %v9528, 0
    %9532 = vmatprep.subr.bf16.mxu0 0
    %9533 = vmatpush1.bf16.msra.mxu0 %v9468
    %9534 = vmatprep.subr.bf16.mxu0 0
    %9535 = vmatpush1.bf16.msra.mxu0 0
    %9536 = vmatprep.subr.bf16.mxu0 0
    %9537 = vmatpush1.bf16.msra.mxu0 0
    %9538 = vmatprep.subr.bf16.mxu0 0
    %9539 = vmatpush1.bf16.msra.mxu0 0
    %9540 = vmatprep.subr.bf16.mxu0 0
    %9541 = vmatpush1.bf16.msra.mxu0 0
    %9542 = vmatprep.subr.bf16.mxu0 0
    %9543 = vmatpush1.bf16.msra.mxu0 0
    %9544 = vmatprep.subr.bf16.mxu0 0
    %9545 = vmatpush1.bf16.msra.mxu0 0
    %9546 = vmatprep.subr.bf16.mxu0 0
    %9547 = vmatpush1.bf16.msra.mxu0 0
    %9548 = vmatprep.subr.bf16.mxu0 0
    %9549 = vmatpush1.bf16.msra.mxu0 0
    %9550 = vmatprep.subr.bf16.mxu0 0
    %9551 = vmatpush1.bf16.msra.mxu0 0
    %9552 = vmatprep.subr.bf16.mxu0 0
    %9553 = vmatpush1.bf16.msra.mxu0 0
    %9554 = vmatprep.subr.bf16.mxu0 0
    %9555 = vmatpush1.bf16.msra.mxu0 0
    %9556 = vmatprep.subr.bf16.mxu0 0
    %9557 = vmatpush1.bf16.msra.mxu0 0
    %9558 = vmatprep.subr.bf16.mxu0 0
    %9559 = vmatpush1.bf16.msra.mxu0 0
    %9560 = vmatprep.subr.bf16.mxu0 0
    %9561 = vmatpush1.bf16.msra.mxu0 0
    %9562 = vmatprep.subr.bf16.mxu0 0
    %9563 = vmatpush1.bf16.msra.mxu0 0
    %9564 = vmatprep.mubr.bf16.mxu0 0
    %9565 = vmatmul.mubr.bf16.gmra.mrb[0].mxu0 %v9530
    %v9566 = vpop.f32.mrb[0].mxu0
    %v9567 = vadd.f32 0.0, %v9566
    %v9568 = vpop.f32.mrb[0].mxu0
    %v9569 = vpop.f32.mrb[0].mxu0
    %v9570 = vpop.f32.mrb[0].mxu0
    %9571 = vdwg.mxu0
    %v9572 = vpack.c.bf16 %v9567, %v9567
    %s9573 = scalar_lea.vmem [#allocation61], 128
    %v9574 = vld [vmem:[%s9573] sm:$0xff]
    %v9575 = vld [vmem:[%s9573 + $0x8] sm:$0xff]
    %v9576 = vld [vmem:[%s9573 + $0x10] sm:$0xff]
    %v9577 = vld [vmem:[%s9573 + $0x18] sm:$0xff]
    %v9578 = vld [vmem:[%s9573 + $0x20] sm:$0xff]
    %v9579 = vld [vmem:[%s9573 + $0x28] sm:$0xff]
    %v9580 = vld [vmem:[%s9573 + $0x30] sm:$0xff]
    %v9581 = vld [vmem:[%s9573 + $0x38] sm:$0xff]
    %v9582 = vld [vmem:[%s9573 + $0x40] sm:$0xff]
    %v9583 = vld [vmem:[%s9573 + $0x48] sm:$0xff]
    %v9584 = vld [vmem:[%s9573 + $0x50] sm:$0xff]
    %v9585 = vld [vmem:[%s9573 + $0x58] sm:$0xff]
    %v9586 = vld [vmem:[%s9573 + $0x60] sm:$0xff]
    %v9587 = vld [vmem:[%s9573 + $0x68] sm:$0xff]
    %v9588 = vld [vmem:[%s9573 + $0x70] sm:$0xff]
    %v9589 = vld [vmem:[%s9573 + $0x78] sm:$0xff]
    %v9606 = vunpack.c.l.b16 %v9574
    %v9607 = vunpack.c.h.b16 %v9574
    %v9608 = vunpack.c.l.b16 %v9575
    %v9609 = vunpack.c.h.b16 %v9575
    %v9610 = vunpack.c.l.b16 %v9576
    %v9611 = vunpack.c.h.b16 %v9576
    %v9612 = vunpack.c.l.b16 %v9577
    %v9613 = vunpack.c.h.b16 %v9577
    %v9614 = vunpack.c.l.b16 %v9578
    %v9615 = vunpack.c.h.b16 %v9578
    %v9616 = vunpack.c.l.b16 %v9579
    %v9617 = vunpack.c.h.b16 %v9579
    %v9618 = vunpack.c.l.b16 %v9580
    %v9619 = vunpack.c.h.b16 %v9580
    %v9620 = vunpack.c.l.b16 %v9581
    %v9621 = vunpack.c.h.b16 %v9581
    %v9622 = vunpack.c.l.b16 %v9582
    %v9623 = vunpack.c.h.b16 %v9582
    %v9624 = vunpack.c.l.b16 %v9583
    %v9625 = vunpack.c.h.b16 %v9583
    %v9626 = vunpack.c.l.b16 %v9584
    %v9627 = vunpack.c.h.b16 %v9584
    %v9628 = vunpack.c.l.b16 %v9585
    %v9629 = vunpack.c.h.b16 %v9585
    %v9630 = vunpack.c.l.b16 %v9586
    %v9631 = vunpack.c.h.b16 %v9586
    %v9632 = vunpack.c.l.b16 %v9587
    %v9633 = vunpack.c.h.b16 %v9587
    %v9634 = vunpack.c.l.b16 %v9588
    %v9635 = vunpack.c.h.b16 %v9588
    %v9636 = vunpack.c.l.b16 %v9589
    %v9637 = vunpack.c.h.b16 %v9589
    %v9638 = vpack.c.b16 %v9608, %v9606
    %v9639 = vpack.c.b16 %v9609, %v9607
    %v9640 = vpack.c.b16 %v9612, %v9610
    %v9641 = vpack.c.b16 %v9613, %v9611
    %v9642 = vpack.c.b16 %v9616, %v9614
    %v9643 = vpack.c.b16 %v9617, %v9615
    %v9644 = vpack.c.b16 %v9620, %v9618
    %v9645 = vpack.c.b16 %v9621, %v9619
    %v9646 = vpack.c.b16 %v9624, %v9622
    %v9647 = vpack.c.b16 %v9625, %v9623
    %v9648 = vpack.c.b16 %v9628, %v9626
    %v9649 = vpack.c.b16 %v9629, %v9627
    %v9650 = vpack.c.b16 %v9632, %v9630
    %v9651 = vpack.c.b16 %v9633, %v9631
    %v9652 = vpack.c.b16 %v9636, %v9634
    %v9653 = vpack.c.b16 %v9637, %v9635
    %9670 = vmatprep.subr.bf16.mxu0 %v9639
    %9671 = vmatpush1.bf16.msra.mxu0 %v9638
    %9672 = vmatprep.subr.bf16.mxu0 %v9641
    %9673 = vmatpush1.bf16.msra.mxu0 %v9640
    %9674 = vmatprep.subr.bf16.mxu0 %v9643
    %9675 = vmatpush1.bf16.msra.mxu0 %v9642
    %9676 = vmatprep.subr.bf16.mxu0 %v9645
    %9677 = vmatpush1.bf16.msra.mxu0 %v9644
    %9678 = vmatprep.subr.bf16.mxu0 %v9647
    %9679 = vmatpush1.bf16.msra.mxu0 %v9646
    %9680 = vmatprep.subr.bf16.mxu0 %v9649
    %9681 = vmatpush1.bf16.msra.mxu0 %v9648
    %9682 = vmatprep.subr.bf16.mxu0 %v9651
    %9683 = vmatpush1.bf16.msra.mxu0 %v9650
    %9684 = vmatprep.subr.bf16.mxu0 %v9653
    %9685 = vmatpush1.bf16.msra.mxu0 %v9652
    %9686 = vmatprep.subr.bf16.mxu0 0
    %9687 = vmatpush1.bf16.msra.mxu0 0
    %9688 = vmatprep.subr.bf16.mxu0 0
    %9689 = vmatpush1.bf16.msra.mxu0 0
    %9690 = vmatprep.subr.bf16.mxu0 0
    %9691 = vmatpush1.bf16.msra.mxu0 0
    %9692 = vmatprep.subr.bf16.mxu0 0
    %9693 = vmatpush1.bf16.msra.mxu0 0
    %9694 = vmatprep.subr.bf16.mxu0 0
    %9695 = vmatpush1.bf16.msra.mxu0 0
    %9696 = vmatprep.subr.bf16.mxu0 0
    %9697 = vmatpush1.bf16.msra.mxu0 0
    %9698 = vmatprep.subr.bf16.mxu0 0
    %9699 = vmatpush1.bf16.msra.mxu0 0
    %9700 = vmatprep.subr.bf16.mxu0 0
    %9701 = vmatpush1.bf16.msra.mxu0 0
    %9702 = vmatprep.mubr.bf16.mxu0 0
    %9703 = vmatmul.mubr.bf16.gmra.mrb[0].mxu0 %v9572
    %v9704 = vpop.f32.mrb[0].mxu0
    %v9705 = vadd.f32 0.0, %v9704
    %v9706 = vpop.f32.mrb[0].mxu0
    %v9707 = vadd.f32 0.0, %v9706
    %v9708 = vpop.f32.mrb[0].mxu0
    %v9709 = vpop.f32.mrb[0].mxu0
    %9710 = vdwg.mxu0
    %v9727 = vunpack.c.l.b16 %v9511
    %v9728 = vunpack.c.h.b16 %v9511
    %v9729 = vunpack.c.l.b16 %v9512
    %v9730 = vunpack.c.h.b16 %v9512
    %v9731 = vunpack.c.l.b16 %v9513
    %v9732 = vunpack.c.h.b16 %v9513
    %v9733 = vunpack.c.l.b16 %v9514
    %v9734 = vunpack.c.h.b16 %v9514
    %v9735 = vunpack.c.l.b16 %v9515
    %v9736 = vunpack.c.h.b16 %v9515
    %v9737 = vunpack.c.l.b16 %v9516
    %v9738 = vunpack.c.h.b16 %v9516
    %v9739 = vunpack.c.l.b16 %v9517
    %v9740 = vunpack.c.h.b16 %v9517
    %v9741 = vunpack.c.l.b16 %v9518
    %v9742 = vunpack.c.h.b16 %v9518
    %v9743 = vunpack.c.l.b16 %v9519
    %v9744 = vunpack.c.h.b16 %v9519
    %v9745 = vunpack.c.l.b16 %v9520
    %v9746 = vunpack.c.h.b16 %v9520
    %v9747 = vunpack.c.l.b16 %v9521
    %v9748 = vunpack.c.h.b16 %v9521
    %v9749 = vunpack.c.l.b16 %v9522
    %v9750 = vunpack.c.h.b16 %v9522
    %v9751 = vunpack.c.l.b16 %v9523
    %v9752 = vunpack.c.h.b16 %v9523
    %v9753 = vunpack.c.l.b16 %v9524
    %v9754 = vunpack.c.h.b16 %v9524
    %v9755 = vunpack.c.l.b16 %v9525
    %v9756 = vunpack.c.h.b16 %v9525
    %v9757 = vunpack.c.l.b16 %v9526
    %v9758 = vunpack.c.h.b16 %v9526
    %v9759 = vpack.c.b16 %v9729, %v9727
    %v9760 = vpack.c.b16 %v9730, %v9728
    %v9761 = vpack.c.b16 %v9733, %v9731
    %v9762 = vpack.c.b16 %v9734, %v9732
    %v9763 = vpack.c.b16 %v9737, %v9735
    %v9764 = vpack.c.b16 %v9738, %v9736
    %v9765 = vpack.c.b16 %v9741, %v9739
    %v9766 = vpack.c.b16 %v9742, %v9740
    %v9767 = vpack.c.b16 %v9745, %v9743
    %v9768 = vpack.c.b16 %v9746, %v9744
    %v9769 = vpack.c.b16 %v9749, %v9747
    %v9770 = vpack.c.b16 %v9750, %v9748
    %v9771 = vpack.c.b16 %v9753, %v9751
    %v9772 = vpack.c.b16 %v9754, %v9752
    %v9773 = vpack.c.b16 %v9757, %v9755
    %v9774 = vpack.c.b16 %v9758, %v9756
    %9791 = vmatprep.subr.bf16.mxu0 %v9760
    %9792 = vmatpush1.bf16.msra.mxu0 %v9759
    %9793 = vmatprep.subr.bf16.mxu0 %v9762
    %9794 = vmatpush1.bf16.msra.mxu0 %v9761
    %9795 = vmatprep.subr.bf16.mxu0 %v9764
    %9796 = vmatpush1.bf16.msra.mxu0 %v9763
    %9797 = vmatprep.subr.bf16.mxu0 %v9766
    %9798 = vmatpush1.bf16.msra.mxu0 %v9765
    %9799 = vmatprep.subr.bf16.mxu0 %v9768
    %9800 = vmatpush1.bf16.msra.mxu0 %v9767
    %9801 = vmatprep.subr.bf16.mxu0 %v9770
    %9802 = vmatpush1.bf16.msra.mxu0 %v9769
    %9803 = vmatprep.subr.bf16.mxu0 %v9772
    %9804 = vmatpush1.bf16.msra.mxu0 %v9771
    %9805 = vmatprep.subr.bf16.mxu0 %v9774
    %9806 = vmatpush1.bf16.msra.mxu0 %v9773
    %9807 = vmatprep.subr.bf16.mxu0 0
    %9808 = vmatpush1.bf16.msra.mxu0 0
    %9809 = vmatprep.subr.bf16.mxu0 0
    %9810 = vmatpush1.bf16.msra.mxu0 0
    %9811 = vmatprep.subr.bf16.mxu0 0
    %9812 = vmatpush1.bf16.msra.mxu0 0
    %9813 = vmatprep.subr.bf16.mxu0 0
    %9814 = vmatpush1.bf16.msra.mxu0 0
    %9815 = vmatprep.subr.bf16.mxu0 0
    %9816 = vmatpush1.bf16.msra.mxu0 0
    %9817 = vmatprep.subr.bf16.mxu0 0
    %9818 = vmatpush1.bf16.msra.mxu0 0
    %9819 = vmatprep.subr.bf16.mxu0 0
    %9820 = vmatpush1.bf16.msra.mxu0 0
    %9821 = vmatprep.subr.bf16.mxu0 0
    %9822 = vmatpush1.bf16.msra.mxu0 0
    %9823 = vmatprep.mubr.bf16.mxu0 0
    %9824 = vmatmul.mubr.bf16.gmra.mrb[0].mxu0 %v9510
    %v9825 = vpop.f32.mrb[0].mxu0
    %v9826 = vadd.f32 %v9705, %v9825
    %v9827 = vpop.f32.mrb[0].mxu0
    %v9828 = vadd.f32 %v9707, %v9827
    %v9829 = vpop.f32.mrb[0].mxu0
    %v9830 = vpop.f32.mrb[0].mxu0
    %9831 = vdwg.mxu0
    %s9832 = scalar_lea.vmem %s85, 2
    %v9833 = vld [vmem:[%s9832] sm:$0x1]
    %v9835 = vsel %vm9462, %v9833, 0
    %9837 = vmatprep.subr.bf16.mxu0 0
    %9838 = vmatpush1.bf16.msra.mxu0 %v9468
    %9839 = vmatprep.subr.bf16.mxu0 0
    %9840 = vmatpush1.bf16.msra.mxu0 0
    %9841 = vmatprep.subr.bf16.mxu0 0
    %9842 = vmatpush1.bf16.msra.mxu0 0
    %9843 = vmatprep.subr.bf16.mxu0 0
    %9844 = vmatpush1.bf16.msra.mxu0 0
    %9845 = vmatprep.subr.bf16.mxu0 0
    %9846 = vmatpush1.bf16.msra.mxu0 0
    %9847 = vmatprep.subr.bf16.mxu0 0
    %9848 = vmatpush1.bf16.msra.mxu0 0
    %9849 = vmatprep.subr.bf16.mxu0 0
    %9850 = vmatpush1.bf16.msra.mxu0 0
    %9851 = vmatprep.subr.bf16.mxu0 0
    %9852 = vmatpush1.bf16.msra.mxu0 0
    %9853 = vmatprep.subr.bf16.mxu0 0
    %9854 = vmatpush1.bf16.msra.mxu0 0
    %9855 = vmatprep.subr.bf16.mxu0 0
    %9856 = vmatpush1.bf16.msra.mxu0 0
    %9857 = vmatprep.subr.bf16.mxu0 0
    %9858 = vmatpush1.bf16.msra.mxu0 0
    %9859 = vmatprep.subr.bf16.mxu0 0
    %9860 = vmatpush1.bf16.msra.mxu0 0
    %9861 = vmatprep.subr.bf16.mxu0 0
    %9862 = vmatpush1.bf16.msra.mxu0 0
    %9863 = vmatprep.subr.bf16.mxu0 0
    %9864 = vmatpush1.bf16.msra.mxu0 0
    %9865 = vmatprep.subr.bf16.mxu0 0
    %9866 = vmatpush1.bf16.msra.mxu0 0
    %9867 = vmatprep.subr.bf16.mxu0 0
    %9868 = vmatpush1.bf16.msra.mxu0 0
    %9869 = vmatprep.mubr.bf16.mxu0 0
    %9870 = vmatmul.mubr.bf16.gmra.mrb[0].mxu0 %v9835
    %v9871 = vpop.f32.mrb[0].mxu0
    %v9872 = vadd.f32 0.0, %v9871
    %v9873 = vpop.f32.mrb[0].mxu0
    %v9874 = vpop.f32.mrb[0].mxu0
    %v9875 = vpop.f32.mrb[0].mxu0
    %9876 = vdwg.mxu0
    %v9877 = vpack.c.bf16 %v9872, %v9872
    %s9878 = scalar_lea.vmem [#allocation61], 256
    %v9879 = vld [vmem:[%s9878] sm:$0xff]
    %v9880 = vld [vmem:[%s9878 + $0x8] sm:$0xff]
    %v9881 = vld [vmem:[%s9878 + $0x10] sm:$0xff]
    %v9882 = vld [vmem:[%s9878 + $0x18] sm:$0xff]
    %v9883 = vld [vmem:[%s9878 + $0x20] sm:$0xff]
    %v9884 = vld [vmem:[%s9878 + $0x28] sm:$0xff]
    %v9885 = vld [vmem:[%s9878 + $0x30] sm:$0xff]
    %v9886 = vld [vmem:[%s9878 + $0x38] sm:$0xff]
    %v9887 = vld [vmem:[%s9878 + $0x40] sm:$0xff]
    %v9888 = vld [vmem:[%s9878 + $0x48] sm:$0xff]
    %v9889 = vld [vmem:[%s9878 + $0x50] sm:$0xff]
    %v9890 = vld [vmem:[%s9878 + $0x58] sm:$0xff]
    %v9891 = vld [vmem:[%s9878 + $0x60] sm:$0xff]
    %v9892 = vld [vmem:[%s9878 + $0x68] sm:$0xff]
    %v9893 = vld [vmem:[%s9878 + $0x70] sm:$0xff]
    %v9894 = vld [vmem:[%s9878 + $0x78] sm:$0xff]
    %v9911 = vunpack.c.l.b16 %v9879
    %v9912 = vunpack.c.h.b16 %v9879
    %v9913 = vunpack.c.l.b16 %v9880
    %v9914 = vunpack.c.h.b16 %v9880
    %v9915 = vunpack.c.l.b16 %v9881
    %v9916 = vunpack.c.h.b16 %v9881
    %v9917 = vunpack.c.l.b16 %v9882
    %v9918 = vunpack.c.h.b16 %v9882
    %v9919 = vunpack.c.l.b16 %v9883
    %v9920 = vunpack.c.h.b16 %v9883
    %v9921 = vunpack.c.l.b16 %v9884
    %v9922 = vunpack.c.h.b16 %v9884
    %v9923 = vunpack.c.l.b16 %v9885
    %v9924 = vunpack.c.h.b16 %v9885
    %v9925 = vunpack.c.l.b16 %v9886
    %v9926 = vunpack.c.h.b16 %v9886
    %v9927 = vunpack.c.l.b16 %v9887
    %v9928 = vunpack.c.h.b16 %v9887
    %v9929 = vunpack.c.l.b16 %v9888
    %v9930 = vunpack.c.h.b16 %v9888
    %v9931 = vunpack.c.l.b16 %v9889
    %v9932 = vunpack.c.h.b16 %v9889
    %v9933 = vunpack.c.l.b16 %v9890
    %v9934 = vunpack.c.h.b16 %v9890
    %v9935 = vunpack.c.l.b16 %v9891
    %v9936 = vunpack.c.h.b16 %v9891
    %v9937 = vunpack.c.l.b16 %v9892
    %v9938 = vunpack.c.h.b16 %v9892
    %v9939 = vunpack.c.l.b16 %v9893
    %v9940 = vunpack.c.h.b16 %v9893
    %v9941 = vunpack.c.l.b16 %v9894
    %v9942 = vunpack.c.h.b16 %v9894
    %v9943 = vpack.c.b16 %v9913, %v9911
    %v9944 = vpack.c.b16 %v9914, %v9912
    %v9945 = vpack.c.b16 %v9917, %v9915
    %v9946 = vpack.c.b16 %v9918, %v9916
    %v9947 = vpack.c.b16 %v9921, %v9919
    %v9948 = vpack.c.b16 %v9922, %v9920
    %v9949 = vpack.c.b16 %v9925, %v9923
    %v9950 = vpack.c.b16 %v9926, %v9924
    %v9951 = vpack.c.b16 %v9929, %v9927
    %v9952 = vpack.c.b16 %v9930, %v9928
    %v9953 = vpack.c.b16 %v9933, %v9931
    %v9954 = vpack.c.b16 %v9934, %v9932
    %v9955 = vpack.c.b16 %v9937, %v9935
    %v9956 = vpack.c.b16 %v9938, %v9936
    %v9957 = vpack.c.b16 %v9941, %v9939
    %v9958 = vpack.c.b16 %v9942, %v9940
    %9975 = vmatprep.subr.bf16.mxu0 %v9944
    %9976 = vmatpush1.bf16.msra.mxu0 %v9943
    %9977 = vmatprep.subr.bf16.mxu0 %v9946
    %9978 = vmatpush1.bf16.msra.mxu0 %v9945
    %9979 = vmatprep.subr.bf16.mxu0 %v9948
    %9980 = vmatpush1.bf16.msra.mxu0 %v9947
    %9981 = vmatprep.subr.bf16.mxu0 %v9950
    %9982 = vmatpush1.bf16.msra.mxu0 %v9949
    %9983 = vmatprep.subr.bf16.mxu0 %v9952
    %9984 = vmatpush1.bf16.msra.mxu0 %v9951
    %9985 = vmatprep.subr.bf16.mxu0 %v9954
    %9986 = vmatpush1.bf16.msra.mxu0 %v9953
    %9987 = vmatprep.subr.bf16.mxu0 %v9956
    %9988 = vmatpush1.bf16.msra.mxu0 %v9955
    %9989 = vmatprep.subr.bf16.mxu0 %v9958
    %9990 = vmatpush1.bf16.msra.mxu0 %v9957
    %9991 = vmatprep.subr.bf16.mxu0 0
    %9992 = vmatpush1.bf16.msra.mxu0 0
    %9993 = vmatprep.subr.bf16.mxu0 0
    %9994 = vmatpush1.bf16.msra.mxu0 0
    %9995 = vmatprep.subr.bf16.mxu0 0
    %9996 = vmatpush1.bf16.msra.mxu0 0
    %9997 = vmatprep.subr.bf16.mxu0 0
    %9998 = vmatpush1.bf16.msra.mxu0 0
    %9999 = vmatprep.subr.bf16.mxu0 0
    %10000 = vmatpush1.bf16.msra.mxu0 0
    %10001 = vmatprep.subr.bf16.mxu0 0
    %10002 = vmatpush1.bf16.msra.mxu0 0
    %10003 = vmatprep.subr.bf16.mxu0 0
    %10004 = vmatpush1.bf16.msra.mxu0 0
    %10005 = vmatprep.subr.bf16.mxu0 0
    %10006 = vmatpush1.bf16.msra.mxu0 0
    %10007 = vmatprep.mubr.bf16.mxu0 0
    %10008 = vmatmul.mubr.bf16.gmra.mrb[0].mxu0 %v9877
    %v10009 = vpop.f32.mrb[0].mxu0
    %v10010 = vadd.f32 0.0, %v10009
    %v10011 = vpop.f32.mrb[0].mxu0
    %v10012 = vadd.f32 0.0, %v10011
    %v10013 = vpop.f32.mrb[0].mxu0
    %v10014 = vpop.f32.mrb[0].mxu0
    %10015 = vdwg.mxu0
    %v10016 = vadd.f32 %v9826, %v10010
    %v10017 = vadd.f32 %v9828, %v10012
    %v10018 = vld [vmem:[%s89] sm:$0x3]
    %v10020 = vlaneseq
    %v10021 = vshrl.u32 %v10020, 7
    %v10022 = vsub.s32 0, %v10021
    %v10023 = vrot.slane %v10018, %v10022
    %v10024 = vlaneseq
    %v10025 = vshrl.u32 %v10024, 7
    %v10026 = vsub.s32 1, %v10025
    %v10027 = vrot.slane %v10018, %v10026
    %v10030 = vadd.f32 %v10016, %v10023
    %v10031 = vadd.f32 %v10017, %v10027
    %vm10032 = vcmp.ge.f32.partialorder %v10030, 0.0
    %vm10033 = vcmp.ge.f32.partialorder %v10031, 0.0
    %v10034 = vmul.f32 %v10030, 0.1
    %v10035 = vmul.f32 %v10031, 0.1
    %v10036 = vsel %vm10032, %v10030, %v10034
    %v10037 = vsel %vm10033, %v10031, %v10035
    %v10038 = vadd.f32 %v10036, %v9278
    %v10039 = vadd.f32 %v10037, %v9279
    %v10040 = vld [vmem:[%s91] sm:$0x3]
    %v10042 = vsel %vm9462, %v10040, 0
    %v10045 = vsel %vm7832, %v10038, 0
    %v10048 = vsel %vm7832, %v10039, 0
    %10050 = vmatprep.subr.mxu0 %v10048
    %10051 = vmatpush1.msra.mxu0 %v10045
    %10052 = vmatprep.subr.mxu0 0.0
    %10053 = vmatpush1.msra.mxu0 0.0
    %10054 = vmatprep.subr.mxu0 0.0
    %10055 = vmatpush1.msra.mxu0 0.0
    %10056 = vmatprep.subr.mxu0 0.0
    %10057 = vmatpush1.msra.mxu0 0.0
    %10058 = vmatprep.subr.mxu0 0.0
    %10059 = vmatpush1.msra.mxu0 0.0
    %10060 = vmatprep.subr.mxu0 0.0
    %10061 = vmatpush1.msra.mxu0 0.0
    %10062 = vmatprep.subr.mxu0 0.0
    %10063 = vmatpush1.msra.mxu0 0.0
    %10064 = vmatprep.subr.mxu0 0.0
    %10065 = vmatpush1.msra.mxu0 0.0
    %10066 = vmatprep.subr.mxu0 0.0
    %10067 = vmatpush1.msra.mxu0 0.0
    %10068 = vmatprep.subr.mxu0 0.0
    %10069 = vmatpush1.msra.mxu0 0.0
    %10070 = vmatprep.subr.mxu0 0.0
    %10071 = vmatpush1.msra.mxu0 0.0
    %10072 = vmatprep.subr.mxu0 0.0
    %10073 = vmatpush1.msra.mxu0 0.0
    %10074 = vmatprep.subr.mxu0 0.0
    %10075 = vmatpush1.msra.mxu0 0.0
    %10076 = vmatprep.subr.mxu0 0.0
    %10077 = vmatpush1.msra.mxu0 0.0
    %10078 = vmatprep.subr.mxu0 0.0
    %10079 = vmatpush1.msra.mxu0 0.0
    %10080 = vmatprep.subr.mxu0 0.0
    %10081 = vmatpush1.msra.mxu0 0.0
    %10082 = vmatprep.subr.mxu0 0.0
    %10083 = vmatpush1.msra.mxu0 0.0
    %10084 = vmatprep.subr.mxu0 0.0
    %10085 = vmatpush1.msra.mxu0 0.0
    %10086 = vmatprep.subr.mxu0 0.0
    %10087 = vmatpush1.msra.mxu0 0.0
    %10088 = vmatprep.subr.mxu0 0.0
    %10089 = vmatpush1.msra.mxu0 0.0
    %10090 = vmatprep.subr.mxu0 0.0
    %10091 = vmatpush1.msra.mxu0 0.0
    %10092 = vmatprep.subr.mxu0 0.0
    %10093 = vmatpush1.msra.mxu0 0.0
    %10094 = vmatprep.subr.mxu0 0.0
    %10095 = vmatpush1.msra.mxu0 0.0
    %10096 = vmatprep.subr.mxu0 0.0
    %10097 = vmatpush1.msra.mxu0 0.0
    %10098 = vmatprep.subr.mxu0 0.0
    %10099 = vmatpush1.msra.mxu0 0.0
    %10100 = vmatprep.subr.mxu0 0.0
    %10101 = vmatpush1.msra.mxu0 0.0
    %10102 = vmatprep.subr.mxu0 0.0
    %10103 = vmatpush1.msra.mxu0 0.0
    %10104 = vmatprep.subr.mxu0 0.0
    %10105 = vmatpush1.msra.mxu0 0.0
    %10106 = vmatprep.subr.mxu0 0.0
    %10107 = vmatpush1.msra.mxu0 0.0
    %10108 = vmatprep.subr.mxu0 0.0
    %10109 = vmatpush1.msra.mxu0 0.0
    %10110 = vmatprep.subr.mxu0 0.0
    %10111 = vmatpush1.msra.mxu0 0.0
    %10112 = vmatprep.subr.mxu0 0.0
    %10113 = vmatpush1.msra.mxu0 0.0
    %10114 = vmatprep.mubr.f32.mxu0 0.0
    %10115 = vmatmul.mubr.f32.gmra.mrb[0].mxu0 %v10042
    %v10116 = vpop.f32.mrb[0].mxu0
    %v10117 = vadd.f32 0.0, %v10116
    %v10118 = vpop.f32.mrb[0].mxu0
    %v10119 = vadd.f32 0.0, %v10118
    %10120 = vdwg.mxu0
    %v10121 = vld [vmem:[#allocation62] sm:$0xff]
    %v10122 = vld [vmem:[#allocation62 + $0x8] sm:$0xff]
    %v10123 = vld [vmem:[#allocation62 + $0x10] sm:$0xff]
    %v10124 = vld [vmem:[#allocation62 + $0x18] sm:$0xff]
    %v10125 = vld [vmem:[#allocation62 + $0x20] sm:$0xff]
    %v10126 = vld [vmem:[#allocation62 + $0x28] sm:$0xff]
    %v10127 = vld [vmem:[#allocation62 + $0x30] sm:$0xff]
    %v10128 = vld [vmem:[#allocation62 + $0x38] sm:$0xff]
    %v10129 = vld [vmem:[#allocation62 + $0x40] sm:$0xff]
    %v10130 = vld [vmem:[#allocation62 + $0x48] sm:$0xff]
    %v10131 = vld [vmem:[#allocation62 + $0x50] sm:$0xff]
    %v10132 = vld [vmem:[#allocation62 + $0x58] sm:$0xff]
    %v10133 = vld [vmem:[#allocation62 + $0x60] sm:$0xff]
    %v10134 = vld [vmem:[#allocation62 + $0x68] sm:$0xff]
    %v10135 = vld [vmem:[#allocation62 + $0x70] sm:$0xff]
    %v10136 = vld [vmem:[#allocation62 + $0x78] sm:$0xff]
    %v10137 = vld [vmem:[#allocation62 + $0x80] sm:$0xff]
    %v10138 = vld [vmem:[#allocation62 + $0x88] sm:$0xff]
    %v10139 = vld [vmem:[#allocation62 + $0x90] sm:$0xff]
    %v10140 = vld [vmem:[#allocation62 + $0x98] sm:$0xff]
    %v10141 = vld [vmem:[#allocation62 + $0xa0] sm:$0xff]
    %v10142 = vld [vmem:[#allocation62 + $0xa8] sm:$0xff]
    %v10143 = vld [vmem:[#allocation62 + $0xb0] sm:$0xff]
    %v10144 = vld [vmem:[#allocation62 + $0xb8] sm:$0xff]
    %v10145 = vld [vmem:[#allocation62 + $0xc0] sm:$0xff]
    %v10146 = vld [vmem:[#allocation62 + $0xc8] sm:$0xff]
    %v10147 = vld [vmem:[#allocation62 + $0xd0] sm:$0xff]
    %v10148 = vld [vmem:[#allocation62 + $0xd8] sm:$0xff]
    %v10149 = vld [vmem:[#allocation62 + $0xe0] sm:$0xff]
    %v10150 = vld [vmem:[#allocation62 + $0xe8] sm:$0xff]
    %v10151 = vld [vmem:[#allocation62 + $0xf0] sm:$0xff]
    %v10152 = vld [vmem:[#allocation62 + $0xf8] sm:$0xff]
    %v10153 = vld [vmem:[#allocation62 + $0x100] sm:$0xff]
    %v10154 = vld [vmem:[#allocation62 + $0x108] sm:$0xff]
    %v10155 = vld [vmem:[#allocation62 + $0x110] sm:$0xff]
    %v10156 = vld [vmem:[#allocation62 + $0x118] sm:$0xff]
    %v10157 = vld [vmem:[#allocation62 + $0x120] sm:$0xff]
    %v10158 = vld [vmem:[#allocation62 + $0x128] sm:$0xff]
    %v10159 = vld [vmem:[#allocation62 + $0x130] sm:$0xff]
    %v10160 = vld [vmem:[#allocation62 + $0x138] sm:$0xff]
    %v10161 = vld [vmem:[#allocation62 + $0x140] sm:$0xff]
    %v10162 = vld [vmem:[#allocation62 + $0x148] sm:$0xff]
    %v10163 = vld [vmem:[#allocation62 + $0x150] sm:$0xff]
    %v10164 = vld [vmem:[#allocation62 + $0x158] sm:$0xff]
    %v10165 = vld [vmem:[#allocation62 + $0x160] sm:$0xff]
    %v10166 = vld [vmem:[#allocation62 + $0x168] sm:$0xff]
    %v10167 = vld [vmem:[#allocation62 + $0x170] sm:$0xff]
    %v10168 = vld [vmem:[#allocation62 + $0x178] sm:$0xff]
    %v10169 = vld [vmem:[#allocation62 + $0x180] sm:$0xff]
    %v10170 = vld [vmem:[#allocation62 + $0x188] sm:$0xff]
    %v10171 = vld [vmem:[#allocation62 + $0x190] sm:$0xff]
    %v10172 = vld [vmem:[#allocation62 + $0x198] sm:$0xff]
    %v10173 = vld [vmem:[#allocation62 + $0x1a0] sm:$0xff]
    %v10174 = vld [vmem:[#allocation62 + $0x1a8] sm:$0xff]
    %v10175 = vld [vmem:[#allocation62 + $0x1b0] sm:$0xff]
    %v10176 = vld [vmem:[#allocation62 + $0x1b8] sm:$0xff]
    %v10177 = vld [vmem:[#allocation62 + $0x1c0] sm:$0xff]
    %v10178 = vld [vmem:[#allocation62 + $0x1c8] sm:$0xff]
    %v10179 = vld [vmem:[#allocation62 + $0x1d0] sm:$0xff]
    %v10180 = vld [vmem:[#allocation62 + $0x1d8] sm:$0xff]
    %v10181 = vld [vmem:[#allocation62 + $0x1e0] sm:$0xff]
    %v10182 = vld [vmem:[#allocation62 + $0x1e8] sm:$0xff]
    %v10183 = vld [vmem:[#allocation62 + $0x1f0] sm:$0xff]
    %v10184 = vld [vmem:[#allocation62 + $0x1f8] sm:$0xff]
    %10185 = vmatprep.subr.mxu0 %v10122
    %10186 = vmatpush1.msra.mxu0 %v10121
    %10187 = vmatprep.subr.mxu0 %v10124
    %10188 = vmatpush1.msra.mxu0 %v10123
    %10189 = vmatprep.subr.mxu0 %v10126
    %10190 = vmatpush1.msra.mxu0 %v10125
    %10191 = vmatprep.subr.mxu0 %v10128
    %10192 = vmatpush1.msra.mxu0 %v10127
    %10193 = vmatprep.subr.mxu0 %v10130
    %10194 = vmatpush1.msra.mxu0 %v10129
    %10195 = vmatprep.subr.mxu0 %v10132
    %10196 = vmatpush1.msra.mxu0 %v10131
    %10197 = vmatprep.subr.mxu0 %v10134
    %10198 = vmatpush1.msra.mxu0 %v10133
    %10199 = vmatprep.subr.mxu0 %v10136
    %10200 = vmatpush1.msra.mxu0 %v10135
    %10201 = vmatprep.subr.mxu0 %v10138
    %10202 = vmatpush1.msra.mxu0 %v10137
    %10203 = vmatprep.subr.mxu0 %v10140
    %10204 = vmatpush1.msra.mxu0 %v10139
    %10205 = vmatprep.subr.mxu0 %v10142
    %10206 = vmatpush1.msra.mxu0 %v10141
    %10207 = vmatprep.subr.mxu0 %v10144
    %10208 = vmatpush1.msra.mxu0 %v10143
    %10209 = vmatprep.subr.mxu0 %v10146
    %10210 = vmatpush1.msra.mxu0 %v10145
    %10211 = vmatprep.subr.mxu0 %v10148
    %10212 = vmatpush1.msra.mxu0 %v10147
    %10213 = vmatprep.subr.mxu0 %v10150
    %10214 = vmatpush1.msra.mxu0 %v10149
    %10215 = vmatprep.subr.mxu0 %v10152
    %10216 = vmatpush1.msra.mxu0 %v10151
    %10217 = vmatprep.subr.mxu0 %v10154
    %10218 = vmatpush1.msra.mxu0 %v10153
    %10219 = vmatprep.subr.mxu0 %v10156
    %10220 = vmatpush1.msra.mxu0 %v10155
    %10221 = vmatprep.subr.mxu0 %v10158
    %10222 = vmatpush1.msra.mxu0 %v10157
    %10223 = vmatprep.subr.mxu0 %v10160
    %10224 = vmatpush1.msra.mxu0 %v10159
    %10225 = vmatprep.subr.mxu0 %v10162
    %10226 = vmatpush1.msra.mxu0 %v10161
    %10227 = vmatprep.subr.mxu0 %v10164
    %10228 = vmatpush1.msra.mxu0 %v10163
    %10229 = vmatprep.subr.mxu0 %v10166
    %10230 = vmatpush1.msra.mxu0 %v10165
    %10231 = vmatprep.subr.mxu0 %v10168
    %10232 = vmatpush1.msra.mxu0 %v10167
    %10233 = vmatprep.subr.mxu0 %v10170
    %10234 = vmatpush1.msra.mxu0 %v10169
    %10235 = vmatprep.subr.mxu0 %v10172
    %10236 = vmatpush1.msra.mxu0 %v10171
    %10237 = vmatprep.subr.mxu0 %v10174
    %10238 = vmatpush1.msra.mxu0 %v10173
    %10239 = vmatprep.subr.mxu0 %v10176
    %10240 = vmatpush1.msra.mxu0 %v10175
    %10241 = vmatprep.subr.mxu0 %v10178
    %10242 = vmatpush1.msra.mxu0 %v10177
    %10243 = vmatprep.subr.mxu0 %v10180
    %10244 = vmatpush1.msra.mxu0 %v10179
    %10245 = vmatprep.subr.mxu0 %v10182
    %10246 = vmatpush1.msra.mxu0 %v10181
    %10247 = vmatprep.subr.mxu0 %v10184
    %10248 = vmatpush1.msra.mxu0 %v10183
    %10249 = vmatprep.mubr.f32.mxu0 %v10119
    %10250 = vmatmul.mubr.f32.gmra.mrb[0].mxu0 %v10117
    %v10251 = vpop.f32.mrb[0].mxu0
    %v10252 = vadd.f32 0.0, %v10251
    %v10253 = vpop.f32.mrb[0].mxu0
    %v10254 = vadd.f32 0.0, %v10253
    %10255 = vdwg.mxu0
    %v10258 = vcombine.low %v10252, %v10254
    %v10260 = vunpack.c.l.s4 1983009808
    %v10261 = vunpack.c.0.s8 %v10260
    %v10262 = vlaneseq
    %v10263 = vshrl.u32 %v10262, 7
    %v10264 = vsub.s32 %v10261, %v10263
    %v10265 = vrot.slane %v10258, %v10264
    %10267 = vst [vmem:[#allocation64] sm:$0xf] %v10265
    %v10268 = vld [vmem:[%s95] sm:$0xff]
    %v10269 = vld [vmem:[%s95 + $0x8] sm:$0xff]
    %v10270 = vld [vmem:[%s95 + $0x10] sm:$0xff]
    %v10271 = vld [vmem:[%s95 + $0x18] sm:$0xff]
    %v10272 = vld [vmem:[%s95 + $0x20] sm:$0xff]
    %v10273 = vld [vmem:[%s95 + $0x28] sm:$0xff]
    %v10274 = vld [vmem:[%s95 + $0x30] sm:$0xff]
    %v10275 = vld [vmem:[%s95 + $0x38] sm:$0xff]
    %v10276 = vld [vmem:[%s95 + $0x40] sm:$0xff]
    %v10277 = vld [vmem:[%s95 + $0x48] sm:$0xff]
    %v10278 = vld [vmem:[%s95 + $0x50] sm:$0xff]
    %v10279 = vld [vmem:[%s95 + $0x58] sm:$0xff]
    %v10280 = vld [vmem:[%s95 + $0x60] sm:$0xff]
    %v10281 = vld [vmem:[%s95 + $0x68] sm:$0xff]
    %v10282 = vld [vmem:[%s95 + $0x70] sm:$0xff]
    %v10283 = vld [vmem:[%s95 + $0x78] sm:$0xff]
    %v10284 = vld [vmem:[%s95 + $0x80] sm:$0xff]
    %v10285 = vld [vmem:[%s95 + $0x88] sm:$0xff]
    %v10286 = vld [vmem:[%s95 + $0x90] sm:$0xff]
    %v10287 = vld [vmem:[%s95 + $0x98] sm:$0xff]
    %v10288 = vld [vmem:[%s95 + $0xa0] sm:$0xff]
    %v10289 = vld [vmem:[%s95 + $0xa8] sm:$0xff]
    %v10290 = vld [vmem:[%s95 + $0xb0] sm:$0xff]
    %v10291 = vld [vmem:[%s95 + $0xb8] sm:$0xff]
    %v10292 = vld [vmem:[%s95 + $0xc0] sm:$0xff]
    %v10293 = vld [vmem:[%s95 + $0xc8] sm:$0xff]
    %v10294 = vld [vmem:[%s95 + $0xd0] sm:$0xff]
    %v10295 = vld [vmem:[%s95 + $0xd8] sm:$0xff]
    %v10296 = vld [vmem:[%s95 + $0xe0] sm:$0xff]
    %v10297 = vld [vmem:[%s95 + $0xe8] sm:$0xff]
    %v10298 = vld [vmem:[%s95 + $0xf0] sm:$0xff]
    %v10299 = vld [vmem:[%s95 + $0xf8] sm:$0xff]
    %v10300 = vmul.f32 %v10252, %v10252
    %v10301 = vmul.f32 %v10254, %v10254
    %v10302 = vsel %vm7832, %v10300, 0.0
    %v10303 = vsel %vm7832, %v10301, 0.0
    %v10304 = vadd.f32 %v10302, %v10303
    %10305 = vadd.xlane.f32.xlu0 %v10304
    %v10306 = vpop.xlane.xlu0 %10305
    %v10307 = vmax.f32 %v10306, 1e-24
    %v10308 = vrsqrt.pop %v10307
    %v10309 = vmul.f32 %v10252, %v10308
    %v10310 = vmul.f32 %v10254, %v10308
    %v10311 = vmul.f32 %v10268, %v10268
    %v10312 = vmul.f32 %v10269, %v10269
    %v10313 = vmul.f32 %v10270, %v10270
    %v10314 = vmul.f32 %v10271, %v10271
    %v10315 = vmul.f32 %v10272, %v10272
    %v10316 = vmul.f32 %v10273, %v10273
    %v10317 = vmul.f32 %v10274, %v10274
    %v10318 = vmul.f32 %v10275, %v10275
    %v10319 = vmul.f32 %v10276, %v10276
    %v10320 = vmul.f32 %v10277, %v10277
    %v10321 = vmul.f32 %v10278, %v10278
    %v10322 = vmul.f32 %v10279, %v10279
    %v10323 = vmul.f32 %v10280, %v10280
    %v10324 = vmul.f32 %v10281, %v10281
    %v10325 = vmul.f32 %v10282, %v10282
    %v10326 = vmul.f32 %v10283, %v10283
    %v10327 = vmul.f32 %v10284, %v10284
    %v10328 = vmul.f32 %v10285, %v10285
    %v10329 = vmul.f32 %v10286, %v10286
    %v10330 = vmul.f32 %v10287, %v10287
    %v10331 = vmul.f32 %v10288, %v10288
    %v10332 = vmul.f32 %v10289, %v10289
    %v10333 = vmul.f32 %v10290, %v10290
    %v10334 = vmul.f32 %v10291, %v10291
    %v10335 = vmul.f32 %v10292, %v10292
    %v10336 = vmul.f32 %v10293, %v10293
    %v10337 = vmul.f32 %v10294, %v10294
    %v10338 = vmul.f32 %v10295, %v10295
    %v10339 = vmul.f32 %v10296, %v10296
    %v10340 = vmul.f32 %v10297, %v10297
    %v10341 = vmul.f32 %v10298, %v10298
    %v10342 = vmul.f32 %v10299, %v10299
    %v10343 = vsel %vm4537, %v10311, 0.0
    %v10344 = vsel %vm4537, %v10312, 0.0
    %v10345 = vadd.f32 %v10343, %v10344
    %v10346 = vsel %vm4537, %v10313, 0.0
    %v10347 = vadd.f32 %v10345, %v10346
    %v10348 = vsel %vm4537, %v10314, 0.0
    %v10349 = vadd.f32 %v10347, %v10348
    %v10350 = vsel %vm4537, %v10315, 0.0
    %v10351 = vadd.f32 %v10349, %v10350
    %v10352 = vsel %vm4537, %v10316, 0.0
    %v10353 = vadd.f32 %v10351, %v10352
    %v10354 = vsel %vm4537, %v10317, 0.0
    %v10355 = vadd.f32 %v10353, %v10354
    %v10356 = vsel %vm4537, %v10318, 0.0
    %v10357 = vadd.f32 %v10355, %v10356
    %v10358 = vsel %vm4537, %v10319, 0.0
    %v10359 = vadd.f32 %v10357, %v10358
    %v10360 = vsel %vm4537, %v10320, 0.0
    %v10361 = vadd.f32 %v10359, %v10360
    %v10362 = vsel %vm4537, %v10321, 0.0
    %v10363 = vadd.f32 %v10361, %v10362
    %v10364 = vsel %vm4537, %v10322, 0.0
    %v10365 = vadd.f32 %v10363, %v10364
    %v10366 = vsel %vm4537, %v10323, 0.0
    %v10367 = vadd.f32 %v10365, %v10366
    %v10368 = vsel %vm4537, %v10324, 0.0
    %v10369 = vadd.f32 %v10367, %v10368
    %v10370 = vsel %vm4537, %v10325, 0.0
    %v10371 = vadd.f32 %v10369, %v10370
    %v10372 = vsel %vm4537, %v10326, 0.0
    %v10373 = vadd.f32 %v10371, %v10372
    %v10374 = vsel %vm4537, %v10327, 0.0
    %v10375 = vadd.f32 %v10373, %v10374
    %v10376 = vsel %vm4537, %v10328, 0.0
    %v10377 = vadd.f32 %v10375, %v10376
    %v10378 = vsel %vm4537, %v10329, 0.0
    %v10379 = vadd.f32 %v10377, %v10378
    %v10380 = vsel %vm4537, %v10330, 0.0
    %v10381 = vadd.f32 %v10379, %v10380
    %v10382 = vsel %vm4537, %v10331, 0.0
    %v10383 = vadd.f32 %v10381, %v10382
    %v10384 = vsel %vm4537, %v10332, 0.0
    %v10385 = vadd.f32 %v10383, %v10384
    %v10386 = vsel %vm4537, %v10333, 0.0
    %v10387 = vadd.f32 %v10385, %v10386
    %v10388 = vsel %vm4537, %v10334, 0.0
    %v10389 = vadd.f32 %v10387, %v10388
    %v10390 = vsel %vm4537, %v10335, 0.0
    %v10391 = vadd.f32 %v10389, %v10390
    %v10392 = vsel %vm4537, %v10336, 0.0
    %v10393 = vadd.f32 %v10391, %v10392
    %v10394 = vsel %vm4537, %v10337, 0.0
    %v10395 = vadd.f32 %v10393, %v10394
    %v10396 = vsel %vm4537, %v10338, 0.0
    %v10397 = vadd.f32 %v10395, %v10396
    %v10398 = vsel %vm4537, %v10339, 0.0
    %v10399 = vadd.f32 %v10397, %v10398
    %v10400 = vsel %vm4537, %v10340, 0.0
    %v10401 = vadd.f32 %v10399, %v10400
    %v10402 = vsel %vm4537, %v10341, 0.0
    %v10403 = vadd.f32 %v10401, %v10402
    %v10404 = vsel %vm4537, %v10342, 0.0
    %v10405 = vadd.f32 %v10403, %v10404
    %v10406 = vrot.slane %v10405, 4
    %v10407 = vadd.f32 %v10405, %v10406
    %v10408 = vrot.slane %v10407, 2
    %v10409 = vadd.f32 %v10407, %v10408
    %v10410 = vrot.slane %v10409, 1
    %v10411 = vadd.f32 %v10409, %v10410
    %v10412 = vmax.f32 %v10411, 1e-24
    %v10413 = vrsqrt.pop %v10412
    %v10414 = vmul.f32 %v10268, %v10413
    %v10415 = vmul.f32 %v10269, %v10413
    %v10416 = vmul.f32 %v10270, %v10413
    %v10417 = vmul.f32 %v10271, %v10413
    %v10418 = vmul.f32 %v10272, %v10413
    %v10419 = vmul.f32 %v10273, %v10413
    %v10420 = vmul.f32 %v10274, %v10413
    %v10421 = vmul.f32 %v10275, %v10413
    %v10422 = vmul.f32 %v10276, %v10413
    %v10423 = vmul.f32 %v10277, %v10413
    %v10424 = vmul.f32 %v10278, %v10413
    %v10425 = vmul.f32 %v10279, %v10413
    %v10426 = vmul.f32 %v10280, %v10413
    %v10427 = vmul.f32 %v10281, %v10413
    %v10428 = vmul.f32 %v10282, %v10413
    %v10429 = vmul.f32 %v10283, %v10413
    %v10430 = vmul.f32 %v10284, %v10413
    %v10431 = vmul.f32 %v10285, %v10413
    %v10432 = vmul.f32 %v10286, %v10413
    %v10433 = vmul.f32 %v10287, %v10413
    %v10434 = vmul.f32 %v10288, %v10413
    %v10435 = vmul.f32 %v10289, %v10413
    %v10436 = vmul.f32 %v10290, %v10413
    %v10437 = vmul.f32 %v10291, %v10413
    %v10438 = vmul.f32 %v10292, %v10413
    %v10439 = vmul.f32 %v10293, %v10413
    %v10440 = vmul.f32 %v10294, %v10413
    %v10441 = vmul.f32 %v10295, %v10413
    %v10442 = vmul.f32 %v10296, %v10413
    %v10443 = vmul.f32 %v10297, %v10413
    %v10444 = vmul.f32 %v10298, %v10413
    %v10445 = vmul.f32 %v10299, %v10413
    %10446 = vmatprep.subr.mxu0 0.0
    %10447 = vmatpush1.msra.mxu0 %v10414
    %10448 = vmatprep.subr.mxu0 0.0
    %10449 = vmatpush1.msra.mxu0 %v10415
    %10450 = vmatprep.subr.mxu0 0.0
    %10451 = vmatpush1.msra.mxu0 %v10416
    %10452 = vmatprep.subr.mxu0 0.0
    %10453 = vmatpush1.msra.mxu0 %v10417
    %10454 = vmatprep.subr.mxu0 0.0
    %10455 = vmatpush1.msra.mxu0 %v10418
    %10456 = vmatprep.subr.mxu0 0.0
    %10457 = vmatpush1.msra.mxu0 %v10419
    %10458 = vmatprep.subr.mxu0 0.0
    %10459 = vmatpush1.msra.mxu0 %v10420
    %10460 = vmatprep.subr.mxu0 0.0
    %10461 = vmatpush1.msra.mxu0 %v10421
    %10462 = vmatprep.subr.mxu0 0.0
    %10463 = vmatpush1.msra.mxu0 %v10422
    %10464 = vmatprep.subr.mxu0 0.0
    %10465 = vmatpush1.msra.mxu0 %v10423
    %10466 = vmatprep.subr.mxu0 0.0
    %10467 = vmatpush1.msra.mxu0 %v10424
    %10468 = vmatprep.subr.mxu0 0.0
    %10469 = vmatpush1.msra.mxu0 %v10425
    %10470 = vmatprep.subr.mxu0 0.0
    %10471 = vmatpush1.msra.mxu0 %v10426
    %10472 = vmatprep.subr.mxu0 0.0
    %10473 = vmatpush1.msra.mxu0 %v10427
    %10474 = vmatprep.subr.mxu0 0.0
    %10475 = vmatpush1.msra.mxu0 %v10428
    %10476 = vmatprep.subr.mxu0 0.0
    %10477 = vmatpush1.msra.mxu0 %v10429
    %10478 = vmatprep.subr.mxu0 0.0
    %10479 = vmatpush1.msra.mxu0 %v10430
    %10480 = vmatprep.subr.mxu0 0.0
    %10481 = vmatpush1.msra.mxu0 %v10431
    %10482 = vmatprep.subr.mxu0 0.0
    %10483 = vmatpush1.msra.mxu0 %v10432
    %10484 = vmatprep.subr.mxu0 0.0
    %10485 = vmatpush1.msra.mxu0 %v10433
    %10486 = vmatprep.subr.mxu0 0.0
    %10487 = vmatpush1.msra.mxu0 %v10434
    %10488 = vmatprep.subr.mxu0 0.0
    %10489 = vmatpush1.msra.mxu0 %v10435
    %10490 = vmatprep.subr.mxu0 0.0
    %10491 = vmatpush1.msra.mxu0 %v10436
    %10492 = vmatprep.subr.mxu0 0.0
    %10493 = vmatpush1.msra.mxu0 %v10437
    %10494 = vmatprep.subr.mxu0 0.0
    %10495 = vmatpush1.msra.mxu0 %v10438
    %10496 = vmatprep.subr.mxu0 0.0
    %10497 = vmatpush1.msra.mxu0 %v10439
    %10498 = vmatprep.subr.mxu0 0.0
    %10499 = vmatpush1.msra.mxu0 %v10440
    %10500 = vmatprep.subr.mxu0 0.0
    %10501 = vmatpush1.msra.mxu0 %v10441
    %10502 = vmatprep.subr.mxu0 0.0
    %10503 = vmatpush1.msra.mxu0 %v10442
    %10504 = vmatprep.subr.mxu0 0.0
    %10505 = vmatpush1.msra.mxu0 %v10443
    %10506 = vmatprep.subr.mxu0 0.0
    %10507 = vmatpush1.msra.mxu0 %v10444
    %10508 = vmatprep.subr.mxu0 0.0
    %10509 = vmatpush1.msra.mxu0 %v10445
    %10510 = vmatprep.mubr.f32.mxu0 %v10310
    %10511 = vmatmul.mubr.f32.gmra.mrb[0].mxu0 %v10309
    %v10512 = vpop.f32.mrb[0].mxu0
    %v10513 = vadd.f32 0.0, %v10512
    %v10514 = vpop.f32.mrb[0].mxu0
    %10515 = vdwg.mxu0
    %v10516 = vmax.f32 %v10513, -1.0
    %v10517 = vmin.f32 %v10516, 1.0
    %v10518 = vmul.f32 %v10517, %v10517
    %v10519 = vsub.f32 1.0, %v10518
    %v10520 = vmax.f32 %v10519, 0.0
    %v10521 = vrsqrt.pop %v10520
    %v10522 = vmul.f32 %v10520, %v10521
    %vm10523 = vcmp.eq.f32.partialorder %v10520, inf
    %v10524 = vsel %vm10523, %v10520, %v10522
    %vm10525 = vcmp.eq.f32.partialorder %v10520, 0.0
    %v10526 = vand.u32 %v10520, 2147483648
    %v10527 = vsel %vm10525, %v10526, %v10524
    %v10528 = vmul.f32 %v10517, 0.87758255
    %v10529 = vmul.f32 %v10527, 0.47942555
    %v10530 = vsub.f32 %v10528, %v10529
    %vm10531 = vcmp.gt.f32.partialorder %v10517, -0.87758255
    %v10532 = vsub.f32 %v10517, 0.23971277
    %v10533 = vsel %vm10531, %v10530, %v10532
    %v10534 = vlaneseq
    %v10535 = vand.u32 %v10534, 127
    %v10536 = vld [vmem:[%s3] sm:$0x3]
    %10537 = vset.pattern.permute.xlu0 0
    %10538 = vperm.xlu0 %10537, %v10536
    %v10539 = vpop.permute.xlu0 %10538
    %vm10540 = vcmp.eq.s32.totalorder %v10535, %v10539
    %v10541 = vsel %vm10540, 1, 0
    %v10542 = vcvt.s32.f32 %v10541
    %v10543 = vmul.f32 %v10542, %v10533
    %v10544 = vsub.f32 1.0, %v10542
    %v10545 = vmul.f32 %v10544, %v10517
    %v10546 = vadd.f32 %v10543, %v10545
    %v10547 = vmul.f32 %v10546, 30.0
    %vm10548 = vcmask 123904
    %10549 = vst.msk [vmem:[#allocation65] sm:$0x3] %vm10548, %v10547
    // Predicated region
    $region354: #{forward.1} parent=1 // pred_check
      _
    $region355: #{forward.1} parent=1 // pred_check_branch
      %10551 = sbr.rel (0) target = $region357
    $region356: #{forward.1} parent=1 // pred_region
      %s10553 = ssub.s32 64, 64
      %10554 = vsyncadd [#allocation4], %s10553
      %s10556 = sshll.u32 [#allocation64], 4
      %s10557 = int_to_ptr.vmem [resolvable:$true] %s10556
      %10559 = dma.vmem_to_hbm [thread:$0]  %s10557, 64, %s97, [#allocation4]
    $region357: #{forward.1} parent=1 // pred_fallthru
      _
    // Predicated region
    $region358: #{forward.1} parent=1 // pred_check
      _
    $region359: #{forward.1} parent=1 // pred_check_branch
      %10561 = sbr.rel (0) target = $region361
    $region360: #{forward.1} parent=1 // pred_region
      %s10563 = ssub.s32 32, 32
      %10564 = vsyncadd [#allocation66], %s10563
      %s10566 = sshll.u32 [#allocation65], 4
      %s10567 = int_to_ptr.vmem [resolvable:$true] %s10566
      %10569 = dma.vmem_to_hbm [thread:$0]  %s10567, 32, %s99, [#allocation66]
    $region361: #{forward.1} parent=1 // pred_fallthru
      _
    // Predicated region
    $region362: #{forward.1} parent=1 // pred_check
      _
    $region363: #{forward.1} parent=1 // pred_check_branch
      %10571 = sbr.rel (0) target = $region365
    $region364: #{forward.1} parent=1 // pred_region
      %10572 = dma.done [#allocation4], 64
    $region365: #{forward.1} parent=1 // pred_fallthru
      _
    // Predicated region
    $region366: #{forward.1} parent=1 // pred_check
      _
    $region367: #{forward.1} parent=1 // pred_check_branch
      %10574 = sbr.rel (0) target = $region369
    $region368: #{forward.1} parent=1 // pred_region
      %10575 = dma.done [#allocation66], 32
    $region369: #{forward.1} parent=1 // pred_fallthru
      _
    %10576 = vsyncpa [#allocation3], 1
    %10577 = vsyncpa [#allocation6], 1
    %10578 = vsyncpa [#allocation9], 1
    %10579 = vsyncpa [#allocation12], 1
    %10580 = vsyncpa [#allocation15], 1
    %10581 = vsyncpa [#allocation18], 1
    %10582 = vsyncpa [#allocation21], 1
    %10583 = vsyncpa [#allocation24], 1
    %10584 = vsyncpa [#allocation27], 1
    %10585 = vsyncpa [#allocation30], 1
    %10586 = vsyncpa [#allocation33], 1
    %10587 = vsyncpa [#allocation36], 1
    %10588 = vsyncpa [#allocation39], 1
    %10589 = vsyncpa [#allocation42], 1
    %10590 = vsyncpa [#allocation45], 1
    %10591 = vsyncpa [#allocation48], 1
    %10592 = vsyncpa [#allocation51], 1
    %10593 = vsyncpa [#allocation54], 1
    %10594 = vsyncpa [#allocation57], 1
    %10595 = vsyncpa [#allocation60], 1
    %10596 = vsyncpa [#allocation63], 1
    %10597 = vsyncpa [#allocation4], 1
    %10598 = vsyncpa [#allocation66], 1

</llo_original>
